<compile_context>
chip_gen: v6e
topology: v6e:2x2x1
jax: 0.10.0
libtpu: 0.0.40
codegen_flags: <defaults>
</compile_context>

<pallas_src>
import functools

import jax
import jax.numpy as jnp
from jax.experimental import pallas as pl
from jax.experimental.pallas import tpu as pltpu

LANES = 128  # packed output slab width (one full lane tile)


def _classifier_kernel(x_ref, w1_ref, b1_ref, w2_ref, out_ref, *, bneck, classes):
    # x_ref : (TN, C*HW)  flattened NCHW activations (native layout, no transpose)
    # w1_ref: (C*HW, 128) = [repeat(w1, HW)/HW | zeros]   (avg-pool folded in)
    # b1_ref: (1, 128)    = [b1 | zeros]
    # w2_ref: (128, 128)  rows [0,B): cols [B,B+K) = w2, cols [B+K,B+2K) = w2 (copy)
    # out_ref:(TN, 128)   = [features | logits | softmax | zeros]

    # avgpool + flatten + bottleneck Linear fused into ONE MXU pass: the 1/HW
    # scaling and the spatial sum live in the replicated weight, so x streams
    # straight from HBM in NCHW order.  f32 accumulation on the MXU.
    y = jnp.dot(x_ref[...], w1_ref[...],
                preferred_element_type=jnp.float32) + b1_ref[...]        # (TN, 128)

    # fc2 (bias-free): tiny second MXU pass over the full 128-lane slab.  Only
    # rows [0, B) of w2_ref are nonzero, so this is exactly features @ w2 and
    # lands the logits at lanes [B, B+K) plus a copy at [B+K, B+2K).
    z = jnp.dot(y, w2_ref[...], preferred_element_type=jnp.float32)      # (TN, 128)
    slab = y + z        # [features | logits | logits(copy) | zeros]

    # Softmax computed in place at its destination lanes [B+K, B+2K) under a
    # lane mask: no narrow (TN, K) intermediates, no concatenate, single
    # unmasked full-width store at the end.
    lane = jax.lax.broadcasted_iota(jnp.int32, slab.shape, 1)
    sm_lanes = (lane >= bneck + classes) & (lane < bneck + 2 * classes)
    masked = jnp.where(sm_lanes, slab, -jnp.inf)
    m = jnp.max(masked, axis=-1, keepdims=True)
    e = jnp.where(sm_lanes, jnp.exp(masked - m), 0.0)
    denom = jnp.sum(e, axis=-1, keepdims=True)
    sm = e / denom      # exact divide: kernel is mem-bound, VPU slack is free

    out_ref[...] = jnp.where(sm_lanes, sm, slab)


def classifier_forward(x_nchw, w1, b1, w2):
    """x_nchw: (N, C, H, W); w1: (C, B); b1: (B,); w2: (B, K).

    Weights are stored (in, out) -- the transpose of PyTorch's Linear.weight.
    Returns (features (N,B), outputs2 (N,K), softmax_outputs (N,K)).
    """
    N, C, H, W = x_nchw.shape
    HW = H * W
    CK = C * HW
    B = w1.shape[1]
    K = w2.shape[1]
    assert B + 2 * K <= LANES, "packed output slab does not fit in 128 lanes"

    # Keep bf16 activations in bf16 (halves the dominant HBM read); everything
    # else computes in f32.  MXU accumulation is always f32.
    compute_dtype = jnp.bfloat16 if x_nchw.dtype == jnp.bfloat16 else jnp.float32
    itemsize = 2 if compute_dtype == jnp.bfloat16 else 4

    # Free reshape of the contiguous NCHW tensor: no transpose, no pad copy.
    x_flat = x_nchw.reshape(N, CK).astype(compute_dtype)

    # Pool folded into the bottleneck weight: W_rep[c*HW + hw, b] = w1[c, b]/HW.
    w1f = w1.astype(jnp.float32)
    w_rep = jnp.zeros((CK, LANES), jnp.float32)
    w_rep = w_rep.at[:, :B].set(jnp.repeat(w1f / HW, HW, axis=0)).astype(compute_dtype)
    b_pad = jnp.zeros((1, LANES), jnp.float32).at[0, :B].set(b1.astype(jnp.float32))
    w2f = w2.astype(jnp.float32)
    w2_pad = (jnp.zeros((LANES, LANES), jnp.float32)
              .at[:B, B:B + K].set(w2f)            # logits lanes
              .at[:B, B + K:B + 2 * K].set(w2f))   # softmax destination lanes

    # --- batch-tile selection (per-generation) -----------------------------
    # v5e / v7x: cap at 128 rows (double-buffered x block stays inside v7x's
    # 64 MiB VMEM; v5e just needs the scoped limit raised).  v6e (128 MiB
    # VMEM) can take 256-row tiles to amortize per-grid-step overhead.
    tn_cap, vmem_budget = 128, 40 << 20
    try:
        if "v6" in jax.devices()[0].device_kind.lower():
            tn_cap, vmem_budget = 256, 96 << 20
    except Exception:
        pass

    # Aim for >=2 grid steps so dimension_semantics=("parallel",) gives both
    # v7x TensorCores work; tiny N falls back to a single 8-row tile.
    target = max(8, pl.cdiv(pl.cdiv(N, 2), 8) * 8) if N > 8 else 8
    TN = min(tn_cap, target)

    def _tile_bytes(tn):
        return (2 * tn * CK * itemsize          # x block (double-buffered)
                + 2 * CK * LANES * itemsize     # replicated weight
                + 2 * LANES * LANES * 4         # w2_pad
                + 2 * LANES * 4                 # bias
                + 2 * tn * LANES * 4)           # output slab (double-buffered)

    while TN > 8 and _tile_bytes(TN) > vmem_budget:
        TN = max(8, (TN // 2) // 8 * 8)
    vmem_limit = int(max(32 << 20, min(_tile_bytes(TN) + (4 << 20), 110 << 20)))

    kernel = functools.partial(_classifier_kernel, bneck=B, classes=K)

    slab = pl.pallas_call(
        kernel,
        out_shape=jax.ShapeDtypeStruct((N, LANES), jnp.float32),
        grid=(pl.cdiv(N, TN),),   # partial last block handled by masked stores
        in_specs=[
            pl.BlockSpec((TN, CK), lambda i: (i, 0)),
            pl.BlockSpec((CK, LANES), lambda i: (0, 0)),
            pl.BlockSpec((1, LANES), lambda i: (0, 0)),
            pl.BlockSpec((LANES, LANES), lambda i: (0, 0)),
        ],
        out_specs=pl.BlockSpec((TN, LANES), lambda i: (i, 0)),
        compiler_params=pltpu.CompilerParams(
            dimension_semantics=("parallel",),
            vmem_limit_bytes=vmem_limit),
    )(x_flat, w_rep, b_pad, w2_pad)

    features = slab[:, :B]
    outputs2 = slab[:, B:B + K]
    softmax_outputs = slab[:, B + K:B + 2 * K]
    return features, outputs2, softmax_outputs


if __name__ == "__main__":
    # cfg: base_output_num=256, bottleneck_dim=32, class_num=8, setting='UDA'
    # (NIUDA-only fc1/mask/centroid and cfg.temp are unused by forward()).
    N, C, H, W = 2, 256, 8, 8
    BNECK, CLASSES = 32, 8

    key = jax.random.PRNGKey(0)
    kx, kw1, kb1, kw2 = jax.random.split(key, 4)

    x = jax.random.normal(kx, (N, C, H, W), dtype=jnp.float32)
    # PyTorch Linear stores weight as (out, in); we keep (in, out) for matmul.
    w1 = jax.random.normal(kw1, (C, BNECK), dtype=jnp.float32) * 0.05
    b1 = jax.random.normal(kb1, (BNECK,), dtype=jnp.float32) * 0.05
    w2 = jax.random.normal(kw2, (BNECK, CLASSES), dtype=jnp.float32) * 0.05

    fwd = jax.jit(classifier_forward)
    features, outputs2, softmax_outputs = jax.block_until_ready(
        fwd(x, w1, b1, w2))

    # Sanity check vs pure-JAX reference (pool -> linear -> linear -> softmax).
    pooled_ref = jnp.mean(x.reshape(N, C, H * W), axis=-1)
    feat_ref = pooled_ref @ w1 + b1
    out2_ref = feat_ref @ w2
    sm_ref = jax.nn.softmax(out2_ref, axis=1)

    # Pool is fused into a K=C*HW MXU contraction -> small fp reassociation /
    # matmul-precision differences vs the two-stage reference.
    assert jnp.allclose(features, feat_ref, atol=2e-3, rtol=2e-3), "features mismatch"
    assert jnp.allclose(outputs2, out2_ref, atol=2e-3, rtol=2e-3), "outputs2 mismatch"
    assert jnp.allclose(softmax_outputs, sm_ref, atol=2e-3, rtol=2e-3), "softmax mismatch"

    print("KERNEL_OK")
</pallas_src>

<mosaic_0001>
module attributes {stable_mosaic.version = 11 : i64} {
  func.func @_classifier_kernel(%arg0: i32, %arg1: memref<8x16384xf32, #tpu.memory_space<vmem>>, %arg2: memref<16384x128xf32, #tpu.memory_space<vmem>>, %arg3: memref<1x128xf32, #tpu.memory_space<vmem>>, %arg4: memref<128x128xf32, #tpu.memory_space<vmem>>, %arg5: memref<8x128xf32, #tpu.memory_space<vmem>>) attributes {dimension_semantics = [#tpu.dimension_semantics<parallel>], iteration_bounds = array<i64: 1>, scalar_prefetch = 0 : i64, scratch_operands = 0 : i64, tpu.core_type = #tpu.core_type<tc>, window_params = [{transform_indices = @transform_0, window_bounds = array<i64: 8, 16384>}, {pipeline_mode = #tpu.pipeline_mode<synchronous>, transform_indices = @transform_1, window_bounds = array<i64: 16384, 128>}, {pipeline_mode = #tpu.pipeline_mode<synchronous>, transform_indices = @transform_2, window_bounds = array<i64: 1, 128>}, {pipeline_mode = #tpu.pipeline_mode<synchronous>, transform_indices = @transform_3, window_bounds = array<i64: 128, 128>}, {transform_indices = @transform_4, window_bounds = array<i64: 8, 128>}]} {
    %c0 = arith.constant 0 : index
    %c0_0 = arith.constant 0 : index
    %0 = vector.load %arg1[%c0, %c0_0] : memref<8x16384xf32, #tpu.memory_space<vmem>>, vector<8x16384xf32>
    %c0_1 = arith.constant 0 : index
    %c0_2 = arith.constant 0 : index
    %1 = vector.load %arg2[%c0_1, %c0_2] : memref<16384x128xf32, #tpu.memory_space<vmem>>, vector<16384x128xf32>
    %cst = arith.constant dense<0.000000e+00> : vector<8x128xf32>
    %2 = tpu.matmul %0, %1, %cst {dimension_numbers = #tpu.dot_dimension_numbers<[1], [0], [0], [1], [0, 0, 1, 1], [], []>} : vector<8x16384xf32>, vector<16384x128xf32>, vector<8x128xf32> -> vector<8x128xf32>
    %c0_3 = arith.constant 0 : index
    %c0_4 = arith.constant 0 : index
    %3 = vector.load %arg3[%c0_3, %c0_4] : memref<1x128xf32, #tpu.memory_space<vmem>>, vector<1x128xf32>
    %4 = vector.broadcast %3 : vector<1x128xf32> to vector<8x128xf32>
    %5 = arith.addf %2, %4 : vector<8x128xf32>
    %c0_5 = arith.constant 0 : index
    %c0_6 = arith.constant 0 : index
    %6 = vector.load %arg4[%c0_5, %c0_6] : memref<128x128xf32, #tpu.memory_space<vmem>>, vector<128x128xf32>
    %cst_7 = arith.constant dense<0.000000e+00> : vector<8x128xf32>
    %7 = tpu.matmul %5, %6, %cst_7 {dimension_numbers = #tpu.dot_dimension_numbers<[1], [0], [0], [1], [0, 0, 1, 1], [], []>} : vector<8x128xf32>, vector<128x128xf32>, vector<8x128xf32> -> vector<8x128xf32>
    %8 = arith.addf %5, %7 : vector<8x128xf32>
    %9 = tpu.iota {dimensions = array<i32: 1>} : vector<8x128xi32>
    %c40_i32 = arith.constant 40 : i32
    %10 = vector.broadcast %c40_i32 : i32 to vector<8x128xi32>
    %11 = arith.cmpi sge, %9, %10 : vector<8x128xi32>
    %c48_i32 = arith.constant 48 : i32
    %12 = vector.broadcast %c48_i32 : i32 to vector<8x128xi32>
    %13 = arith.cmpi slt, %9, %12 : vector<8x128xi32>
    %14 = arith.andi %11, %13 : vector<8x128xi1>
    %cst_8 = arith.constant 0xFF800000 : f32
    %15 = vector.broadcast %cst_8 : f32 to vector<8x128xf32>
    %16 = arith.select %14, %8, %15 : vector<8x128xi1>, vector<8x128xf32>
    %cst_9 = arith.constant dense<0xFF800000> : vector<8xf32>
    %17 = vector.multi_reduction <maximumf>, %16, %cst_9 [1] : vector<8x128xf32> to vector<8xf32>
    %18 = vector.shape_cast %17 : vector<8xf32> to vector<8x1xf32>
    %19 = vector.broadcast %18 : vector<8x1xf32> to vector<8x128xf32>
    %20 = arith.subf %16, %19 : vector<8x128xf32>
    %21 = math.exp %20 : vector<8x128xf32>
    %cst_10 = arith.constant 0.000000e+00 : f32
    %22 = vector.broadcast %cst_10 : f32 to vector<8x128xf32>
    %23 = arith.select %14, %21, %22 : vector<8x128xi1>, vector<8x128xf32>
    %cst_11 = arith.constant dense<0.000000e+00> : vector<8xf32>
    %24 = vector.multi_reduction <add>, %23, %cst_11 [1] : vector<8x128xf32> to vector<8xf32>
    %25 = vector.shape_cast %24 : vector<8xf32> to vector<8x1xf32>
    %26 = vector.broadcast %25 : vector<8x1xf32> to vector<8x128xf32>
    %27 = arith.divf %23, %26 : vector<8x128xf32>
    %28 = arith.select %14, %27, %8 : vector<8x128xi1>, vector<8x128xf32>
    %c0_12 = arith.constant 0 : index
    %c0_13 = arith.constant 0 : index
    %29 = vector.load %arg5[%c0_12, %c0_13] : memref<8x128xf32, #tpu.memory_space<vmem>>, vector<8x128xf32>
    tpu.vector_store %arg5[%c0_12, %c0_13], %28 {strides = array<i32>} : memref<8x128xf32, #tpu.memory_space<vmem>>, vector<8x128xf32>,
    return
  }
  func.func @transform_0(%arg0: i32) -> (i32, i32) {
    %c0_i32 = arith.constant 0 : i32
    %c0_i32_0 = arith.constant 0 : i32
    return %arg0, %c0_i32 : i32, i32
  }
  func.func @transform_1(%arg0: i32) -> (i32, i32) {
    %c0_i32 = arith.constant 0 : i32
    %c0_i32_0 = arith.constant 0 : i32
    %c0_i32_1 = arith.constant 0 : i32
    return %c0_i32, %c0_i32_0 : i32, i32
  }
  func.func @transform_2(%arg0: i32) -> (i32, i32) {
    %c0_i32 = arith.constant 0 : i32
    %c0_i32_0 = arith.constant 0 : i32
    %c0_i32_1 = arith.constant 0 : i32
    return %c0_i32, %c0_i32_0 : i32, i32
  }
  func.func @transform_3(%arg0: i32) -> (i32, i32) {
    %c0_i32 = arith.constant 0 : i32
    %c0_i32_0 = arith.constant 0 : i32
    %c0_i32_1 = arith.constant 0 : i32
    return %c0_i32, %c0_i32_0 : i32, i32
  }
  func.func @transform_4(%arg0: i32) -> (i32, i32) {
    %c0_i32 = arith.constant 0 : i32
    %c0_i32_0 = arith.constant 0 : i32
    return %arg0, %c0_i32 : i32, i32
  }
}

</mosaic_0001>

<llo_original>
// kernel: classifier_forward.1
$region0: #{classifier_forward.1}
  #allocation0 [shape = 'u32[]', space=smem, size = 0x4, offset = 0x4, fixed_abs, tag = 'smem constant byte address 0x4 - core index']
  #allocation1 [shape = 'u32[144,128]{1,0:T(1,128)}', space=vmem, size = 0x12000, scoped, tag = 'internal scratch']
  %s0 = inlined_call_operand.vmem [shape: f32[2,16384], index: 0, kind: input, shape index: {}]
  %s1 = inlined_call_operand.vmem [shape: f32[16384,128], index: 1, kind: input, shape index: {}]
  %s2 = inlined_call_operand.vmem [shape: f32[1,128], index: 2, kind: input, shape index: {}]
  %s3 = inlined_call_operand.vmem [shape: f32[128,128], index: 3, kind: input, shape index: {}]
  %s4 = inlined_call_operand.vmem [shape: f32[2,128], index: 4, kind: output, shape index: {}]
  %s5 = sld [smem:[#allocation0]]
  $region56: #{classifier_forward.1} parent=0
    _
  %s7 = ssub.s32 1, %s5
  %s8 = scalar_select 0, %s7, %s5
  $region1: #{classifier_forward.1} parent=0
    #allocation2 [shape = 'u8[4096]{0}', space=vmem, size = 0x1000, scoped, tag = 'output window, operand 0, single buffered']
    // Predicated region
    $region2: #{classifier_forward.1} parent=1 // pred_check
      _
    $region3: #{classifier_forward.1} parent=1 // pred_check_branch
      %10 = sbr.rel (0) target = $region5
    $region4: #{classifier_forward.1} parent=1 // pred_region
      _
    $region5: #{classifier_forward.1} parent=1 // pred_fallthru
      _
    // Predicated region
    $region6: #{classifier_forward.1} parent=1 // pred_check
      _
    $region7: #{classifier_forward.1} parent=1 // pred_check_branch
      %12 = sbr.rel (0) target = $region9
    $region8: #{classifier_forward.1} parent=1 // pred_region
      _
    $region9: #{classifier_forward.1} parent=1 // pred_fallthru
      _
    // Predicated region
    $region10: #{classifier_forward.1} parent=1 // pred_check
      _
    $region11: #{classifier_forward.1} parent=1 // pred_check_branch
      %14 = sbr.rel (0) target = $region13
    $region12: #{classifier_forward.1} parent=1 // pred_region
      _
    $region13: #{classifier_forward.1} parent=1 // pred_fallthru
      _
    // Predicated region
    $region14: #{classifier_forward.1} parent=1 // pred_check
      _
    $region15: #{classifier_forward.1} parent=1 // pred_check_branch
      %16 = sbr.rel (0) target = $region17
    $region16: #{classifier_forward.1} parent=1 // pred_region
      _
    $region17: #{classifier_forward.1} parent=1 // pred_fallthru
      _
    %v17 = vld [vmem:[%s0] sm:$0xff]
    %v18 = vld [vmem:[%s0 + $0x8] sm:$0xff]
    %v19 = vld [vmem:[%s0 + $0x10] sm:$0xff]
    %v20 = vld [vmem:[%s0 + $0x18] sm:$0xff]
    %v21 = vld [vmem:[%s0 + $0x20] sm:$0xff]
    %v22 = vld [vmem:[%s0 + $0x28] sm:$0xff]
    %v23 = vld [vmem:[%s0 + $0x30] sm:$0xff]
    %v24 = vld [vmem:[%s0 + $0x38] sm:$0xff]
    %v25 = vld [vmem:[%s0 + $0x40] sm:$0xff]
    %v26 = vld [vmem:[%s0 + $0x48] sm:$0xff]
    %v27 = vld [vmem:[%s0 + $0x50] sm:$0xff]
    %v28 = vld [vmem:[%s0 + $0x58] sm:$0xff]
    %v29 = vld [vmem:[%s0 + $0x60] sm:$0xff]
    %v30 = vld [vmem:[%s0 + $0x68] sm:$0xff]
    %v31 = vld [vmem:[%s0 + $0x70] sm:$0xff]
    %v32 = vld [vmem:[%s0 + $0x78] sm:$0xff]
    %v33 = vld [vmem:[%s0 + $0x80] sm:$0xff]
    %v34 = vld [vmem:[%s0 + $0x88] sm:$0xff]
    %v35 = vld [vmem:[%s0 + $0x90] sm:$0xff]
    %v36 = vld [vmem:[%s0 + $0x98] sm:$0xff]
    %v37 = vld [vmem:[%s0 + $0xa0] sm:$0xff]
    %v38 = vld [vmem:[%s0 + $0xa8] sm:$0xff]
    %v39 = vld [vmem:[%s0 + $0xb0] sm:$0xff]
    %v40 = vld [vmem:[%s0 + $0xb8] sm:$0xff]
    %v41 = vld [vmem:[%s0 + $0xc0] sm:$0xff]
    %v42 = vld [vmem:[%s0 + $0xc8] sm:$0xff]
    %v43 = vld [vmem:[%s0 + $0xd0] sm:$0xff]
    %v44 = vld [vmem:[%s0 + $0xd8] sm:$0xff]
    %v45 = vld [vmem:[%s0 + $0xe0] sm:$0xff]
    %v46 = vld [vmem:[%s0 + $0xe8] sm:$0xff]
    %v47 = vld [vmem:[%s0 + $0xf0] sm:$0xff]
    %v48 = vld [vmem:[%s0 + $0xf8] sm:$0xff]
    %v49 = vld [vmem:[%s0 + $0x100] sm:$0xff]
    %v50 = vld [vmem:[%s0 + $0x108] sm:$0xff]
    %v51 = vld [vmem:[%s0 + $0x110] sm:$0xff]
    %v52 = vld [vmem:[%s0 + $0x118] sm:$0xff]
    %v53 = vld [vmem:[%s0 + $0x120] sm:$0xff]
    %v54 = vld [vmem:[%s0 + $0x128] sm:$0xff]
    %v55 = vld [vmem:[%s0 + $0x130] sm:$0xff]
    %v56 = vld [vmem:[%s0 + $0x138] sm:$0xff]
    %v57 = vld [vmem:[%s0 + $0x140] sm:$0xff]
    %v58 = vld [vmem:[%s0 + $0x148] sm:$0xff]
    %v59 = vld [vmem:[%s0 + $0x150] sm:$0xff]
    %v60 = vld [vmem:[%s0 + $0x158] sm:$0xff]
    %v61 = vld [vmem:[%s0 + $0x160] sm:$0xff]
    %v62 = vld [vmem:[%s0 + $0x168] sm:$0xff]
    %v63 = vld [vmem:[%s0 + $0x170] sm:$0xff]
    %v64 = vld [vmem:[%s0 + $0x178] sm:$0xff]
    %v65 = vld [vmem:[%s0 + $0x180] sm:$0xff]
    %v66 = vld [vmem:[%s0 + $0x188] sm:$0xff]
    %v67 = vld [vmem:[%s0 + $0x190] sm:$0xff]
    %v68 = vld [vmem:[%s0 + $0x198] sm:$0xff]
    %v69 = vld [vmem:[%s0 + $0x1a0] sm:$0xff]
    %v70 = vld [vmem:[%s0 + $0x1a8] sm:$0xff]
    %v71 = vld [vmem:[%s0 + $0x1b0] sm:$0xff]
    %v72 = vld [vmem:[%s0 + $0x1b8] sm:$0xff]
    %v73 = vld [vmem:[%s0 + $0x1c0] sm:$0xff]
    %v74 = vld [vmem:[%s0 + $0x1c8] sm:$0xff]
    %v75 = vld [vmem:[%s0 + $0x1d0] sm:$0xff]
    %v76 = vld [vmem:[%s0 + $0x1d8] sm:$0xff]
    %v77 = vld [vmem:[%s0 + $0x1e0] sm:$0xff]
    %v78 = vld [vmem:[%s0 + $0x1e8] sm:$0xff]
    %v79 = vld [vmem:[%s0 + $0x1f0] sm:$0xff]
    %v80 = vld [vmem:[%s0 + $0x1f8] sm:$0xff]
    %v81 = vld [vmem:[%s0 + $0x200] sm:$0xff]
    %v82 = vld [vmem:[%s0 + $0x208] sm:$0xff]
    %v83 = vld [vmem:[%s0 + $0x210] sm:$0xff]
    %v84 = vld [vmem:[%s0 + $0x218] sm:$0xff]
    %v85 = vld [vmem:[%s0 + $0x220] sm:$0xff]
    %v86 = vld [vmem:[%s0 + $0x228] sm:$0xff]
    %v87 = vld [vmem:[%s0 + $0x230] sm:$0xff]
    %v88 = vld [vmem:[%s0 + $0x238] sm:$0xff]
    %v89 = vld [vmem:[%s0 + $0x240] sm:$0xff]
    %v90 = vld [vmem:[%s0 + $0x248] sm:$0xff]
    %v91 = vld [vmem:[%s0 + $0x250] sm:$0xff]
    %v92 = vld [vmem:[%s0 + $0x258] sm:$0xff]
    %v93 = vld [vmem:[%s0 + $0x260] sm:$0xff]
    %v94 = vld [vmem:[%s0 + $0x268] sm:$0xff]
    %v95 = vld [vmem:[%s0 + $0x270] sm:$0xff]
    %v96 = vld [vmem:[%s0 + $0x278] sm:$0xff]
    %v97 = vld [vmem:[%s0 + $0x280] sm:$0xff]
    %v98 = vld [vmem:[%s0 + $0x288] sm:$0xff]
    %v99 = vld [vmem:[%s0 + $0x290] sm:$0xff]
    %v100 = vld [vmem:[%s0 + $0x298] sm:$0xff]
    %v101 = vld [vmem:[%s0 + $0x2a0] sm:$0xff]
    %v102 = vld [vmem:[%s0 + $0x2a8] sm:$0xff]
    %v103 = vld [vmem:[%s0 + $0x2b0] sm:$0xff]
    %v104 = vld [vmem:[%s0 + $0x2b8] sm:$0xff]
    %v105 = vld [vmem:[%s0 + $0x2c0] sm:$0xff]
    %v106 = vld [vmem:[%s0 + $0x2c8] sm:$0xff]
    %v107 = vld [vmem:[%s0 + $0x2d0] sm:$0xff]
    %v108 = vld [vmem:[%s0 + $0x2d8] sm:$0xff]
    %v109 = vld [vmem:[%s0 + $0x2e0] sm:$0xff]
    %v110 = vld [vmem:[%s0 + $0x2e8] sm:$0xff]
    %v111 = vld [vmem:[%s0 + $0x2f0] sm:$0xff]
    %v112 = vld [vmem:[%s0 + $0x2f8] sm:$0xff]
    %v113 = vld [vmem:[%s0 + $0x300] sm:$0xff]
    %v114 = vld [vmem:[%s0 + $0x308] sm:$0xff]
    %v115 = vld [vmem:[%s0 + $0x310] sm:$0xff]
    %v116 = vld [vmem:[%s0 + $0x318] sm:$0xff]
    %v117 = vld [vmem:[%s0 + $0x320] sm:$0xff]
    %v118 = vld [vmem:[%s0 + $0x328] sm:$0xff]
    %v119 = vld [vmem:[%s0 + $0x330] sm:$0xff]
    %v120 = vld [vmem:[%s0 + $0x338] sm:$0xff]
    %v121 = vld [vmem:[%s0 + $0x340] sm:$0xff]
    %v122 = vld [vmem:[%s0 + $0x348] sm:$0xff]
    %v123 = vld [vmem:[%s0 + $0x350] sm:$0xff]
    %v124 = vld [vmem:[%s0 + $0x358] sm:$0xff]
    %v125 = vld [vmem:[%s0 + $0x360] sm:$0xff]
    %v126 = vld [vmem:[%s0 + $0x368] sm:$0xff]
    %v127 = vld [vmem:[%s0 + $0x370] sm:$0xff]
    %v128 = vld [vmem:[%s0 + $0x378] sm:$0xff]
    %v129 = vld [vmem:[%s0 + $0x380] sm:$0xff]
    %v130 = vld [vmem:[%s0 + $0x388] sm:$0xff]
    %v131 = vld [vmem:[%s0 + $0x390] sm:$0xff]
    %v132 = vld [vmem:[%s0 + $0x398] sm:$0xff]
    %v133 = vld [vmem:[%s0 + $0x3a0] sm:$0xff]
    %v134 = vld [vmem:[%s0 + $0x3a8] sm:$0xff]
    %v135 = vld [vmem:[%s0 + $0x3b0] sm:$0xff]
    %v136 = vld [vmem:[%s0 + $0x3b8] sm:$0xff]
    %v137 = vld [vmem:[%s0 + $0x3c0] sm:$0xff]
    %v138 = vld [vmem:[%s0 + $0x3c8] sm:$0xff]
    %v139 = vld [vmem:[%s0 + $0x3d0] sm:$0xff]
    %v140 = vld [vmem:[%s0 + $0x3d8] sm:$0xff]
    %v141 = vld [vmem:[%s0 + $0x3e0] sm:$0xff]
    %v142 = vld [vmem:[%s0 + $0x3e8] sm:$0xff]
    %v143 = vld [vmem:[%s0 + $0x3f0] sm:$0xff]
    %v144 = vld [vmem:[%s0 + $0x3f8] sm:$0xff]
    %v145 = vld [vmem:[%s1] sm:$0xff]
    %v146 = vld [vmem:[%s1 + $0x8] sm:$0xff]
    %v147 = vld [vmem:[%s1 + $0x10] sm:$0xff]
    %v148 = vld [vmem:[%s1 + $0x18] sm:$0xff]
    %v149 = vld [vmem:[%s1 + $0x20] sm:$0xff]
    %v150 = vld [vmem:[%s1 + $0x28] sm:$0xff]
    %v151 = vld [vmem:[%s1 + $0x30] sm:$0xff]
    %v152 = vld [vmem:[%s1 + $0x38] sm:$0xff]
    %v153 = vld [vmem:[%s1 + $0x40] sm:$0xff]
    %v154 = vld [vmem:[%s1 + $0x48] sm:$0xff]
    %v155 = vld [vmem:[%s1 + $0x50] sm:$0xff]
    %v156 = vld [vmem:[%s1 + $0x58] sm:$0xff]
    %v157 = vld [vmem:[%s1 + $0x60] sm:$0xff]
    %v158 = vld [vmem:[%s1 + $0x68] sm:$0xff]
    %v159 = vld [vmem:[%s1 + $0x70] sm:$0xff]
    %v160 = vld [vmem:[%s1 + $0x78] sm:$0xff]
    %v161 = vld [vmem:[%s1 + $0x80] sm:$0xff]
    %v162 = vld [vmem:[%s1 + $0x88] sm:$0xff]
    %v163 = vld [vmem:[%s1 + $0x90] sm:$0xff]
    %v164 = vld [vmem:[%s1 + $0x98] sm:$0xff]
    %v165 = vld [vmem:[%s1 + $0xa0] sm:$0xff]
    %v166 = vld [vmem:[%s1 + $0xa8] sm:$0xff]
    %v167 = vld [vmem:[%s1 + $0xb0] sm:$0xff]
    %v168 = vld [vmem:[%s1 + $0xb8] sm:$0xff]
    %v169 = vld [vmem:[%s1 + $0xc0] sm:$0xff]
    %v170 = vld [vmem:[%s1 + $0xc8] sm:$0xff]
    %v171 = vld [vmem:[%s1 + $0xd0] sm:$0xff]
    %v172 = vld [vmem:[%s1 + $0xd8] sm:$0xff]
    %v173 = vld [vmem:[%s1 + $0xe0] sm:$0xff]
    %v174 = vld [vmem:[%s1 + $0xe8] sm:$0xff]
    %v175 = vld [vmem:[%s1 + $0xf0] sm:$0xff]
    %v176 = vld [vmem:[%s1 + $0xf8] sm:$0xff]
    %v177 = vld [vmem:[%s1 + $0x100] sm:$0xff]
    %v178 = vld [vmem:[%s1 + $0x108] sm:$0xff]
    %v179 = vld [vmem:[%s1 + $0x110] sm:$0xff]
    %v180 = vld [vmem:[%s1 + $0x118] sm:$0xff]
    %v181 = vld [vmem:[%s1 + $0x120] sm:$0xff]
    %v182 = vld [vmem:[%s1 + $0x128] sm:$0xff]
    %v183 = vld [vmem:[%s1 + $0x130] sm:$0xff]
    %v184 = vld [vmem:[%s1 + $0x138] sm:$0xff]
    %v185 = vld [vmem:[%s1 + $0x140] sm:$0xff]
    %v186 = vld [vmem:[%s1 + $0x148] sm:$0xff]
    %v187 = vld [vmem:[%s1 + $0x150] sm:$0xff]
    %v188 = vld [vmem:[%s1 + $0x158] sm:$0xff]
    %v189 = vld [vmem:[%s1 + $0x160] sm:$0xff]
    %v190 = vld [vmem:[%s1 + $0x168] sm:$0xff]
    %v191 = vld [vmem:[%s1 + $0x170] sm:$0xff]
    %v192 = vld [vmem:[%s1 + $0x178] sm:$0xff]
    %v193 = vld [vmem:[%s1 + $0x180] sm:$0xff]
    %v194 = vld [vmem:[%s1 + $0x188] sm:$0xff]
    %v195 = vld [vmem:[%s1 + $0x190] sm:$0xff]
    %v196 = vld [vmem:[%s1 + $0x198] sm:$0xff]
    %v197 = vld [vmem:[%s1 + $0x1a0] sm:$0xff]
    %v198 = vld [vmem:[%s1 + $0x1a8] sm:$0xff]
    %v199 = vld [vmem:[%s1 + $0x1b0] sm:$0xff]
    %v200 = vld [vmem:[%s1 + $0x1b8] sm:$0xff]
    %v201 = vld [vmem:[%s1 + $0x1c0] sm:$0xff]
    %v202 = vld [vmem:[%s1 + $0x1c8] sm:$0xff]
    %v203 = vld [vmem:[%s1 + $0x1d0] sm:$0xff]
    %v204 = vld [vmem:[%s1 + $0x1d8] sm:$0xff]
    %v205 = vld [vmem:[%s1 + $0x1e0] sm:$0xff]
    %v206 = vld [vmem:[%s1 + $0x1e8] sm:$0xff]
    %v207 = vld [vmem:[%s1 + $0x1f0] sm:$0xff]
    %v208 = vld [vmem:[%s1 + $0x1f8] sm:$0xff]
    %v209 = vld [vmem:[%s1 + $0x200] sm:$0xff]
    %v210 = vld [vmem:[%s1 + $0x208] sm:$0xff]
    %v211 = vld [vmem:[%s1 + $0x210] sm:$0xff]
    %v212 = vld [vmem:[%s1 + $0x218] sm:$0xff]
    %v213 = vld [vmem:[%s1 + $0x220] sm:$0xff]
    %v214 = vld [vmem:[%s1 + $0x228] sm:$0xff]
    %v215 = vld [vmem:[%s1 + $0x230] sm:$0xff]
    %v216 = vld [vmem:[%s1 + $0x238] sm:$0xff]
    %v217 = vld [vmem:[%s1 + $0x240] sm:$0xff]
    %v218 = vld [vmem:[%s1 + $0x248] sm:$0xff]
    %v219 = vld [vmem:[%s1 + $0x250] sm:$0xff]
    %v220 = vld [vmem:[%s1 + $0x258] sm:$0xff]
    %v221 = vld [vmem:[%s1 + $0x260] sm:$0xff]
    %v222 = vld [vmem:[%s1 + $0x268] sm:$0xff]
    %v223 = vld [vmem:[%s1 + $0x270] sm:$0xff]
    %v224 = vld [vmem:[%s1 + $0x278] sm:$0xff]
    %v225 = vld [vmem:[%s1 + $0x280] sm:$0xff]
    %v226 = vld [vmem:[%s1 + $0x288] sm:$0xff]
    %v227 = vld [vmem:[%s1 + $0x290] sm:$0xff]
    %v228 = vld [vmem:[%s1 + $0x298] sm:$0xff]
    %v229 = vld [vmem:[%s1 + $0x2a0] sm:$0xff]
    %v230 = vld [vmem:[%s1 + $0x2a8] sm:$0xff]
    %v231 = vld [vmem:[%s1 + $0x2b0] sm:$0xff]
    %v232 = vld [vmem:[%s1 + $0x2b8] sm:$0xff]
    %v233 = vld [vmem:[%s1 + $0x2c0] sm:$0xff]
    %v234 = vld [vmem:[%s1 + $0x2c8] sm:$0xff]
    %v235 = vld [vmem:[%s1 + $0x2d0] sm:$0xff]
    %v236 = vld [vmem:[%s1 + $0x2d8] sm:$0xff]
    %v237 = vld [vmem:[%s1 + $0x2e0] sm:$0xff]
    %v238 = vld [vmem:[%s1 + $0x2e8] sm:$0xff]
    %v239 = vld [vmem:[%s1 + $0x2f0] sm:$0xff]
    %v240 = vld [vmem:[%s1 + $0x2f8] sm:$0xff]
    %v241 = vld [vmem:[%s1 + $0x300] sm:$0xff]
    %v242 = vld [vmem:[%s1 + $0x308] sm:$0xff]
    %v243 = vld [vmem:[%s1 + $0x310] sm:$0xff]
    %v244 = vld [vmem:[%s1 + $0x318] sm:$0xff]
    %v245 = vld [vmem:[%s1 + $0x320] sm:$0xff]
    %v246 = vld [vmem:[%s1 + $0x328] sm:$0xff]
    %v247 = vld [vmem:[%s1 + $0x330] sm:$0xff]
    %v248 = vld [vmem:[%s1 + $0x338] sm:$0xff]
    %v249 = vld [vmem:[%s1 + $0x340] sm:$0xff]
    %v250 = vld [vmem:[%s1 + $0x348] sm:$0xff]
    %v251 = vld [vmem:[%s1 + $0x350] sm:$0xff]
    %v252 = vld [vmem:[%s1 + $0x358] sm:$0xff]
    %v253 = vld [vmem:[%s1 + $0x360] sm:$0xff]
    %v254 = vld [vmem:[%s1 + $0x368] sm:$0xff]
    %v255 = vld [vmem:[%s1 + $0x370] sm:$0xff]
    %v256 = vld [vmem:[%s1 + $0x378] sm:$0xff]
    %v257 = vld [vmem:[%s1 + $0x380] sm:$0xff]
    %v258 = vld [vmem:[%s1 + $0x388] sm:$0xff]
    %v259 = vld [vmem:[%s1 + $0x390] sm:$0xff]
    %v260 = vld [vmem:[%s1 + $0x398] sm:$0xff]
    %v261 = vld [vmem:[%s1 + $0x3a0] sm:$0xff]
    %v262 = vld [vmem:[%s1 + $0x3a8] sm:$0xff]
    %v263 = vld [vmem:[%s1 + $0x3b0] sm:$0xff]
    %v264 = vld [vmem:[%s1 + $0x3b8] sm:$0xff]
    %v265 = vld [vmem:[%s1 + $0x3c0] sm:$0xff]
    %v266 = vld [vmem:[%s1 + $0x3c8] sm:$0xff]
    %v267 = vld [vmem:[%s1 + $0x3d0] sm:$0xff]
    %v268 = vld [vmem:[%s1 + $0x3d8] sm:$0xff]
    %v269 = vld [vmem:[%s1 + $0x3e0] sm:$0xff]
    %v270 = vld [vmem:[%s1 + $0x3e8] sm:$0xff]
    %v271 = vld [vmem:[%s1 + $0x3f0] sm:$0xff]
    %v272 = vld [vmem:[%s1 + $0x3f8] sm:$0xff]
    %v273 = vld [vmem:[%s1 + $0x400] sm:$0xff]
    %v274 = vld [vmem:[%s1 + $0x408] sm:$0xff]
    %v275 = vld [vmem:[%s1 + $0x410] sm:$0xff]
    %v276 = vld [vmem:[%s1 + $0x418] sm:$0xff]
    %v277 = vld [vmem:[%s1 + $0x420] sm:$0xff]
    %v278 = vld [vmem:[%s1 + $0x428] sm:$0xff]
    %v279 = vld [vmem:[%s1 + $0x430] sm:$0xff]
    %v280 = vld [vmem:[%s1 + $0x438] sm:$0xff]
    %v281 = vld [vmem:[%s1 + $0x440] sm:$0xff]
    %v282 = vld [vmem:[%s1 + $0x448] sm:$0xff]
    %v283 = vld [vmem:[%s1 + $0x450] sm:$0xff]
    %v284 = vld [vmem:[%s1 + $0x458] sm:$0xff]
    %v285 = vld [vmem:[%s1 + $0x460] sm:$0xff]
    %v286 = vld [vmem:[%s1 + $0x468] sm:$0xff]
    %v287 = vld [vmem:[%s1 + $0x470] sm:$0xff]
    %v288 = vld [vmem:[%s1 + $0x478] sm:$0xff]
    %v289 = vld [vmem:[%s1 + $0x480] sm:$0xff]
    %v290 = vld [vmem:[%s1 + $0x488] sm:$0xff]
    %v291 = vld [vmem:[%s1 + $0x490] sm:$0xff]
    %v292 = vld [vmem:[%s1 + $0x498] sm:$0xff]
    %v293 = vld [vmem:[%s1 + $0x4a0] sm:$0xff]
    %v294 = vld [vmem:[%s1 + $0x4a8] sm:$0xff]
    %v295 = vld [vmem:[%s1 + $0x4b0] sm:$0xff]
    %v296 = vld [vmem:[%s1 + $0x4b8] sm:$0xff]
    %v297 = vld [vmem:[%s1 + $0x4c0] sm:$0xff]
    %v298 = vld [vmem:[%s1 + $0x4c8] sm:$0xff]
    %v299 = vld [vmem:[%s1 + $0x4d0] sm:$0xff]
    %v300 = vld [vmem:[%s1 + $0x4d8] sm:$0xff]
    %v301 = vld [vmem:[%s1 + $0x4e0] sm:$0xff]
    %v302 = vld [vmem:[%s1 + $0x4e8] sm:$0xff]
    %v303 = vld [vmem:[%s1 + $0x4f0] sm:$0xff]
    %v304 = vld [vmem:[%s1 + $0x4f8] sm:$0xff]
    %v305 = vld [vmem:[%s1 + $0x500] sm:$0xff]
    %v306 = vld [vmem:[%s1 + $0x508] sm:$0xff]
    %v307 = vld [vmem:[%s1 + $0x510] sm:$0xff]
    %v308 = vld [vmem:[%s1 + $0x518] sm:$0xff]
    %v309 = vld [vmem:[%s1 + $0x520] sm:$0xff]
    %v310 = vld [vmem:[%s1 + $0x528] sm:$0xff]
    %v311 = vld [vmem:[%s1 + $0x530] sm:$0xff]
    %v312 = vld [vmem:[%s1 + $0x538] sm:$0xff]
    %v313 = vld [vmem:[%s1 + $0x540] sm:$0xff]
    %v314 = vld [vmem:[%s1 + $0x548] sm:$0xff]
    %v315 = vld [vmem:[%s1 + $0x550] sm:$0xff]
    %v316 = vld [vmem:[%s1 + $0x558] sm:$0xff]
    %v317 = vld [vmem:[%s1 + $0x560] sm:$0xff]
    %v318 = vld [vmem:[%s1 + $0x568] sm:$0xff]
    %v319 = vld [vmem:[%s1 + $0x570] sm:$0xff]
    %v320 = vld [vmem:[%s1 + $0x578] sm:$0xff]
    %v321 = vld [vmem:[%s1 + $0x580] sm:$0xff]
    %v322 = vld [vmem:[%s1 + $0x588] sm:$0xff]
    %v323 = vld [vmem:[%s1 + $0x590] sm:$0xff]
    %v324 = vld [vmem:[%s1 + $0x598] sm:$0xff]
    %v325 = vld [vmem:[%s1 + $0x5a0] sm:$0xff]
    %v326 = vld [vmem:[%s1 + $0x5a8] sm:$0xff]
    %v327 = vld [vmem:[%s1 + $0x5b0] sm:$0xff]
    %v328 = vld [vmem:[%s1 + $0x5b8] sm:$0xff]
    %v329 = vld [vmem:[%s1 + $0x5c0] sm:$0xff]
    %v330 = vld [vmem:[%s1 + $0x5c8] sm:$0xff]
    %v331 = vld [vmem:[%s1 + $0x5d0] sm:$0xff]
    %v332 = vld [vmem:[%s1 + $0x5d8] sm:$0xff]
    %v333 = vld [vmem:[%s1 + $0x5e0] sm:$0xff]
    %v334 = vld [vmem:[%s1 + $0x5e8] sm:$0xff]
    %v335 = vld [vmem:[%s1 + $0x5f0] sm:$0xff]
    %v336 = vld [vmem:[%s1 + $0x5f8] sm:$0xff]
    %v337 = vld [vmem:[%s1 + $0x600] sm:$0xff]
    %v338 = vld [vmem:[%s1 + $0x608] sm:$0xff]
    %v339 = vld [vmem:[%s1 + $0x610] sm:$0xff]
    %v340 = vld [vmem:[%s1 + $0x618] sm:$0xff]
    %v341 = vld [vmem:[%s1 + $0x620] sm:$0xff]
    %v342 = vld [vmem:[%s1 + $0x628] sm:$0xff]
    %v343 = vld [vmem:[%s1 + $0x630] sm:$0xff]
    %v344 = vld [vmem:[%s1 + $0x638] sm:$0xff]
    %v345 = vld [vmem:[%s1 + $0x640] sm:$0xff]
    %v346 = vld [vmem:[%s1 + $0x648] sm:$0xff]
    %v347 = vld [vmem:[%s1 + $0x650] sm:$0xff]
    %v348 = vld [vmem:[%s1 + $0x658] sm:$0xff]
    %v349 = vld [vmem:[%s1 + $0x660] sm:$0xff]
    %v350 = vld [vmem:[%s1 + $0x668] sm:$0xff]
    %v351 = vld [vmem:[%s1 + $0x670] sm:$0xff]
    %v352 = vld [vmem:[%s1 + $0x678] sm:$0xff]
    %v353 = vld [vmem:[%s1 + $0x680] sm:$0xff]
    %v354 = vld [vmem:[%s1 + $0x688] sm:$0xff]
    %v355 = vld [vmem:[%s1 + $0x690] sm:$0xff]
    %v356 = vld [vmem:[%s1 + $0x698] sm:$0xff]
    %v357 = vld [vmem:[%s1 + $0x6a0] sm:$0xff]
    %v358 = vld [vmem:[%s1 + $0x6a8] sm:$0xff]
    %v359 = vld [vmem:[%s1 + $0x6b0] sm:$0xff]
    %v360 = vld [vmem:[%s1 + $0x6b8] sm:$0xff]
    %v361 = vld [vmem:[%s1 + $0x6c0] sm:$0xff]
    %v362 = vld [vmem:[%s1 + $0x6c8] sm:$0xff]
    %v363 = vld [vmem:[%s1 + $0x6d0] sm:$0xff]
    %v364 = vld [vmem:[%s1 + $0x6d8] sm:$0xff]
    %v365 = vld [vmem:[%s1 + $0x6e0] sm:$0xff]
    %v366 = vld [vmem:[%s1 + $0x6e8] sm:$0xff]
    %v367 = vld [vmem:[%s1 + $0x6f0] sm:$0xff]
    %v368 = vld [vmem:[%s1 + $0x6f8] sm:$0xff]
    %v369 = vld [vmem:[%s1 + $0x700] sm:$0xff]
    %v370 = vld [vmem:[%s1 + $0x708] sm:$0xff]
    %v371 = vld [vmem:[%s1 + $0x710] sm:$0xff]
    %v372 = vld [vmem:[%s1 + $0x718] sm:$0xff]
    %v373 = vld [vmem:[%s1 + $0x720] sm:$0xff]
    %v374 = vld [vmem:[%s1 + $0x728] sm:$0xff]
    %v375 = vld [vmem:[%s1 + $0x730] sm:$0xff]
    %v376 = vld [vmem:[%s1 + $0x738] sm:$0xff]
    %v377 = vld [vmem:[%s1 + $0x740] sm:$0xff]
    %v378 = vld [vmem:[%s1 + $0x748] sm:$0xff]
    %v379 = vld [vmem:[%s1 + $0x750] sm:$0xff]
    %v380 = vld [vmem:[%s1 + $0x758] sm:$0xff]
    %v381 = vld [vmem:[%s1 + $0x760] sm:$0xff]
    %v382 = vld [vmem:[%s1 + $0x768] sm:$0xff]
    %v383 = vld [vmem:[%s1 + $0x770] sm:$0xff]
    %v384 = vld [vmem:[%s1 + $0x778] sm:$0xff]
    %v385 = vld [vmem:[%s1 + $0x780] sm:$0xff]
    %v386 = vld [vmem:[%s1 + $0x788] sm:$0xff]
    %v387 = vld [vmem:[%s1 + $0x790] sm:$0xff]
    %v388 = vld [vmem:[%s1 + $0x798] sm:$0xff]
    %v389 = vld [vmem:[%s1 + $0x7a0] sm:$0xff]
    %v390 = vld [vmem:[%s1 + $0x7a8] sm:$0xff]
    %v391 = vld [vmem:[%s1 + $0x7b0] sm:$0xff]
    %v392 = vld [vmem:[%s1 + $0x7b8] sm:$0xff]
    %v393 = vld [vmem:[%s1 + $0x7c0] sm:$0xff]
    %v394 = vld [vmem:[%s1 + $0x7c8] sm:$0xff]
    %v395 = vld [vmem:[%s1 + $0x7d0] sm:$0xff]
    %v396 = vld [vmem:[%s1 + $0x7d8] sm:$0xff]
    %v397 = vld [vmem:[%s1 + $0x7e0] sm:$0xff]
    %v398 = vld [vmem:[%s1 + $0x7e8] sm:$0xff]
    %v399 = vld [vmem:[%s1 + $0x7f0] sm:$0xff]
    %v400 = vld [vmem:[%s1 + $0x7f8] sm:$0xff]
    %v401 = vld [vmem:[%s1 + $0x800] sm:$0xff]
    %v402 = vld [vmem:[%s1 + $0x808] sm:$0xff]
    %v403 = vld [vmem:[%s1 + $0x810] sm:$0xff]
    %v404 = vld [vmem:[%s1 + $0x818] sm:$0xff]
    %v405 = vld [vmem:[%s1 + $0x820] sm:$0xff]
    %v406 = vld [vmem:[%s1 + $0x828] sm:$0xff]
    %v407 = vld [vmem:[%s1 + $0x830] sm:$0xff]
    %v408 = vld [vmem:[%s1 + $0x838] sm:$0xff]
    %v409 = vld [vmem:[%s1 + $0x840] sm:$0xff]
    %v410 = vld [vmem:[%s1 + $0x848] sm:$0xff]
    %v411 = vld [vmem:[%s1 + $0x850] sm:$0xff]
    %v412 = vld [vmem:[%s1 + $0x858] sm:$0xff]
    %v413 = vld [vmem:[%s1 + $0x860] sm:$0xff]
    %v414 = vld [vmem:[%s1 + $0x868] sm:$0xff]
    %v415 = vld [vmem:[%s1 + $0x870] sm:$0xff]
    %v416 = vld [vmem:[%s1 + $0x878] sm:$0xff]
    %v417 = vld [vmem:[%s1 + $0x880] sm:$0xff]
    %v418 = vld [vmem:[%s1 + $0x888] sm:$0xff]
    %v419 = vld [vmem:[%s1 + $0x890] sm:$0xff]
    %v420 = vld [vmem:[%s1 + $0x898] sm:$0xff]
    %v421 = vld [vmem:[%s1 + $0x8a0] sm:$0xff]
    %v422 = vld [vmem:[%s1 + $0x8a8] sm:$0xff]
    %v423 = vld [vmem:[%s1 + $0x8b0] sm:$0xff]
    %v424 = vld [vmem:[%s1 + $0x8b8] sm:$0xff]
    %v425 = vld [vmem:[%s1 + $0x8c0] sm:$0xff]
    %v426 = vld [vmem:[%s1 + $0x8c8] sm:$0xff]
    %v427 = vld [vmem:[%s1 + $0x8d0] sm:$0xff]
    %v428 = vld [vmem:[%s1 + $0x8d8] sm:$0xff]
    %v429 = vld [vmem:[%s1 + $0x8e0] sm:$0xff]
    %v430 = vld [vmem:[%s1 + $0x8e8] sm:$0xff]
    %v431 = vld [vmem:[%s1 + $0x8f0] sm:$0xff]
    %v432 = vld [vmem:[%s1 + $0x8f8] sm:$0xff]
    %v433 = vld [vmem:[%s1 + $0x900] sm:$0xff]
    %v434 = vld [vmem:[%s1 + $0x908] sm:$0xff]
    %v435 = vld [vmem:[%s1 + $0x910] sm:$0xff]
    %v436 = vld [vmem:[%s1 + $0x918] sm:$0xff]
    %v437 = vld [vmem:[%s1 + $0x920] sm:$0xff]
    %v438 = vld [vmem:[%s1 + $0x928] sm:$0xff]
    %v439 = vld [vmem:[%s1 + $0x930] sm:$0xff]
    %v440 = vld [vmem:[%s1 + $0x938] sm:$0xff]
    %v441 = vld [vmem:[%s1 + $0x940] sm:$0xff]
    %v442 = vld [vmem:[%s1 + $0x948] sm:$0xff]
    %v443 = vld [vmem:[%s1 + $0x950] sm:$0xff]
    %v444 = vld [vmem:[%s1 + $0x958] sm:$0xff]
    %v445 = vld [vmem:[%s1 + $0x960] sm:$0xff]
    %v446 = vld [vmem:[%s1 + $0x968] sm:$0xff]
    %v447 = vld [vmem:[%s1 + $0x970] sm:$0xff]
    %v448 = vld [vmem:[%s1 + $0x978] sm:$0xff]
    %v449 = vld [vmem:[%s1 + $0x980] sm:$0xff]
    %v450 = vld [vmem:[%s1 + $0x988] sm:$0xff]
    %v451 = vld [vmem:[%s1 + $0x990] sm:$0xff]
    %v452 = vld [vmem:[%s1 + $0x998] sm:$0xff]
    %v453 = vld [vmem:[%s1 + $0x9a0] sm:$0xff]
    %v454 = vld [vmem:[%s1 + $0x9a8] sm:$0xff]
    %v455 = vld [vmem:[%s1 + $0x9b0] sm:$0xff]
    %v456 = vld [vmem:[%s1 + $0x9b8] sm:$0xff]
    %v457 = vld [vmem:[%s1 + $0x9c0] sm:$0xff]
    %v458 = vld [vmem:[%s1 + $0x9c8] sm:$0xff]
    %v459 = vld [vmem:[%s1 + $0x9d0] sm:$0xff]
    %v460 = vld [vmem:[%s1 + $0x9d8] sm:$0xff]
    %v461 = vld [vmem:[%s1 + $0x9e0] sm:$0xff]
    %v462 = vld [vmem:[%s1 + $0x9e8] sm:$0xff]
    %v463 = vld [vmem:[%s1 + $0x9f0] sm:$0xff]
    %v464 = vld [vmem:[%s1 + $0x9f8] sm:$0xff]
    %v465 = vld [vmem:[%s1 + $0xa00] sm:$0xff]
    %v466 = vld [vmem:[%s1 + $0xa08] sm:$0xff]
    %v467 = vld [vmem:[%s1 + $0xa10] sm:$0xff]
    %v468 = vld [vmem:[%s1 + $0xa18] sm:$0xff]
    %v469 = vld [vmem:[%s1 + $0xa20] sm:$0xff]
    %v470 = vld [vmem:[%s1 + $0xa28] sm:$0xff]
    %v471 = vld [vmem:[%s1 + $0xa30] sm:$0xff]
    %v472 = vld [vmem:[%s1 + $0xa38] sm:$0xff]
    %v473 = vld [vmem:[%s1 + $0xa40] sm:$0xff]
    %v474 = vld [vmem:[%s1 + $0xa48] sm:$0xff]
    %v475 = vld [vmem:[%s1 + $0xa50] sm:$0xff]
    %v476 = vld [vmem:[%s1 + $0xa58] sm:$0xff]
    %v477 = vld [vmem:[%s1 + $0xa60] sm:$0xff]
    %v478 = vld [vmem:[%s1 + $0xa68] sm:$0xff]
    %v479 = vld [vmem:[%s1 + $0xa70] sm:$0xff]
    %v480 = vld [vmem:[%s1 + $0xa78] sm:$0xff]
    %v481 = vld [vmem:[%s1 + $0xa80] sm:$0xff]
    %v482 = vld [vmem:[%s1 + $0xa88] sm:$0xff]
    %v483 = vld [vmem:[%s1 + $0xa90] sm:$0xff]
    %v484 = vld [vmem:[%s1 + $0xa98] sm:$0xff]
    %v485 = vld [vmem:[%s1 + $0xaa0] sm:$0xff]
    %v486 = vld [vmem:[%s1 + $0xaa8] sm:$0xff]
    %v487 = vld [vmem:[%s1 + $0xab0] sm:$0xff]
    %v488 = vld [vmem:[%s1 + $0xab8] sm:$0xff]
    %v489 = vld [vmem:[%s1 + $0xac0] sm:$0xff]
    %v490 = vld [vmem:[%s1 + $0xac8] sm:$0xff]
    %v491 = vld [vmem:[%s1 + $0xad0] sm:$0xff]
    %v492 = vld [vmem:[%s1 + $0xad8] sm:$0xff]
    %v493 = vld [vmem:[%s1 + $0xae0] sm:$0xff]
    %v494 = vld [vmem:[%s1 + $0xae8] sm:$0xff]
    %v495 = vld [vmem:[%s1 + $0xaf0] sm:$0xff]
    %v496 = vld [vmem:[%s1 + $0xaf8] sm:$0xff]
    %v497 = vld [vmem:[%s1 + $0xb00] sm:$0xff]
    %v498 = vld [vmem:[%s1 + $0xb08] sm:$0xff]
    %v499 = vld [vmem:[%s1 + $0xb10] sm:$0xff]
    %v500 = vld [vmem:[%s1 + $0xb18] sm:$0xff]
    %v501 = vld [vmem:[%s1 + $0xb20] sm:$0xff]
    %v502 = vld [vmem:[%s1 + $0xb28] sm:$0xff]
    %v503 = vld [vmem:[%s1 + $0xb30] sm:$0xff]
    %v504 = vld [vmem:[%s1 + $0xb38] sm:$0xff]
    %v505 = vld [vmem:[%s1 + $0xb40] sm:$0xff]
    %v506 = vld [vmem:[%s1 + $0xb48] sm:$0xff]
    %v507 = vld [vmem:[%s1 + $0xb50] sm:$0xff]
    %v508 = vld [vmem:[%s1 + $0xb58] sm:$0xff]
    %v509 = vld [vmem:[%s1 + $0xb60] sm:$0xff]
    %v510 = vld [vmem:[%s1 + $0xb68] sm:$0xff]
    %v511 = vld [vmem:[%s1 + $0xb70] sm:$0xff]
    %v512 = vld [vmem:[%s1 + $0xb78] sm:$0xff]
    %v513 = vld [vmem:[%s1 + $0xb80] sm:$0xff]
    %v514 = vld [vmem:[%s1 + $0xb88] sm:$0xff]
    %v515 = vld [vmem:[%s1 + $0xb90] sm:$0xff]
    %v516 = vld [vmem:[%s1 + $0xb98] sm:$0xff]
    %v517 = vld [vmem:[%s1 + $0xba0] sm:$0xff]
    %v518 = vld [vmem:[%s1 + $0xba8] sm:$0xff]
    %v519 = vld [vmem:[%s1 + $0xbb0] sm:$0xff]
    %v520 = vld [vmem:[%s1 + $0xbb8] sm:$0xff]
    %v521 = vld [vmem:[%s1 + $0xbc0] sm:$0xff]
    %v522 = vld [vmem:[%s1 + $0xbc8] sm:$0xff]
    %v523 = vld [vmem:[%s1 + $0xbd0] sm:$0xff]
    %v524 = vld [vmem:[%s1 + $0xbd8] sm:$0xff]
    %v525 = vld [vmem:[%s1 + $0xbe0] sm:$0xff]
    %v526 = vld [vmem:[%s1 + $0xbe8] sm:$0xff]
    %v527 = vld [vmem:[%s1 + $0xbf0] sm:$0xff]
    %v528 = vld [vmem:[%s1 + $0xbf8] sm:$0xff]
    %v529 = vld [vmem:[%s1 + $0xc00] sm:$0xff]
    %v530 = vld [vmem:[%s1 + $0xc08] sm:$0xff]
    %v531 = vld [vmem:[%s1 + $0xc10] sm:$0xff]
    %v532 = vld [vmem:[%s1 + $0xc18] sm:$0xff]
    %v533 = vld [vmem:[%s1 + $0xc20] sm:$0xff]
    %v534 = vld [vmem:[%s1 + $0xc28] sm:$0xff]
    %v535 = vld [vmem:[%s1 + $0xc30] sm:$0xff]
    %v536 = vld [vmem:[%s1 + $0xc38] sm:$0xff]
    %v537 = vld [vmem:[%s1 + $0xc40] sm:$0xff]
    %v538 = vld [vmem:[%s1 + $0xc48] sm:$0xff]
    %v539 = vld [vmem:[%s1 + $0xc50] sm:$0xff]
    %v540 = vld [vmem:[%s1 + $0xc58] sm:$0xff]
    %v541 = vld [vmem:[%s1 + $0xc60] sm:$0xff]
    %v542 = vld [vmem:[%s1 + $0xc68] sm:$0xff]
    %v543 = vld [vmem:[%s1 + $0xc70] sm:$0xff]
    %v544 = vld [vmem:[%s1 + $0xc78] sm:$0xff]
    %v545 = vld [vmem:[%s1 + $0xc80] sm:$0xff]
    %v546 = vld [vmem:[%s1 + $0xc88] sm:$0xff]
    %v547 = vld [vmem:[%s1 + $0xc90] sm:$0xff]
    %v548 = vld [vmem:[%s1 + $0xc98] sm:$0xff]
    %v549 = vld [vmem:[%s1 + $0xca0] sm:$0xff]
    %v550 = vld [vmem:[%s1 + $0xca8] sm:$0xff]
    %v551 = vld [vmem:[%s1 + $0xcb0] sm:$0xff]
    %v552 = vld [vmem:[%s1 + $0xcb8] sm:$0xff]
    %v553 = vld [vmem:[%s1 + $0xcc0] sm:$0xff]
    %v554 = vld [vmem:[%s1 + $0xcc8] sm:$0xff]
    %v555 = vld [vmem:[%s1 + $0xcd0] sm:$0xff]
    %v556 = vld [vmem:[%s1 + $0xcd8] sm:$0xff]
    %v557 = vld [vmem:[%s1 + $0xce0] sm:$0xff]
    %v558 = vld [vmem:[%s1 + $0xce8] sm:$0xff]
    %v559 = vld [vmem:[%s1 + $0xcf0] sm:$0xff]
    %v560 = vld [vmem:[%s1 + $0xcf8] sm:$0xff]
    %v561 = vld [vmem:[%s1 + $0xd00] sm:$0xff]
    %v562 = vld [vmem:[%s1 + $0xd08] sm:$0xff]
    %v563 = vld [vmem:[%s1 + $0xd10] sm:$0xff]
    %v564 = vld [vmem:[%s1 + $0xd18] sm:$0xff]
    %v565 = vld [vmem:[%s1 + $0xd20] sm:$0xff]
    %v566 = vld [vmem:[%s1 + $0xd28] sm:$0xff]
    %v567 = vld [vmem:[%s1 + $0xd30] sm:$0xff]
    %v568 = vld [vmem:[%s1 + $0xd38] sm:$0xff]
    %v569 = vld [vmem:[%s1 + $0xd40] sm:$0xff]
    %v570 = vld [vmem:[%s1 + $0xd48] sm:$0xff]
    %v571 = vld [vmem:[%s1 + $0xd50] sm:$0xff]
    %v572 = vld [vmem:[%s1 + $0xd58] sm:$0xff]
    %v573 = vld [vmem:[%s1 + $0xd60] sm:$0xff]
    %v574 = vld [vmem:[%s1 + $0xd68] sm:$0xff]
    %v575 = vld [vmem:[%s1 + $0xd70] sm:$0xff]
    %v576 = vld [vmem:[%s1 + $0xd78] sm:$0xff]
    %v577 = vld [vmem:[%s1 + $0xd80] sm:$0xff]
    %v578 = vld [vmem:[%s1 + $0xd88] sm:$0xff]
    %v579 = vld [vmem:[%s1 + $0xd90] sm:$0xff]
    %v580 = vld [vmem:[%s1 + $0xd98] sm:$0xff]
    %v581 = vld [vmem:[%s1 + $0xda0] sm:$0xff]
    %v582 = vld [vmem:[%s1 + $0xda8] sm:$0xff]
    %v583 = vld [vmem:[%s1 + $0xdb0] sm:$0xff]
    %v584 = vld [vmem:[%s1 + $0xdb8] sm:$0xff]
    %v585 = vld [vmem:[%s1 + $0xdc0] sm:$0xff]
    %v586 = vld [vmem:[%s1 + $0xdc8] sm:$0xff]
    %v587 = vld [vmem:[%s1 + $0xdd0] sm:$0xff]
    %v588 = vld [vmem:[%s1 + $0xdd8] sm:$0xff]
    %v589 = vld [vmem:[%s1 + $0xde0] sm:$0xff]
    %v590 = vld [vmem:[%s1 + $0xde8] sm:$0xff]
    %v591 = vld [vmem:[%s1 + $0xdf0] sm:$0xff]
    %v592 = vld [vmem:[%s1 + $0xdf8] sm:$0xff]
    %v593 = vld [vmem:[%s1 + $0xe00] sm:$0xff]
    %v594 = vld [vmem:[%s1 + $0xe08] sm:$0xff]
    %v595 = vld [vmem:[%s1 + $0xe10] sm:$0xff]
    %v596 = vld [vmem:[%s1 + $0xe18] sm:$0xff]
    %v597 = vld [vmem:[%s1 + $0xe20] sm:$0xff]
    %v598 = vld [vmem:[%s1 + $0xe28] sm:$0xff]
    %v599 = vld [vmem:[%s1 + $0xe30] sm:$0xff]
    %v600 = vld [vmem:[%s1 + $0xe38] sm:$0xff]
    %v601 = vld [vmem:[%s1 + $0xe40] sm:$0xff]
    %v602 = vld [vmem:[%s1 + $0xe48] sm:$0xff]
    %v603 = vld [vmem:[%s1 + $0xe50] sm:$0xff]
    %v604 = vld [vmem:[%s1 + $0xe58] sm:$0xff]
    %v605 = vld [vmem:[%s1 + $0xe60] sm:$0xff]
    %v606 = vld [vmem:[%s1 + $0xe68] sm:$0xff]
    %v607 = vld [vmem:[%s1 + $0xe70] sm:$0xff]
    %v608 = vld [vmem:[%s1 + $0xe78] sm:$0xff]
    %v609 = vld [vmem:[%s1 + $0xe80] sm:$0xff]
    %v610 = vld [vmem:[%s1 + $0xe88] sm:$0xff]
    %v611 = vld [vmem:[%s1 + $0xe90] sm:$0xff]
    %v612 = vld [vmem:[%s1 + $0xe98] sm:$0xff]
    %v613 = vld [vmem:[%s1 + $0xea0] sm:$0xff]
    %v614 = vld [vmem:[%s1 + $0xea8] sm:$0xff]
    %v615 = vld [vmem:[%s1 + $0xeb0] sm:$0xff]
    %v616 = vld [vmem:[%s1 + $0xeb8] sm:$0xff]
    %v617 = vld [vmem:[%s1 + $0xec0] sm:$0xff]
    %v618 = vld [vmem:[%s1 + $0xec8] sm:$0xff]
    %v619 = vld [vmem:[%s1 + $0xed0] sm:$0xff]
    %v620 = vld [vmem:[%s1 + $0xed8] sm:$0xff]
    %v621 = vld [vmem:[%s1 + $0xee0] sm:$0xff]
    %v622 = vld [vmem:[%s1 + $0xee8] sm:$0xff]
    %v623 = vld [vmem:[%s1 + $0xef0] sm:$0xff]
    %v624 = vld [vmem:[%s1 + $0xef8] sm:$0xff]
    %v625 = vld [vmem:[%s1 + $0xf00] sm:$0xff]
    %v626 = vld [vmem:[%s1 + $0xf08] sm:$0xff]
    %v627 = vld [vmem:[%s1 + $0xf10] sm:$0xff]
    %v628 = vld [vmem:[%s1 + $0xf18] sm:$0xff]
    %v629 = vld [vmem:[%s1 + $0xf20] sm:$0xff]
    %v630 = vld [vmem:[%s1 + $0xf28] sm:$0xff]
    %v631 = vld [vmem:[%s1 + $0xf30] sm:$0xff]
    %v632 = vld [vmem:[%s1 + $0xf38] sm:$0xff]
    %v633 = vld [vmem:[%s1 + $0xf40] sm:$0xff]
    %v634 = vld [vmem:[%s1 + $0xf48] sm:$0xff]
    %v635 = vld [vmem:[%s1 + $0xf50] sm:$0xff]
    %v636 = vld [vmem:[%s1 + $0xf58] sm:$0xff]
    %v637 = vld [vmem:[%s1 + $0xf60] sm:$0xff]
    %v638 = vld [vmem:[%s1 + $0xf68] sm:$0xff]
    %v639 = vld [vmem:[%s1 + $0xf70] sm:$0xff]
    %v640 = vld [vmem:[%s1 + $0xf78] sm:$0xff]
    %v641 = vld [vmem:[%s1 + $0xf80] sm:$0xff]
    %v642 = vld [vmem:[%s1 + $0xf88] sm:$0xff]
    %v643 = vld [vmem:[%s1 + $0xf90] sm:$0xff]
    %v644 = vld [vmem:[%s1 + $0xf98] sm:$0xff]
    %v645 = vld [vmem:[%s1 + $0xfa0] sm:$0xff]
    %v646 = vld [vmem:[%s1 + $0xfa8] sm:$0xff]
    %v647 = vld [vmem:[%s1 + $0xfb0] sm:$0xff]
    %v648 = vld [vmem:[%s1 + $0xfb8] sm:$0xff]
    %v649 = vld [vmem:[%s1 + $0xfc0] sm:$0xff]
    %v650 = vld [vmem:[%s1 + $0xfc8] sm:$0xff]
    %v651 = vld [vmem:[%s1 + $0xfd0] sm:$0xff]
    %v652 = vld [vmem:[%s1 + $0xfd8] sm:$0xff]
    %v653 = vld [vmem:[%s1 + $0xfe0] sm:$0xff]
    %v654 = vld [vmem:[%s1 + $0xfe8] sm:$0xff]
    %v655 = vld [vmem:[%s1 + $0xff0] sm:$0xff]
    %v656 = vld [vmem:[%s1 + $0xff8] sm:$0xff]
    %v657 = vld [vmem:[%s1 + $0x1000] sm:$0xff]
    %v658 = vld [vmem:[%s1 + $0x1008] sm:$0xff]
    %v659 = vld [vmem:[%s1 + $0x1010] sm:$0xff]
    %v660 = vld [vmem:[%s1 + $0x1018] sm:$0xff]
    %v661 = vld [vmem:[%s1 + $0x1020] sm:$0xff]
    %v662 = vld [vmem:[%s1 + $0x1028] sm:$0xff]
    %v663 = vld [vmem:[%s1 + $0x1030] sm:$0xff]
    %v664 = vld [vmem:[%s1 + $0x1038] sm:$0xff]
    %v665 = vld [vmem:[%s1 + $0x1040] sm:$0xff]
    %v666 = vld [vmem:[%s1 + $0x1048] sm:$0xff]
    %v667 = vld [vmem:[%s1 + $0x1050] sm:$0xff]
    %v668 = vld [vmem:[%s1 + $0x1058] sm:$0xff]
    %v669 = vld [vmem:[%s1 + $0x1060] sm:$0xff]
    %v670 = vld [vmem:[%s1 + $0x1068] sm:$0xff]
    %v671 = vld [vmem:[%s1 + $0x1070] sm:$0xff]
    %v672 = vld [vmem:[%s1 + $0x1078] sm:$0xff]
    %v673 = vld [vmem:[%s1 + $0x1080] sm:$0xff]
    %v674 = vld [vmem:[%s1 + $0x1088] sm:$0xff]
    %v675 = vld [vmem:[%s1 + $0x1090] sm:$0xff]
    %v676 = vld [vmem:[%s1 + $0x1098] sm:$0xff]
    %v677 = vld [vmem:[%s1 + $0x10a0] sm:$0xff]
    %v678 = vld [vmem:[%s1 + $0x10a8] sm:$0xff]
    %v679 = vld [vmem:[%s1 + $0x10b0] sm:$0xff]
    %v680 = vld [vmem:[%s1 + $0x10b8] sm:$0xff]
    %v681 = vld [vmem:[%s1 + $0x10c0] sm:$0xff]
    %v682 = vld [vmem:[%s1 + $0x10c8] sm:$0xff]
    %v683 = vld [vmem:[%s1 + $0x10d0] sm:$0xff]
    %v684 = vld [vmem:[%s1 + $0x10d8] sm:$0xff]
    %v685 = vld [vmem:[%s1 + $0x10e0] sm:$0xff]
    %v686 = vld [vmem:[%s1 + $0x10e8] sm:$0xff]
    %v687 = vld [vmem:[%s1 + $0x10f0] sm:$0xff]
    %v688 = vld [vmem:[%s1 + $0x10f8] sm:$0xff]
    %v689 = vld [vmem:[%s1 + $0x1100] sm:$0xff]
    %v690 = vld [vmem:[%s1 + $0x1108] sm:$0xff]
    %v691 = vld [vmem:[%s1 + $0x1110] sm:$0xff]
    %v692 = vld [vmem:[%s1 + $0x1118] sm:$0xff]
    %v693 = vld [vmem:[%s1 + $0x1120] sm:$0xff]
    %v694 = vld [vmem:[%s1 + $0x1128] sm:$0xff]
    %v695 = vld [vmem:[%s1 + $0x1130] sm:$0xff]
    %v696 = vld [vmem:[%s1 + $0x1138] sm:$0xff]
    %v697 = vld [vmem:[%s1 + $0x1140] sm:$0xff]
    %v698 = vld [vmem:[%s1 + $0x1148] sm:$0xff]
    %v699 = vld [vmem:[%s1 + $0x1150] sm:$0xff]
    %v700 = vld [vmem:[%s1 + $0x1158] sm:$0xff]
    %v701 = vld [vmem:[%s1 + $0x1160] sm:$0xff]
    %v702 = vld [vmem:[%s1 + $0x1168] sm:$0xff]
    %v703 = vld [vmem:[%s1 + $0x1170] sm:$0xff]
    %v704 = vld [vmem:[%s1 + $0x1178] sm:$0xff]
    %v705 = vld [vmem:[%s1 + $0x1180] sm:$0xff]
    %v706 = vld [vmem:[%s1 + $0x1188] sm:$0xff]
    %v707 = vld [vmem:[%s1 + $0x1190] sm:$0xff]
    %v708 = vld [vmem:[%s1 + $0x1198] sm:$0xff]
    %v709 = vld [vmem:[%s1 + $0x11a0] sm:$0xff]
    %v710 = vld [vmem:[%s1 + $0x11a8] sm:$0xff]
    %v711 = vld [vmem:[%s1 + $0x11b0] sm:$0xff]
    %v712 = vld [vmem:[%s1 + $0x11b8] sm:$0xff]
    %v713 = vld [vmem:[%s1 + $0x11c0] sm:$0xff]
    %v714 = vld [vmem:[%s1 + $0x11c8] sm:$0xff]
    %v715 = vld [vmem:[%s1 + $0x11d0] sm:$0xff]
    %v716 = vld [vmem:[%s1 + $0x11d8] sm:$0xff]
    %v717 = vld [vmem:[%s1 + $0x11e0] sm:$0xff]
    %v718 = vld [vmem:[%s1 + $0x11e8] sm:$0xff]
    %v719 = vld [vmem:[%s1 + $0x11f0] sm:$0xff]
    %v720 = vld [vmem:[%s1 + $0x11f8] sm:$0xff]
    %v721 = vld [vmem:[%s1 + $0x1200] sm:$0xff]
    %v722 = vld [vmem:[%s1 + $0x1208] sm:$0xff]
    %v723 = vld [vmem:[%s1 + $0x1210] sm:$0xff]
    %v724 = vld [vmem:[%s1 + $0x1218] sm:$0xff]
    %v725 = vld [vmem:[%s1 + $0x1220] sm:$0xff]
    %v726 = vld [vmem:[%s1 + $0x1228] sm:$0xff]
    %v727 = vld [vmem:[%s1 + $0x1230] sm:$0xff]
    %v728 = vld [vmem:[%s1 + $0x1238] sm:$0xff]
    %v729 = vld [vmem:[%s1 + $0x1240] sm:$0xff]
    %v730 = vld [vmem:[%s1 + $0x1248] sm:$0xff]
    %v731 = vld [vmem:[%s1 + $0x1250] sm:$0xff]
    %v732 = vld [vmem:[%s1 + $0x1258] sm:$0xff]
    %v733 = vld [vmem:[%s1 + $0x1260] sm:$0xff]
    %v734 = vld [vmem:[%s1 + $0x1268] sm:$0xff]
    %v735 = vld [vmem:[%s1 + $0x1270] sm:$0xff]
    %v736 = vld [vmem:[%s1 + $0x1278] sm:$0xff]
    %v737 = vld [vmem:[%s1 + $0x1280] sm:$0xff]
    %v738 = vld [vmem:[%s1 + $0x1288] sm:$0xff]
    %v739 = vld [vmem:[%s1 + $0x1290] sm:$0xff]
    %v740 = vld [vmem:[%s1 + $0x1298] sm:$0xff]
    %v741 = vld [vmem:[%s1 + $0x12a0] sm:$0xff]
    %v742 = vld [vmem:[%s1 + $0x12a8] sm:$0xff]
    %v743 = vld [vmem:[%s1 + $0x12b0] sm:$0xff]
    %v744 = vld [vmem:[%s1 + $0x12b8] sm:$0xff]
    %v745 = vld [vmem:[%s1 + $0x12c0] sm:$0xff]
    %v746 = vld [vmem:[%s1 + $0x12c8] sm:$0xff]
    %v747 = vld [vmem:[%s1 + $0x12d0] sm:$0xff]
    %v748 = vld [vmem:[%s1 + $0x12d8] sm:$0xff]
    %v749 = vld [vmem:[%s1 + $0x12e0] sm:$0xff]
    %v750 = vld [vmem:[%s1 + $0x12e8] sm:$0xff]
    %v751 = vld [vmem:[%s1 + $0x12f0] sm:$0xff]
    %v752 = vld [vmem:[%s1 + $0x12f8] sm:$0xff]
    %v753 = vld [vmem:[%s1 + $0x1300] sm:$0xff]
    %v754 = vld [vmem:[%s1 + $0x1308] sm:$0xff]
    %v755 = vld [vmem:[%s1 + $0x1310] sm:$0xff]
    %v756 = vld [vmem:[%s1 + $0x1318] sm:$0xff]
    %v757 = vld [vmem:[%s1 + $0x1320] sm:$0xff]
    %v758 = vld [vmem:[%s1 + $0x1328] sm:$0xff]
    %v759 = vld [vmem:[%s1 + $0x1330] sm:$0xff]
    %v760 = vld [vmem:[%s1 + $0x1338] sm:$0xff]
    %v761 = vld [vmem:[%s1 + $0x1340] sm:$0xff]
    %v762 = vld [vmem:[%s1 + $0x1348] sm:$0xff]
    %v763 = vld [vmem:[%s1 + $0x1350] sm:$0xff]
    %v764 = vld [vmem:[%s1 + $0x1358] sm:$0xff]
    %v765 = vld [vmem:[%s1 + $0x1360] sm:$0xff]
    %v766 = vld [vmem:[%s1 + $0x1368] sm:$0xff]
    %v767 = vld [vmem:[%s1 + $0x1370] sm:$0xff]
    %v768 = vld [vmem:[%s1 + $0x1378] sm:$0xff]
    %v769 = vld [vmem:[%s1 + $0x1380] sm:$0xff]
    %v770 = vld [vmem:[%s1 + $0x1388] sm:$0xff]
    %v771 = vld [vmem:[%s1 + $0x1390] sm:$0xff]
    %v772 = vld [vmem:[%s1 + $0x1398] sm:$0xff]
    %v773 = vld [vmem:[%s1 + $0x13a0] sm:$0xff]
    %v774 = vld [vmem:[%s1 + $0x13a8] sm:$0xff]
    %v775 = vld [vmem:[%s1 + $0x13b0] sm:$0xff]
    %v776 = vld [vmem:[%s1 + $0x13b8] sm:$0xff]
    %v777 = vld [vmem:[%s1 + $0x13c0] sm:$0xff]
    %v778 = vld [vmem:[%s1 + $0x13c8] sm:$0xff]
    %v779 = vld [vmem:[%s1 + $0x13d0] sm:$0xff]
    %v780 = vld [vmem:[%s1 + $0x13d8] sm:$0xff]
    %v781 = vld [vmem:[%s1 + $0x13e0] sm:$0xff]
    %v782 = vld [vmem:[%s1 + $0x13e8] sm:$0xff]
    %v783 = vld [vmem:[%s1 + $0x13f0] sm:$0xff]
    %v784 = vld [vmem:[%s1 + $0x13f8] sm:$0xff]
    %v785 = vld [vmem:[%s1 + $0x1400] sm:$0xff]
    %v786 = vld [vmem:[%s1 + $0x1408] sm:$0xff]
    %v787 = vld [vmem:[%s1 + $0x1410] sm:$0xff]
    %v788 = vld [vmem:[%s1 + $0x1418] sm:$0xff]
    %v789 = vld [vmem:[%s1 + $0x1420] sm:$0xff]
    %v790 = vld [vmem:[%s1 + $0x1428] sm:$0xff]
    %v791 = vld [vmem:[%s1 + $0x1430] sm:$0xff]
    %v792 = vld [vmem:[%s1 + $0x1438] sm:$0xff]
    %v793 = vld [vmem:[%s1 + $0x1440] sm:$0xff]
    %v794 = vld [vmem:[%s1 + $0x1448] sm:$0xff]
    %v795 = vld [vmem:[%s1 + $0x1450] sm:$0xff]
    %v796 = vld [vmem:[%s1 + $0x1458] sm:$0xff]
    %v797 = vld [vmem:[%s1 + $0x1460] sm:$0xff]
    %v798 = vld [vmem:[%s1 + $0x1468] sm:$0xff]
    %v799 = vld [vmem:[%s1 + $0x1470] sm:$0xff]
    %v800 = vld [vmem:[%s1 + $0x1478] sm:$0xff]
    %v801 = vld [vmem:[%s1 + $0x1480] sm:$0xff]
    %v802 = vld [vmem:[%s1 + $0x1488] sm:$0xff]
    %v803 = vld [vmem:[%s1 + $0x1490] sm:$0xff]
    %v804 = vld [vmem:[%s1 + $0x1498] sm:$0xff]
    %v805 = vld [vmem:[%s1 + $0x14a0] sm:$0xff]
    %v806 = vld [vmem:[%s1 + $0x14a8] sm:$0xff]
    %v807 = vld [vmem:[%s1 + $0x14b0] sm:$0xff]
    %v808 = vld [vmem:[%s1 + $0x14b8] sm:$0xff]
    %v809 = vld [vmem:[%s1 + $0x14c0] sm:$0xff]
    %v810 = vld [vmem:[%s1 + $0x14c8] sm:$0xff]
    %v811 = vld [vmem:[%s1 + $0x14d0] sm:$0xff]
    %v812 = vld [vmem:[%s1 + $0x14d8] sm:$0xff]
    %v813 = vld [vmem:[%s1 + $0x14e0] sm:$0xff]
    %v814 = vld [vmem:[%s1 + $0x14e8] sm:$0xff]
    %v815 = vld [vmem:[%s1 + $0x14f0] sm:$0xff]
    %v816 = vld [vmem:[%s1 + $0x14f8] sm:$0xff]
    %v817 = vld [vmem:[%s1 + $0x1500] sm:$0xff]
    %v818 = vld [vmem:[%s1 + $0x1508] sm:$0xff]
    %v819 = vld [vmem:[%s1 + $0x1510] sm:$0xff]
    %v820 = vld [vmem:[%s1 + $0x1518] sm:$0xff]
    %v821 = vld [vmem:[%s1 + $0x1520] sm:$0xff]
    %v822 = vld [vmem:[%s1 + $0x1528] sm:$0xff]
    %v823 = vld [vmem:[%s1 + $0x1530] sm:$0xff]
    %v824 = vld [vmem:[%s1 + $0x1538] sm:$0xff]
    %v825 = vld [vmem:[%s1 + $0x1540] sm:$0xff]
    %v826 = vld [vmem:[%s1 + $0x1548] sm:$0xff]
    %v827 = vld [vmem:[%s1 + $0x1550] sm:$0xff]
    %v828 = vld [vmem:[%s1 + $0x1558] sm:$0xff]
    %v829 = vld [vmem:[%s1 + $0x1560] sm:$0xff]
    %v830 = vld [vmem:[%s1 + $0x1568] sm:$0xff]
    %v831 = vld [vmem:[%s1 + $0x1570] sm:$0xff]
    %v832 = vld [vmem:[%s1 + $0x1578] sm:$0xff]
    %v833 = vld [vmem:[%s1 + $0x1580] sm:$0xff]
    %v834 = vld [vmem:[%s1 + $0x1588] sm:$0xff]
    %v835 = vld [vmem:[%s1 + $0x1590] sm:$0xff]
    %v836 = vld [vmem:[%s1 + $0x1598] sm:$0xff]
    %v837 = vld [vmem:[%s1 + $0x15a0] sm:$0xff]
    %v838 = vld [vmem:[%s1 + $0x15a8] sm:$0xff]
    %v839 = vld [vmem:[%s1 + $0x15b0] sm:$0xff]
    %v840 = vld [vmem:[%s1 + $0x15b8] sm:$0xff]
    %v841 = vld [vmem:[%s1 + $0x15c0] sm:$0xff]
    %v842 = vld [vmem:[%s1 + $0x15c8] sm:$0xff]
    %v843 = vld [vmem:[%s1 + $0x15d0] sm:$0xff]
    %v844 = vld [vmem:[%s1 + $0x15d8] sm:$0xff]
    %v845 = vld [vmem:[%s1 + $0x15e0] sm:$0xff]
    %v846 = vld [vmem:[%s1 + $0x15e8] sm:$0xff]
    %v847 = vld [vmem:[%s1 + $0x15f0] sm:$0xff]
    %v848 = vld [vmem:[%s1 + $0x15f8] sm:$0xff]
    %v849 = vld [vmem:[%s1 + $0x1600] sm:$0xff]
    %v850 = vld [vmem:[%s1 + $0x1608] sm:$0xff]
    %v851 = vld [vmem:[%s1 + $0x1610] sm:$0xff]
    %v852 = vld [vmem:[%s1 + $0x1618] sm:$0xff]
    %v853 = vld [vmem:[%s1 + $0x1620] sm:$0xff]
    %v854 = vld [vmem:[%s1 + $0x1628] sm:$0xff]
    %v855 = vld [vmem:[%s1 + $0x1630] sm:$0xff]
    %v856 = vld [vmem:[%s1 + $0x1638] sm:$0xff]
    %v857 = vld [vmem:[%s1 + $0x1640] sm:$0xff]
    %v858 = vld [vmem:[%s1 + $0x1648] sm:$0xff]
    %v859 = vld [vmem:[%s1 + $0x1650] sm:$0xff]
    %v860 = vld [vmem:[%s1 + $0x1658] sm:$0xff]
    %v861 = vld [vmem:[%s1 + $0x1660] sm:$0xff]
    %v862 = vld [vmem:[%s1 + $0x1668] sm:$0xff]
    %v863 = vld [vmem:[%s1 + $0x1670] sm:$0xff]
    %v864 = vld [vmem:[%s1 + $0x1678] sm:$0xff]
    %v865 = vld [vmem:[%s1 + $0x1680] sm:$0xff]
    %v866 = vld [vmem:[%s1 + $0x1688] sm:$0xff]
    %v867 = vld [vmem:[%s1 + $0x1690] sm:$0xff]
    %v868 = vld [vmem:[%s1 + $0x1698] sm:$0xff]
    %v869 = vld [vmem:[%s1 + $0x16a0] sm:$0xff]
    %v870 = vld [vmem:[%s1 + $0x16a8] sm:$0xff]
    %v871 = vld [vmem:[%s1 + $0x16b0] sm:$0xff]
    %v872 = vld [vmem:[%s1 + $0x16b8] sm:$0xff]
    %v873 = vld [vmem:[%s1 + $0x16c0] sm:$0xff]
    %v874 = vld [vmem:[%s1 + $0x16c8] sm:$0xff]
    %v875 = vld [vmem:[%s1 + $0x16d0] sm:$0xff]
    %v876 = vld [vmem:[%s1 + $0x16d8] sm:$0xff]
    %v877 = vld [vmem:[%s1 + $0x16e0] sm:$0xff]
    %v878 = vld [vmem:[%s1 + $0x16e8] sm:$0xff]
    %v879 = vld [vmem:[%s1 + $0x16f0] sm:$0xff]
    %v880 = vld [vmem:[%s1 + $0x16f8] sm:$0xff]
    %v881 = vld [vmem:[%s1 + $0x1700] sm:$0xff]
    %v882 = vld [vmem:[%s1 + $0x1708] sm:$0xff]
    %v883 = vld [vmem:[%s1 + $0x1710] sm:$0xff]
    %v884 = vld [vmem:[%s1 + $0x1718] sm:$0xff]
    %v885 = vld [vmem:[%s1 + $0x1720] sm:$0xff]
    %v886 = vld [vmem:[%s1 + $0x1728] sm:$0xff]
    %v887 = vld [vmem:[%s1 + $0x1730] sm:$0xff]
    %v888 = vld [vmem:[%s1 + $0x1738] sm:$0xff]
    %v889 = vld [vmem:[%s1 + $0x1740] sm:$0xff]
    %v890 = vld [vmem:[%s1 + $0x1748] sm:$0xff]
    %v891 = vld [vmem:[%s1 + $0x1750] sm:$0xff]
    %v892 = vld [vmem:[%s1 + $0x1758] sm:$0xff]
    %v893 = vld [vmem:[%s1 + $0x1760] sm:$0xff]
    %v894 = vld [vmem:[%s1 + $0x1768] sm:$0xff]
    %v895 = vld [vmem:[%s1 + $0x1770] sm:$0xff]
    %v896 = vld [vmem:[%s1 + $0x1778] sm:$0xff]
    %v897 = vld [vmem:[%s1 + $0x1780] sm:$0xff]
    %v898 = vld [vmem:[%s1 + $0x1788] sm:$0xff]
    %v899 = vld [vmem:[%s1 + $0x1790] sm:$0xff]
    %v900 = vld [vmem:[%s1 + $0x1798] sm:$0xff]
    %v901 = vld [vmem:[%s1 + $0x17a0] sm:$0xff]
    %v902 = vld [vmem:[%s1 + $0x17a8] sm:$0xff]
    %v903 = vld [vmem:[%s1 + $0x17b0] sm:$0xff]
    %v904 = vld [vmem:[%s1 + $0x17b8] sm:$0xff]
    %v905 = vld [vmem:[%s1 + $0x17c0] sm:$0xff]
    %v906 = vld [vmem:[%s1 + $0x17c8] sm:$0xff]
    %v907 = vld [vmem:[%s1 + $0x17d0] sm:$0xff]
    %v908 = vld [vmem:[%s1 + $0x17d8] sm:$0xff]
    %v909 = vld [vmem:[%s1 + $0x17e0] sm:$0xff]
    %v910 = vld [vmem:[%s1 + $0x17e8] sm:$0xff]
    %v911 = vld [vmem:[%s1 + $0x17f0] sm:$0xff]
    %v912 = vld [vmem:[%s1 + $0x17f8] sm:$0xff]
    %v913 = vld [vmem:[%s1 + $0x1800] sm:$0xff]
    %v914 = vld [vmem:[%s1 + $0x1808] sm:$0xff]
    %v915 = vld [vmem:[%s1 + $0x1810] sm:$0xff]
    %v916 = vld [vmem:[%s1 + $0x1818] sm:$0xff]
    %v917 = vld [vmem:[%s1 + $0x1820] sm:$0xff]
    %v918 = vld [vmem:[%s1 + $0x1828] sm:$0xff]
    %v919 = vld [vmem:[%s1 + $0x1830] sm:$0xff]
    %v920 = vld [vmem:[%s1 + $0x1838] sm:$0xff]
    %v921 = vld [vmem:[%s1 + $0x1840] sm:$0xff]
    %v922 = vld [vmem:[%s1 + $0x1848] sm:$0xff]
    %v923 = vld [vmem:[%s1 + $0x1850] sm:$0xff]
    %v924 = vld [vmem:[%s1 + $0x1858] sm:$0xff]
    %v925 = vld [vmem:[%s1 + $0x1860] sm:$0xff]
    %v926 = vld [vmem:[%s1 + $0x1868] sm:$0xff]
    %v927 = vld [vmem:[%s1 + $0x1870] sm:$0xff]
    %v928 = vld [vmem:[%s1 + $0x1878] sm:$0xff]
    %v929 = vld [vmem:[%s1 + $0x1880] sm:$0xff]
    %v930 = vld [vmem:[%s1 + $0x1888] sm:$0xff]
    %v931 = vld [vmem:[%s1 + $0x1890] sm:$0xff]
    %v932 = vld [vmem:[%s1 + $0x1898] sm:$0xff]
    %v933 = vld [vmem:[%s1 + $0x18a0] sm:$0xff]
    %v934 = vld [vmem:[%s1 + $0x18a8] sm:$0xff]
    %v935 = vld [vmem:[%s1 + $0x18b0] sm:$0xff]
    %v936 = vld [vmem:[%s1 + $0x18b8] sm:$0xff]
    %v937 = vld [vmem:[%s1 + $0x18c0] sm:$0xff]
    %v938 = vld [vmem:[%s1 + $0x18c8] sm:$0xff]
    %v939 = vld [vmem:[%s1 + $0x18d0] sm:$0xff]
    %v940 = vld [vmem:[%s1 + $0x18d8] sm:$0xff]
    %v941 = vld [vmem:[%s1 + $0x18e0] sm:$0xff]
    %v942 = vld [vmem:[%s1 + $0x18e8] sm:$0xff]
    %v943 = vld [vmem:[%s1 + $0x18f0] sm:$0xff]
    %v944 = vld [vmem:[%s1 + $0x18f8] sm:$0xff]
    %v945 = vld [vmem:[%s1 + $0x1900] sm:$0xff]
    %v946 = vld [vmem:[%s1 + $0x1908] sm:$0xff]
    %v947 = vld [vmem:[%s1 + $0x1910] sm:$0xff]
    %v948 = vld [vmem:[%s1 + $0x1918] sm:$0xff]
    %v949 = vld [vmem:[%s1 + $0x1920] sm:$0xff]
    %v950 = vld [vmem:[%s1 + $0x1928] sm:$0xff]
    %v951 = vld [vmem:[%s1 + $0x1930] sm:$0xff]
    %v952 = vld [vmem:[%s1 + $0x1938] sm:$0xff]
    %v953 = vld [vmem:[%s1 + $0x1940] sm:$0xff]
    %v954 = vld [vmem:[%s1 + $0x1948] sm:$0xff]
    %v955 = vld [vmem:[%s1 + $0x1950] sm:$0xff]
    %v956 = vld [vmem:[%s1 + $0x1958] sm:$0xff]
    %v957 = vld [vmem:[%s1 + $0x1960] sm:$0xff]
    %v958 = vld [vmem:[%s1 + $0x1968] sm:$0xff]
    %v959 = vld [vmem:[%s1 + $0x1970] sm:$0xff]
    %v960 = vld [vmem:[%s1 + $0x1978] sm:$0xff]
    %v961 = vld [vmem:[%s1 + $0x1980] sm:$0xff]
    %v962 = vld [vmem:[%s1 + $0x1988] sm:$0xff]
    %v963 = vld [vmem:[%s1 + $0x1990] sm:$0xff]
    %v964 = vld [vmem:[%s1 + $0x1998] sm:$0xff]
    %v965 = vld [vmem:[%s1 + $0x19a0] sm:$0xff]
    %v966 = vld [vmem:[%s1 + $0x19a8] sm:$0xff]
    %v967 = vld [vmem:[%s1 + $0x19b0] sm:$0xff]
    %v968 = vld [vmem:[%s1 + $0x19b8] sm:$0xff]
    %v969 = vld [vmem:[%s1 + $0x19c0] sm:$0xff]
    %v970 = vld [vmem:[%s1 + $0x19c8] sm:$0xff]
    %v971 = vld [vmem:[%s1 + $0x19d0] sm:$0xff]
    %v972 = vld [vmem:[%s1 + $0x19d8] sm:$0xff]
    %v973 = vld [vmem:[%s1 + $0x19e0] sm:$0xff]
    %v974 = vld [vmem:[%s1 + $0x19e8] sm:$0xff]
    %v975 = vld [vmem:[%s1 + $0x19f0] sm:$0xff]
    %v976 = vld [vmem:[%s1 + $0x19f8] sm:$0xff]
    %v977 = vld [vmem:[%s1 + $0x1a00] sm:$0xff]
    %v978 = vld [vmem:[%s1 + $0x1a08] sm:$0xff]
    %v979 = vld [vmem:[%s1 + $0x1a10] sm:$0xff]
    %v980 = vld [vmem:[%s1 + $0x1a18] sm:$0xff]
    %v981 = vld [vmem:[%s1 + $0x1a20] sm:$0xff]
    %v982 = vld [vmem:[%s1 + $0x1a28] sm:$0xff]
    %v983 = vld [vmem:[%s1 + $0x1a30] sm:$0xff]
    %v984 = vld [vmem:[%s1 + $0x1a38] sm:$0xff]
    %v985 = vld [vmem:[%s1 + $0x1a40] sm:$0xff]
    %v986 = vld [vmem:[%s1 + $0x1a48] sm:$0xff]
    %v987 = vld [vmem:[%s1 + $0x1a50] sm:$0xff]
    %v988 = vld [vmem:[%s1 + $0x1a58] sm:$0xff]
    %v989 = vld [vmem:[%s1 + $0x1a60] sm:$0xff]
    %v990 = vld [vmem:[%s1 + $0x1a68] sm:$0xff]
    %v991 = vld [vmem:[%s1 + $0x1a70] sm:$0xff]
    %v992 = vld [vmem:[%s1 + $0x1a78] sm:$0xff]
    %v993 = vld [vmem:[%s1 + $0x1a80] sm:$0xff]
    %v994 = vld [vmem:[%s1 + $0x1a88] sm:$0xff]
    %v995 = vld [vmem:[%s1 + $0x1a90] sm:$0xff]
    %v996 = vld [vmem:[%s1 + $0x1a98] sm:$0xff]
    %v997 = vld [vmem:[%s1 + $0x1aa0] sm:$0xff]
    %v998 = vld [vmem:[%s1 + $0x1aa8] sm:$0xff]
    %v999 = vld [vmem:[%s1 + $0x1ab0] sm:$0xff]
    %v1000 = vld [vmem:[%s1 + $0x1ab8] sm:$0xff]
    %v1001 = vld [vmem:[%s1 + $0x1ac0] sm:$0xff]
    %v1002 = vld [vmem:[%s1 + $0x1ac8] sm:$0xff]
    %v1003 = vld [vmem:[%s1 + $0x1ad0] sm:$0xff]
    %v1004 = vld [vmem:[%s1 + $0x1ad8] sm:$0xff]
    %v1005 = vld [vmem:[%s1 + $0x1ae0] sm:$0xff]
    %v1006 = vld [vmem:[%s1 + $0x1ae8] sm:$0xff]
    %v1007 = vld [vmem:[%s1 + $0x1af0] sm:$0xff]
    %v1008 = vld [vmem:[%s1 + $0x1af8] sm:$0xff]
    %v1009 = vld [vmem:[%s1 + $0x1b00] sm:$0xff]
    %v1010 = vld [vmem:[%s1 + $0x1b08] sm:$0xff]
    %v1011 = vld [vmem:[%s1 + $0x1b10] sm:$0xff]
    %v1012 = vld [vmem:[%s1 + $0x1b18] sm:$0xff]
    %v1013 = vld [vmem:[%s1 + $0x1b20] sm:$0xff]
    %v1014 = vld [vmem:[%s1 + $0x1b28] sm:$0xff]
    %v1015 = vld [vmem:[%s1 + $0x1b30] sm:$0xff]
    %v1016 = vld [vmem:[%s1 + $0x1b38] sm:$0xff]
    %v1017 = vld [vmem:[%s1 + $0x1b40] sm:$0xff]
    %v1018 = vld [vmem:[%s1 + $0x1b48] sm:$0xff]
    %v1019 = vld [vmem:[%s1 + $0x1b50] sm:$0xff]
    %v1020 = vld [vmem:[%s1 + $0x1b58] sm:$0xff]
    %v1021 = vld [vmem:[%s1 + $0x1b60] sm:$0xff]
    %v1022 = vld [vmem:[%s1 + $0x1b68] sm:$0xff]
    %v1023 = vld [vmem:[%s1 + $0x1b70] sm:$0xff]
    %v1024 = vld [vmem:[%s1 + $0x1b78] sm:$0xff]
    %v1025 = vld [vmem:[%s1 + $0x1b80] sm:$0xff]
    %v1026 = vld [vmem:[%s1 + $0x1b88] sm:$0xff]
    %v1027 = vld [vmem:[%s1 + $0x1b90] sm:$0xff]
    %v1028 = vld [vmem:[%s1 + $0x1b98] sm:$0xff]
    %v1029 = vld [vmem:[%s1 + $0x1ba0] sm:$0xff]
    %v1030 = vld [vmem:[%s1 + $0x1ba8] sm:$0xff]
    %v1031 = vld [vmem:[%s1 + $0x1bb0] sm:$0xff]
    %v1032 = vld [vmem:[%s1 + $0x1bb8] sm:$0xff]
    %v1033 = vld [vmem:[%s1 + $0x1bc0] sm:$0xff]
    %v1034 = vld [vmem:[%s1 + $0x1bc8] sm:$0xff]
    %v1035 = vld [vmem:[%s1 + $0x1bd0] sm:$0xff]
    %v1036 = vld [vmem:[%s1 + $0x1bd8] sm:$0xff]
    %v1037 = vld [vmem:[%s1 + $0x1be0] sm:$0xff]
    %v1038 = vld [vmem:[%s1 + $0x1be8] sm:$0xff]
    %v1039 = vld [vmem:[%s1 + $0x1bf0] sm:$0xff]
    %v1040 = vld [vmem:[%s1 + $0x1bf8] sm:$0xff]
    %v1041 = vld [vmem:[%s1 + $0x1c00] sm:$0xff]
    %v1042 = vld [vmem:[%s1 + $0x1c08] sm:$0xff]
    %v1043 = vld [vmem:[%s1 + $0x1c10] sm:$0xff]
    %v1044 = vld [vmem:[%s1 + $0x1c18] sm:$0xff]
    %v1045 = vld [vmem:[%s1 + $0x1c20] sm:$0xff]
    %v1046 = vld [vmem:[%s1 + $0x1c28] sm:$0xff]
    %v1047 = vld [vmem:[%s1 + $0x1c30] sm:$0xff]
    %v1048 = vld [vmem:[%s1 + $0x1c38] sm:$0xff]
    %v1049 = vld [vmem:[%s1 + $0x1c40] sm:$0xff]
    %v1050 = vld [vmem:[%s1 + $0x1c48] sm:$0xff]
    %v1051 = vld [vmem:[%s1 + $0x1c50] sm:$0xff]
    %v1052 = vld [vmem:[%s1 + $0x1c58] sm:$0xff]
    %v1053 = vld [vmem:[%s1 + $0x1c60] sm:$0xff]
    %v1054 = vld [vmem:[%s1 + $0x1c68] sm:$0xff]
    %v1055 = vld [vmem:[%s1 + $0x1c70] sm:$0xff]
    %v1056 = vld [vmem:[%s1 + $0x1c78] sm:$0xff]
    %v1057 = vld [vmem:[%s1 + $0x1c80] sm:$0xff]
    %v1058 = vld [vmem:[%s1 + $0x1c88] sm:$0xff]
    %v1059 = vld [vmem:[%s1 + $0x1c90] sm:$0xff]
    %v1060 = vld [vmem:[%s1 + $0x1c98] sm:$0xff]
    %v1061 = vld [vmem:[%s1 + $0x1ca0] sm:$0xff]
    %v1062 = vld [vmem:[%s1 + $0x1ca8] sm:$0xff]
    %v1063 = vld [vmem:[%s1 + $0x1cb0] sm:$0xff]
    %v1064 = vld [vmem:[%s1 + $0x1cb8] sm:$0xff]
    %v1065 = vld [vmem:[%s1 + $0x1cc0] sm:$0xff]
    %v1066 = vld [vmem:[%s1 + $0x1cc8] sm:$0xff]
    %v1067 = vld [vmem:[%s1 + $0x1cd0] sm:$0xff]
    %v1068 = vld [vmem:[%s1 + $0x1cd8] sm:$0xff]
    %v1069 = vld [vmem:[%s1 + $0x1ce0] sm:$0xff]
    %v1070 = vld [vmem:[%s1 + $0x1ce8] sm:$0xff]
    %v1071 = vld [vmem:[%s1 + $0x1cf0] sm:$0xff]
    %v1072 = vld [vmem:[%s1 + $0x1cf8] sm:$0xff]
    %v1073 = vld [vmem:[%s1 + $0x1d00] sm:$0xff]
    %v1074 = vld [vmem:[%s1 + $0x1d08] sm:$0xff]
    %v1075 = vld [vmem:[%s1 + $0x1d10] sm:$0xff]
    %v1076 = vld [vmem:[%s1 + $0x1d18] sm:$0xff]
    %v1077 = vld [vmem:[%s1 + $0x1d20] sm:$0xff]
    %v1078 = vld [vmem:[%s1 + $0x1d28] sm:$0xff]
    %v1079 = vld [vmem:[%s1 + $0x1d30] sm:$0xff]
    %v1080 = vld [vmem:[%s1 + $0x1d38] sm:$0xff]
    %v1081 = vld [vmem:[%s1 + $0x1d40] sm:$0xff]
    %v1082 = vld [vmem:[%s1 + $0x1d48] sm:$0xff]
    %v1083 = vld [vmem:[%s1 + $0x1d50] sm:$0xff]
    %v1084 = vld [vmem:[%s1 + $0x1d58] sm:$0xff]
    %v1085 = vld [vmem:[%s1 + $0x1d60] sm:$0xff]
    %v1086 = vld [vmem:[%s1 + $0x1d68] sm:$0xff]
    %v1087 = vld [vmem:[%s1 + $0x1d70] sm:$0xff]
    %v1088 = vld [vmem:[%s1 + $0x1d78] sm:$0xff]
    %v1089 = vld [vmem:[%s1 + $0x1d80] sm:$0xff]
    %v1090 = vld [vmem:[%s1 + $0x1d88] sm:$0xff]
    %v1091 = vld [vmem:[%s1 + $0x1d90] sm:$0xff]
    %v1092 = vld [vmem:[%s1 + $0x1d98] sm:$0xff]
    %v1093 = vld [vmem:[%s1 + $0x1da0] sm:$0xff]
    %v1094 = vld [vmem:[%s1 + $0x1da8] sm:$0xff]
    %v1095 = vld [vmem:[%s1 + $0x1db0] sm:$0xff]
    %v1096 = vld [vmem:[%s1 + $0x1db8] sm:$0xff]
    %v1097 = vld [vmem:[%s1 + $0x1dc0] sm:$0xff]
    %v1098 = vld [vmem:[%s1 + $0x1dc8] sm:$0xff]
    %v1099 = vld [vmem:[%s1 + $0x1dd0] sm:$0xff]
    %v1100 = vld [vmem:[%s1 + $0x1dd8] sm:$0xff]
    %v1101 = vld [vmem:[%s1 + $0x1de0] sm:$0xff]
    %v1102 = vld [vmem:[%s1 + $0x1de8] sm:$0xff]
    %v1103 = vld [vmem:[%s1 + $0x1df0] sm:$0xff]
    %v1104 = vld [vmem:[%s1 + $0x1df8] sm:$0xff]
    %v1105 = vld [vmem:[%s1 + $0x1e00] sm:$0xff]
    %v1106 = vld [vmem:[%s1 + $0x1e08] sm:$0xff]
    %v1107 = vld [vmem:[%s1 + $0x1e10] sm:$0xff]
    %v1108 = vld [vmem:[%s1 + $0x1e18] sm:$0xff]
    %v1109 = vld [vmem:[%s1 + $0x1e20] sm:$0xff]
    %v1110 = vld [vmem:[%s1 + $0x1e28] sm:$0xff]
    %v1111 = vld [vmem:[%s1 + $0x1e30] sm:$0xff]
    %v1112 = vld [vmem:[%s1 + $0x1e38] sm:$0xff]
    %v1113 = vld [vmem:[%s1 + $0x1e40] sm:$0xff]
    %v1114 = vld [vmem:[%s1 + $0x1e48] sm:$0xff]
    %v1115 = vld [vmem:[%s1 + $0x1e50] sm:$0xff]
    %v1116 = vld [vmem:[%s1 + $0x1e58] sm:$0xff]
    %v1117 = vld [vmem:[%s1 + $0x1e60] sm:$0xff]
    %v1118 = vld [vmem:[%s1 + $0x1e68] sm:$0xff]
    %v1119 = vld [vmem:[%s1 + $0x1e70] sm:$0xff]
    %v1120 = vld [vmem:[%s1 + $0x1e78] sm:$0xff]
    %v1121 = vld [vmem:[%s1 + $0x1e80] sm:$0xff]
    %v1122 = vld [vmem:[%s1 + $0x1e88] sm:$0xff]
    %v1123 = vld [vmem:[%s1 + $0x1e90] sm:$0xff]
    %v1124 = vld [vmem:[%s1 + $0x1e98] sm:$0xff]
    %v1125 = vld [vmem:[%s1 + $0x1ea0] sm:$0xff]
    %v1126 = vld [vmem:[%s1 + $0x1ea8] sm:$0xff]
    %v1127 = vld [vmem:[%s1 + $0x1eb0] sm:$0xff]
    %v1128 = vld [vmem:[%s1 + $0x1eb8] sm:$0xff]
    %v1129 = vld [vmem:[%s1 + $0x1ec0] sm:$0xff]
    %v1130 = vld [vmem:[%s1 + $0x1ec8] sm:$0xff]
    %v1131 = vld [vmem:[%s1 + $0x1ed0] sm:$0xff]
    %v1132 = vld [vmem:[%s1 + $0x1ed8] sm:$0xff]
    %v1133 = vld [vmem:[%s1 + $0x1ee0] sm:$0xff]
    %v1134 = vld [vmem:[%s1 + $0x1ee8] sm:$0xff]
    %v1135 = vld [vmem:[%s1 + $0x1ef0] sm:$0xff]
    %v1136 = vld [vmem:[%s1 + $0x1ef8] sm:$0xff]
    %v1137 = vld [vmem:[%s1 + $0x1f00] sm:$0xff]
    %v1138 = vld [vmem:[%s1 + $0x1f08] sm:$0xff]
    %v1139 = vld [vmem:[%s1 + $0x1f10] sm:$0xff]
    %v1140 = vld [vmem:[%s1 + $0x1f18] sm:$0xff]
    %v1141 = vld [vmem:[%s1 + $0x1f20] sm:$0xff]
    %v1142 = vld [vmem:[%s1 + $0x1f28] sm:$0xff]
    %v1143 = vld [vmem:[%s1 + $0x1f30] sm:$0xff]
    %v1144 = vld [vmem:[%s1 + $0x1f38] sm:$0xff]
    %v1145 = vld [vmem:[%s1 + $0x1f40] sm:$0xff]
    %v1146 = vld [vmem:[%s1 + $0x1f48] sm:$0xff]
    %v1147 = vld [vmem:[%s1 + $0x1f50] sm:$0xff]
    %v1148 = vld [vmem:[%s1 + $0x1f58] sm:$0xff]
    %v1149 = vld [vmem:[%s1 + $0x1f60] sm:$0xff]
    %v1150 = vld [vmem:[%s1 + $0x1f68] sm:$0xff]
    %v1151 = vld [vmem:[%s1 + $0x1f70] sm:$0xff]
    %v1152 = vld [vmem:[%s1 + $0x1f78] sm:$0xff]
    %v1153 = vld [vmem:[%s1 + $0x1f80] sm:$0xff]
    %v1154 = vld [vmem:[%s1 + $0x1f88] sm:$0xff]
    %v1155 = vld [vmem:[%s1 + $0x1f90] sm:$0xff]
    %v1156 = vld [vmem:[%s1 + $0x1f98] sm:$0xff]
    %v1157 = vld [vmem:[%s1 + $0x1fa0] sm:$0xff]
    %v1158 = vld [vmem:[%s1 + $0x1fa8] sm:$0xff]
    %v1159 = vld [vmem:[%s1 + $0x1fb0] sm:$0xff]
    %v1160 = vld [vmem:[%s1 + $0x1fb8] sm:$0xff]
    %v1161 = vld [vmem:[%s1 + $0x1fc0] sm:$0xff]
    %v1162 = vld [vmem:[%s1 + $0x1fc8] sm:$0xff]
    %v1163 = vld [vmem:[%s1 + $0x1fd0] sm:$0xff]
    %v1164 = vld [vmem:[%s1 + $0x1fd8] sm:$0xff]
    %v1165 = vld [vmem:[%s1 + $0x1fe0] sm:$0xff]
    %v1166 = vld [vmem:[%s1 + $0x1fe8] sm:$0xff]
    %v1167 = vld [vmem:[%s1 + $0x1ff0] sm:$0xff]
    %v1168 = vld [vmem:[%s1 + $0x1ff8] sm:$0xff]
    %v1169 = vld [vmem:[%s1 + $0x2000] sm:$0xff]
    %v1170 = vld [vmem:[%s1 + $0x2008] sm:$0xff]
    %v1171 = vld [vmem:[%s1 + $0x2010] sm:$0xff]
    %v1172 = vld [vmem:[%s1 + $0x2018] sm:$0xff]
    %v1173 = vld [vmem:[%s1 + $0x2020] sm:$0xff]
    %v1174 = vld [vmem:[%s1 + $0x2028] sm:$0xff]
    %v1175 = vld [vmem:[%s1 + $0x2030] sm:$0xff]
    %v1176 = vld [vmem:[%s1 + $0x2038] sm:$0xff]
    %v1177 = vld [vmem:[%s1 + $0x2040] sm:$0xff]
    %v1178 = vld [vmem:[%s1 + $0x2048] sm:$0xff]
    %v1179 = vld [vmem:[%s1 + $0x2050] sm:$0xff]
    %v1180 = vld [vmem:[%s1 + $0x2058] sm:$0xff]
    %v1181 = vld [vmem:[%s1 + $0x2060] sm:$0xff]
    %v1182 = vld [vmem:[%s1 + $0x2068] sm:$0xff]
    %v1183 = vld [vmem:[%s1 + $0x2070] sm:$0xff]
    %v1184 = vld [vmem:[%s1 + $0x2078] sm:$0xff]
    %v1185 = vld [vmem:[%s1 + $0x2080] sm:$0xff]
    %v1186 = vld [vmem:[%s1 + $0x2088] sm:$0xff]
    %v1187 = vld [vmem:[%s1 + $0x2090] sm:$0xff]
    %v1188 = vld [vmem:[%s1 + $0x2098] sm:$0xff]
    %v1189 = vld [vmem:[%s1 + $0x20a0] sm:$0xff]
    %v1190 = vld [vmem:[%s1 + $0x20a8] sm:$0xff]
    %v1191 = vld [vmem:[%s1 + $0x20b0] sm:$0xff]
    %v1192 = vld [vmem:[%s1 + $0x20b8] sm:$0xff]
    %v1193 = vld [vmem:[%s1 + $0x20c0] sm:$0xff]
    %v1194 = vld [vmem:[%s1 + $0x20c8] sm:$0xff]
    %v1195 = vld [vmem:[%s1 + $0x20d0] sm:$0xff]
    %v1196 = vld [vmem:[%s1 + $0x20d8] sm:$0xff]
    %v1197 = vld [vmem:[%s1 + $0x20e0] sm:$0xff]
    %v1198 = vld [vmem:[%s1 + $0x20e8] sm:$0xff]
    %v1199 = vld [vmem:[%s1 + $0x20f0] sm:$0xff]
    %v1200 = vld [vmem:[%s1 + $0x20f8] sm:$0xff]
    %v1201 = vld [vmem:[%s1 + $0x2100] sm:$0xff]
    %v1202 = vld [vmem:[%s1 + $0x2108] sm:$0xff]
    %v1203 = vld [vmem:[%s1 + $0x2110] sm:$0xff]
    %v1204 = vld [vmem:[%s1 + $0x2118] sm:$0xff]
    %v1205 = vld [vmem:[%s1 + $0x2120] sm:$0xff]
    %v1206 = vld [vmem:[%s1 + $0x2128] sm:$0xff]
    %v1207 = vld [vmem:[%s1 + $0x2130] sm:$0xff]
    %v1208 = vld [vmem:[%s1 + $0x2138] sm:$0xff]
    %v1209 = vld [vmem:[%s1 + $0x2140] sm:$0xff]
    %v1210 = vld [vmem:[%s1 + $0x2148] sm:$0xff]
    %v1211 = vld [vmem:[%s1 + $0x2150] sm:$0xff]
    %v1212 = vld [vmem:[%s1 + $0x2158] sm:$0xff]
    %v1213 = vld [vmem:[%s1 + $0x2160] sm:$0xff]
    %v1214 = vld [vmem:[%s1 + $0x2168] sm:$0xff]
    %v1215 = vld [vmem:[%s1 + $0x2170] sm:$0xff]
    %v1216 = vld [vmem:[%s1 + $0x2178] sm:$0xff]
    %v1217 = vld [vmem:[%s1 + $0x2180] sm:$0xff]
    %v1218 = vld [vmem:[%s1 + $0x2188] sm:$0xff]
    %v1219 = vld [vmem:[%s1 + $0x2190] sm:$0xff]
    %v1220 = vld [vmem:[%s1 + $0x2198] sm:$0xff]
    %v1221 = vld [vmem:[%s1 + $0x21a0] sm:$0xff]
    %v1222 = vld [vmem:[%s1 + $0x21a8] sm:$0xff]
    %v1223 = vld [vmem:[%s1 + $0x21b0] sm:$0xff]
    %v1224 = vld [vmem:[%s1 + $0x21b8] sm:$0xff]
    %v1225 = vld [vmem:[%s1 + $0x21c0] sm:$0xff]
    %v1226 = vld [vmem:[%s1 + $0x21c8] sm:$0xff]
    %v1227 = vld [vmem:[%s1 + $0x21d0] sm:$0xff]
    %v1228 = vld [vmem:[%s1 + $0x21d8] sm:$0xff]
    %v1229 = vld [vmem:[%s1 + $0x21e0] sm:$0xff]
    %v1230 = vld [vmem:[%s1 + $0x21e8] sm:$0xff]
    %v1231 = vld [vmem:[%s1 + $0x21f0] sm:$0xff]
    %v1232 = vld [vmem:[%s1 + $0x21f8] sm:$0xff]
    %v1233 = vld [vmem:[%s1 + $0x2200] sm:$0xff]
    %v1234 = vld [vmem:[%s1 + $0x2208] sm:$0xff]
    %v1235 = vld [vmem:[%s1 + $0x2210] sm:$0xff]
    %v1236 = vld [vmem:[%s1 + $0x2218] sm:$0xff]
    %v1237 = vld [vmem:[%s1 + $0x2220] sm:$0xff]
    %v1238 = vld [vmem:[%s1 + $0x2228] sm:$0xff]
    %v1239 = vld [vmem:[%s1 + $0x2230] sm:$0xff]
    %v1240 = vld [vmem:[%s1 + $0x2238] sm:$0xff]
    %v1241 = vld [vmem:[%s1 + $0x2240] sm:$0xff]
    %v1242 = vld [vmem:[%s1 + $0x2248] sm:$0xff]
    %v1243 = vld [vmem:[%s1 + $0x2250] sm:$0xff]
    %v1244 = vld [vmem:[%s1 + $0x2258] sm:$0xff]
    %v1245 = vld [vmem:[%s1 + $0x2260] sm:$0xff]
    %v1246 = vld [vmem:[%s1 + $0x2268] sm:$0xff]
    %v1247 = vld [vmem:[%s1 + $0x2270] sm:$0xff]
    %v1248 = vld [vmem:[%s1 + $0x2278] sm:$0xff]
    %v1249 = vld [vmem:[%s1 + $0x2280] sm:$0xff]
    %v1250 = vld [vmem:[%s1 + $0x2288] sm:$0xff]
    %v1251 = vld [vmem:[%s1 + $0x2290] sm:$0xff]
    %v1252 = vld [vmem:[%s1 + $0x2298] sm:$0xff]
    %v1253 = vld [vmem:[%s1 + $0x22a0] sm:$0xff]
    %v1254 = vld [vmem:[%s1 + $0x22a8] sm:$0xff]
    %v1255 = vld [vmem:[%s1 + $0x22b0] sm:$0xff]
    %v1256 = vld [vmem:[%s1 + $0x22b8] sm:$0xff]
    %v1257 = vld [vmem:[%s1 + $0x22c0] sm:$0xff]
    %v1258 = vld [vmem:[%s1 + $0x22c8] sm:$0xff]
    %v1259 = vld [vmem:[%s1 + $0x22d0] sm:$0xff]
    %v1260 = vld [vmem:[%s1 + $0x22d8] sm:$0xff]
    %v1261 = vld [vmem:[%s1 + $0x22e0] sm:$0xff]
    %v1262 = vld [vmem:[%s1 + $0x22e8] sm:$0xff]
    %v1263 = vld [vmem:[%s1 + $0x22f0] sm:$0xff]
    %v1264 = vld [vmem:[%s1 + $0x22f8] sm:$0xff]
    %v1265 = vld [vmem:[%s1 + $0x2300] sm:$0xff]
    %v1266 = vld [vmem:[%s1 + $0x2308] sm:$0xff]
    %v1267 = vld [vmem:[%s1 + $0x2310] sm:$0xff]
    %v1268 = vld [vmem:[%s1 + $0x2318] sm:$0xff]
    %v1269 = vld [vmem:[%s1 + $0x2320] sm:$0xff]
    %v1270 = vld [vmem:[%s1 + $0x2328] sm:$0xff]
    %v1271 = vld [vmem:[%s1 + $0x2330] sm:$0xff]
    %v1272 = vld [vmem:[%s1 + $0x2338] sm:$0xff]
    %v1273 = vld [vmem:[%s1 + $0x2340] sm:$0xff]
    %v1274 = vld [vmem:[%s1 + $0x2348] sm:$0xff]
    %v1275 = vld [vmem:[%s1 + $0x2350] sm:$0xff]
    %v1276 = vld [vmem:[%s1 + $0x2358] sm:$0xff]
    %v1277 = vld [vmem:[%s1 + $0x2360] sm:$0xff]
    %v1278 = vld [vmem:[%s1 + $0x2368] sm:$0xff]
    %v1279 = vld [vmem:[%s1 + $0x2370] sm:$0xff]
    %v1280 = vld [vmem:[%s1 + $0x2378] sm:$0xff]
    %v1281 = vld [vmem:[%s1 + $0x2380] sm:$0xff]
    %v1282 = vld [vmem:[%s1 + $0x2388] sm:$0xff]
    %v1283 = vld [vmem:[%s1 + $0x2390] sm:$0xff]
    %v1284 = vld [vmem:[%s1 + $0x2398] sm:$0xff]
    %v1285 = vld [vmem:[%s1 + $0x23a0] sm:$0xff]
    %v1286 = vld [vmem:[%s1 + $0x23a8] sm:$0xff]
    %v1287 = vld [vmem:[%s1 + $0x23b0] sm:$0xff]
    %v1288 = vld [vmem:[%s1 + $0x23b8] sm:$0xff]
    %v1289 = vld [vmem:[%s1 + $0x23c0] sm:$0xff]
    %v1290 = vld [vmem:[%s1 + $0x23c8] sm:$0xff]
    %v1291 = vld [vmem:[%s1 + $0x23d0] sm:$0xff]
    %v1292 = vld [vmem:[%s1 + $0x23d8] sm:$0xff]
    %v1293 = vld [vmem:[%s1 + $0x23e0] sm:$0xff]
    %v1294 = vld [vmem:[%s1 + $0x23e8] sm:$0xff]
    %v1295 = vld [vmem:[%s1 + $0x23f0] sm:$0xff]
    %v1296 = vld [vmem:[%s1 + $0x23f8] sm:$0xff]
    %v1297 = vld [vmem:[%s1 + $0x2400] sm:$0xff]
    %v1298 = vld [vmem:[%s1 + $0x2408] sm:$0xff]
    %v1299 = vld [vmem:[%s1 + $0x2410] sm:$0xff]
    %v1300 = vld [vmem:[%s1 + $0x2418] sm:$0xff]
    %v1301 = vld [vmem:[%s1 + $0x2420] sm:$0xff]
    %v1302 = vld [vmem:[%s1 + $0x2428] sm:$0xff]
    %v1303 = vld [vmem:[%s1 + $0x2430] sm:$0xff]
    %v1304 = vld [vmem:[%s1 + $0x2438] sm:$0xff]
    %v1305 = vld [vmem:[%s1 + $0x2440] sm:$0xff]
    %v1306 = vld [vmem:[%s1 + $0x2448] sm:$0xff]
    %v1307 = vld [vmem:[%s1 + $0x2450] sm:$0xff]
    %v1308 = vld [vmem:[%s1 + $0x2458] sm:$0xff]
    %v1309 = vld [vmem:[%s1 + $0x2460] sm:$0xff]
    %v1310 = vld [vmem:[%s1 + $0x2468] sm:$0xff]
    %v1311 = vld [vmem:[%s1 + $0x2470] sm:$0xff]
    %v1312 = vld [vmem:[%s1 + $0x2478] sm:$0xff]
    %v1313 = vld [vmem:[%s1 + $0x2480] sm:$0xff]
    %v1314 = vld [vmem:[%s1 + $0x2488] sm:$0xff]
    %v1315 = vld [vmem:[%s1 + $0x2490] sm:$0xff]
    %v1316 = vld [vmem:[%s1 + $0x2498] sm:$0xff]
    %v1317 = vld [vmem:[%s1 + $0x24a0] sm:$0xff]
    %v1318 = vld [vmem:[%s1 + $0x24a8] sm:$0xff]
    %v1319 = vld [vmem:[%s1 + $0x24b0] sm:$0xff]
    %v1320 = vld [vmem:[%s1 + $0x24b8] sm:$0xff]
    %v1321 = vld [vmem:[%s1 + $0x24c0] sm:$0xff]
    %v1322 = vld [vmem:[%s1 + $0x24c8] sm:$0xff]
    %v1323 = vld [vmem:[%s1 + $0x24d0] sm:$0xff]
    %v1324 = vld [vmem:[%s1 + $0x24d8] sm:$0xff]
    %v1325 = vld [vmem:[%s1 + $0x24e0] sm:$0xff]
    %v1326 = vld [vmem:[%s1 + $0x24e8] sm:$0xff]
    %v1327 = vld [vmem:[%s1 + $0x24f0] sm:$0xff]
    %v1328 = vld [vmem:[%s1 + $0x24f8] sm:$0xff]
    %v1329 = vld [vmem:[%s1 + $0x2500] sm:$0xff]
    %v1330 = vld [vmem:[%s1 + $0x2508] sm:$0xff]
    %v1331 = vld [vmem:[%s1 + $0x2510] sm:$0xff]
    %v1332 = vld [vmem:[%s1 + $0x2518] sm:$0xff]
    %v1333 = vld [vmem:[%s1 + $0x2520] sm:$0xff]
    %v1334 = vld [vmem:[%s1 + $0x2528] sm:$0xff]
    %v1335 = vld [vmem:[%s1 + $0x2530] sm:$0xff]
    %v1336 = vld [vmem:[%s1 + $0x2538] sm:$0xff]
    %v1337 = vld [vmem:[%s1 + $0x2540] sm:$0xff]
    %v1338 = vld [vmem:[%s1 + $0x2548] sm:$0xff]
    %v1339 = vld [vmem:[%s1 + $0x2550] sm:$0xff]
    %v1340 = vld [vmem:[%s1 + $0x2558] sm:$0xff]
    %v1341 = vld [vmem:[%s1 + $0x2560] sm:$0xff]
    %v1342 = vld [vmem:[%s1 + $0x2568] sm:$0xff]
    %v1343 = vld [vmem:[%s1 + $0x2570] sm:$0xff]
    %v1344 = vld [vmem:[%s1 + $0x2578] sm:$0xff]
    %v1345 = vld [vmem:[%s1 + $0x2580] sm:$0xff]
    %v1346 = vld [vmem:[%s1 + $0x2588] sm:$0xff]
    %v1347 = vld [vmem:[%s1 + $0x2590] sm:$0xff]
    %v1348 = vld [vmem:[%s1 + $0x2598] sm:$0xff]
    %v1349 = vld [vmem:[%s1 + $0x25a0] sm:$0xff]
    %v1350 = vld [vmem:[%s1 + $0x25a8] sm:$0xff]
    %v1351 = vld [vmem:[%s1 + $0x25b0] sm:$0xff]
    %v1352 = vld [vmem:[%s1 + $0x25b8] sm:$0xff]
    %v1353 = vld [vmem:[%s1 + $0x25c0] sm:$0xff]
    %v1354 = vld [vmem:[%s1 + $0x25c8] sm:$0xff]
    %v1355 = vld [vmem:[%s1 + $0x25d0] sm:$0xff]
    %v1356 = vld [vmem:[%s1 + $0x25d8] sm:$0xff]
    %v1357 = vld [vmem:[%s1 + $0x25e0] sm:$0xff]
    %v1358 = vld [vmem:[%s1 + $0x25e8] sm:$0xff]
    %v1359 = vld [vmem:[%s1 + $0x25f0] sm:$0xff]
    %v1360 = vld [vmem:[%s1 + $0x25f8] sm:$0xff]
    %v1361 = vld [vmem:[%s1 + $0x2600] sm:$0xff]
    %v1362 = vld [vmem:[%s1 + $0x2608] sm:$0xff]
    %v1363 = vld [vmem:[%s1 + $0x2610] sm:$0xff]
    %v1364 = vld [vmem:[%s1 + $0x2618] sm:$0xff]
    %v1365 = vld [vmem:[%s1 + $0x2620] sm:$0xff]
    %v1366 = vld [vmem:[%s1 + $0x2628] sm:$0xff]
    %v1367 = vld [vmem:[%s1 + $0x2630] sm:$0xff]
    %v1368 = vld [vmem:[%s1 + $0x2638] sm:$0xff]
    %v1369 = vld [vmem:[%s1 + $0x2640] sm:$0xff]
    %v1370 = vld [vmem:[%s1 + $0x2648] sm:$0xff]
    %v1371 = vld [vmem:[%s1 + $0x2650] sm:$0xff]
    %v1372 = vld [vmem:[%s1 + $0x2658] sm:$0xff]
    %v1373 = vld [vmem:[%s1 + $0x2660] sm:$0xff]
    %v1374 = vld [vmem:[%s1 + $0x2668] sm:$0xff]
    %v1375 = vld [vmem:[%s1 + $0x2670] sm:$0xff]
    %v1376 = vld [vmem:[%s1 + $0x2678] sm:$0xff]
    %v1377 = vld [vmem:[%s1 + $0x2680] sm:$0xff]
    %v1378 = vld [vmem:[%s1 + $0x2688] sm:$0xff]
    %v1379 = vld [vmem:[%s1 + $0x2690] sm:$0xff]
    %v1380 = vld [vmem:[%s1 + $0x2698] sm:$0xff]
    %v1381 = vld [vmem:[%s1 + $0x26a0] sm:$0xff]
    %v1382 = vld [vmem:[%s1 + $0x26a8] sm:$0xff]
    %v1383 = vld [vmem:[%s1 + $0x26b0] sm:$0xff]
    %v1384 = vld [vmem:[%s1 + $0x26b8] sm:$0xff]
    %v1385 = vld [vmem:[%s1 + $0x26c0] sm:$0xff]
    %v1386 = vld [vmem:[%s1 + $0x26c8] sm:$0xff]
    %v1387 = vld [vmem:[%s1 + $0x26d0] sm:$0xff]
    %v1388 = vld [vmem:[%s1 + $0x26d8] sm:$0xff]
    %v1389 = vld [vmem:[%s1 + $0x26e0] sm:$0xff]
    %v1390 = vld [vmem:[%s1 + $0x26e8] sm:$0xff]
    %v1391 = vld [vmem:[%s1 + $0x26f0] sm:$0xff]
    %v1392 = vld [vmem:[%s1 + $0x26f8] sm:$0xff]
    %v1393 = vld [vmem:[%s1 + $0x2700] sm:$0xff]
    %v1394 = vld [vmem:[%s1 + $0x2708] sm:$0xff]
    %v1395 = vld [vmem:[%s1 + $0x2710] sm:$0xff]
    %v1396 = vld [vmem:[%s1 + $0x2718] sm:$0xff]
    %v1397 = vld [vmem:[%s1 + $0x2720] sm:$0xff]
    %v1398 = vld [vmem:[%s1 + $0x2728] sm:$0xff]
    %v1399 = vld [vmem:[%s1 + $0x2730] sm:$0xff]
    %v1400 = vld [vmem:[%s1 + $0x2738] sm:$0xff]
    %v1401 = vld [vmem:[%s1 + $0x2740] sm:$0xff]
    %v1402 = vld [vmem:[%s1 + $0x2748] sm:$0xff]
    %v1403 = vld [vmem:[%s1 + $0x2750] sm:$0xff]
    %v1404 = vld [vmem:[%s1 + $0x2758] sm:$0xff]
    %v1405 = vld [vmem:[%s1 + $0x2760] sm:$0xff]
    %v1406 = vld [vmem:[%s1 + $0x2768] sm:$0xff]
    %v1407 = vld [vmem:[%s1 + $0x2770] sm:$0xff]
    %v1408 = vld [vmem:[%s1 + $0x2778] sm:$0xff]
    %v1409 = vld [vmem:[%s1 + $0x2780] sm:$0xff]
    %v1410 = vld [vmem:[%s1 + $0x2788] sm:$0xff]
    %v1411 = vld [vmem:[%s1 + $0x2790] sm:$0xff]
    %v1412 = vld [vmem:[%s1 + $0x2798] sm:$0xff]
    %v1413 = vld [vmem:[%s1 + $0x27a0] sm:$0xff]
    %v1414 = vld [vmem:[%s1 + $0x27a8] sm:$0xff]
    %v1415 = vld [vmem:[%s1 + $0x27b0] sm:$0xff]
    %v1416 = vld [vmem:[%s1 + $0x27b8] sm:$0xff]
    %v1417 = vld [vmem:[%s1 + $0x27c0] sm:$0xff]
    %v1418 = vld [vmem:[%s1 + $0x27c8] sm:$0xff]
    %v1419 = vld [vmem:[%s1 + $0x27d0] sm:$0xff]
    %v1420 = vld [vmem:[%s1 + $0x27d8] sm:$0xff]
    %v1421 = vld [vmem:[%s1 + $0x27e0] sm:$0xff]
    %v1422 = vld [vmem:[%s1 + $0x27e8] sm:$0xff]
    %v1423 = vld [vmem:[%s1 + $0x27f0] sm:$0xff]
    %v1424 = vld [vmem:[%s1 + $0x27f8] sm:$0xff]
    %v1425 = vld [vmem:[%s1 + $0x2800] sm:$0xff]
    %v1426 = vld [vmem:[%s1 + $0x2808] sm:$0xff]
    %v1427 = vld [vmem:[%s1 + $0x2810] sm:$0xff]
    %v1428 = vld [vmem:[%s1 + $0x2818] sm:$0xff]
    %v1429 = vld [vmem:[%s1 + $0x2820] sm:$0xff]
    %v1430 = vld [vmem:[%s1 + $0x2828] sm:$0xff]
    %v1431 = vld [vmem:[%s1 + $0x2830] sm:$0xff]
    %v1432 = vld [vmem:[%s1 + $0x2838] sm:$0xff]
    %v1433 = vld [vmem:[%s1 + $0x2840] sm:$0xff]
    %v1434 = vld [vmem:[%s1 + $0x2848] sm:$0xff]
    %v1435 = vld [vmem:[%s1 + $0x2850] sm:$0xff]
    %v1436 = vld [vmem:[%s1 + $0x2858] sm:$0xff]
    %v1437 = vld [vmem:[%s1 + $0x2860] sm:$0xff]
    %v1438 = vld [vmem:[%s1 + $0x2868] sm:$0xff]
    %v1439 = vld [vmem:[%s1 + $0x2870] sm:$0xff]
    %v1440 = vld [vmem:[%s1 + $0x2878] sm:$0xff]
    %v1441 = vld [vmem:[%s1 + $0x2880] sm:$0xff]
    %v1442 = vld [vmem:[%s1 + $0x2888] sm:$0xff]
    %v1443 = vld [vmem:[%s1 + $0x2890] sm:$0xff]
    %v1444 = vld [vmem:[%s1 + $0x2898] sm:$0xff]
    %v1445 = vld [vmem:[%s1 + $0x28a0] sm:$0xff]
    %v1446 = vld [vmem:[%s1 + $0x28a8] sm:$0xff]
    %v1447 = vld [vmem:[%s1 + $0x28b0] sm:$0xff]
    %v1448 = vld [vmem:[%s1 + $0x28b8] sm:$0xff]
    %v1449 = vld [vmem:[%s1 + $0x28c0] sm:$0xff]
    %v1450 = vld [vmem:[%s1 + $0x28c8] sm:$0xff]
    %v1451 = vld [vmem:[%s1 + $0x28d0] sm:$0xff]
    %v1452 = vld [vmem:[%s1 + $0x28d8] sm:$0xff]
    %v1453 = vld [vmem:[%s1 + $0x28e0] sm:$0xff]
    %v1454 = vld [vmem:[%s1 + $0x28e8] sm:$0xff]
    %v1455 = vld [vmem:[%s1 + $0x28f0] sm:$0xff]
    %v1456 = vld [vmem:[%s1 + $0x28f8] sm:$0xff]
    %v1457 = vld [vmem:[%s1 + $0x2900] sm:$0xff]
    %v1458 = vld [vmem:[%s1 + $0x2908] sm:$0xff]
    %v1459 = vld [vmem:[%s1 + $0x2910] sm:$0xff]
    %v1460 = vld [vmem:[%s1 + $0x2918] sm:$0xff]
    %v1461 = vld [vmem:[%s1 + $0x2920] sm:$0xff]
    %v1462 = vld [vmem:[%s1 + $0x2928] sm:$0xff]
    %v1463 = vld [vmem:[%s1 + $0x2930] sm:$0xff]
    %v1464 = vld [vmem:[%s1 + $0x2938] sm:$0xff]
    %v1465 = vld [vmem:[%s1 + $0x2940] sm:$0xff]
    %v1466 = vld [vmem:[%s1 + $0x2948] sm:$0xff]
    %v1467 = vld [vmem:[%s1 + $0x2950] sm:$0xff]
    %v1468 = vld [vmem:[%s1 + $0x2958] sm:$0xff]
    %v1469 = vld [vmem:[%s1 + $0x2960] sm:$0xff]
    %v1470 = vld [vmem:[%s1 + $0x2968] sm:$0xff]
    %v1471 = vld [vmem:[%s1 + $0x2970] sm:$0xff]
    %v1472 = vld [vmem:[%s1 + $0x2978] sm:$0xff]
    %v1473 = vld [vmem:[%s1 + $0x2980] sm:$0xff]
    %v1474 = vld [vmem:[%s1 + $0x2988] sm:$0xff]
    %v1475 = vld [vmem:[%s1 + $0x2990] sm:$0xff]
    %v1476 = vld [vmem:[%s1 + $0x2998] sm:$0xff]
    %v1477 = vld [vmem:[%s1 + $0x29a0] sm:$0xff]
    %v1478 = vld [vmem:[%s1 + $0x29a8] sm:$0xff]
    %v1479 = vld [vmem:[%s1 + $0x29b0] sm:$0xff]
    %v1480 = vld [vmem:[%s1 + $0x29b8] sm:$0xff]
    %v1481 = vld [vmem:[%s1 + $0x29c0] sm:$0xff]
    %v1482 = vld [vmem:[%s1 + $0x29c8] sm:$0xff]
    %v1483 = vld [vmem:[%s1 + $0x29d0] sm:$0xff]
    %v1484 = vld [vmem:[%s1 + $0x29d8] sm:$0xff]
    %v1485 = vld [vmem:[%s1 + $0x29e0] sm:$0xff]
    %v1486 = vld [vmem:[%s1 + $0x29e8] sm:$0xff]
    %v1487 = vld [vmem:[%s1 + $0x29f0] sm:$0xff]
    %v1488 = vld [vmem:[%s1 + $0x29f8] sm:$0xff]
    %v1489 = vld [vmem:[%s1 + $0x2a00] sm:$0xff]
    %v1490 = vld [vmem:[%s1 + $0x2a08] sm:$0xff]
    %v1491 = vld [vmem:[%s1 + $0x2a10] sm:$0xff]
    %v1492 = vld [vmem:[%s1 + $0x2a18] sm:$0xff]
    %v1493 = vld [vmem:[%s1 + $0x2a20] sm:$0xff]
    %v1494 = vld [vmem:[%s1 + $0x2a28] sm:$0xff]
    %v1495 = vld [vmem:[%s1 + $0x2a30] sm:$0xff]
    %v1496 = vld [vmem:[%s1 + $0x2a38] sm:$0xff]
    %v1497 = vld [vmem:[%s1 + $0x2a40] sm:$0xff]
    %v1498 = vld [vmem:[%s1 + $0x2a48] sm:$0xff]
    %v1499 = vld [vmem:[%s1 + $0x2a50] sm:$0xff]
    %v1500 = vld [vmem:[%s1 + $0x2a58] sm:$0xff]
    %v1501 = vld [vmem:[%s1 + $0x2a60] sm:$0xff]
    %v1502 = vld [vmem:[%s1 + $0x2a68] sm:$0xff]
    %v1503 = vld [vmem:[%s1 + $0x2a70] sm:$0xff]
    %v1504 = vld [vmem:[%s1 + $0x2a78] sm:$0xff]
    %v1505 = vld [vmem:[%s1 + $0x2a80] sm:$0xff]
    %v1506 = vld [vmem:[%s1 + $0x2a88] sm:$0xff]
    %v1507 = vld [vmem:[%s1 + $0x2a90] sm:$0xff]
    %v1508 = vld [vmem:[%s1 + $0x2a98] sm:$0xff]
    %v1509 = vld [vmem:[%s1 + $0x2aa0] sm:$0xff]
    %v1510 = vld [vmem:[%s1 + $0x2aa8] sm:$0xff]
    %v1511 = vld [vmem:[%s1 + $0x2ab0] sm:$0xff]
    %v1512 = vld [vmem:[%s1 + $0x2ab8] sm:$0xff]
    %v1513 = vld [vmem:[%s1 + $0x2ac0] sm:$0xff]
    %v1514 = vld [vmem:[%s1 + $0x2ac8] sm:$0xff]
    %v1515 = vld [vmem:[%s1 + $0x2ad0] sm:$0xff]
    %v1516 = vld [vmem:[%s1 + $0x2ad8] sm:$0xff]
    %v1517 = vld [vmem:[%s1 + $0x2ae0] sm:$0xff]
    %v1518 = vld [vmem:[%s1 + $0x2ae8] sm:$0xff]
    %v1519 = vld [vmem:[%s1 + $0x2af0] sm:$0xff]
    %v1520 = vld [vmem:[%s1 + $0x2af8] sm:$0xff]
    %v1521 = vld [vmem:[%s1 + $0x2b00] sm:$0xff]
    %v1522 = vld [vmem:[%s1 + $0x2b08] sm:$0xff]
    %v1523 = vld [vmem:[%s1 + $0x2b10] sm:$0xff]
    %v1524 = vld [vmem:[%s1 + $0x2b18] sm:$0xff]
    %v1525 = vld [vmem:[%s1 + $0x2b20] sm:$0xff]
    %v1526 = vld [vmem:[%s1 + $0x2b28] sm:$0xff]
    %v1527 = vld [vmem:[%s1 + $0x2b30] sm:$0xff]
    %v1528 = vld [vmem:[%s1 + $0x2b38] sm:$0xff]
    %v1529 = vld [vmem:[%s1 + $0x2b40] sm:$0xff]
    %v1530 = vld [vmem:[%s1 + $0x2b48] sm:$0xff]
    %v1531 = vld [vmem:[%s1 + $0x2b50] sm:$0xff]
    %v1532 = vld [vmem:[%s1 + $0x2b58] sm:$0xff]
    %v1533 = vld [vmem:[%s1 + $0x2b60] sm:$0xff]
    %v1534 = vld [vmem:[%s1 + $0x2b68] sm:$0xff]
    %v1535 = vld [vmem:[%s1 + $0x2b70] sm:$0xff]
    %v1536 = vld [vmem:[%s1 + $0x2b78] sm:$0xff]
    %v1537 = vld [vmem:[%s1 + $0x2b80] sm:$0xff]
    %v1538 = vld [vmem:[%s1 + $0x2b88] sm:$0xff]
    %v1539 = vld [vmem:[%s1 + $0x2b90] sm:$0xff]
    %v1540 = vld [vmem:[%s1 + $0x2b98] sm:$0xff]
    %v1541 = vld [vmem:[%s1 + $0x2ba0] sm:$0xff]
    %v1542 = vld [vmem:[%s1 + $0x2ba8] sm:$0xff]
    %v1543 = vld [vmem:[%s1 + $0x2bb0] sm:$0xff]
    %v1544 = vld [vmem:[%s1 + $0x2bb8] sm:$0xff]
    %v1545 = vld [vmem:[%s1 + $0x2bc0] sm:$0xff]
    %v1546 = vld [vmem:[%s1 + $0x2bc8] sm:$0xff]
    %v1547 = vld [vmem:[%s1 + $0x2bd0] sm:$0xff]
    %v1548 = vld [vmem:[%s1 + $0x2bd8] sm:$0xff]
    %v1549 = vld [vmem:[%s1 + $0x2be0] sm:$0xff]
    %v1550 = vld [vmem:[%s1 + $0x2be8] sm:$0xff]
    %v1551 = vld [vmem:[%s1 + $0x2bf0] sm:$0xff]
    %v1552 = vld [vmem:[%s1 + $0x2bf8] sm:$0xff]
    %v1553 = vld [vmem:[%s1 + $0x2c00] sm:$0xff]
    %v1554 = vld [vmem:[%s1 + $0x2c08] sm:$0xff]
    %v1555 = vld [vmem:[%s1 + $0x2c10] sm:$0xff]
    %v1556 = vld [vmem:[%s1 + $0x2c18] sm:$0xff]
    %v1557 = vld [vmem:[%s1 + $0x2c20] sm:$0xff]
    %v1558 = vld [vmem:[%s1 + $0x2c28] sm:$0xff]
    %v1559 = vld [vmem:[%s1 + $0x2c30] sm:$0xff]
    %v1560 = vld [vmem:[%s1 + $0x2c38] sm:$0xff]
    %v1561 = vld [vmem:[%s1 + $0x2c40] sm:$0xff]
    %v1562 = vld [vmem:[%s1 + $0x2c48] sm:$0xff]
    %v1563 = vld [vmem:[%s1 + $0x2c50] sm:$0xff]
    %v1564 = vld [vmem:[%s1 + $0x2c58] sm:$0xff]
    %v1565 = vld [vmem:[%s1 + $0x2c60] sm:$0xff]
    %v1566 = vld [vmem:[%s1 + $0x2c68] sm:$0xff]
    %v1567 = vld [vmem:[%s1 + $0x2c70] sm:$0xff]
    %v1568 = vld [vmem:[%s1 + $0x2c78] sm:$0xff]
    %v1569 = vld [vmem:[%s1 + $0x2c80] sm:$0xff]
    %v1570 = vld [vmem:[%s1 + $0x2c88] sm:$0xff]
    %v1571 = vld [vmem:[%s1 + $0x2c90] sm:$0xff]
    %v1572 = vld [vmem:[%s1 + $0x2c98] sm:$0xff]
    %v1573 = vld [vmem:[%s1 + $0x2ca0] sm:$0xff]
    %v1574 = vld [vmem:[%s1 + $0x2ca8] sm:$0xff]
    %v1575 = vld [vmem:[%s1 + $0x2cb0] sm:$0xff]
    %v1576 = vld [vmem:[%s1 + $0x2cb8] sm:$0xff]
    %v1577 = vld [vmem:[%s1 + $0x2cc0] sm:$0xff]
    %v1578 = vld [vmem:[%s1 + $0x2cc8] sm:$0xff]
    %v1579 = vld [vmem:[%s1 + $0x2cd0] sm:$0xff]
    %v1580 = vld [vmem:[%s1 + $0x2cd8] sm:$0xff]
    %v1581 = vld [vmem:[%s1 + $0x2ce0] sm:$0xff]
    %v1582 = vld [vmem:[%s1 + $0x2ce8] sm:$0xff]
    %v1583 = vld [vmem:[%s1 + $0x2cf0] sm:$0xff]
    %v1584 = vld [vmem:[%s1 + $0x2cf8] sm:$0xff]
    %v1585 = vld [vmem:[%s1 + $0x2d00] sm:$0xff]
    %v1586 = vld [vmem:[%s1 + $0x2d08] sm:$0xff]
    %v1587 = vld [vmem:[%s1 + $0x2d10] sm:$0xff]
    %v1588 = vld [vmem:[%s1 + $0x2d18] sm:$0xff]
    %v1589 = vld [vmem:[%s1 + $0x2d20] sm:$0xff]
    %v1590 = vld [vmem:[%s1 + $0x2d28] sm:$0xff]
    %v1591 = vld [vmem:[%s1 + $0x2d30] sm:$0xff]
    %v1592 = vld [vmem:[%s1 + $0x2d38] sm:$0xff]
    %v1593 = vld [vmem:[%s1 + $0x2d40] sm:$0xff]
    %v1594 = vld [vmem:[%s1 + $0x2d48] sm:$0xff]
    %v1595 = vld [vmem:[%s1 + $0x2d50] sm:$0xff]
    %v1596 = vld [vmem:[%s1 + $0x2d58] sm:$0xff]
    %v1597 = vld [vmem:[%s1 + $0x2d60] sm:$0xff]
    %v1598 = vld [vmem:[%s1 + $0x2d68] sm:$0xff]
    %v1599 = vld [vmem:[%s1 + $0x2d70] sm:$0xff]
    %v1600 = vld [vmem:[%s1 + $0x2d78] sm:$0xff]
    %v1601 = vld [vmem:[%s1 + $0x2d80] sm:$0xff]
    %v1602 = vld [vmem:[%s1 + $0x2d88] sm:$0xff]
    %v1603 = vld [vmem:[%s1 + $0x2d90] sm:$0xff]
    %v1604 = vld [vmem:[%s1 + $0x2d98] sm:$0xff]
    %v1605 = vld [vmem:[%s1 + $0x2da0] sm:$0xff]
    %v1606 = vld [vmem:[%s1 + $0x2da8] sm:$0xff]
    %v1607 = vld [vmem:[%s1 + $0x2db0] sm:$0xff]
    %v1608 = vld [vmem:[%s1 + $0x2db8] sm:$0xff]
    %v1609 = vld [vmem:[%s1 + $0x2dc0] sm:$0xff]
    %v1610 = vld [vmem:[%s1 + $0x2dc8] sm:$0xff]
    %v1611 = vld [vmem:[%s1 + $0x2dd0] sm:$0xff]
    %v1612 = vld [vmem:[%s1 + $0x2dd8] sm:$0xff]
    %v1613 = vld [vmem:[%s1 + $0x2de0] sm:$0xff]
    %v1614 = vld [vmem:[%s1 + $0x2de8] sm:$0xff]
    %v1615 = vld [vmem:[%s1 + $0x2df0] sm:$0xff]
    %v1616 = vld [vmem:[%s1 + $0x2df8] sm:$0xff]
    %v1617 = vld [vmem:[%s1 + $0x2e00] sm:$0xff]
    %v1618 = vld [vmem:[%s1 + $0x2e08] sm:$0xff]
    %v1619 = vld [vmem:[%s1 + $0x2e10] sm:$0xff]
    %v1620 = vld [vmem:[%s1 + $0x2e18] sm:$0xff]
    %v1621 = vld [vmem:[%s1 + $0x2e20] sm:$0xff]
    %v1622 = vld [vmem:[%s1 + $0x2e28] sm:$0xff]
    %v1623 = vld [vmem:[%s1 + $0x2e30] sm:$0xff]
    %v1624 = vld [vmem:[%s1 + $0x2e38] sm:$0xff]
    %v1625 = vld [vmem:[%s1 + $0x2e40] sm:$0xff]
    %v1626 = vld [vmem:[%s1 + $0x2e48] sm:$0xff]
    %v1627 = vld [vmem:[%s1 + $0x2e50] sm:$0xff]
    %v1628 = vld [vmem:[%s1 + $0x2e58] sm:$0xff]
    %v1629 = vld [vmem:[%s1 + $0x2e60] sm:$0xff]
    %v1630 = vld [vmem:[%s1 + $0x2e68] sm:$0xff]
    %v1631 = vld [vmem:[%s1 + $0x2e70] sm:$0xff]
    %v1632 = vld [vmem:[%s1 + $0x2e78] sm:$0xff]
    %v1633 = vld [vmem:[%s1 + $0x2e80] sm:$0xff]
    %v1634 = vld [vmem:[%s1 + $0x2e88] sm:$0xff]
    %v1635 = vld [vmem:[%s1 + $0x2e90] sm:$0xff]
    %v1636 = vld [vmem:[%s1 + $0x2e98] sm:$0xff]
    %v1637 = vld [vmem:[%s1 + $0x2ea0] sm:$0xff]
    %v1638 = vld [vmem:[%s1 + $0x2ea8] sm:$0xff]
    %v1639 = vld [vmem:[%s1 + $0x2eb0] sm:$0xff]
    %v1640 = vld [vmem:[%s1 + $0x2eb8] sm:$0xff]
    %v1641 = vld [vmem:[%s1 + $0x2ec0] sm:$0xff]
    %v1642 = vld [vmem:[%s1 + $0x2ec8] sm:$0xff]
    %v1643 = vld [vmem:[%s1 + $0x2ed0] sm:$0xff]
    %v1644 = vld [vmem:[%s1 + $0x2ed8] sm:$0xff]
    %v1645 = vld [vmem:[%s1 + $0x2ee0] sm:$0xff]
    %v1646 = vld [vmem:[%s1 + $0x2ee8] sm:$0xff]
    %v1647 = vld [vmem:[%s1 + $0x2ef0] sm:$0xff]
    %v1648 = vld [vmem:[%s1 + $0x2ef8] sm:$0xff]
    %v1649 = vld [vmem:[%s1 + $0x2f00] sm:$0xff]
    %v1650 = vld [vmem:[%s1 + $0x2f08] sm:$0xff]
    %v1651 = vld [vmem:[%s1 + $0x2f10] sm:$0xff]
    %v1652 = vld [vmem:[%s1 + $0x2f18] sm:$0xff]
    %v1653 = vld [vmem:[%s1 + $0x2f20] sm:$0xff]
    %v1654 = vld [vmem:[%s1 + $0x2f28] sm:$0xff]
    %v1655 = vld [vmem:[%s1 + $0x2f30] sm:$0xff]
    %v1656 = vld [vmem:[%s1 + $0x2f38] sm:$0xff]
    %v1657 = vld [vmem:[%s1 + $0x2f40] sm:$0xff]
    %v1658 = vld [vmem:[%s1 + $0x2f48] sm:$0xff]
    %v1659 = vld [vmem:[%s1 + $0x2f50] sm:$0xff]
    %v1660 = vld [vmem:[%s1 + $0x2f58] sm:$0xff]
    %v1661 = vld [vmem:[%s1 + $0x2f60] sm:$0xff]
    %v1662 = vld [vmem:[%s1 + $0x2f68] sm:$0xff]
    %v1663 = vld [vmem:[%s1 + $0x2f70] sm:$0xff]
    %v1664 = vld [vmem:[%s1 + $0x2f78] sm:$0xff]
    %v1665 = vld [vmem:[%s1 + $0x2f80] sm:$0xff]
    %v1666 = vld [vmem:[%s1 + $0x2f88] sm:$0xff]
    %v1667 = vld [vmem:[%s1 + $0x2f90] sm:$0xff]
    %v1668 = vld [vmem:[%s1 + $0x2f98] sm:$0xff]
    %v1669 = vld [vmem:[%s1 + $0x2fa0] sm:$0xff]
    %v1670 = vld [vmem:[%s1 + $0x2fa8] sm:$0xff]
    %v1671 = vld [vmem:[%s1 + $0x2fb0] sm:$0xff]
    %v1672 = vld [vmem:[%s1 + $0x2fb8] sm:$0xff]
    %v1673 = vld [vmem:[%s1 + $0x2fc0] sm:$0xff]
    %v1674 = vld [vmem:[%s1 + $0x2fc8] sm:$0xff]
    %v1675 = vld [vmem:[%s1 + $0x2fd0] sm:$0xff]
    %v1676 = vld [vmem:[%s1 + $0x2fd8] sm:$0xff]
    %v1677 = vld [vmem:[%s1 + $0x2fe0] sm:$0xff]
    %v1678 = vld [vmem:[%s1 + $0x2fe8] sm:$0xff]
    %v1679 = vld [vmem:[%s1 + $0x2ff0] sm:$0xff]
    %v1680 = vld [vmem:[%s1 + $0x2ff8] sm:$0xff]
    %v1681 = vld [vmem:[%s1 + $0x3000] sm:$0xff]
    %v1682 = vld [vmem:[%s1 + $0x3008] sm:$0xff]
    %v1683 = vld [vmem:[%s1 + $0x3010] sm:$0xff]
    %v1684 = vld [vmem:[%s1 + $0x3018] sm:$0xff]
    %v1685 = vld [vmem:[%s1 + $0x3020] sm:$0xff]
    %v1686 = vld [vmem:[%s1 + $0x3028] sm:$0xff]
    %v1687 = vld [vmem:[%s1 + $0x3030] sm:$0xff]
    %v1688 = vld [vmem:[%s1 + $0x3038] sm:$0xff]
    %v1689 = vld [vmem:[%s1 + $0x3040] sm:$0xff]
    %v1690 = vld [vmem:[%s1 + $0x3048] sm:$0xff]
    %v1691 = vld [vmem:[%s1 + $0x3050] sm:$0xff]
    %v1692 = vld [vmem:[%s1 + $0x3058] sm:$0xff]
    %v1693 = vld [vmem:[%s1 + $0x3060] sm:$0xff]
    %v1694 = vld [vmem:[%s1 + $0x3068] sm:$0xff]
    %v1695 = vld [vmem:[%s1 + $0x3070] sm:$0xff]
    %v1696 = vld [vmem:[%s1 + $0x3078] sm:$0xff]
    %v1697 = vld [vmem:[%s1 + $0x3080] sm:$0xff]
    %v1698 = vld [vmem:[%s1 + $0x3088] sm:$0xff]
    %v1699 = vld [vmem:[%s1 + $0x3090] sm:$0xff]
    %v1700 = vld [vmem:[%s1 + $0x3098] sm:$0xff]
    %v1701 = vld [vmem:[%s1 + $0x30a0] sm:$0xff]
    %v1702 = vld [vmem:[%s1 + $0x30a8] sm:$0xff]
    %v1703 = vld [vmem:[%s1 + $0x30b0] sm:$0xff]
    %v1704 = vld [vmem:[%s1 + $0x30b8] sm:$0xff]
    %v1705 = vld [vmem:[%s1 + $0x30c0] sm:$0xff]
    %v1706 = vld [vmem:[%s1 + $0x30c8] sm:$0xff]
    %v1707 = vld [vmem:[%s1 + $0x30d0] sm:$0xff]
    %v1708 = vld [vmem:[%s1 + $0x30d8] sm:$0xff]
    %v1709 = vld [vmem:[%s1 + $0x30e0] sm:$0xff]
    %v1710 = vld [vmem:[%s1 + $0x30e8] sm:$0xff]
    %v1711 = vld [vmem:[%s1 + $0x30f0] sm:$0xff]
    %v1712 = vld [vmem:[%s1 + $0x30f8] sm:$0xff]
    %v1713 = vld [vmem:[%s1 + $0x3100] sm:$0xff]
    %v1714 = vld [vmem:[%s1 + $0x3108] sm:$0xff]
    %v1715 = vld [vmem:[%s1 + $0x3110] sm:$0xff]
    %v1716 = vld [vmem:[%s1 + $0x3118] sm:$0xff]
    %v1717 = vld [vmem:[%s1 + $0x3120] sm:$0xff]
    %v1718 = vld [vmem:[%s1 + $0x3128] sm:$0xff]
    %v1719 = vld [vmem:[%s1 + $0x3130] sm:$0xff]
    %v1720 = vld [vmem:[%s1 + $0x3138] sm:$0xff]
    %v1721 = vld [vmem:[%s1 + $0x3140] sm:$0xff]
    %v1722 = vld [vmem:[%s1 + $0x3148] sm:$0xff]
    %v1723 = vld [vmem:[%s1 + $0x3150] sm:$0xff]
    %v1724 = vld [vmem:[%s1 + $0x3158] sm:$0xff]
    %v1725 = vld [vmem:[%s1 + $0x3160] sm:$0xff]
    %v1726 = vld [vmem:[%s1 + $0x3168] sm:$0xff]
    %v1727 = vld [vmem:[%s1 + $0x3170] sm:$0xff]
    %v1728 = vld [vmem:[%s1 + $0x3178] sm:$0xff]
    %v1729 = vld [vmem:[%s1 + $0x3180] sm:$0xff]
    %v1730 = vld [vmem:[%s1 + $0x3188] sm:$0xff]
    %v1731 = vld [vmem:[%s1 + $0x3190] sm:$0xff]
    %v1732 = vld [vmem:[%s1 + $0x3198] sm:$0xff]
    %v1733 = vld [vmem:[%s1 + $0x31a0] sm:$0xff]
    %v1734 = vld [vmem:[%s1 + $0x31a8] sm:$0xff]
    %v1735 = vld [vmem:[%s1 + $0x31b0] sm:$0xff]
    %v1736 = vld [vmem:[%s1 + $0x31b8] sm:$0xff]
    %v1737 = vld [vmem:[%s1 + $0x31c0] sm:$0xff]
    %v1738 = vld [vmem:[%s1 + $0x31c8] sm:$0xff]
    %v1739 = vld [vmem:[%s1 + $0x31d0] sm:$0xff]
    %v1740 = vld [vmem:[%s1 + $0x31d8] sm:$0xff]
    %v1741 = vld [vmem:[%s1 + $0x31e0] sm:$0xff]
    %v1742 = vld [vmem:[%s1 + $0x31e8] sm:$0xff]
    %v1743 = vld [vmem:[%s1 + $0x31f0] sm:$0xff]
    %v1744 = vld [vmem:[%s1 + $0x31f8] sm:$0xff]
    %v1745 = vld [vmem:[%s1 + $0x3200] sm:$0xff]
    %v1746 = vld [vmem:[%s1 + $0x3208] sm:$0xff]
    %v1747 = vld [vmem:[%s1 + $0x3210] sm:$0xff]
    %v1748 = vld [vmem:[%s1 + $0x3218] sm:$0xff]
    %v1749 = vld [vmem:[%s1 + $0x3220] sm:$0xff]
    %v1750 = vld [vmem:[%s1 + $0x3228] sm:$0xff]
    %v1751 = vld [vmem:[%s1 + $0x3230] sm:$0xff]
    %v1752 = vld [vmem:[%s1 + $0x3238] sm:$0xff]
    %v1753 = vld [vmem:[%s1 + $0x3240] sm:$0xff]
    %v1754 = vld [vmem:[%s1 + $0x3248] sm:$0xff]
    %v1755 = vld [vmem:[%s1 + $0x3250] sm:$0xff]
    %v1756 = vld [vmem:[%s1 + $0x3258] sm:$0xff]
    %v1757 = vld [vmem:[%s1 + $0x3260] sm:$0xff]
    %v1758 = vld [vmem:[%s1 + $0x3268] sm:$0xff]
    %v1759 = vld [vmem:[%s1 + $0x3270] sm:$0xff]
    %v1760 = vld [vmem:[%s1 + $0x3278] sm:$0xff]
    %v1761 = vld [vmem:[%s1 + $0x3280] sm:$0xff]
    %v1762 = vld [vmem:[%s1 + $0x3288] sm:$0xff]
    %v1763 = vld [vmem:[%s1 + $0x3290] sm:$0xff]
    %v1764 = vld [vmem:[%s1 + $0x3298] sm:$0xff]
    %v1765 = vld [vmem:[%s1 + $0x32a0] sm:$0xff]
    %v1766 = vld [vmem:[%s1 + $0x32a8] sm:$0xff]
    %v1767 = vld [vmem:[%s1 + $0x32b0] sm:$0xff]
    %v1768 = vld [vmem:[%s1 + $0x32b8] sm:$0xff]
    %v1769 = vld [vmem:[%s1 + $0x32c0] sm:$0xff]
    %v1770 = vld [vmem:[%s1 + $0x32c8] sm:$0xff]
    %v1771 = vld [vmem:[%s1 + $0x32d0] sm:$0xff]
    %v1772 = vld [vmem:[%s1 + $0x32d8] sm:$0xff]
    %v1773 = vld [vmem:[%s1 + $0x32e0] sm:$0xff]
    %v1774 = vld [vmem:[%s1 + $0x32e8] sm:$0xff]
    %v1775 = vld [vmem:[%s1 + $0x32f0] sm:$0xff]
    %v1776 = vld [vmem:[%s1 + $0x32f8] sm:$0xff]
    %v1777 = vld [vmem:[%s1 + $0x3300] sm:$0xff]
    %v1778 = vld [vmem:[%s1 + $0x3308] sm:$0xff]
    %v1779 = vld [vmem:[%s1 + $0x3310] sm:$0xff]
    %v1780 = vld [vmem:[%s1 + $0x3318] sm:$0xff]
    %v1781 = vld [vmem:[%s1 + $0x3320] sm:$0xff]
    %v1782 = vld [vmem:[%s1 + $0x3328] sm:$0xff]
    %v1783 = vld [vmem:[%s1 + $0x3330] sm:$0xff]
    %v1784 = vld [vmem:[%s1 + $0x3338] sm:$0xff]
    %v1785 = vld [vmem:[%s1 + $0x3340] sm:$0xff]
    %v1786 = vld [vmem:[%s1 + $0x3348] sm:$0xff]
    %v1787 = vld [vmem:[%s1 + $0x3350] sm:$0xff]
    %v1788 = vld [vmem:[%s1 + $0x3358] sm:$0xff]
    %v1789 = vld [vmem:[%s1 + $0x3360] sm:$0xff]
    %v1790 = vld [vmem:[%s1 + $0x3368] sm:$0xff]
    %v1791 = vld [vmem:[%s1 + $0x3370] sm:$0xff]
    %v1792 = vld [vmem:[%s1 + $0x3378] sm:$0xff]
    %v1793 = vld [vmem:[%s1 + $0x3380] sm:$0xff]
    %v1794 = vld [vmem:[%s1 + $0x3388] sm:$0xff]
    %v1795 = vld [vmem:[%s1 + $0x3390] sm:$0xff]
    %v1796 = vld [vmem:[%s1 + $0x3398] sm:$0xff]
    %v1797 = vld [vmem:[%s1 + $0x33a0] sm:$0xff]
    %v1798 = vld [vmem:[%s1 + $0x33a8] sm:$0xff]
    %v1799 = vld [vmem:[%s1 + $0x33b0] sm:$0xff]
    %v1800 = vld [vmem:[%s1 + $0x33b8] sm:$0xff]
    %v1801 = vld [vmem:[%s1 + $0x33c0] sm:$0xff]
    %v1802 = vld [vmem:[%s1 + $0x33c8] sm:$0xff]
    %v1803 = vld [vmem:[%s1 + $0x33d0] sm:$0xff]
    %v1804 = vld [vmem:[%s1 + $0x33d8] sm:$0xff]
    %v1805 = vld [vmem:[%s1 + $0x33e0] sm:$0xff]
    %v1806 = vld [vmem:[%s1 + $0x33e8] sm:$0xff]
    %v1807 = vld [vmem:[%s1 + $0x33f0] sm:$0xff]
    %v1808 = vld [vmem:[%s1 + $0x33f8] sm:$0xff]
    %v1809 = vld [vmem:[%s1 + $0x3400] sm:$0xff]
    %v1810 = vld [vmem:[%s1 + $0x3408] sm:$0xff]
    %v1811 = vld [vmem:[%s1 + $0x3410] sm:$0xff]
    %v1812 = vld [vmem:[%s1 + $0x3418] sm:$0xff]
    %v1813 = vld [vmem:[%s1 + $0x3420] sm:$0xff]
    %v1814 = vld [vmem:[%s1 + $0x3428] sm:$0xff]
    %v1815 = vld [vmem:[%s1 + $0x3430] sm:$0xff]
    %v1816 = vld [vmem:[%s1 + $0x3438] sm:$0xff]
    %v1817 = vld [vmem:[%s1 + $0x3440] sm:$0xff]
    %v1818 = vld [vmem:[%s1 + $0x3448] sm:$0xff]
    %v1819 = vld [vmem:[%s1 + $0x3450] sm:$0xff]
    %v1820 = vld [vmem:[%s1 + $0x3458] sm:$0xff]
    %v1821 = vld [vmem:[%s1 + $0x3460] sm:$0xff]
    %v1822 = vld [vmem:[%s1 + $0x3468] sm:$0xff]
    %v1823 = vld [vmem:[%s1 + $0x3470] sm:$0xff]
    %v1824 = vld [vmem:[%s1 + $0x3478] sm:$0xff]
    %v1825 = vld [vmem:[%s1 + $0x3480] sm:$0xff]
    %v1826 = vld [vmem:[%s1 + $0x3488] sm:$0xff]
    %v1827 = vld [vmem:[%s1 + $0x3490] sm:$0xff]
    %v1828 = vld [vmem:[%s1 + $0x3498] sm:$0xff]
    %v1829 = vld [vmem:[%s1 + $0x34a0] sm:$0xff]
    %v1830 = vld [vmem:[%s1 + $0x34a8] sm:$0xff]
    %v1831 = vld [vmem:[%s1 + $0x34b0] sm:$0xff]
    %v1832 = vld [vmem:[%s1 + $0x34b8] sm:$0xff]
    %v1833 = vld [vmem:[%s1 + $0x34c0] sm:$0xff]
    %v1834 = vld [vmem:[%s1 + $0x34c8] sm:$0xff]
    %v1835 = vld [vmem:[%s1 + $0x34d0] sm:$0xff]
    %v1836 = vld [vmem:[%s1 + $0x34d8] sm:$0xff]
    %v1837 = vld [vmem:[%s1 + $0x34e0] sm:$0xff]
    %v1838 = vld [vmem:[%s1 + $0x34e8] sm:$0xff]
    %v1839 = vld [vmem:[%s1 + $0x34f0] sm:$0xff]
    %v1840 = vld [vmem:[%s1 + $0x34f8] sm:$0xff]
    %v1841 = vld [vmem:[%s1 + $0x3500] sm:$0xff]
    %v1842 = vld [vmem:[%s1 + $0x3508] sm:$0xff]
    %v1843 = vld [vmem:[%s1 + $0x3510] sm:$0xff]
    %v1844 = vld [vmem:[%s1 + $0x3518] sm:$0xff]
    %v1845 = vld [vmem:[%s1 + $0x3520] sm:$0xff]
    %v1846 = vld [vmem:[%s1 + $0x3528] sm:$0xff]
    %v1847 = vld [vmem:[%s1 + $0x3530] sm:$0xff]
    %v1848 = vld [vmem:[%s1 + $0x3538] sm:$0xff]
    %v1849 = vld [vmem:[%s1 + $0x3540] sm:$0xff]
    %v1850 = vld [vmem:[%s1 + $0x3548] sm:$0xff]
    %v1851 = vld [vmem:[%s1 + $0x3550] sm:$0xff]
    %v1852 = vld [vmem:[%s1 + $0x3558] sm:$0xff]
    %v1853 = vld [vmem:[%s1 + $0x3560] sm:$0xff]
    %v1854 = vld [vmem:[%s1 + $0x3568] sm:$0xff]
    %v1855 = vld [vmem:[%s1 + $0x3570] sm:$0xff]
    %v1856 = vld [vmem:[%s1 + $0x3578] sm:$0xff]
    %v1857 = vld [vmem:[%s1 + $0x3580] sm:$0xff]
    %v1858 = vld [vmem:[%s1 + $0x3588] sm:$0xff]
    %v1859 = vld [vmem:[%s1 + $0x3590] sm:$0xff]
    %v1860 = vld [vmem:[%s1 + $0x3598] sm:$0xff]
    %v1861 = vld [vmem:[%s1 + $0x35a0] sm:$0xff]
    %v1862 = vld [vmem:[%s1 + $0x35a8] sm:$0xff]
    %v1863 = vld [vmem:[%s1 + $0x35b0] sm:$0xff]
    %v1864 = vld [vmem:[%s1 + $0x35b8] sm:$0xff]
    %v1865 = vld [vmem:[%s1 + $0x35c0] sm:$0xff]
    %v1866 = vld [vmem:[%s1 + $0x35c8] sm:$0xff]
    %v1867 = vld [vmem:[%s1 + $0x35d0] sm:$0xff]
    %v1868 = vld [vmem:[%s1 + $0x35d8] sm:$0xff]
    %v1869 = vld [vmem:[%s1 + $0x35e0] sm:$0xff]
    %v1870 = vld [vmem:[%s1 + $0x35e8] sm:$0xff]
    %v1871 = vld [vmem:[%s1 + $0x35f0] sm:$0xff]
    %v1872 = vld [vmem:[%s1 + $0x35f8] sm:$0xff]
    %v1873 = vld [vmem:[%s1 + $0x3600] sm:$0xff]
    %v1874 = vld [vmem:[%s1 + $0x3608] sm:$0xff]
    %v1875 = vld [vmem:[%s1 + $0x3610] sm:$0xff]
    %v1876 = vld [vmem:[%s1 + $0x3618] sm:$0xff]
    %v1877 = vld [vmem:[%s1 + $0x3620] sm:$0xff]
    %v1878 = vld [vmem:[%s1 + $0x3628] sm:$0xff]
    %v1879 = vld [vmem:[%s1 + $0x3630] sm:$0xff]
    %v1880 = vld [vmem:[%s1 + $0x3638] sm:$0xff]
    %v1881 = vld [vmem:[%s1 + $0x3640] sm:$0xff]
    %v1882 = vld [vmem:[%s1 + $0x3648] sm:$0xff]
    %v1883 = vld [vmem:[%s1 + $0x3650] sm:$0xff]
    %v1884 = vld [vmem:[%s1 + $0x3658] sm:$0xff]
    %v1885 = vld [vmem:[%s1 + $0x3660] sm:$0xff]
    %v1886 = vld [vmem:[%s1 + $0x3668] sm:$0xff]
    %v1887 = vld [vmem:[%s1 + $0x3670] sm:$0xff]
    %v1888 = vld [vmem:[%s1 + $0x3678] sm:$0xff]
    %v1889 = vld [vmem:[%s1 + $0x3680] sm:$0xff]
    %v1890 = vld [vmem:[%s1 + $0x3688] sm:$0xff]
    %v1891 = vld [vmem:[%s1 + $0x3690] sm:$0xff]
    %v1892 = vld [vmem:[%s1 + $0x3698] sm:$0xff]
    %v1893 = vld [vmem:[%s1 + $0x36a0] sm:$0xff]
    %v1894 = vld [vmem:[%s1 + $0x36a8] sm:$0xff]
    %v1895 = vld [vmem:[%s1 + $0x36b0] sm:$0xff]
    %v1896 = vld [vmem:[%s1 + $0x36b8] sm:$0xff]
    %v1897 = vld [vmem:[%s1 + $0x36c0] sm:$0xff]
    %v1898 = vld [vmem:[%s1 + $0x36c8] sm:$0xff]
    %v1899 = vld [vmem:[%s1 + $0x36d0] sm:$0xff]
    %v1900 = vld [vmem:[%s1 + $0x36d8] sm:$0xff]
    %v1901 = vld [vmem:[%s1 + $0x36e0] sm:$0xff]
    %v1902 = vld [vmem:[%s1 + $0x36e8] sm:$0xff]
    %v1903 = vld [vmem:[%s1 + $0x36f0] sm:$0xff]
    %v1904 = vld [vmem:[%s1 + $0x36f8] sm:$0xff]
    %v1905 = vld [vmem:[%s1 + $0x3700] sm:$0xff]
    %v1906 = vld [vmem:[%s1 + $0x3708] sm:$0xff]
    %v1907 = vld [vmem:[%s1 + $0x3710] sm:$0xff]
    %v1908 = vld [vmem:[%s1 + $0x3718] sm:$0xff]
    %v1909 = vld [vmem:[%s1 + $0x3720] sm:$0xff]
    %v1910 = vld [vmem:[%s1 + $0x3728] sm:$0xff]
    %v1911 = vld [vmem:[%s1 + $0x3730] sm:$0xff]
    %v1912 = vld [vmem:[%s1 + $0x3738] sm:$0xff]
    %v1913 = vld [vmem:[%s1 + $0x3740] sm:$0xff]
    %v1914 = vld [vmem:[%s1 + $0x3748] sm:$0xff]
    %v1915 = vld [vmem:[%s1 + $0x3750] sm:$0xff]
    %v1916 = vld [vmem:[%s1 + $0x3758] sm:$0xff]
    %v1917 = vld [vmem:[%s1 + $0x3760] sm:$0xff]
    %v1918 = vld [vmem:[%s1 + $0x3768] sm:$0xff]
    %v1919 = vld [vmem:[%s1 + $0x3770] sm:$0xff]
    %v1920 = vld [vmem:[%s1 + $0x3778] sm:$0xff]
    %v1921 = vld [vmem:[%s1 + $0x3780] sm:$0xff]
    %v1922 = vld [vmem:[%s1 + $0x3788] sm:$0xff]
    %v1923 = vld [vmem:[%s1 + $0x3790] sm:$0xff]
    %v1924 = vld [vmem:[%s1 + $0x3798] sm:$0xff]
    %v1925 = vld [vmem:[%s1 + $0x37a0] sm:$0xff]
    %v1926 = vld [vmem:[%s1 + $0x37a8] sm:$0xff]
    %v1927 = vld [vmem:[%s1 + $0x37b0] sm:$0xff]
    %v1928 = vld [vmem:[%s1 + $0x37b8] sm:$0xff]
    %v1929 = vld [vmem:[%s1 + $0x37c0] sm:$0xff]
    %v1930 = vld [vmem:[%s1 + $0x37c8] sm:$0xff]
    %v1931 = vld [vmem:[%s1 + $0x37d0] sm:$0xff]
    %v1932 = vld [vmem:[%s1 + $0x37d8] sm:$0xff]
    %v1933 = vld [vmem:[%s1 + $0x37e0] sm:$0xff]
    %v1934 = vld [vmem:[%s1 + $0x37e8] sm:$0xff]
    %v1935 = vld [vmem:[%s1 + $0x37f0] sm:$0xff]
    %v1936 = vld [vmem:[%s1 + $0x37f8] sm:$0xff]
    %v1937 = vld [vmem:[%s1 + $0x3800] sm:$0xff]
    %v1938 = vld [vmem:[%s1 + $0x3808] sm:$0xff]
    %v1939 = vld [vmem:[%s1 + $0x3810] sm:$0xff]
    %v1940 = vld [vmem:[%s1 + $0x3818] sm:$0xff]
    %v1941 = vld [vmem:[%s1 + $0x3820] sm:$0xff]
    %v1942 = vld [vmem:[%s1 + $0x3828] sm:$0xff]
    %v1943 = vld [vmem:[%s1 + $0x3830] sm:$0xff]
    %v1944 = vld [vmem:[%s1 + $0x3838] sm:$0xff]
    %v1945 = vld [vmem:[%s1 + $0x3840] sm:$0xff]
    %v1946 = vld [vmem:[%s1 + $0x3848] sm:$0xff]
    %v1947 = vld [vmem:[%s1 + $0x3850] sm:$0xff]
    %v1948 = vld [vmem:[%s1 + $0x3858] sm:$0xff]
    %v1949 = vld [vmem:[%s1 + $0x3860] sm:$0xff]
    %v1950 = vld [vmem:[%s1 + $0x3868] sm:$0xff]
    %v1951 = vld [vmem:[%s1 + $0x3870] sm:$0xff]
    %v1952 = vld [vmem:[%s1 + $0x3878] sm:$0xff]
    %v1953 = vld [vmem:[%s1 + $0x3880] sm:$0xff]
    %v1954 = vld [vmem:[%s1 + $0x3888] sm:$0xff]
    %v1955 = vld [vmem:[%s1 + $0x3890] sm:$0xff]
    %v1956 = vld [vmem:[%s1 + $0x3898] sm:$0xff]
    %v1957 = vld [vmem:[%s1 + $0x38a0] sm:$0xff]
    %v1958 = vld [vmem:[%s1 + $0x38a8] sm:$0xff]
    %v1959 = vld [vmem:[%s1 + $0x38b0] sm:$0xff]
    %v1960 = vld [vmem:[%s1 + $0x38b8] sm:$0xff]
    %v1961 = vld [vmem:[%s1 + $0x38c0] sm:$0xff]
    %v1962 = vld [vmem:[%s1 + $0x38c8] sm:$0xff]
    %v1963 = vld [vmem:[%s1 + $0x38d0] sm:$0xff]
    %v1964 = vld [vmem:[%s1 + $0x38d8] sm:$0xff]
    %v1965 = vld [vmem:[%s1 + $0x38e0] sm:$0xff]
    %v1966 = vld [vmem:[%s1 + $0x38e8] sm:$0xff]
    %v1967 = vld [vmem:[%s1 + $0x38f0] sm:$0xff]
    %v1968 = vld [vmem:[%s1 + $0x38f8] sm:$0xff]
    %v1969 = vld [vmem:[%s1 + $0x3900] sm:$0xff]
    %v1970 = vld [vmem:[%s1 + $0x3908] sm:$0xff]
    %v1971 = vld [vmem:[%s1 + $0x3910] sm:$0xff]
    %v1972 = vld [vmem:[%s1 + $0x3918] sm:$0xff]
    %v1973 = vld [vmem:[%s1 + $0x3920] sm:$0xff]
    %v1974 = vld [vmem:[%s1 + $0x3928] sm:$0xff]
    %v1975 = vld [vmem:[%s1 + $0x3930] sm:$0xff]
    %v1976 = vld [vmem:[%s1 + $0x3938] sm:$0xff]
    %v1977 = vld [vmem:[%s1 + $0x3940] sm:$0xff]
    %v1978 = vld [vmem:[%s1 + $0x3948] sm:$0xff]
    %v1979 = vld [vmem:[%s1 + $0x3950] sm:$0xff]
    %v1980 = vld [vmem:[%s1 + $0x3958] sm:$0xff]
    %v1981 = vld [vmem:[%s1 + $0x3960] sm:$0xff]
    %v1982 = vld [vmem:[%s1 + $0x3968] sm:$0xff]
    %v1983 = vld [vmem:[%s1 + $0x3970] sm:$0xff]
    %v1984 = vld [vmem:[%s1 + $0x3978] sm:$0xff]
    %v1985 = vld [vmem:[%s1 + $0x3980] sm:$0xff]
    %v1986 = vld [vmem:[%s1 + $0x3988] sm:$0xff]
    %v1987 = vld [vmem:[%s1 + $0x3990] sm:$0xff]
    %v1988 = vld [vmem:[%s1 + $0x3998] sm:$0xff]
    %v1989 = vld [vmem:[%s1 + $0x39a0] sm:$0xff]
    %v1990 = vld [vmem:[%s1 + $0x39a8] sm:$0xff]
    %v1991 = vld [vmem:[%s1 + $0x39b0] sm:$0xff]
    %v1992 = vld [vmem:[%s1 + $0x39b8] sm:$0xff]
    %v1993 = vld [vmem:[%s1 + $0x39c0] sm:$0xff]
    %v1994 = vld [vmem:[%s1 + $0x39c8] sm:$0xff]
    %v1995 = vld [vmem:[%s1 + $0x39d0] sm:$0xff]
    %v1996 = vld [vmem:[%s1 + $0x39d8] sm:$0xff]
    %v1997 = vld [vmem:[%s1 + $0x39e0] sm:$0xff]
    %v1998 = vld [vmem:[%s1 + $0x39e8] sm:$0xff]
    %v1999 = vld [vmem:[%s1 + $0x39f0] sm:$0xff]
    %v2000 = vld [vmem:[%s1 + $0x39f8] sm:$0xff]
    %v2001 = vld [vmem:[%s1 + $0x3a00] sm:$0xff]
    %v2002 = vld [vmem:[%s1 + $0x3a08] sm:$0xff]
    %v2003 = vld [vmem:[%s1 + $0x3a10] sm:$0xff]
    %v2004 = vld [vmem:[%s1 + $0x3a18] sm:$0xff]
    %v2005 = vld [vmem:[%s1 + $0x3a20] sm:$0xff]
    %v2006 = vld [vmem:[%s1 + $0x3a28] sm:$0xff]
    %v2007 = vld [vmem:[%s1 + $0x3a30] sm:$0xff]
    %v2008 = vld [vmem:[%s1 + $0x3a38] sm:$0xff]
    %v2009 = vld [vmem:[%s1 + $0x3a40] sm:$0xff]
    %v2010 = vld [vmem:[%s1 + $0x3a48] sm:$0xff]
    %v2011 = vld [vmem:[%s1 + $0x3a50] sm:$0xff]
    %v2012 = vld [vmem:[%s1 + $0x3a58] sm:$0xff]
    %v2013 = vld [vmem:[%s1 + $0x3a60] sm:$0xff]
    %v2014 = vld [vmem:[%s1 + $0x3a68] sm:$0xff]
    %v2015 = vld [vmem:[%s1 + $0x3a70] sm:$0xff]
    %v2016 = vld [vmem:[%s1 + $0x3a78] sm:$0xff]
    %v2017 = vld [vmem:[%s1 + $0x3a80] sm:$0xff]
    %v2018 = vld [vmem:[%s1 + $0x3a88] sm:$0xff]
    %v2019 = vld [vmem:[%s1 + $0x3a90] sm:$0xff]
    %v2020 = vld [vmem:[%s1 + $0x3a98] sm:$0xff]
    %v2021 = vld [vmem:[%s1 + $0x3aa0] sm:$0xff]
    %v2022 = vld [vmem:[%s1 + $0x3aa8] sm:$0xff]
    %v2023 = vld [vmem:[%s1 + $0x3ab0] sm:$0xff]
    %v2024 = vld [vmem:[%s1 + $0x3ab8] sm:$0xff]
    %v2025 = vld [vmem:[%s1 + $0x3ac0] sm:$0xff]
    %v2026 = vld [vmem:[%s1 + $0x3ac8] sm:$0xff]
    %v2027 = vld [vmem:[%s1 + $0x3ad0] sm:$0xff]
    %v2028 = vld [vmem:[%s1 + $0x3ad8] sm:$0xff]
    %v2029 = vld [vmem:[%s1 + $0x3ae0] sm:$0xff]
    %v2030 = vld [vmem:[%s1 + $0x3ae8] sm:$0xff]
    %v2031 = vld [vmem:[%s1 + $0x3af0] sm:$0xff]
    %v2032 = vld [vmem:[%s1 + $0x3af8] sm:$0xff]
    %v2033 = vld [vmem:[%s1 + $0x3b00] sm:$0xff]
    %v2034 = vld [vmem:[%s1 + $0x3b08] sm:$0xff]
    %v2035 = vld [vmem:[%s1 + $0x3b10] sm:$0xff]
    %v2036 = vld [vmem:[%s1 + $0x3b18] sm:$0xff]
    %v2037 = vld [vmem:[%s1 + $0x3b20] sm:$0xff]
    %v2038 = vld [vmem:[%s1 + $0x3b28] sm:$0xff]
    %v2039 = vld [vmem:[%s1 + $0x3b30] sm:$0xff]
    %v2040 = vld [vmem:[%s1 + $0x3b38] sm:$0xff]
    %v2041 = vld [vmem:[%s1 + $0x3b40] sm:$0xff]
    %v2042 = vld [vmem:[%s1 + $0x3b48] sm:$0xff]
    %v2043 = vld [vmem:[%s1 + $0x3b50] sm:$0xff]
    %v2044 = vld [vmem:[%s1 + $0x3b58] sm:$0xff]
    %v2045 = vld [vmem:[%s1 + $0x3b60] sm:$0xff]
    %v2046 = vld [vmem:[%s1 + $0x3b68] sm:$0xff]
    %v2047 = vld [vmem:[%s1 + $0x3b70] sm:$0xff]
    %v2048 = vld [vmem:[%s1 + $0x3b78] sm:$0xff]
    %v2049 = vld [vmem:[%s1 + $0x3b80] sm:$0xff]
    %v2050 = vld [vmem:[%s1 + $0x3b88] sm:$0xff]
    %v2051 = vld [vmem:[%s1 + $0x3b90] sm:$0xff]
    %v2052 = vld [vmem:[%s1 + $0x3b98] sm:$0xff]
    %v2053 = vld [vmem:[%s1 + $0x3ba0] sm:$0xff]
    %v2054 = vld [vmem:[%s1 + $0x3ba8] sm:$0xff]
    %v2055 = vld [vmem:[%s1 + $0x3bb0] sm:$0xff]
    %v2056 = vld [vmem:[%s1 + $0x3bb8] sm:$0xff]
    %v2057 = vld [vmem:[%s1 + $0x3bc0] sm:$0xff]
    %v2058 = vld [vmem:[%s1 + $0x3bc8] sm:$0xff]
    %v2059 = vld [vmem:[%s1 + $0x3bd0] sm:$0xff]
    %v2060 = vld [vmem:[%s1 + $0x3bd8] sm:$0xff]
    %v2061 = vld [vmem:[%s1 + $0x3be0] sm:$0xff]
    %v2062 = vld [vmem:[%s1 + $0x3be8] sm:$0xff]
    %v2063 = vld [vmem:[%s1 + $0x3bf0] sm:$0xff]
    %v2064 = vld [vmem:[%s1 + $0x3bf8] sm:$0xff]
    %v2065 = vld [vmem:[%s1 + $0x3c00] sm:$0xff]
    %v2066 = vld [vmem:[%s1 + $0x3c08] sm:$0xff]
    %v2067 = vld [vmem:[%s1 + $0x3c10] sm:$0xff]
    %v2068 = vld [vmem:[%s1 + $0x3c18] sm:$0xff]
    %v2069 = vld [vmem:[%s1 + $0x3c20] sm:$0xff]
    %v2070 = vld [vmem:[%s1 + $0x3c28] sm:$0xff]
    %v2071 = vld [vmem:[%s1 + $0x3c30] sm:$0xff]
    %v2072 = vld [vmem:[%s1 + $0x3c38] sm:$0xff]
    %v2073 = vld [vmem:[%s1 + $0x3c40] sm:$0xff]
    %v2074 = vld [vmem:[%s1 + $0x3c48] sm:$0xff]
    %v2075 = vld [vmem:[%s1 + $0x3c50] sm:$0xff]
    %v2076 = vld [vmem:[%s1 + $0x3c58] sm:$0xff]
    %v2077 = vld [vmem:[%s1 + $0x3c60] sm:$0xff]
    %v2078 = vld [vmem:[%s1 + $0x3c68] sm:$0xff]
    %v2079 = vld [vmem:[%s1 + $0x3c70] sm:$0xff]
    %v2080 = vld [vmem:[%s1 + $0x3c78] sm:$0xff]
    %v2081 = vld [vmem:[%s1 + $0x3c80] sm:$0xff]
    %v2082 = vld [vmem:[%s1 + $0x3c88] sm:$0xff]
    %v2083 = vld [vmem:[%s1 + $0x3c90] sm:$0xff]
    %v2084 = vld [vmem:[%s1 + $0x3c98] sm:$0xff]
    %v2085 = vld [vmem:[%s1 + $0x3ca0] sm:$0xff]
    %v2086 = vld [vmem:[%s1 + $0x3ca8] sm:$0xff]
    %v2087 = vld [vmem:[%s1 + $0x3cb0] sm:$0xff]
    %v2088 = vld [vmem:[%s1 + $0x3cb8] sm:$0xff]
    %v2089 = vld [vmem:[%s1 + $0x3cc0] sm:$0xff]
    %v2090 = vld [vmem:[%s1 + $0x3cc8] sm:$0xff]
    %v2091 = vld [vmem:[%s1 + $0x3cd0] sm:$0xff]
    %v2092 = vld [vmem:[%s1 + $0x3cd8] sm:$0xff]
    %v2093 = vld [vmem:[%s1 + $0x3ce0] sm:$0xff]
    %v2094 = vld [vmem:[%s1 + $0x3ce8] sm:$0xff]
    %v2095 = vld [vmem:[%s1 + $0x3cf0] sm:$0xff]
    %v2096 = vld [vmem:[%s1 + $0x3cf8] sm:$0xff]
    %v2097 = vld [vmem:[%s1 + $0x3d00] sm:$0xff]
    %v2098 = vld [vmem:[%s1 + $0x3d08] sm:$0xff]
    %v2099 = vld [vmem:[%s1 + $0x3d10] sm:$0xff]
    %v2100 = vld [vmem:[%s1 + $0x3d18] sm:$0xff]
    %v2101 = vld [vmem:[%s1 + $0x3d20] sm:$0xff]
    %v2102 = vld [vmem:[%s1 + $0x3d28] sm:$0xff]
    %v2103 = vld [vmem:[%s1 + $0x3d30] sm:$0xff]
    %v2104 = vld [vmem:[%s1 + $0x3d38] sm:$0xff]
    %v2105 = vld [vmem:[%s1 + $0x3d40] sm:$0xff]
    %v2106 = vld [vmem:[%s1 + $0x3d48] sm:$0xff]
    %v2107 = vld [vmem:[%s1 + $0x3d50] sm:$0xff]
    %v2108 = vld [vmem:[%s1 + $0x3d58] sm:$0xff]
    %v2109 = vld [vmem:[%s1 + $0x3d60] sm:$0xff]
    %v2110 = vld [vmem:[%s1 + $0x3d68] sm:$0xff]
    %v2111 = vld [vmem:[%s1 + $0x3d70] sm:$0xff]
    %v2112 = vld [vmem:[%s1 + $0x3d78] sm:$0xff]
    %v2113 = vld [vmem:[%s1 + $0x3d80] sm:$0xff]
    %v2114 = vld [vmem:[%s1 + $0x3d88] sm:$0xff]
    %v2115 = vld [vmem:[%s1 + $0x3d90] sm:$0xff]
    %v2116 = vld [vmem:[%s1 + $0x3d98] sm:$0xff]
    %v2117 = vld [vmem:[%s1 + $0x3da0] sm:$0xff]
    %v2118 = vld [vmem:[%s1 + $0x3da8] sm:$0xff]
    %v2119 = vld [vmem:[%s1 + $0x3db0] sm:$0xff]
    %v2120 = vld [vmem:[%s1 + $0x3db8] sm:$0xff]
    %v2121 = vld [vmem:[%s1 + $0x3dc0] sm:$0xff]
    %v2122 = vld [vmem:[%s1 + $0x3dc8] sm:$0xff]
    %v2123 = vld [vmem:[%s1 + $0x3dd0] sm:$0xff]
    %v2124 = vld [vmem:[%s1 + $0x3dd8] sm:$0xff]
    %v2125 = vld [vmem:[%s1 + $0x3de0] sm:$0xff]
    %v2126 = vld [vmem:[%s1 + $0x3de8] sm:$0xff]
    %v2127 = vld [vmem:[%s1 + $0x3df0] sm:$0xff]
    %v2128 = vld [vmem:[%s1 + $0x3df8] sm:$0xff]
    %v2129 = vld [vmem:[%s1 + $0x3e00] sm:$0xff]
    %v2130 = vld [vmem:[%s1 + $0x3e08] sm:$0xff]
    %v2131 = vld [vmem:[%s1 + $0x3e10] sm:$0xff]
    %v2132 = vld [vmem:[%s1 + $0x3e18] sm:$0xff]
    %v2133 = vld [vmem:[%s1 + $0x3e20] sm:$0xff]
    %v2134 = vld [vmem:[%s1 + $0x3e28] sm:$0xff]
    %v2135 = vld [vmem:[%s1 + $0x3e30] sm:$0xff]
    %v2136 = vld [vmem:[%s1 + $0x3e38] sm:$0xff]
    %v2137 = vld [vmem:[%s1 + $0x3e40] sm:$0xff]
    %v2138 = vld [vmem:[%s1 + $0x3e48] sm:$0xff]
    %v2139 = vld [vmem:[%s1 + $0x3e50] sm:$0xff]
    %v2140 = vld [vmem:[%s1 + $0x3e58] sm:$0xff]
    %v2141 = vld [vmem:[%s1 + $0x3e60] sm:$0xff]
    %v2142 = vld [vmem:[%s1 + $0x3e68] sm:$0xff]
    %v2143 = vld [vmem:[%s1 + $0x3e70] sm:$0xff]
    %v2144 = vld [vmem:[%s1 + $0x3e78] sm:$0xff]
    %v2145 = vld [vmem:[%s1 + $0x3e80] sm:$0xff]
    %v2146 = vld [vmem:[%s1 + $0x3e88] sm:$0xff]
    %v2147 = vld [vmem:[%s1 + $0x3e90] sm:$0xff]
    %v2148 = vld [vmem:[%s1 + $0x3e98] sm:$0xff]
    %v2149 = vld [vmem:[%s1 + $0x3ea0] sm:$0xff]
    %v2150 = vld [vmem:[%s1 + $0x3ea8] sm:$0xff]
    %v2151 = vld [vmem:[%s1 + $0x3eb0] sm:$0xff]
    %v2152 = vld [vmem:[%s1 + $0x3eb8] sm:$0xff]
    %v2153 = vld [vmem:[%s1 + $0x3ec0] sm:$0xff]
    %v2154 = vld [vmem:[%s1 + $0x3ec8] sm:$0xff]
    %v2155 = vld [vmem:[%s1 + $0x3ed0] sm:$0xff]
    %v2156 = vld [vmem:[%s1 + $0x3ed8] sm:$0xff]
    %v2157 = vld [vmem:[%s1 + $0x3ee0] sm:$0xff]
    %v2158 = vld [vmem:[%s1 + $0x3ee8] sm:$0xff]
    %v2159 = vld [vmem:[%s1 + $0x3ef0] sm:$0xff]
    %v2160 = vld [vmem:[%s1 + $0x3ef8] sm:$0xff]
    %v2161 = vld [vmem:[%s1 + $0x3f00] sm:$0xff]
    %v2162 = vld [vmem:[%s1 + $0x3f08] sm:$0xff]
    %v2163 = vld [vmem:[%s1 + $0x3f10] sm:$0xff]
    %v2164 = vld [vmem:[%s1 + $0x3f18] sm:$0xff]
    %v2165 = vld [vmem:[%s1 + $0x3f20] sm:$0xff]
    %v2166 = vld [vmem:[%s1 + $0x3f28] sm:$0xff]
    %v2167 = vld [vmem:[%s1 + $0x3f30] sm:$0xff]
    %v2168 = vld [vmem:[%s1 + $0x3f38] sm:$0xff]
    %v2169 = vld [vmem:[%s1 + $0x3f40] sm:$0xff]
    %v2170 = vld [vmem:[%s1 + $0x3f48] sm:$0xff]
    %v2171 = vld [vmem:[%s1 + $0x3f50] sm:$0xff]
    %v2172 = vld [vmem:[%s1 + $0x3f58] sm:$0xff]
    %v2173 = vld [vmem:[%s1 + $0x3f60] sm:$0xff]
    %v2174 = vld [vmem:[%s1 + $0x3f68] sm:$0xff]
    %v2175 = vld [vmem:[%s1 + $0x3f70] sm:$0xff]
    %v2176 = vld [vmem:[%s1 + $0x3f78] sm:$0xff]
    %v2177 = vld [vmem:[%s1 + $0x3f80] sm:$0xff]
    %v2178 = vld [vmem:[%s1 + $0x3f88] sm:$0xff]
    %v2179 = vld [vmem:[%s1 + $0x3f90] sm:$0xff]
    %v2180 = vld [vmem:[%s1 + $0x3f98] sm:$0xff]
    %v2181 = vld [vmem:[%s1 + $0x3fa0] sm:$0xff]
    %v2182 = vld [vmem:[%s1 + $0x3fa8] sm:$0xff]
    %v2183 = vld [vmem:[%s1 + $0x3fb0] sm:$0xff]
    %v2184 = vld [vmem:[%s1 + $0x3fb8] sm:$0xff]
    %v2185 = vld [vmem:[%s1 + $0x3fc0] sm:$0xff]
    %v2186 = vld [vmem:[%s1 + $0x3fc8] sm:$0xff]
    %v2187 = vld [vmem:[%s1 + $0x3fd0] sm:$0xff]
    %v2188 = vld [vmem:[%s1 + $0x3fd8] sm:$0xff]
    %v2189 = vld [vmem:[%s1 + $0x3fe0] sm:$0xff]
    %v2190 = vld [vmem:[%s1 + $0x3fe8] sm:$0xff]
    %v2191 = vld [vmem:[%s1 + $0x3ff0] sm:$0xff]
    %v2192 = vld [vmem:[%s1 + $0x3ff8] sm:$0xff]
    %v2193 = vld [vmem:[%s2] sm:$0x1]
    %v2195 = vlaneseq
    %v2196 = vshrl.u32 %v2195, 7
    %v2197 = vsub.s32 0, %v2196
    %v2198 = vrot.slane %v2193, %v2197
    %v2328 = vcombine.low %v17, %v49
    %v2329 = vcombine.high %v17, %v49
    %v2330 = vcombine.low %v81, %v113
    %v2331 = vcombine.high %v81, %v113
    %v2333 = vunpack.c.l.s4 1983009808
    %v2334 = vunpack.c.0.s8 %v2333
    %v2335 = vlaneseq
    %v2336 = vshrl.u32 %v2335, 7
    %v2337 = vsub.s32 %v2334, %v2336
    %v2338 = vrot.slane %v2328, %v2337
    %v2340 = vunpack.c.l.s4 1983009808
    %v2341 = vunpack.c.0.s8 %v2340
    %v2342 = vlaneseq
    %v2343 = vshrl.u32 %v2342, 7
    %v2344 = vsub.s32 %v2341, %v2343
    %v2345 = vrot.slane %v2329, %v2344
    %v2347 = vunpack.c.l.s4 1983009808
    %v2348 = vunpack.c.0.s8 %v2347
    %v2349 = vlaneseq
    %v2350 = vshrl.u32 %v2349, 7
    %v2351 = vsub.s32 %v2348, %v2350
    %v2352 = vrot.slane %v2330, %v2351
    %v2354 = vunpack.c.l.s4 1983009808
    %v2355 = vunpack.c.0.s8 %v2354
    %v2356 = vlaneseq
    %v2357 = vshrl.u32 %v2356, 7
    %v2358 = vsub.s32 %v2355, %v2357
    %v2359 = vrot.slane %v2331, %v2358
    %v2360 = vcombine.low %v2338, %v2352
    %v2361 = vcombine.high %v2338, %v2352
    %v2362 = vcombine.low %v2345, %v2359
    %v2363 = vcombine.high %v2345, %v2359
    %v2364 = vcombine.low %v18, %v50
    %v2365 = vcombine.high %v18, %v50
    %v2366 = vcombine.low %v82, %v114
    %v2367 = vcombine.high %v82, %v114
    %v2369 = vunpack.c.l.s4 1983009808
    %v2370 = vunpack.c.0.s8 %v2369
    %v2371 = vlaneseq
    %v2372 = vshrl.u32 %v2371, 7
    %v2373 = vsub.s32 %v2370, %v2372
    %v2374 = vrot.slane %v2364, %v2373
    %v2376 = vunpack.c.l.s4 1983009808
    %v2377 = vunpack.c.0.s8 %v2376
    %v2378 = vlaneseq
    %v2379 = vshrl.u32 %v2378, 7
    %v2380 = vsub.s32 %v2377, %v2379
    %v2381 = vrot.slane %v2365, %v2380
    %v2383 = vunpack.c.l.s4 1983009808
    %v2384 = vunpack.c.0.s8 %v2383
    %v2385 = vlaneseq
    %v2386 = vshrl.u32 %v2385, 7
    %v2387 = vsub.s32 %v2384, %v2386
    %v2388 = vrot.slane %v2366, %v2387
    %v2390 = vunpack.c.l.s4 1983009808
    %v2391 = vunpack.c.0.s8 %v2390
    %v2392 = vlaneseq
    %v2393 = vshrl.u32 %v2392, 7
    %v2394 = vsub.s32 %v2391, %v2393
    %v2395 = vrot.slane %v2367, %v2394
    %v2396 = vcombine.low %v2374, %v2388
    %v2397 = vcombine.high %v2374, %v2388
    %v2398 = vcombine.low %v2381, %v2395
    %v2399 = vcombine.high %v2381, %v2395
    %v2400 = vcombine.low %v19, %v51
    %v2401 = vcombine.high %v19, %v51
    %v2402 = vcombine.low %v83, %v115
    %v2403 = vcombine.high %v83, %v115
    %v2405 = vunpack.c.l.s4 1983009808
    %v2406 = vunpack.c.0.s8 %v2405
    %v2407 = vlaneseq
    %v2408 = vshrl.u32 %v2407, 7
    %v2409 = vsub.s32 %v2406, %v2408
    %v2410 = vrot.slane %v2400, %v2409
    %v2412 = vunpack.c.l.s4 1983009808
    %v2413 = vunpack.c.0.s8 %v2412
    %v2414 = vlaneseq
    %v2415 = vshrl.u32 %v2414, 7
    %v2416 = vsub.s32 %v2413, %v2415
    %v2417 = vrot.slane %v2401, %v2416
    %v2419 = vunpack.c.l.s4 1983009808
    %v2420 = vunpack.c.0.s8 %v2419
    %v2421 = vlaneseq
    %v2422 = vshrl.u32 %v2421, 7
    %v2423 = vsub.s32 %v2420, %v2422
    %v2424 = vrot.slane %v2402, %v2423
    %v2426 = vunpack.c.l.s4 1983009808
    %v2427 = vunpack.c.0.s8 %v2426
    %v2428 = vlaneseq
    %v2429 = vshrl.u32 %v2428, 7
    %v2430 = vsub.s32 %v2427, %v2429
    %v2431 = vrot.slane %v2403, %v2430
    %v2432 = vcombine.low %v2410, %v2424
    %v2433 = vcombine.high %v2410, %v2424
    %v2434 = vcombine.low %v2417, %v2431
    %v2435 = vcombine.high %v2417, %v2431
    %v2436 = vcombine.low %v20, %v52
    %v2437 = vcombine.high %v20, %v52
    %v2438 = vcombine.low %v84, %v116
    %v2439 = vcombine.high %v84, %v116
    %v2441 = vunpack.c.l.s4 1983009808
    %v2442 = vunpack.c.0.s8 %v2441
    %v2443 = vlaneseq
    %v2444 = vshrl.u32 %v2443, 7
    %v2445 = vsub.s32 %v2442, %v2444
    %v2446 = vrot.slane %v2436, %v2445
    %v2448 = vunpack.c.l.s4 1983009808
    %v2449 = vunpack.c.0.s8 %v2448
    %v2450 = vlaneseq
    %v2451 = vshrl.u32 %v2450, 7
    %v2452 = vsub.s32 %v2449, %v2451
    %v2453 = vrot.slane %v2437, %v2452
    %v2455 = vunpack.c.l.s4 1983009808
    %v2456 = vunpack.c.0.s8 %v2455
    %v2457 = vlaneseq
    %v2458 = vshrl.u32 %v2457, 7
    %v2459 = vsub.s32 %v2456, %v2458
    %v2460 = vrot.slane %v2438, %v2459
    %v2462 = vunpack.c.l.s4 1983009808
    %v2463 = vunpack.c.0.s8 %v2462
    %v2464 = vlaneseq
    %v2465 = vshrl.u32 %v2464, 7
    %v2466 = vsub.s32 %v2463, %v2465
    %v2467 = vrot.slane %v2439, %v2466
    %v2468 = vcombine.low %v2446, %v2460
    %v2469 = vcombine.high %v2446, %v2460
    %v2470 = vcombine.low %v2453, %v2467
    %v2471 = vcombine.high %v2453, %v2467
    %v2472 = vcombine.low %v21, %v53
    %v2473 = vcombine.high %v21, %v53
    %v2474 = vcombine.low %v85, %v117
    %v2475 = vcombine.high %v85, %v117
    %v2477 = vunpack.c.l.s4 1983009808
    %v2478 = vunpack.c.0.s8 %v2477
    %v2479 = vlaneseq
    %v2480 = vshrl.u32 %v2479, 7
    %v2481 = vsub.s32 %v2478, %v2480
    %v2482 = vrot.slane %v2472, %v2481
    %v2484 = vunpack.c.l.s4 1983009808
    %v2485 = vunpack.c.0.s8 %v2484
    %v2486 = vlaneseq
    %v2487 = vshrl.u32 %v2486, 7
    %v2488 = vsub.s32 %v2485, %v2487
    %v2489 = vrot.slane %v2473, %v2488
    %v2491 = vunpack.c.l.s4 1983009808
    %v2492 = vunpack.c.0.s8 %v2491
    %v2493 = vlaneseq
    %v2494 = vshrl.u32 %v2493, 7
    %v2495 = vsub.s32 %v2492, %v2494
    %v2496 = vrot.slane %v2474, %v2495
    %v2498 = vunpack.c.l.s4 1983009808
    %v2499 = vunpack.c.0.s8 %v2498
    %v2500 = vlaneseq
    %v2501 = vshrl.u32 %v2500, 7
    %v2502 = vsub.s32 %v2499, %v2501
    %v2503 = vrot.slane %v2475, %v2502
    %v2504 = vcombine.low %v2482, %v2496
    %v2505 = vcombine.high %v2482, %v2496
    %v2506 = vcombine.low %v2489, %v2503
    %v2507 = vcombine.high %v2489, %v2503
    %v2508 = vcombine.low %v22, %v54
    %v2509 = vcombine.high %v22, %v54
    %v2510 = vcombine.low %v86, %v118
    %v2511 = vcombine.high %v86, %v118
    %v2513 = vunpack.c.l.s4 1983009808
    %v2514 = vunpack.c.0.s8 %v2513
    %v2515 = vlaneseq
    %v2516 = vshrl.u32 %v2515, 7
    %v2517 = vsub.s32 %v2514, %v2516
    %v2518 = vrot.slane %v2508, %v2517
    %v2520 = vunpack.c.l.s4 1983009808
    %v2521 = vunpack.c.0.s8 %v2520
    %v2522 = vlaneseq
    %v2523 = vshrl.u32 %v2522, 7
    %v2524 = vsub.s32 %v2521, %v2523
    %v2525 = vrot.slane %v2509, %v2524
    %v2527 = vunpack.c.l.s4 1983009808
    %v2528 = vunpack.c.0.s8 %v2527
    %v2529 = vlaneseq
    %v2530 = vshrl.u32 %v2529, 7
    %v2531 = vsub.s32 %v2528, %v2530
    %v2532 = vrot.slane %v2510, %v2531
    %v2534 = vunpack.c.l.s4 1983009808
    %v2535 = vunpack.c.0.s8 %v2534
    %v2536 = vlaneseq
    %v2537 = vshrl.u32 %v2536, 7
    %v2538 = vsub.s32 %v2535, %v2537
    %v2539 = vrot.slane %v2511, %v2538
    %v2540 = vcombine.low %v2518, %v2532
    %v2541 = vcombine.high %v2518, %v2532
    %v2542 = vcombine.low %v2525, %v2539
    %v2543 = vcombine.high %v2525, %v2539
    %v2544 = vcombine.low %v23, %v55
    %v2545 = vcombine.high %v23, %v55
    %v2546 = vcombine.low %v87, %v119
    %v2547 = vcombine.high %v87, %v119
    %v2549 = vunpack.c.l.s4 1983009808
    %v2550 = vunpack.c.0.s8 %v2549
    %v2551 = vlaneseq
    %v2552 = vshrl.u32 %v2551, 7
    %v2553 = vsub.s32 %v2550, %v2552
    %v2554 = vrot.slane %v2544, %v2553
    %v2556 = vunpack.c.l.s4 1983009808
    %v2557 = vunpack.c.0.s8 %v2556
    %v2558 = vlaneseq
    %v2559 = vshrl.u32 %v2558, 7
    %v2560 = vsub.s32 %v2557, %v2559
    %v2561 = vrot.slane %v2545, %v2560
    %v2563 = vunpack.c.l.s4 1983009808
    %v2564 = vunpack.c.0.s8 %v2563
    %v2565 = vlaneseq
    %v2566 = vshrl.u32 %v2565, 7
    %v2567 = vsub.s32 %v2564, %v2566
    %v2568 = vrot.slane %v2546, %v2567
    %v2570 = vunpack.c.l.s4 1983009808
    %v2571 = vunpack.c.0.s8 %v2570
    %v2572 = vlaneseq
    %v2573 = vshrl.u32 %v2572, 7
    %v2574 = vsub.s32 %v2571, %v2573
    %v2575 = vrot.slane %v2547, %v2574
    %v2576 = vcombine.low %v2554, %v2568
    %v2577 = vcombine.high %v2554, %v2568
    %v2578 = vcombine.low %v2561, %v2575
    %v2579 = vcombine.high %v2561, %v2575
    %v2580 = vcombine.low %v24, %v56
    %v2581 = vcombine.high %v24, %v56
    %v2582 = vcombine.low %v88, %v120
    %v2583 = vcombine.high %v88, %v120
    %v2585 = vunpack.c.l.s4 1983009808
    %v2586 = vunpack.c.0.s8 %v2585
    %v2587 = vlaneseq
    %v2588 = vshrl.u32 %v2587, 7
    %v2589 = vsub.s32 %v2586, %v2588
    %v2590 = vrot.slane %v2580, %v2589
    %v2592 = vunpack.c.l.s4 1983009808
    %v2593 = vunpack.c.0.s8 %v2592
    %v2594 = vlaneseq
    %v2595 = vshrl.u32 %v2594, 7
    %v2596 = vsub.s32 %v2593, %v2595
    %v2597 = vrot.slane %v2581, %v2596
    %v2599 = vunpack.c.l.s4 1983009808
    %v2600 = vunpack.c.0.s8 %v2599
    %v2601 = vlaneseq
    %v2602 = vshrl.u32 %v2601, 7
    %v2603 = vsub.s32 %v2600, %v2602
    %v2604 = vrot.slane %v2582, %v2603
    %v2606 = vunpack.c.l.s4 1983009808
    %v2607 = vunpack.c.0.s8 %v2606
    %v2608 = vlaneseq
    %v2609 = vshrl.u32 %v2608, 7
    %v2610 = vsub.s32 %v2607, %v2609
    %v2611 = vrot.slane %v2583, %v2610
    %v2612 = vcombine.low %v2590, %v2604
    %v2613 = vcombine.high %v2590, %v2604
    %v2614 = vcombine.low %v2597, %v2611
    %v2615 = vcombine.high %v2597, %v2611
    %v2616 = vcombine.low %v25, %v57
    %v2617 = vcombine.high %v25, %v57
    %v2618 = vcombine.low %v89, %v121
    %v2619 = vcombine.high %v89, %v121
    %v2621 = vunpack.c.l.s4 1983009808
    %v2622 = vunpack.c.0.s8 %v2621
    %v2623 = vlaneseq
    %v2624 = vshrl.u32 %v2623, 7
    %v2625 = vsub.s32 %v2622, %v2624
    %v2626 = vrot.slane %v2616, %v2625
    %v2628 = vunpack.c.l.s4 1983009808
    %v2629 = vunpack.c.0.s8 %v2628
    %v2630 = vlaneseq
    %v2631 = vshrl.u32 %v2630, 7
    %v2632 = vsub.s32 %v2629, %v2631
    %v2633 = vrot.slane %v2617, %v2632
    %v2635 = vunpack.c.l.s4 1983009808
    %v2636 = vunpack.c.0.s8 %v2635
    %v2637 = vlaneseq
    %v2638 = vshrl.u32 %v2637, 7
    %v2639 = vsub.s32 %v2636, %v2638
    %v2640 = vrot.slane %v2618, %v2639
    %v2642 = vunpack.c.l.s4 1983009808
    %v2643 = vunpack.c.0.s8 %v2642
    %v2644 = vlaneseq
    %v2645 = vshrl.u32 %v2644, 7
    %v2646 = vsub.s32 %v2643, %v2645
    %v2647 = vrot.slane %v2619, %v2646
    %v2648 = vcombine.low %v2626, %v2640
    %v2649 = vcombine.high %v2626, %v2640
    %v2650 = vcombine.low %v2633, %v2647
    %v2651 = vcombine.high %v2633, %v2647
    %v2652 = vcombine.low %v26, %v58
    %v2653 = vcombine.high %v26, %v58
    %v2654 = vcombine.low %v90, %v122
    %v2655 = vcombine.high %v90, %v122
    %v2657 = vunpack.c.l.s4 1983009808
    %v2658 = vunpack.c.0.s8 %v2657
    %v2659 = vlaneseq
    %v2660 = vshrl.u32 %v2659, 7
    %v2661 = vsub.s32 %v2658, %v2660
    %v2662 = vrot.slane %v2652, %v2661
    %v2664 = vunpack.c.l.s4 1983009808
    %v2665 = vunpack.c.0.s8 %v2664
    %v2666 = vlaneseq
    %v2667 = vshrl.u32 %v2666, 7
    %v2668 = vsub.s32 %v2665, %v2667
    %v2669 = vrot.slane %v2653, %v2668
    %v2671 = vunpack.c.l.s4 1983009808
    %v2672 = vunpack.c.0.s8 %v2671
    %v2673 = vlaneseq
    %v2674 = vshrl.u32 %v2673, 7
    %v2675 = vsub.s32 %v2672, %v2674
    %v2676 = vrot.slane %v2654, %v2675
    %v2678 = vunpack.c.l.s4 1983009808
    %v2679 = vunpack.c.0.s8 %v2678
    %v2680 = vlaneseq
    %v2681 = vshrl.u32 %v2680, 7
    %v2682 = vsub.s32 %v2679, %v2681
    %v2683 = vrot.slane %v2655, %v2682
    %v2684 = vcombine.low %v2662, %v2676
    %v2685 = vcombine.high %v2662, %v2676
    %v2686 = vcombine.low %v2669, %v2683
    %v2687 = vcombine.high %v2669, %v2683
    %v2688 = vcombine.low %v27, %v59
    %v2689 = vcombine.high %v27, %v59
    %v2690 = vcombine.low %v91, %v123
    %v2691 = vcombine.high %v91, %v123
    %v2693 = vunpack.c.l.s4 1983009808
    %v2694 = vunpack.c.0.s8 %v2693
    %v2695 = vlaneseq
    %v2696 = vshrl.u32 %v2695, 7
    %v2697 = vsub.s32 %v2694, %v2696
    %v2698 = vrot.slane %v2688, %v2697
    %v2700 = vunpack.c.l.s4 1983009808
    %v2701 = vunpack.c.0.s8 %v2700
    %v2702 = vlaneseq
    %v2703 = vshrl.u32 %v2702, 7
    %v2704 = vsub.s32 %v2701, %v2703
    %v2705 = vrot.slane %v2689, %v2704
    %v2707 = vunpack.c.l.s4 1983009808
    %v2708 = vunpack.c.0.s8 %v2707
    %v2709 = vlaneseq
    %v2710 = vshrl.u32 %v2709, 7
    %v2711 = vsub.s32 %v2708, %v2710
    %v2712 = vrot.slane %v2690, %v2711
    %v2714 = vunpack.c.l.s4 1983009808
    %v2715 = vunpack.c.0.s8 %v2714
    %v2716 = vlaneseq
    %v2717 = vshrl.u32 %v2716, 7
    %v2718 = vsub.s32 %v2715, %v2717
    %v2719 = vrot.slane %v2691, %v2718
    %v2720 = vcombine.low %v2698, %v2712
    %v2721 = vcombine.high %v2698, %v2712
    %v2722 = vcombine.low %v2705, %v2719
    %v2723 = vcombine.high %v2705, %v2719
    %v2724 = vcombine.low %v28, %v60
    %v2725 = vcombine.high %v28, %v60
    %v2726 = vcombine.low %v92, %v124
    %v2727 = vcombine.high %v92, %v124
    %v2729 = vunpack.c.l.s4 1983009808
    %v2730 = vunpack.c.0.s8 %v2729
    %v2731 = vlaneseq
    %v2732 = vshrl.u32 %v2731, 7
    %v2733 = vsub.s32 %v2730, %v2732
    %v2734 = vrot.slane %v2724, %v2733
    %v2736 = vunpack.c.l.s4 1983009808
    %v2737 = vunpack.c.0.s8 %v2736
    %v2738 = vlaneseq
    %v2739 = vshrl.u32 %v2738, 7
    %v2740 = vsub.s32 %v2737, %v2739
    %v2741 = vrot.slane %v2725, %v2740
    %v2743 = vunpack.c.l.s4 1983009808
    %v2744 = vunpack.c.0.s8 %v2743
    %v2745 = vlaneseq
    %v2746 = vshrl.u32 %v2745, 7
    %v2747 = vsub.s32 %v2744, %v2746
    %v2748 = vrot.slane %v2726, %v2747
    %v2750 = vunpack.c.l.s4 1983009808
    %v2751 = vunpack.c.0.s8 %v2750
    %v2752 = vlaneseq
    %v2753 = vshrl.u32 %v2752, 7
    %v2754 = vsub.s32 %v2751, %v2753
    %v2755 = vrot.slane %v2727, %v2754
    %v2756 = vcombine.low %v2734, %v2748
    %v2757 = vcombine.high %v2734, %v2748
    %v2758 = vcombine.low %v2741, %v2755
    %v2759 = vcombine.high %v2741, %v2755
    %v2760 = vcombine.low %v29, %v61
    %v2761 = vcombine.high %v29, %v61
    %v2762 = vcombine.low %v93, %v125
    %v2763 = vcombine.high %v93, %v125
    %v2765 = vunpack.c.l.s4 1983009808
    %v2766 = vunpack.c.0.s8 %v2765
    %v2767 = vlaneseq
    %v2768 = vshrl.u32 %v2767, 7
    %v2769 = vsub.s32 %v2766, %v2768
    %v2770 = vrot.slane %v2760, %v2769
    %v2772 = vunpack.c.l.s4 1983009808
    %v2773 = vunpack.c.0.s8 %v2772
    %v2774 = vlaneseq
    %v2775 = vshrl.u32 %v2774, 7
    %v2776 = vsub.s32 %v2773, %v2775
    %v2777 = vrot.slane %v2761, %v2776
    %v2779 = vunpack.c.l.s4 1983009808
    %v2780 = vunpack.c.0.s8 %v2779
    %v2781 = vlaneseq
    %v2782 = vshrl.u32 %v2781, 7
    %v2783 = vsub.s32 %v2780, %v2782
    %v2784 = vrot.slane %v2762, %v2783
    %v2786 = vunpack.c.l.s4 1983009808
    %v2787 = vunpack.c.0.s8 %v2786
    %v2788 = vlaneseq
    %v2789 = vshrl.u32 %v2788, 7
    %v2790 = vsub.s32 %v2787, %v2789
    %v2791 = vrot.slane %v2763, %v2790
    %v2792 = vcombine.low %v2770, %v2784
    %v2793 = vcombine.high %v2770, %v2784
    %v2794 = vcombine.low %v2777, %v2791
    %v2795 = vcombine.high %v2777, %v2791
    %v2796 = vcombine.low %v30, %v62
    %v2797 = vcombine.high %v30, %v62
    %v2798 = vcombine.low %v94, %v126
    %v2799 = vcombine.high %v94, %v126
    %v2801 = vunpack.c.l.s4 1983009808
    %v2802 = vunpack.c.0.s8 %v2801
    %v2803 = vlaneseq
    %v2804 = vshrl.u32 %v2803, 7
    %v2805 = vsub.s32 %v2802, %v2804
    %v2806 = vrot.slane %v2796, %v2805
    %v2808 = vunpack.c.l.s4 1983009808
    %v2809 = vunpack.c.0.s8 %v2808
    %v2810 = vlaneseq
    %v2811 = vshrl.u32 %v2810, 7
    %v2812 = vsub.s32 %v2809, %v2811
    %v2813 = vrot.slane %v2797, %v2812
    %v2815 = vunpack.c.l.s4 1983009808
    %v2816 = vunpack.c.0.s8 %v2815
    %v2817 = vlaneseq
    %v2818 = vshrl.u32 %v2817, 7
    %v2819 = vsub.s32 %v2816, %v2818
    %v2820 = vrot.slane %v2798, %v2819
    %v2822 = vunpack.c.l.s4 1983009808
    %v2823 = vunpack.c.0.s8 %v2822
    %v2824 = vlaneseq
    %v2825 = vshrl.u32 %v2824, 7
    %v2826 = vsub.s32 %v2823, %v2825
    %v2827 = vrot.slane %v2799, %v2826
    %v2828 = vcombine.low %v2806, %v2820
    %v2829 = vcombine.high %v2806, %v2820
    %v2830 = vcombine.low %v2813, %v2827
    %v2831 = vcombine.high %v2813, %v2827
    %v2832 = vcombine.low %v31, %v63
    %v2833 = vcombine.high %v31, %v63
    %v2834 = vcombine.low %v95, %v127
    %v2835 = vcombine.high %v95, %v127
    %v2837 = vunpack.c.l.s4 1983009808
    %v2838 = vunpack.c.0.s8 %v2837
    %v2839 = vlaneseq
    %v2840 = vshrl.u32 %v2839, 7
    %v2841 = vsub.s32 %v2838, %v2840
    %v2842 = vrot.slane %v2832, %v2841
    %v2844 = vunpack.c.l.s4 1983009808
    %v2845 = vunpack.c.0.s8 %v2844
    %v2846 = vlaneseq
    %v2847 = vshrl.u32 %v2846, 7
    %v2848 = vsub.s32 %v2845, %v2847
    %v2849 = vrot.slane %v2833, %v2848
    %v2851 = vunpack.c.l.s4 1983009808
    %v2852 = vunpack.c.0.s8 %v2851
    %v2853 = vlaneseq
    %v2854 = vshrl.u32 %v2853, 7
    %v2855 = vsub.s32 %v2852, %v2854
    %v2856 = vrot.slane %v2834, %v2855
    %v2858 = vunpack.c.l.s4 1983009808
    %v2859 = vunpack.c.0.s8 %v2858
    %v2860 = vlaneseq
    %v2861 = vshrl.u32 %v2860, 7
    %v2862 = vsub.s32 %v2859, %v2861
    %v2863 = vrot.slane %v2835, %v2862
    %v2864 = vcombine.low %v2842, %v2856
    %v2865 = vcombine.high %v2842, %v2856
    %v2866 = vcombine.low %v2849, %v2863
    %v2867 = vcombine.high %v2849, %v2863
    %v2868 = vcombine.low %v32, %v64
    %v2869 = vcombine.high %v32, %v64
    %v2870 = vcombine.low %v96, %v128
    %v2871 = vcombine.high %v96, %v128
    %v2873 = vunpack.c.l.s4 1983009808
    %v2874 = vunpack.c.0.s8 %v2873
    %v2875 = vlaneseq
    %v2876 = vshrl.u32 %v2875, 7
    %v2877 = vsub.s32 %v2874, %v2876
    %v2878 = vrot.slane %v2868, %v2877
    %v2880 = vunpack.c.l.s4 1983009808
    %v2881 = vunpack.c.0.s8 %v2880
    %v2882 = vlaneseq
    %v2883 = vshrl.u32 %v2882, 7
    %v2884 = vsub.s32 %v2881, %v2883
    %v2885 = vrot.slane %v2869, %v2884
    %v2887 = vunpack.c.l.s4 1983009808
    %v2888 = vunpack.c.0.s8 %v2887
    %v2889 = vlaneseq
    %v2890 = vshrl.u32 %v2889, 7
    %v2891 = vsub.s32 %v2888, %v2890
    %v2892 = vrot.slane %v2870, %v2891
    %v2894 = vunpack.c.l.s4 1983009808
    %v2895 = vunpack.c.0.s8 %v2894
    %v2896 = vlaneseq
    %v2897 = vshrl.u32 %v2896, 7
    %v2898 = vsub.s32 %v2895, %v2897
    %v2899 = vrot.slane %v2871, %v2898
    %v2900 = vcombine.low %v2878, %v2892
    %v2901 = vcombine.high %v2878, %v2892
    %v2902 = vcombine.low %v2885, %v2899
    %v2903 = vcombine.high %v2885, %v2899
    %v2904 = vcombine.low %v33, %v65
    %v2905 = vcombine.high %v33, %v65
    %v2906 = vcombine.low %v97, %v129
    %v2907 = vcombine.high %v97, %v129
    %v2909 = vunpack.c.l.s4 1983009808
    %v2910 = vunpack.c.0.s8 %v2909
    %v2911 = vlaneseq
    %v2912 = vshrl.u32 %v2911, 7
    %v2913 = vsub.s32 %v2910, %v2912
    %v2914 = vrot.slane %v2904, %v2913
    %v2916 = vunpack.c.l.s4 1983009808
    %v2917 = vunpack.c.0.s8 %v2916
    %v2918 = vlaneseq
    %v2919 = vshrl.u32 %v2918, 7
    %v2920 = vsub.s32 %v2917, %v2919
    %v2921 = vrot.slane %v2905, %v2920
    %v2923 = vunpack.c.l.s4 1983009808
    %v2924 = vunpack.c.0.s8 %v2923
    %v2925 = vlaneseq
    %v2926 = vshrl.u32 %v2925, 7
    %v2927 = vsub.s32 %v2924, %v2926
    %v2928 = vrot.slane %v2906, %v2927
    %v2930 = vunpack.c.l.s4 1983009808
    %v2931 = vunpack.c.0.s8 %v2930
    %v2932 = vlaneseq
    %v2933 = vshrl.u32 %v2932, 7
    %v2934 = vsub.s32 %v2931, %v2933
    %v2935 = vrot.slane %v2907, %v2934
    %v2936 = vcombine.low %v2914, %v2928
    %v2937 = vcombine.high %v2914, %v2928
    %v2938 = vcombine.low %v2921, %v2935
    %v2939 = vcombine.high %v2921, %v2935
    %v2940 = vcombine.low %v34, %v66
    %v2941 = vcombine.high %v34, %v66
    %v2942 = vcombine.low %v98, %v130
    %v2943 = vcombine.high %v98, %v130
    %v2945 = vunpack.c.l.s4 1983009808
    %v2946 = vunpack.c.0.s8 %v2945
    %v2947 = vlaneseq
    %v2948 = vshrl.u32 %v2947, 7
    %v2949 = vsub.s32 %v2946, %v2948
    %v2950 = vrot.slane %v2940, %v2949
    %v2952 = vunpack.c.l.s4 1983009808
    %v2953 = vunpack.c.0.s8 %v2952
    %v2954 = vlaneseq
    %v2955 = vshrl.u32 %v2954, 7
    %v2956 = vsub.s32 %v2953, %v2955
    %v2957 = vrot.slane %v2941, %v2956
    %v2959 = vunpack.c.l.s4 1983009808
    %v2960 = vunpack.c.0.s8 %v2959
    %v2961 = vlaneseq
    %v2962 = vshrl.u32 %v2961, 7
    %v2963 = vsub.s32 %v2960, %v2962
    %v2964 = vrot.slane %v2942, %v2963
    %v2966 = vunpack.c.l.s4 1983009808
    %v2967 = vunpack.c.0.s8 %v2966
    %v2968 = vlaneseq
    %v2969 = vshrl.u32 %v2968, 7
    %v2970 = vsub.s32 %v2967, %v2969
    %v2971 = vrot.slane %v2943, %v2970
    %v2972 = vcombine.low %v2950, %v2964
    %v2973 = vcombine.high %v2950, %v2964
    %v2974 = vcombine.low %v2957, %v2971
    %v2975 = vcombine.high %v2957, %v2971
    %v2976 = vcombine.low %v35, %v67
    %v2977 = vcombine.high %v35, %v67
    %v2978 = vcombine.low %v99, %v131
    %v2979 = vcombine.high %v99, %v131
    %v2981 = vunpack.c.l.s4 1983009808
    %v2982 = vunpack.c.0.s8 %v2981
    %v2983 = vlaneseq
    %v2984 = vshrl.u32 %v2983, 7
    %v2985 = vsub.s32 %v2982, %v2984
    %v2986 = vrot.slane %v2976, %v2985
    %v2988 = vunpack.c.l.s4 1983009808
    %v2989 = vunpack.c.0.s8 %v2988
    %v2990 = vlaneseq
    %v2991 = vshrl.u32 %v2990, 7
    %v2992 = vsub.s32 %v2989, %v2991
    %v2993 = vrot.slane %v2977, %v2992
    %v2995 = vunpack.c.l.s4 1983009808
    %v2996 = vunpack.c.0.s8 %v2995
    %v2997 = vlaneseq
    %v2998 = vshrl.u32 %v2997, 7
    %v2999 = vsub.s32 %v2996, %v2998
    %v3000 = vrot.slane %v2978, %v2999
    %v3002 = vunpack.c.l.s4 1983009808
    %v3003 = vunpack.c.0.s8 %v3002
    %v3004 = vlaneseq
    %v3005 = vshrl.u32 %v3004, 7
    %v3006 = vsub.s32 %v3003, %v3005
    %v3007 = vrot.slane %v2979, %v3006
    %v3008 = vcombine.low %v2986, %v3000
    %v3009 = vcombine.high %v2986, %v3000
    %v3010 = vcombine.low %v2993, %v3007
    %v3011 = vcombine.high %v2993, %v3007
    %v3012 = vcombine.low %v36, %v68
    %v3013 = vcombine.high %v36, %v68
    %v3014 = vcombine.low %v100, %v132
    %v3015 = vcombine.high %v100, %v132
    %v3017 = vunpack.c.l.s4 1983009808
    %v3018 = vunpack.c.0.s8 %v3017
    %v3019 = vlaneseq
    %v3020 = vshrl.u32 %v3019, 7
    %v3021 = vsub.s32 %v3018, %v3020
    %v3022 = vrot.slane %v3012, %v3021
    %v3024 = vunpack.c.l.s4 1983009808
    %v3025 = vunpack.c.0.s8 %v3024
    %v3026 = vlaneseq
    %v3027 = vshrl.u32 %v3026, 7
    %v3028 = vsub.s32 %v3025, %v3027
    %v3029 = vrot.slane %v3013, %v3028
    %v3031 = vunpack.c.l.s4 1983009808
    %v3032 = vunpack.c.0.s8 %v3031
    %v3033 = vlaneseq
    %v3034 = vshrl.u32 %v3033, 7
    %v3035 = vsub.s32 %v3032, %v3034
    %v3036 = vrot.slane %v3014, %v3035
    %v3038 = vunpack.c.l.s4 1983009808
    %v3039 = vunpack.c.0.s8 %v3038
    %v3040 = vlaneseq
    %v3041 = vshrl.u32 %v3040, 7
    %v3042 = vsub.s32 %v3039, %v3041
    %v3043 = vrot.slane %v3015, %v3042
    %v3044 = vcombine.low %v3022, %v3036
    %v3045 = vcombine.high %v3022, %v3036
    %v3046 = vcombine.low %v3029, %v3043
    %v3047 = vcombine.high %v3029, %v3043
    %v3048 = vcombine.low %v37, %v69
    %v3049 = vcombine.high %v37, %v69
    %v3050 = vcombine.low %v101, %v133
    %v3051 = vcombine.high %v101, %v133
    %v3053 = vunpack.c.l.s4 1983009808
    %v3054 = vunpack.c.0.s8 %v3053
    %v3055 = vlaneseq
    %v3056 = vshrl.u32 %v3055, 7
    %v3057 = vsub.s32 %v3054, %v3056
    %v3058 = vrot.slane %v3048, %v3057
    %v3060 = vunpack.c.l.s4 1983009808
    %v3061 = vunpack.c.0.s8 %v3060
    %v3062 = vlaneseq
    %v3063 = vshrl.u32 %v3062, 7
    %v3064 = vsub.s32 %v3061, %v3063
    %v3065 = vrot.slane %v3049, %v3064
    %v3067 = vunpack.c.l.s4 1983009808
    %v3068 = vunpack.c.0.s8 %v3067
    %v3069 = vlaneseq
    %v3070 = vshrl.u32 %v3069, 7
    %v3071 = vsub.s32 %v3068, %v3070
    %v3072 = vrot.slane %v3050, %v3071
    %v3074 = vunpack.c.l.s4 1983009808
    %v3075 = vunpack.c.0.s8 %v3074
    %v3076 = vlaneseq
    %v3077 = vshrl.u32 %v3076, 7
    %v3078 = vsub.s32 %v3075, %v3077
    %v3079 = vrot.slane %v3051, %v3078
    %v3080 = vcombine.low %v3058, %v3072
    %v3081 = vcombine.high %v3058, %v3072
    %v3082 = vcombine.low %v3065, %v3079
    %v3083 = vcombine.high %v3065, %v3079
    %v3084 = vcombine.low %v38, %v70
    %v3085 = vcombine.high %v38, %v70
    %v3086 = vcombine.low %v102, %v134
    %v3087 = vcombine.high %v102, %v134
    %v3089 = vunpack.c.l.s4 1983009808
    %v3090 = vunpack.c.0.s8 %v3089
    %v3091 = vlaneseq
    %v3092 = vshrl.u32 %v3091, 7
    %v3093 = vsub.s32 %v3090, %v3092
    %v3094 = vrot.slane %v3084, %v3093
    %v3096 = vunpack.c.l.s4 1983009808
    %v3097 = vunpack.c.0.s8 %v3096
    %v3098 = vlaneseq
    %v3099 = vshrl.u32 %v3098, 7
    %v3100 = vsub.s32 %v3097, %v3099
    %v3101 = vrot.slane %v3085, %v3100
    %v3103 = vunpack.c.l.s4 1983009808
    %v3104 = vunpack.c.0.s8 %v3103
    %v3105 = vlaneseq
    %v3106 = vshrl.u32 %v3105, 7
    %v3107 = vsub.s32 %v3104, %v3106
    %v3108 = vrot.slane %v3086, %v3107
    %v3110 = vunpack.c.l.s4 1983009808
    %v3111 = vunpack.c.0.s8 %v3110
    %v3112 = vlaneseq
    %v3113 = vshrl.u32 %v3112, 7
    %v3114 = vsub.s32 %v3111, %v3113
    %v3115 = vrot.slane %v3087, %v3114
    %v3116 = vcombine.low %v3094, %v3108
    %v3117 = vcombine.high %v3094, %v3108
    %v3118 = vcombine.low %v3101, %v3115
    %v3119 = vcombine.high %v3101, %v3115
    %v3120 = vcombine.low %v39, %v71
    %v3121 = vcombine.high %v39, %v71
    %v3122 = vcombine.low %v103, %v135
    %v3123 = vcombine.high %v103, %v135
    %v3125 = vunpack.c.l.s4 1983009808
    %v3126 = vunpack.c.0.s8 %v3125
    %v3127 = vlaneseq
    %v3128 = vshrl.u32 %v3127, 7
    %v3129 = vsub.s32 %v3126, %v3128
    %v3130 = vrot.slane %v3120, %v3129
    %v3132 = vunpack.c.l.s4 1983009808
    %v3133 = vunpack.c.0.s8 %v3132
    %v3134 = vlaneseq
    %v3135 = vshrl.u32 %v3134, 7
    %v3136 = vsub.s32 %v3133, %v3135
    %v3137 = vrot.slane %v3121, %v3136
    %v3139 = vunpack.c.l.s4 1983009808
    %v3140 = vunpack.c.0.s8 %v3139
    %v3141 = vlaneseq
    %v3142 = vshrl.u32 %v3141, 7
    %v3143 = vsub.s32 %v3140, %v3142
    %v3144 = vrot.slane %v3122, %v3143
    %v3146 = vunpack.c.l.s4 1983009808
    %v3147 = vunpack.c.0.s8 %v3146
    %v3148 = vlaneseq
    %v3149 = vshrl.u32 %v3148, 7
    %v3150 = vsub.s32 %v3147, %v3149
    %v3151 = vrot.slane %v3123, %v3150
    %v3152 = vcombine.low %v3130, %v3144
    %v3153 = vcombine.high %v3130, %v3144
    %v3154 = vcombine.low %v3137, %v3151
    %v3155 = vcombine.high %v3137, %v3151
    %v3156 = vcombine.low %v40, %v72
    %v3157 = vcombine.high %v40, %v72
    %v3158 = vcombine.low %v104, %v136
    %v3159 = vcombine.high %v104, %v136
    %v3161 = vunpack.c.l.s4 1983009808
    %v3162 = vunpack.c.0.s8 %v3161
    %v3163 = vlaneseq
    %v3164 = vshrl.u32 %v3163, 7
    %v3165 = vsub.s32 %v3162, %v3164
    %v3166 = vrot.slane %v3156, %v3165
    %v3168 = vunpack.c.l.s4 1983009808
    %v3169 = vunpack.c.0.s8 %v3168
    %v3170 = vlaneseq
    %v3171 = vshrl.u32 %v3170, 7
    %v3172 = vsub.s32 %v3169, %v3171
    %v3173 = vrot.slane %v3157, %v3172
    %v3175 = vunpack.c.l.s4 1983009808
    %v3176 = vunpack.c.0.s8 %v3175
    %v3177 = vlaneseq
    %v3178 = vshrl.u32 %v3177, 7
    %v3179 = vsub.s32 %v3176, %v3178
    %v3180 = vrot.slane %v3158, %v3179
    %v3182 = vunpack.c.l.s4 1983009808
    %v3183 = vunpack.c.0.s8 %v3182
    %v3184 = vlaneseq
    %v3185 = vshrl.u32 %v3184, 7
    %v3186 = vsub.s32 %v3183, %v3185
    %v3187 = vrot.slane %v3159, %v3186
    %v3188 = vcombine.low %v3166, %v3180
    %v3189 = vcombine.high %v3166, %v3180
    %v3190 = vcombine.low %v3173, %v3187
    %v3191 = vcombine.high %v3173, %v3187
    %v3192 = vcombine.low %v41, %v73
    %v3193 = vcombine.high %v41, %v73
    %v3194 = vcombine.low %v105, %v137
    %v3195 = vcombine.high %v105, %v137
    %v3197 = vunpack.c.l.s4 1983009808
    %v3198 = vunpack.c.0.s8 %v3197
    %v3199 = vlaneseq
    %v3200 = vshrl.u32 %v3199, 7
    %v3201 = vsub.s32 %v3198, %v3200
    %v3202 = vrot.slane %v3192, %v3201
    %v3204 = vunpack.c.l.s4 1983009808
    %v3205 = vunpack.c.0.s8 %v3204
    %v3206 = vlaneseq
    %v3207 = vshrl.u32 %v3206, 7
    %v3208 = vsub.s32 %v3205, %v3207
    %v3209 = vrot.slane %v3193, %v3208
    %v3211 = vunpack.c.l.s4 1983009808
    %v3212 = vunpack.c.0.s8 %v3211
    %v3213 = vlaneseq
    %v3214 = vshrl.u32 %v3213, 7
    %v3215 = vsub.s32 %v3212, %v3214
    %v3216 = vrot.slane %v3194, %v3215
    %v3218 = vunpack.c.l.s4 1983009808
    %v3219 = vunpack.c.0.s8 %v3218
    %v3220 = vlaneseq
    %v3221 = vshrl.u32 %v3220, 7
    %v3222 = vsub.s32 %v3219, %v3221
    %v3223 = vrot.slane %v3195, %v3222
    %v3224 = vcombine.low %v3202, %v3216
    %v3225 = vcombine.high %v3202, %v3216
    %v3226 = vcombine.low %v3209, %v3223
    %v3227 = vcombine.high %v3209, %v3223
    %v3228 = vcombine.low %v42, %v74
    %v3229 = vcombine.high %v42, %v74
    %v3230 = vcombine.low %v106, %v138
    %v3231 = vcombine.high %v106, %v138
    %v3233 = vunpack.c.l.s4 1983009808
    %v3234 = vunpack.c.0.s8 %v3233
    %v3235 = vlaneseq
    %v3236 = vshrl.u32 %v3235, 7
    %v3237 = vsub.s32 %v3234, %v3236
    %v3238 = vrot.slane %v3228, %v3237
    %v3240 = vunpack.c.l.s4 1983009808
    %v3241 = vunpack.c.0.s8 %v3240
    %v3242 = vlaneseq
    %v3243 = vshrl.u32 %v3242, 7
    %v3244 = vsub.s32 %v3241, %v3243
    %v3245 = vrot.slane %v3229, %v3244
    %v3247 = vunpack.c.l.s4 1983009808
    %v3248 = vunpack.c.0.s8 %v3247
    %v3249 = vlaneseq
    %v3250 = vshrl.u32 %v3249, 7
    %v3251 = vsub.s32 %v3248, %v3250
    %v3252 = vrot.slane %v3230, %v3251
    %v3254 = vunpack.c.l.s4 1983009808
    %v3255 = vunpack.c.0.s8 %v3254
    %v3256 = vlaneseq
    %v3257 = vshrl.u32 %v3256, 7
    %v3258 = vsub.s32 %v3255, %v3257
    %v3259 = vrot.slane %v3231, %v3258
    %v3260 = vcombine.low %v3238, %v3252
    %v3261 = vcombine.high %v3238, %v3252
    %v3262 = vcombine.low %v3245, %v3259
    %v3263 = vcombine.high %v3245, %v3259
    %v3264 = vcombine.low %v43, %v75
    %v3265 = vcombine.high %v43, %v75
    %v3266 = vcombine.low %v107, %v139
    %v3267 = vcombine.high %v107, %v139
    %v3269 = vunpack.c.l.s4 1983009808
    %v3270 = vunpack.c.0.s8 %v3269
    %v3271 = vlaneseq
    %v3272 = vshrl.u32 %v3271, 7
    %v3273 = vsub.s32 %v3270, %v3272
    %v3274 = vrot.slane %v3264, %v3273
    %v3276 = vunpack.c.l.s4 1983009808
    %v3277 = vunpack.c.0.s8 %v3276
    %v3278 = vlaneseq
    %v3279 = vshrl.u32 %v3278, 7
    %v3280 = vsub.s32 %v3277, %v3279
    %v3281 = vrot.slane %v3265, %v3280
    %v3283 = vunpack.c.l.s4 1983009808
    %v3284 = vunpack.c.0.s8 %v3283
    %v3285 = vlaneseq
    %v3286 = vshrl.u32 %v3285, 7
    %v3287 = vsub.s32 %v3284, %v3286
    %v3288 = vrot.slane %v3266, %v3287
    %v3290 = vunpack.c.l.s4 1983009808
    %v3291 = vunpack.c.0.s8 %v3290
    %v3292 = vlaneseq
    %v3293 = vshrl.u32 %v3292, 7
    %v3294 = vsub.s32 %v3291, %v3293
    %v3295 = vrot.slane %v3267, %v3294
    %v3296 = vcombine.low %v3274, %v3288
    %v3297 = vcombine.high %v3274, %v3288
    %v3298 = vcombine.low %v3281, %v3295
    %v3299 = vcombine.high %v3281, %v3295
    %v3300 = vcombine.low %v44, %v76
    %v3301 = vcombine.high %v44, %v76
    %v3302 = vcombine.low %v108, %v140
    %v3303 = vcombine.high %v108, %v140
    %v3305 = vunpack.c.l.s4 1983009808
    %v3306 = vunpack.c.0.s8 %v3305
    %v3307 = vlaneseq
    %v3308 = vshrl.u32 %v3307, 7
    %v3309 = vsub.s32 %v3306, %v3308
    %v3310 = vrot.slane %v3300, %v3309
    %v3312 = vunpack.c.l.s4 1983009808
    %v3313 = vunpack.c.0.s8 %v3312
    %v3314 = vlaneseq
    %v3315 = vshrl.u32 %v3314, 7
    %v3316 = vsub.s32 %v3313, %v3315
    %v3317 = vrot.slane %v3301, %v3316
    %v3319 = vunpack.c.l.s4 1983009808
    %v3320 = vunpack.c.0.s8 %v3319
    %v3321 = vlaneseq
    %v3322 = vshrl.u32 %v3321, 7
    %v3323 = vsub.s32 %v3320, %v3322
    %v3324 = vrot.slane %v3302, %v3323
    %v3326 = vunpack.c.l.s4 1983009808
    %v3327 = vunpack.c.0.s8 %v3326
    %v3328 = vlaneseq
    %v3329 = vshrl.u32 %v3328, 7
    %v3330 = vsub.s32 %v3327, %v3329
    %v3331 = vrot.slane %v3303, %v3330
    %v3332 = vcombine.low %v3310, %v3324
    %v3333 = vcombine.high %v3310, %v3324
    %v3334 = vcombine.low %v3317, %v3331
    %v3335 = vcombine.high %v3317, %v3331
    %v3336 = vcombine.low %v45, %v77
    %v3337 = vcombine.high %v45, %v77
    %v3338 = vcombine.low %v109, %v141
    %v3339 = vcombine.high %v109, %v141
    %v3341 = vunpack.c.l.s4 1983009808
    %v3342 = vunpack.c.0.s8 %v3341
    %v3343 = vlaneseq
    %v3344 = vshrl.u32 %v3343, 7
    %v3345 = vsub.s32 %v3342, %v3344
    %v3346 = vrot.slane %v3336, %v3345
    %v3348 = vunpack.c.l.s4 1983009808
    %v3349 = vunpack.c.0.s8 %v3348
    %v3350 = vlaneseq
    %v3351 = vshrl.u32 %v3350, 7
    %v3352 = vsub.s32 %v3349, %v3351
    %v3353 = vrot.slane %v3337, %v3352
    %v3355 = vunpack.c.l.s4 1983009808
    %v3356 = vunpack.c.0.s8 %v3355
    %v3357 = vlaneseq
    %v3358 = vshrl.u32 %v3357, 7
    %v3359 = vsub.s32 %v3356, %v3358
    %v3360 = vrot.slane %v3338, %v3359
    %v3362 = vunpack.c.l.s4 1983009808
    %v3363 = vunpack.c.0.s8 %v3362
    %v3364 = vlaneseq
    %v3365 = vshrl.u32 %v3364, 7
    %v3366 = vsub.s32 %v3363, %v3365
    %v3367 = vrot.slane %v3339, %v3366
    %v3368 = vcombine.low %v3346, %v3360
    %v3369 = vcombine.high %v3346, %v3360
    %v3370 = vcombine.low %v3353, %v3367
    %v3371 = vcombine.high %v3353, %v3367
    %v3372 = vcombine.low %v46, %v78
    %v3373 = vcombine.high %v46, %v78
    %v3374 = vcombine.low %v110, %v142
    %v3375 = vcombine.high %v110, %v142
    %v3377 = vunpack.c.l.s4 1983009808
    %v3378 = vunpack.c.0.s8 %v3377
    %v3379 = vlaneseq
    %v3380 = vshrl.u32 %v3379, 7
    %v3381 = vsub.s32 %v3378, %v3380
    %v3382 = vrot.slane %v3372, %v3381
    %v3384 = vunpack.c.l.s4 1983009808
    %v3385 = vunpack.c.0.s8 %v3384
    %v3386 = vlaneseq
    %v3387 = vshrl.u32 %v3386, 7
    %v3388 = vsub.s32 %v3385, %v3387
    %v3389 = vrot.slane %v3373, %v3388
    %v3391 = vunpack.c.l.s4 1983009808
    %v3392 = vunpack.c.0.s8 %v3391
    %v3393 = vlaneseq
    %v3394 = vshrl.u32 %v3393, 7
    %v3395 = vsub.s32 %v3392, %v3394
    %v3396 = vrot.slane %v3374, %v3395
    %v3398 = vunpack.c.l.s4 1983009808
    %v3399 = vunpack.c.0.s8 %v3398
    %v3400 = vlaneseq
    %v3401 = vshrl.u32 %v3400, 7
    %v3402 = vsub.s32 %v3399, %v3401
    %v3403 = vrot.slane %v3375, %v3402
    %v3404 = vcombine.low %v3382, %v3396
    %v3405 = vcombine.high %v3382, %v3396
    %v3406 = vcombine.low %v3389, %v3403
    %v3407 = vcombine.high %v3389, %v3403
    %v3408 = vcombine.low %v47, %v79
    %v3409 = vcombine.high %v47, %v79
    %v3410 = vcombine.low %v111, %v143
    %v3411 = vcombine.high %v111, %v143
    %v3413 = vunpack.c.l.s4 1983009808
    %v3414 = vunpack.c.0.s8 %v3413
    %v3415 = vlaneseq
    %v3416 = vshrl.u32 %v3415, 7
    %v3417 = vsub.s32 %v3414, %v3416
    %v3418 = vrot.slane %v3408, %v3417
    %v3420 = vunpack.c.l.s4 1983009808
    %v3421 = vunpack.c.0.s8 %v3420
    %v3422 = vlaneseq
    %v3423 = vshrl.u32 %v3422, 7
    %v3424 = vsub.s32 %v3421, %v3423
    %v3425 = vrot.slane %v3409, %v3424
    %v3427 = vunpack.c.l.s4 1983009808
    %v3428 = vunpack.c.0.s8 %v3427
    %v3429 = vlaneseq
    %v3430 = vshrl.u32 %v3429, 7
    %v3431 = vsub.s32 %v3428, %v3430
    %v3432 = vrot.slane %v3410, %v3431
    %v3434 = vunpack.c.l.s4 1983009808
    %v3435 = vunpack.c.0.s8 %v3434
    %v3436 = vlaneseq
    %v3437 = vshrl.u32 %v3436, 7
    %v3438 = vsub.s32 %v3435, %v3437
    %v3439 = vrot.slane %v3411, %v3438
    %v3440 = vcombine.low %v3418, %v3432
    %v3441 = vcombine.high %v3418, %v3432
    %v3442 = vcombine.low %v3425, %v3439
    %v3443 = vcombine.high %v3425, %v3439
    %v3444 = vcombine.low %v48, %v80
    %v3445 = vcombine.high %v48, %v80
    %v3446 = vcombine.low %v112, %v144
    %v3447 = vcombine.high %v112, %v144
    %v3449 = vunpack.c.l.s4 1983009808
    %v3450 = vunpack.c.0.s8 %v3449
    %v3451 = vlaneseq
    %v3452 = vshrl.u32 %v3451, 7
    %v3453 = vsub.s32 %v3450, %v3452
    %v3454 = vrot.slane %v3444, %v3453
    %v3456 = vunpack.c.l.s4 1983009808
    %v3457 = vunpack.c.0.s8 %v3456
    %v3458 = vlaneseq
    %v3459 = vshrl.u32 %v3458, 7
    %v3460 = vsub.s32 %v3457, %v3459
    %v3461 = vrot.slane %v3445, %v3460
    %v3463 = vunpack.c.l.s4 1983009808
    %v3464 = vunpack.c.0.s8 %v3463
    %v3465 = vlaneseq
    %v3466 = vshrl.u32 %v3465, 7
    %v3467 = vsub.s32 %v3464, %v3466
    %v3468 = vrot.slane %v3446, %v3467
    %v3470 = vunpack.c.l.s4 1983009808
    %v3471 = vunpack.c.0.s8 %v3470
    %v3472 = vlaneseq
    %v3473 = vshrl.u32 %v3472, 7
    %v3474 = vsub.s32 %v3471, %v3473
    %v3475 = vrot.slane %v3447, %v3474
    %v3476 = vcombine.low %v3454, %v3468
    %v3477 = vcombine.high %v3454, %v3468
    %v3478 = vcombine.low %v3461, %v3475
    %v3479 = vcombine.high %v3461, %v3475
    %3608 = vmatprep.subr.mxu0 0.0
    %3609 = vmatpush1.msra.mxu0 %v160
    %3610 = vmatprep.subr.mxu0 0.0
    %3611 = vmatpush1.msra.mxu0 %v159
    %3612 = vmatprep.subr.mxu0 0.0
    %3613 = vmatpush1.msra.mxu0 %v158
    %3614 = vmatprep.subr.mxu0 0.0
    %3615 = vmatpush1.msra.mxu0 %v157
    %3616 = vmatprep.subr.mxu0 0.0
    %3617 = vmatpush1.msra.mxu0 %v156
    %3618 = vmatprep.subr.mxu0 0.0
    %3619 = vmatpush1.msra.mxu0 %v155
    %3620 = vmatprep.subr.mxu0 0.0
    %3621 = vmatpush1.msra.mxu0 %v154
    %3622 = vmatprep.subr.mxu0 0.0
    %3623 = vmatpush1.msra.mxu0 %v153
    %3624 = vmatprep.subr.mxu0 0.0
    %3625 = vmatpush1.msra.mxu0 %v152
    %3626 = vmatprep.subr.mxu0 0.0
    %3627 = vmatpush1.msra.mxu0 %v151
    %3628 = vmatprep.subr.mxu0 0.0
    %3629 = vmatpush1.msra.mxu0 %v150
    %3630 = vmatprep.subr.mxu0 0.0
    %3631 = vmatpush1.msra.mxu0 %v149
    %3632 = vmatprep.subr.mxu0 0.0
    %3633 = vmatpush1.msra.mxu0 %v148
    %3634 = vmatprep.subr.mxu0 0.0
    %3635 = vmatpush1.msra.mxu0 %v147
    %3636 = vmatprep.subr.mxu0 0.0
    %3637 = vmatpush1.msra.mxu0 %v146
    %3638 = vmatprep.subr.mxu0 0.0
    %3639 = vmatpush1.msra.mxu0 %v145
    %3640 = vmatprep.subr.mxu0 0.0
    %3641 = vmatpush2.msra.mxu0 %v176
    %3642 = vmatprep.subr.mxu0 0.0
    %3643 = vmatpush2.msra.mxu0 %v175
    %3644 = vmatprep.subr.mxu0 0.0
    %3645 = vmatpush2.msra.mxu0 %v174
    %3646 = vmatprep.subr.mxu0 0.0
    %3647 = vmatpush2.msra.mxu0 %v173
    %3648 = vmatprep.subr.mxu0 0.0
    %3649 = vmatpush2.msra.mxu0 %v172
    %3650 = vmatprep.subr.mxu0 0.0
    %3651 = vmatpush2.msra.mxu0 %v171
    %3652 = vmatprep.subr.mxu0 0.0
    %3653 = vmatpush2.msra.mxu0 %v170
    %3654 = vmatprep.subr.mxu0 0.0
    %3655 = vmatpush2.msra.mxu0 %v169
    %3656 = vmatprep.subr.mxu0 0.0
    %3657 = vmatpush2.msra.mxu0 %v168
    %3658 = vmatprep.subr.mxu0 0.0
    %3659 = vmatpush2.msra.mxu0 %v167
    %3660 = vmatprep.subr.mxu0 0.0
    %3661 = vmatpush2.msra.mxu0 %v166
    %3662 = vmatprep.subr.mxu0 0.0
    %3663 = vmatpush2.msra.mxu0 %v165
    %3664 = vmatprep.subr.mxu0 0.0
    %3665 = vmatpush2.msra.mxu0 %v164
    %3666 = vmatprep.subr.mxu0 0.0
    %3667 = vmatpush2.msra.mxu0 %v163
    %3668 = vmatprep.subr.mxu0 0.0
    %3669 = vmatpush2.msra.mxu0 %v162
    %3670 = vmatprep.subr.mxu0 0.0
    %3671 = vmatpush2.msra.mxu0 %v161
    %3672 = vmatprep.mubr.f32.mxu0 %v2361
    %3673 = vmatmul.mubr.f32.gmra.mxu0 %v2360
    %v3674 = vpop.f32.mrf.mxu0
    %v3675 = vadd.f32 %v2198, %v3674
    %v3676 = vpop.f32.mrf.mxu0
    %3677 = vdwg.mxu0
    %3678 = vmatprep.subr.mxu0 0.0
    %3679 = vmatpush1.msra.mxu0 %v192
    %3680 = vmatprep.subr.mxu0 0.0
    %3681 = vmatpush1.msra.mxu0 %v191
    %3682 = vmatprep.subr.mxu0 0.0
    %3683 = vmatpush1.msra.mxu0 %v190
    %3684 = vmatprep.subr.mxu0 0.0
    %3685 = vmatpush1.msra.mxu0 %v189
    %3686 = vmatprep.subr.mxu0 0.0
    %3687 = vmatpush1.msra.mxu0 %v188
    %3688 = vmatprep.subr.mxu0 0.0
    %3689 = vmatpush1.msra.mxu0 %v187
    %3690 = vmatprep.subr.mxu0 0.0
    %3691 = vmatpush1.msra.mxu0 %v186
    %3692 = vmatprep.subr.mxu0 0.0
    %3693 = vmatpush1.msra.mxu0 %v185
    %3694 = vmatprep.subr.mxu0 0.0
    %3695 = vmatpush1.msra.mxu0 %v184
    %3696 = vmatprep.subr.mxu0 0.0
    %3697 = vmatpush1.msra.mxu0 %v183
    %3698 = vmatprep.subr.mxu0 0.0
    %3699 = vmatpush1.msra.mxu0 %v182
    %3700 = vmatprep.subr.mxu0 0.0
    %3701 = vmatpush1.msra.mxu0 %v181
    %3702 = vmatprep.subr.mxu0 0.0
    %3703 = vmatpush1.msra.mxu0 %v180
    %3704 = vmatprep.subr.mxu0 0.0
    %3705 = vmatpush1.msra.mxu0 %v179
    %3706 = vmatprep.subr.mxu0 0.0
    %3707 = vmatpush1.msra.mxu0 %v178
    %3708 = vmatprep.subr.mxu0 0.0
    %3709 = vmatpush1.msra.mxu0 %v177
    %3710 = vmatprep.subr.mxu0 0.0
    %3711 = vmatpush2.msra.mxu0 %v208
    %3712 = vmatprep.subr.mxu0 0.0
    %3713 = vmatpush2.msra.mxu0 %v207
    %3714 = vmatprep.subr.mxu0 0.0
    %3715 = vmatpush2.msra.mxu0 %v206
    %3716 = vmatprep.subr.mxu0 0.0
    %3717 = vmatpush2.msra.mxu0 %v205
    %3718 = vmatprep.subr.mxu0 0.0
    %3719 = vmatpush2.msra.mxu0 %v204
    %3720 = vmatprep.subr.mxu0 0.0
    %3721 = vmatpush2.msra.mxu0 %v203
    %3722 = vmatprep.subr.mxu0 0.0
    %3723 = vmatpush2.msra.mxu0 %v202
    %3724 = vmatprep.subr.mxu0 0.0
    %3725 = vmatpush2.msra.mxu0 %v201
    %3726 = vmatprep.subr.mxu0 0.0
    %3727 = vmatpush2.msra.mxu0 %v200
    %3728 = vmatprep.subr.mxu0 0.0
    %3729 = vmatpush2.msra.mxu0 %v199
    %3730 = vmatprep.subr.mxu0 0.0
    %3731 = vmatpush2.msra.mxu0 %v198
    %3732 = vmatprep.subr.mxu0 0.0
    %3733 = vmatpush2.msra.mxu0 %v197
    %3734 = vmatprep.subr.mxu0 0.0
    %3735 = vmatpush2.msra.mxu0 %v196
    %3736 = vmatprep.subr.mxu0 0.0
    %3737 = vmatpush2.msra.mxu0 %v195
    %3738 = vmatprep.subr.mxu0 0.0
    %3739 = vmatpush2.msra.mxu0 %v194
    %3740 = vmatprep.subr.mxu0 0.0
    %3741 = vmatpush2.msra.mxu0 %v193
    %3742 = vmatprep.mubr.f32.mxu0 %v2363
    %3743 = vmatmul.mubr.f32.gmra.mxu0 %v2362
    %v3744 = vpop.f32.mrf.mxu0
    %v3745 = vadd.f32 %v3675, %v3744
    %v3746 = vpop.f32.mrf.mxu0
    %3747 = vdwg.mxu0
    %3748 = vmatprep.subr.mxu0 0.0
    %3749 = vmatpush1.msra.mxu0 %v224
    %3750 = vmatprep.subr.mxu0 0.0
    %3751 = vmatpush1.msra.mxu0 %v223
    %3752 = vmatprep.subr.mxu0 0.0
    %3753 = vmatpush1.msra.mxu0 %v222
    %3754 = vmatprep.subr.mxu0 0.0
    %3755 = vmatpush1.msra.mxu0 %v221
    %3756 = vmatprep.subr.mxu0 0.0
    %3757 = vmatpush1.msra.mxu0 %v220
    %3758 = vmatprep.subr.mxu0 0.0
    %3759 = vmatpush1.msra.mxu0 %v219
    %3760 = vmatprep.subr.mxu0 0.0
    %3761 = vmatpush1.msra.mxu0 %v218
    %3762 = vmatprep.subr.mxu0 0.0
    %3763 = vmatpush1.msra.mxu0 %v217
    %3764 = vmatprep.subr.mxu0 0.0
    %3765 = vmatpush1.msra.mxu0 %v216
    %3766 = vmatprep.subr.mxu0 0.0
    %3767 = vmatpush1.msra.mxu0 %v215
    %3768 = vmatprep.subr.mxu0 0.0
    %3769 = vmatpush1.msra.mxu0 %v214
    %3770 = vmatprep.subr.mxu0 0.0
    %3771 = vmatpush1.msra.mxu0 %v213
    %3772 = vmatprep.subr.mxu0 0.0
    %3773 = vmatpush1.msra.mxu0 %v212
    %3774 = vmatprep.subr.mxu0 0.0
    %3775 = vmatpush1.msra.mxu0 %v211
    %3776 = vmatprep.subr.mxu0 0.0
    %3777 = vmatpush1.msra.mxu0 %v210
    %3778 = vmatprep.subr.mxu0 0.0
    %3779 = vmatpush1.msra.mxu0 %v209
    %3780 = vmatprep.subr.mxu0 0.0
    %3781 = vmatpush2.msra.mxu0 %v240
    %3782 = vmatprep.subr.mxu0 0.0
    %3783 = vmatpush2.msra.mxu0 %v239
    %3784 = vmatprep.subr.mxu0 0.0
    %3785 = vmatpush2.msra.mxu0 %v238
    %3786 = vmatprep.subr.mxu0 0.0
    %3787 = vmatpush2.msra.mxu0 %v237
    %3788 = vmatprep.subr.mxu0 0.0
    %3789 = vmatpush2.msra.mxu0 %v236
    %3790 = vmatprep.subr.mxu0 0.0
    %3791 = vmatpush2.msra.mxu0 %v235
    %3792 = vmatprep.subr.mxu0 0.0
    %3793 = vmatpush2.msra.mxu0 %v234
    %3794 = vmatprep.subr.mxu0 0.0
    %3795 = vmatpush2.msra.mxu0 %v233
    %3796 = vmatprep.subr.mxu0 0.0
    %3797 = vmatpush2.msra.mxu0 %v232
    %3798 = vmatprep.subr.mxu0 0.0
    %3799 = vmatpush2.msra.mxu0 %v231
    %3800 = vmatprep.subr.mxu0 0.0
    %3801 = vmatpush2.msra.mxu0 %v230
    %3802 = vmatprep.subr.mxu0 0.0
    %3803 = vmatpush2.msra.mxu0 %v229
    %3804 = vmatprep.subr.mxu0 0.0
    %3805 = vmatpush2.msra.mxu0 %v228
    %3806 = vmatprep.subr.mxu0 0.0
    %3807 = vmatpush2.msra.mxu0 %v227
    %3808 = vmatprep.subr.mxu0 0.0
    %3809 = vmatpush2.msra.mxu0 %v226
    %3810 = vmatprep.subr.mxu0 0.0
    %3811 = vmatpush2.msra.mxu0 %v225
    %3812 = vmatprep.mubr.f32.mxu0 %v2397
    %3813 = vmatmul.mubr.f32.gmra.mxu0 %v2396
    %v3814 = vpop.f32.mrf.mxu0
    %v3815 = vadd.f32 %v3745, %v3814
    %v3816 = vpop.f32.mrf.mxu0
    %3817 = vdwg.mxu0
    %3818 = vmatprep.subr.mxu0 0.0
    %3819 = vmatpush1.msra.mxu0 %v256
    %3820 = vmatprep.subr.mxu0 0.0
    %3821 = vmatpush1.msra.mxu0 %v255
    %3822 = vmatprep.subr.mxu0 0.0
    %3823 = vmatpush1.msra.mxu0 %v254
    %3824 = vmatprep.subr.mxu0 0.0
    %3825 = vmatpush1.msra.mxu0 %v253
    %3826 = vmatprep.subr.mxu0 0.0
    %3827 = vmatpush1.msra.mxu0 %v252
    %3828 = vmatprep.subr.mxu0 0.0
    %3829 = vmatpush1.msra.mxu0 %v251
    %3830 = vmatprep.subr.mxu0 0.0
    %3831 = vmatpush1.msra.mxu0 %v250
    %3832 = vmatprep.subr.mxu0 0.0
    %3833 = vmatpush1.msra.mxu0 %v249
    %3834 = vmatprep.subr.mxu0 0.0
    %3835 = vmatpush1.msra.mxu0 %v248
    %3836 = vmatprep.subr.mxu0 0.0
    %3837 = vmatpush1.msra.mxu0 %v247
    %3838 = vmatprep.subr.mxu0 0.0
    %3839 = vmatpush1.msra.mxu0 %v246
    %3840 = vmatprep.subr.mxu0 0.0
    %3841 = vmatpush1.msra.mxu0 %v245
    %3842 = vmatprep.subr.mxu0 0.0
    %3843 = vmatpush1.msra.mxu0 %v244
    %3844 = vmatprep.subr.mxu0 0.0
    %3845 = vmatpush1.msra.mxu0 %v243
    %3846 = vmatprep.subr.mxu0 0.0
    %3847 = vmatpush1.msra.mxu0 %v242
    %3848 = vmatprep.subr.mxu0 0.0
    %3849 = vmatpush1.msra.mxu0 %v241
    %3850 = vmatprep.subr.mxu0 0.0
    %3851 = vmatpush2.msra.mxu0 %v272
    %3852 = vmatprep.subr.mxu0 0.0
    %3853 = vmatpush2.msra.mxu0 %v271
    %3854 = vmatprep.subr.mxu0 0.0
    %3855 = vmatpush2.msra.mxu0 %v270
    %3856 = vmatprep.subr.mxu0 0.0
    %3857 = vmatpush2.msra.mxu0 %v269
    %3858 = vmatprep.subr.mxu0 0.0
    %3859 = vmatpush2.msra.mxu0 %v268
    %3860 = vmatprep.subr.mxu0 0.0
    %3861 = vmatpush2.msra.mxu0 %v267
    %3862 = vmatprep.subr.mxu0 0.0
    %3863 = vmatpush2.msra.mxu0 %v266
    %3864 = vmatprep.subr.mxu0 0.0
    %3865 = vmatpush2.msra.mxu0 %v265
    %3866 = vmatprep.subr.mxu0 0.0
    %3867 = vmatpush2.msra.mxu0 %v264
    %3868 = vmatprep.subr.mxu0 0.0
    %3869 = vmatpush2.msra.mxu0 %v263
    %3870 = vmatprep.subr.mxu0 0.0
    %3871 = vmatpush2.msra.mxu0 %v262
    %3872 = vmatprep.subr.mxu0 0.0
    %3873 = vmatpush2.msra.mxu0 %v261
    %3874 = vmatprep.subr.mxu0 0.0
    %3875 = vmatpush2.msra.mxu0 %v260
    %3876 = vmatprep.subr.mxu0 0.0
    %3877 = vmatpush2.msra.mxu0 %v259
    %3878 = vmatprep.subr.mxu0 0.0
    %3879 = vmatpush2.msra.mxu0 %v258
    %3880 = vmatprep.subr.mxu0 0.0
    %3881 = vmatpush2.msra.mxu0 %v257
    %3882 = vmatprep.mubr.f32.mxu0 %v2399
    %3883 = vmatmul.mubr.f32.gmra.mxu0 %v2398
    %v3884 = vpop.f32.mrf.mxu0
    %v3885 = vadd.f32 %v3815, %v3884
    %v3886 = vpop.f32.mrf.mxu0
    %3887 = vdwg.mxu0
    %3888 = vmatprep.subr.mxu0 0.0
    %3889 = vmatpush1.msra.mxu0 %v288
    %3890 = vmatprep.subr.mxu0 0.0
    %3891 = vmatpush1.msra.mxu0 %v287
    %3892 = vmatprep.subr.mxu0 0.0
    %3893 = vmatpush1.msra.mxu0 %v286
    %3894 = vmatprep.subr.mxu0 0.0
    %3895 = vmatpush1.msra.mxu0 %v285
    %3896 = vmatprep.subr.mxu0 0.0
    %3897 = vmatpush1.msra.mxu0 %v284
    %3898 = vmatprep.subr.mxu0 0.0
    %3899 = vmatpush1.msra.mxu0 %v283
    %3900 = vmatprep.subr.mxu0 0.0
    %3901 = vmatpush1.msra.mxu0 %v282
    %3902 = vmatprep.subr.mxu0 0.0
    %3903 = vmatpush1.msra.mxu0 %v281
    %3904 = vmatprep.subr.mxu0 0.0
    %3905 = vmatpush1.msra.mxu0 %v280
    %3906 = vmatprep.subr.mxu0 0.0
    %3907 = vmatpush1.msra.mxu0 %v279
    %3908 = vmatprep.subr.mxu0 0.0
    %3909 = vmatpush1.msra.mxu0 %v278
    %3910 = vmatprep.subr.mxu0 0.0
    %3911 = vmatpush1.msra.mxu0 %v277
    %3912 = vmatprep.subr.mxu0 0.0
    %3913 = vmatpush1.msra.mxu0 %v276
    %3914 = vmatprep.subr.mxu0 0.0
    %3915 = vmatpush1.msra.mxu0 %v275
    %3916 = vmatprep.subr.mxu0 0.0
    %3917 = vmatpush1.msra.mxu0 %v274
    %3918 = vmatprep.subr.mxu0 0.0
    %3919 = vmatpush1.msra.mxu0 %v273
    %3920 = vmatprep.subr.mxu0 0.0
    %3921 = vmatpush2.msra.mxu0 %v304
    %3922 = vmatprep.subr.mxu0 0.0
    %3923 = vmatpush2.msra.mxu0 %v303
    %3924 = vmatprep.subr.mxu0 0.0
    %3925 = vmatpush2.msra.mxu0 %v302
    %3926 = vmatprep.subr.mxu0 0.0
    %3927 = vmatpush2.msra.mxu0 %v301
    %3928 = vmatprep.subr.mxu0 0.0
    %3929 = vmatpush2.msra.mxu0 %v300
    %3930 = vmatprep.subr.mxu0 0.0
    %3931 = vmatpush2.msra.mxu0 %v299
    %3932 = vmatprep.subr.mxu0 0.0
    %3933 = vmatpush2.msra.mxu0 %v298
    %3934 = vmatprep.subr.mxu0 0.0
    %3935 = vmatpush2.msra.mxu0 %v297
    %3936 = vmatprep.subr.mxu0 0.0
    %3937 = vmatpush2.msra.mxu0 %v296
    %3938 = vmatprep.subr.mxu0 0.0
    %3939 = vmatpush2.msra.mxu0 %v295
    %3940 = vmatprep.subr.mxu0 0.0
    %3941 = vmatpush2.msra.mxu0 %v294
    %3942 = vmatprep.subr.mxu0 0.0
    %3943 = vmatpush2.msra.mxu0 %v293
    %3944 = vmatprep.subr.mxu0 0.0
    %3945 = vmatpush2.msra.mxu0 %v292
    %3946 = vmatprep.subr.mxu0 0.0
    %3947 = vmatpush2.msra.mxu0 %v291
    %3948 = vmatprep.subr.mxu0 0.0
    %3949 = vmatpush2.msra.mxu0 %v290
    %3950 = vmatprep.subr.mxu0 0.0
    %3951 = vmatpush2.msra.mxu0 %v289
    %3952 = vmatprep.mubr.f32.mxu0 %v2433
    %3953 = vmatmul.mubr.f32.gmra.mxu0 %v2432
    %v3954 = vpop.f32.mrf.mxu0
    %v3955 = vadd.f32 %v3885, %v3954
    %v3956 = vpop.f32.mrf.mxu0
    %3957 = vdwg.mxu0
    %3958 = vmatprep.subr.mxu0 0.0
    %3959 = vmatpush1.msra.mxu0 %v320
    %3960 = vmatprep.subr.mxu0 0.0
    %3961 = vmatpush1.msra.mxu0 %v319
    %3962 = vmatprep.subr.mxu0 0.0
    %3963 = vmatpush1.msra.mxu0 %v318
    %3964 = vmatprep.subr.mxu0 0.0
    %3965 = vmatpush1.msra.mxu0 %v317
    %3966 = vmatprep.subr.mxu0 0.0
    %3967 = vmatpush1.msra.mxu0 %v316
    %3968 = vmatprep.subr.mxu0 0.0
    %3969 = vmatpush1.msra.mxu0 %v315
    %3970 = vmatprep.subr.mxu0 0.0
    %3971 = vmatpush1.msra.mxu0 %v314
    %3972 = vmatprep.subr.mxu0 0.0
    %3973 = vmatpush1.msra.mxu0 %v313
    %3974 = vmatprep.subr.mxu0 0.0
    %3975 = vmatpush1.msra.mxu0 %v312
    %3976 = vmatprep.subr.mxu0 0.0
    %3977 = vmatpush1.msra.mxu0 %v311
    %3978 = vmatprep.subr.mxu0 0.0
    %3979 = vmatpush1.msra.mxu0 %v310
    %3980 = vmatprep.subr.mxu0 0.0
    %3981 = vmatpush1.msra.mxu0 %v309
    %3982 = vmatprep.subr.mxu0 0.0
    %3983 = vmatpush1.msra.mxu0 %v308
    %3984 = vmatprep.subr.mxu0 0.0
    %3985 = vmatpush1.msra.mxu0 %v307
    %3986 = vmatprep.subr.mxu0 0.0
    %3987 = vmatpush1.msra.mxu0 %v306
    %3988 = vmatprep.subr.mxu0 0.0
    %3989 = vmatpush1.msra.mxu0 %v305
    %3990 = vmatprep.subr.mxu0 0.0
    %3991 = vmatpush2.msra.mxu0 %v336
    %3992 = vmatprep.subr.mxu0 0.0
    %3993 = vmatpush2.msra.mxu0 %v335
    %3994 = vmatprep.subr.mxu0 0.0
    %3995 = vmatpush2.msra.mxu0 %v334
    %3996 = vmatprep.subr.mxu0 0.0
    %3997 = vmatpush2.msra.mxu0 %v333
    %3998 = vmatprep.subr.mxu0 0.0
    %3999 = vmatpush2.msra.mxu0 %v332
    %4000 = vmatprep.subr.mxu0 0.0
    %4001 = vmatpush2.msra.mxu0 %v331
    %4002 = vmatprep.subr.mxu0 0.0
    %4003 = vmatpush2.msra.mxu0 %v330
    %4004 = vmatprep.subr.mxu0 0.0
    %4005 = vmatpush2.msra.mxu0 %v329
    %4006 = vmatprep.subr.mxu0 0.0
    %4007 = vmatpush2.msra.mxu0 %v328
    %4008 = vmatprep.subr.mxu0 0.0
    %4009 = vmatpush2.msra.mxu0 %v327
    %4010 = vmatprep.subr.mxu0 0.0
    %4011 = vmatpush2.msra.mxu0 %v326
    %4012 = vmatprep.subr.mxu0 0.0
    %4013 = vmatpush2.msra.mxu0 %v325
    %4014 = vmatprep.subr.mxu0 0.0
    %4015 = vmatpush2.msra.mxu0 %v324
    %4016 = vmatprep.subr.mxu0 0.0
    %4017 = vmatpush2.msra.mxu0 %v323
    %4018 = vmatprep.subr.mxu0 0.0
    %4019 = vmatpush2.msra.mxu0 %v322
    %4020 = vmatprep.subr.mxu0 0.0
    %4021 = vmatpush2.msra.mxu0 %v321
    %4022 = vmatprep.mubr.f32.mxu0 %v2435
    %4023 = vmatmul.mubr.f32.gmra.mxu0 %v2434
    %v4024 = vpop.f32.mrf.mxu0
    %v4025 = vadd.f32 %v3955, %v4024
    %v4026 = vpop.f32.mrf.mxu0
    %4027 = vdwg.mxu0
    %4028 = vmatprep.subr.mxu0 0.0
    %4029 = vmatpush1.msra.mxu0 %v352
    %4030 = vmatprep.subr.mxu0 0.0
    %4031 = vmatpush1.msra.mxu0 %v351
    %4032 = vmatprep.subr.mxu0 0.0
    %4033 = vmatpush1.msra.mxu0 %v350
    %4034 = vmatprep.subr.mxu0 0.0
    %4035 = vmatpush1.msra.mxu0 %v349
    %4036 = vmatprep.subr.mxu0 0.0
    %4037 = vmatpush1.msra.mxu0 %v348
    %4038 = vmatprep.subr.mxu0 0.0
    %4039 = vmatpush1.msra.mxu0 %v347
    %4040 = vmatprep.subr.mxu0 0.0
    %4041 = vmatpush1.msra.mxu0 %v346
    %4042 = vmatprep.subr.mxu0 0.0
    %4043 = vmatpush1.msra.mxu0 %v345
    %4044 = vmatprep.subr.mxu0 0.0
    %4045 = vmatpush1.msra.mxu0 %v344
    %4046 = vmatprep.subr.mxu0 0.0
    %4047 = vmatpush1.msra.mxu0 %v343
    %4048 = vmatprep.subr.mxu0 0.0
    %4049 = vmatpush1.msra.mxu0 %v342
    %4050 = vmatprep.subr.mxu0 0.0
    %4051 = vmatpush1.msra.mxu0 %v341
    %4052 = vmatprep.subr.mxu0 0.0
    %4053 = vmatpush1.msra.mxu0 %v340
    %4054 = vmatprep.subr.mxu0 0.0
    %4055 = vmatpush1.msra.mxu0 %v339
    %4056 = vmatprep.subr.mxu0 0.0
    %4057 = vmatpush1.msra.mxu0 %v338
    %4058 = vmatprep.subr.mxu0 0.0
    %4059 = vmatpush1.msra.mxu0 %v337
    %4060 = vmatprep.subr.mxu0 0.0
    %4061 = vmatpush2.msra.mxu0 %v368
    %4062 = vmatprep.subr.mxu0 0.0
    %4063 = vmatpush2.msra.mxu0 %v367
    %4064 = vmatprep.subr.mxu0 0.0
    %4065 = vmatpush2.msra.mxu0 %v366
    %4066 = vmatprep.subr.mxu0 0.0
    %4067 = vmatpush2.msra.mxu0 %v365
    %4068 = vmatprep.subr.mxu0 0.0
    %4069 = vmatpush2.msra.mxu0 %v364
    %4070 = vmatprep.subr.mxu0 0.0
    %4071 = vmatpush2.msra.mxu0 %v363
    %4072 = vmatprep.subr.mxu0 0.0
    %4073 = vmatpush2.msra.mxu0 %v362
    %4074 = vmatprep.subr.mxu0 0.0
    %4075 = vmatpush2.msra.mxu0 %v361
    %4076 = vmatprep.subr.mxu0 0.0
    %4077 = vmatpush2.msra.mxu0 %v360
    %4078 = vmatprep.subr.mxu0 0.0
    %4079 = vmatpush2.msra.mxu0 %v359
    %4080 = vmatprep.subr.mxu0 0.0
    %4081 = vmatpush2.msra.mxu0 %v358
    %4082 = vmatprep.subr.mxu0 0.0
    %4083 = vmatpush2.msra.mxu0 %v357
    %4084 = vmatprep.subr.mxu0 0.0
    %4085 = vmatpush2.msra.mxu0 %v356
    %4086 = vmatprep.subr.mxu0 0.0
    %4087 = vmatpush2.msra.mxu0 %v355
    %4088 = vmatprep.subr.mxu0 0.0
    %4089 = vmatpush2.msra.mxu0 %v354
    %4090 = vmatprep.subr.mxu0 0.0
    %4091 = vmatpush2.msra.mxu0 %v353
    %4092 = vmatprep.mubr.f32.mxu0 %v2469
    %4093 = vmatmul.mubr.f32.gmra.mxu0 %v2468
    %v4094 = vpop.f32.mrf.mxu0
    %v4095 = vadd.f32 %v4025, %v4094
    %v4096 = vpop.f32.mrf.mxu0
    %4097 = vdwg.mxu0
    %4098 = vmatprep.subr.mxu0 0.0
    %4099 = vmatpush1.msra.mxu0 %v384
    %4100 = vmatprep.subr.mxu0 0.0
    %4101 = vmatpush1.msra.mxu0 %v383
    %4102 = vmatprep.subr.mxu0 0.0
    %4103 = vmatpush1.msra.mxu0 %v382
    %4104 = vmatprep.subr.mxu0 0.0
    %4105 = vmatpush1.msra.mxu0 %v381
    %4106 = vmatprep.subr.mxu0 0.0
    %4107 = vmatpush1.msra.mxu0 %v380
    %4108 = vmatprep.subr.mxu0 0.0
    %4109 = vmatpush1.msra.mxu0 %v379
    %4110 = vmatprep.subr.mxu0 0.0
    %4111 = vmatpush1.msra.mxu0 %v378
    %4112 = vmatprep.subr.mxu0 0.0
    %4113 = vmatpush1.msra.mxu0 %v377
    %4114 = vmatprep.subr.mxu0 0.0
    %4115 = vmatpush1.msra.mxu0 %v376
    %4116 = vmatprep.subr.mxu0 0.0
    %4117 = vmatpush1.msra.mxu0 %v375
    %4118 = vmatprep.subr.mxu0 0.0
    %4119 = vmatpush1.msra.mxu0 %v374
    %4120 = vmatprep.subr.mxu0 0.0
    %4121 = vmatpush1.msra.mxu0 %v373
    %4122 = vmatprep.subr.mxu0 0.0
    %4123 = vmatpush1.msra.mxu0 %v372
    %4124 = vmatprep.subr.mxu0 0.0
    %4125 = vmatpush1.msra.mxu0 %v371
    %4126 = vmatprep.subr.mxu0 0.0
    %4127 = vmatpush1.msra.mxu0 %v370
    %4128 = vmatprep.subr.mxu0 0.0
    %4129 = vmatpush1.msra.mxu0 %v369
    %4130 = vmatprep.subr.mxu0 0.0
    %4131 = vmatpush2.msra.mxu0 %v400
    %4132 = vmatprep.subr.mxu0 0.0
    %4133 = vmatpush2.msra.mxu0 %v399
    %4134 = vmatprep.subr.mxu0 0.0
    %4135 = vmatpush2.msra.mxu0 %v398
    %4136 = vmatprep.subr.mxu0 0.0
    %4137 = vmatpush2.msra.mxu0 %v397
    %4138 = vmatprep.subr.mxu0 0.0
    %4139 = vmatpush2.msra.mxu0 %v396
    %4140 = vmatprep.subr.mxu0 0.0
    %4141 = vmatpush2.msra.mxu0 %v395
    %4142 = vmatprep.subr.mxu0 0.0
    %4143 = vmatpush2.msra.mxu0 %v394
    %4144 = vmatprep.subr.mxu0 0.0
    %4145 = vmatpush2.msra.mxu0 %v393
    %4146 = vmatprep.subr.mxu0 0.0
    %4147 = vmatpush2.msra.mxu0 %v392
    %4148 = vmatprep.subr.mxu0 0.0
    %4149 = vmatpush2.msra.mxu0 %v391
    %4150 = vmatprep.subr.mxu0 0.0
    %4151 = vmatpush2.msra.mxu0 %v390
    %4152 = vmatprep.subr.mxu0 0.0
    %4153 = vmatpush2.msra.mxu0 %v389
    %4154 = vmatprep.subr.mxu0 0.0
    %4155 = vmatpush2.msra.mxu0 %v388
    %4156 = vmatprep.subr.mxu0 0.0
    %4157 = vmatpush2.msra.mxu0 %v387
    %4158 = vmatprep.subr.mxu0 0.0
    %4159 = vmatpush2.msra.mxu0 %v386
    %4160 = vmatprep.subr.mxu0 0.0
    %4161 = vmatpush2.msra.mxu0 %v385
    %4162 = vmatprep.mubr.f32.mxu0 %v2471
    %4163 = vmatmul.mubr.f32.gmra.mxu0 %v2470
    %v4164 = vpop.f32.mrf.mxu0
    %v4165 = vadd.f32 %v4095, %v4164
    %v4166 = vpop.f32.mrf.mxu0
    %4167 = vdwg.mxu0
    %4168 = vmatprep.subr.mxu0 0.0
    %4169 = vmatpush1.msra.mxu0 %v416
    %4170 = vmatprep.subr.mxu0 0.0
    %4171 = vmatpush1.msra.mxu0 %v415
    %4172 = vmatprep.subr.mxu0 0.0
    %4173 = vmatpush1.msra.mxu0 %v414
    %4174 = vmatprep.subr.mxu0 0.0
    %4175 = vmatpush1.msra.mxu0 %v413
    %4176 = vmatprep.subr.mxu0 0.0
    %4177 = vmatpush1.msra.mxu0 %v412
    %4178 = vmatprep.subr.mxu0 0.0
    %4179 = vmatpush1.msra.mxu0 %v411
    %4180 = vmatprep.subr.mxu0 0.0
    %4181 = vmatpush1.msra.mxu0 %v410
    %4182 = vmatprep.subr.mxu0 0.0
    %4183 = vmatpush1.msra.mxu0 %v409
    %4184 = vmatprep.subr.mxu0 0.0
    %4185 = vmatpush1.msra.mxu0 %v408
    %4186 = vmatprep.subr.mxu0 0.0
    %4187 = vmatpush1.msra.mxu0 %v407
    %4188 = vmatprep.subr.mxu0 0.0
    %4189 = vmatpush1.msra.mxu0 %v406
    %4190 = vmatprep.subr.mxu0 0.0
    %4191 = vmatpush1.msra.mxu0 %v405
    %4192 = vmatprep.subr.mxu0 0.0
    %4193 = vmatpush1.msra.mxu0 %v404
    %4194 = vmatprep.subr.mxu0 0.0
    %4195 = vmatpush1.msra.mxu0 %v403
    %4196 = vmatprep.subr.mxu0 0.0
    %4197 = vmatpush1.msra.mxu0 %v402
    %4198 = vmatprep.subr.mxu0 0.0
    %4199 = vmatpush1.msra.mxu0 %v401
    %4200 = vmatprep.subr.mxu0 0.0
    %4201 = vmatpush2.msra.mxu0 %v432
    %4202 = vmatprep.subr.mxu0 0.0
    %4203 = vmatpush2.msra.mxu0 %v431
    %4204 = vmatprep.subr.mxu0 0.0
    %4205 = vmatpush2.msra.mxu0 %v430
    %4206 = vmatprep.subr.mxu0 0.0
    %4207 = vmatpush2.msra.mxu0 %v429
    %4208 = vmatprep.subr.mxu0 0.0
    %4209 = vmatpush2.msra.mxu0 %v428
    %4210 = vmatprep.subr.mxu0 0.0
    %4211 = vmatpush2.msra.mxu0 %v427
    %4212 = vmatprep.subr.mxu0 0.0
    %4213 = vmatpush2.msra.mxu0 %v426
    %4214 = vmatprep.subr.mxu0 0.0
    %4215 = vmatpush2.msra.mxu0 %v425
    %4216 = vmatprep.subr.mxu0 0.0
    %4217 = vmatpush2.msra.mxu0 %v424
    %4218 = vmatprep.subr.mxu0 0.0
    %4219 = vmatpush2.msra.mxu0 %v423
    %4220 = vmatprep.subr.mxu0 0.0
    %4221 = vmatpush2.msra.mxu0 %v422
    %4222 = vmatprep.subr.mxu0 0.0
    %4223 = vmatpush2.msra.mxu0 %v421
    %4224 = vmatprep.subr.mxu0 0.0
    %4225 = vmatpush2.msra.mxu0 %v420
    %4226 = vmatprep.subr.mxu0 0.0
    %4227 = vmatpush2.msra.mxu0 %v419
    %4228 = vmatprep.subr.mxu0 0.0
    %4229 = vmatpush2.msra.mxu0 %v418
    %4230 = vmatprep.subr.mxu0 0.0
    %4231 = vmatpush2.msra.mxu0 %v417
    %4232 = vmatprep.mubr.f32.mxu0 %v2505
    %4233 = vmatmul.mubr.f32.gmra.mxu0 %v2504
    %v4234 = vpop.f32.mrf.mxu0
    %v4235 = vadd.f32 %v4165, %v4234
    %v4236 = vpop.f32.mrf.mxu0
    %4237 = vdwg.mxu0
    %4238 = vmatprep.subr.mxu0 0.0
    %4239 = vmatpush1.msra.mxu0 %v448
    %4240 = vmatprep.subr.mxu0 0.0
    %4241 = vmatpush1.msra.mxu0 %v447
    %4242 = vmatprep.subr.mxu0 0.0
    %4243 = vmatpush1.msra.mxu0 %v446
    %4244 = vmatprep.subr.mxu0 0.0
    %4245 = vmatpush1.msra.mxu0 %v445
    %4246 = vmatprep.subr.mxu0 0.0
    %4247 = vmatpush1.msra.mxu0 %v444
    %4248 = vmatprep.subr.mxu0 0.0
    %4249 = vmatpush1.msra.mxu0 %v443
    %4250 = vmatprep.subr.mxu0 0.0
    %4251 = vmatpush1.msra.mxu0 %v442
    %4252 = vmatprep.subr.mxu0 0.0
    %4253 = vmatpush1.msra.mxu0 %v441
    %4254 = vmatprep.subr.mxu0 0.0
    %4255 = vmatpush1.msra.mxu0 %v440
    %4256 = vmatprep.subr.mxu0 0.0
    %4257 = vmatpush1.msra.mxu0 %v439
    %4258 = vmatprep.subr.mxu0 0.0
    %4259 = vmatpush1.msra.mxu0 %v438
    %4260 = vmatprep.subr.mxu0 0.0
    %4261 = vmatpush1.msra.mxu0 %v437
    %4262 = vmatprep.subr.mxu0 0.0
    %4263 = vmatpush1.msra.mxu0 %v436
    %4264 = vmatprep.subr.mxu0 0.0
    %4265 = vmatpush1.msra.mxu0 %v435
    %4266 = vmatprep.subr.mxu0 0.0
    %4267 = vmatpush1.msra.mxu0 %v434
    %4268 = vmatprep.subr.mxu0 0.0
    %4269 = vmatpush1.msra.mxu0 %v433
    %4270 = vmatprep.subr.mxu0 0.0
    %4271 = vmatpush2.msra.mxu0 %v464
    %4272 = vmatprep.subr.mxu0 0.0
    %4273 = vmatpush2.msra.mxu0 %v463
    %4274 = vmatprep.subr.mxu0 0.0
    %4275 = vmatpush2.msra.mxu0 %v462
    %4276 = vmatprep.subr.mxu0 0.0
    %4277 = vmatpush2.msra.mxu0 %v461
    %4278 = vmatprep.subr.mxu0 0.0
    %4279 = vmatpush2.msra.mxu0 %v460
    %4280 = vmatprep.subr.mxu0 0.0
    %4281 = vmatpush2.msra.mxu0 %v459
    %4282 = vmatprep.subr.mxu0 0.0
    %4283 = vmatpush2.msra.mxu0 %v458
    %4284 = vmatprep.subr.mxu0 0.0
    %4285 = vmatpush2.msra.mxu0 %v457
    %4286 = vmatprep.subr.mxu0 0.0
    %4287 = vmatpush2.msra.mxu0 %v456
    %4288 = vmatprep.subr.mxu0 0.0
    %4289 = vmatpush2.msra.mxu0 %v455
    %4290 = vmatprep.subr.mxu0 0.0
    %4291 = vmatpush2.msra.mxu0 %v454
    %4292 = vmatprep.subr.mxu0 0.0
    %4293 = vmatpush2.msra.mxu0 %v453
    %4294 = vmatprep.subr.mxu0 0.0
    %4295 = vmatpush2.msra.mxu0 %v452
    %4296 = vmatprep.subr.mxu0 0.0
    %4297 = vmatpush2.msra.mxu0 %v451
    %4298 = vmatprep.subr.mxu0 0.0
    %4299 = vmatpush2.msra.mxu0 %v450
    %4300 = vmatprep.subr.mxu0 0.0
    %4301 = vmatpush2.msra.mxu0 %v449
    %4302 = vmatprep.mubr.f32.mxu0 %v2507
    %4303 = vmatmul.mubr.f32.gmra.mxu0 %v2506
    %v4304 = vpop.f32.mrf.mxu0
    %v4305 = vadd.f32 %v4235, %v4304
    %v4306 = vpop.f32.mrf.mxu0
    %4307 = vdwg.mxu0
    %4308 = vmatprep.subr.mxu0 0.0
    %4309 = vmatpush1.msra.mxu0 %v480
    %4310 = vmatprep.subr.mxu0 0.0
    %4311 = vmatpush1.msra.mxu0 %v479
    %4312 = vmatprep.subr.mxu0 0.0
    %4313 = vmatpush1.msra.mxu0 %v478
    %4314 = vmatprep.subr.mxu0 0.0
    %4315 = vmatpush1.msra.mxu0 %v477
    %4316 = vmatprep.subr.mxu0 0.0
    %4317 = vmatpush1.msra.mxu0 %v476
    %4318 = vmatprep.subr.mxu0 0.0
    %4319 = vmatpush1.msra.mxu0 %v475
    %4320 = vmatprep.subr.mxu0 0.0
    %4321 = vmatpush1.msra.mxu0 %v474
    %4322 = vmatprep.subr.mxu0 0.0
    %4323 = vmatpush1.msra.mxu0 %v473
    %4324 = vmatprep.subr.mxu0 0.0
    %4325 = vmatpush1.msra.mxu0 %v472
    %4326 = vmatprep.subr.mxu0 0.0
    %4327 = vmatpush1.msra.mxu0 %v471
    %4328 = vmatprep.subr.mxu0 0.0
    %4329 = vmatpush1.msra.mxu0 %v470
    %4330 = vmatprep.subr.mxu0 0.0
    %4331 = vmatpush1.msra.mxu0 %v469
    %4332 = vmatprep.subr.mxu0 0.0
    %4333 = vmatpush1.msra.mxu0 %v468
    %4334 = vmatprep.subr.mxu0 0.0
    %4335 = vmatpush1.msra.mxu0 %v467
    %4336 = vmatprep.subr.mxu0 0.0
    %4337 = vmatpush1.msra.mxu0 %v466
    %4338 = vmatprep.subr.mxu0 0.0
    %4339 = vmatpush1.msra.mxu0 %v465
    %4340 = vmatprep.subr.mxu0 0.0
    %4341 = vmatpush2.msra.mxu0 %v496
    %4342 = vmatprep.subr.mxu0 0.0
    %4343 = vmatpush2.msra.mxu0 %v495
    %4344 = vmatprep.subr.mxu0 0.0
    %4345 = vmatpush2.msra.mxu0 %v494
    %4346 = vmatprep.subr.mxu0 0.0
    %4347 = vmatpush2.msra.mxu0 %v493
    %4348 = vmatprep.subr.mxu0 0.0
    %4349 = vmatpush2.msra.mxu0 %v492
    %4350 = vmatprep.subr.mxu0 0.0
    %4351 = vmatpush2.msra.mxu0 %v491
    %4352 = vmatprep.subr.mxu0 0.0
    %4353 = vmatpush2.msra.mxu0 %v490
    %4354 = vmatprep.subr.mxu0 0.0
    %4355 = vmatpush2.msra.mxu0 %v489
    %4356 = vmatprep.subr.mxu0 0.0
    %4357 = vmatpush2.msra.mxu0 %v488
    %4358 = vmatprep.subr.mxu0 0.0
    %4359 = vmatpush2.msra.mxu0 %v487
    %4360 = vmatprep.subr.mxu0 0.0
    %4361 = vmatpush2.msra.mxu0 %v486
    %4362 = vmatprep.subr.mxu0 0.0
    %4363 = vmatpush2.msra.mxu0 %v485
    %4364 = vmatprep.subr.mxu0 0.0
    %4365 = vmatpush2.msra.mxu0 %v484
    %4366 = vmatprep.subr.mxu0 0.0
    %4367 = vmatpush2.msra.mxu0 %v483
    %4368 = vmatprep.subr.mxu0 0.0
    %4369 = vmatpush2.msra.mxu0 %v482
    %4370 = vmatprep.subr.mxu0 0.0
    %4371 = vmatpush2.msra.mxu0 %v481
    %4372 = vmatprep.mubr.f32.mxu0 %v2541
    %4373 = vmatmul.mubr.f32.gmra.mxu0 %v2540
    %v4374 = vpop.f32.mrf.mxu0
    %v4375 = vadd.f32 %v4305, %v4374
    %v4376 = vpop.f32.mrf.mxu0
    %4377 = vdwg.mxu0
    %4378 = vmatprep.subr.mxu0 0.0
    %4379 = vmatpush1.msra.mxu0 %v512
    %4380 = vmatprep.subr.mxu0 0.0
    %4381 = vmatpush1.msra.mxu0 %v511
    %4382 = vmatprep.subr.mxu0 0.0
    %4383 = vmatpush1.msra.mxu0 %v510
    %4384 = vmatprep.subr.mxu0 0.0
    %4385 = vmatpush1.msra.mxu0 %v509
    %4386 = vmatprep.subr.mxu0 0.0
    %4387 = vmatpush1.msra.mxu0 %v508
    %4388 = vmatprep.subr.mxu0 0.0
    %4389 = vmatpush1.msra.mxu0 %v507
    %4390 = vmatprep.subr.mxu0 0.0
    %4391 = vmatpush1.msra.mxu0 %v506
    %4392 = vmatprep.subr.mxu0 0.0
    %4393 = vmatpush1.msra.mxu0 %v505
    %4394 = vmatprep.subr.mxu0 0.0
    %4395 = vmatpush1.msra.mxu0 %v504
    %4396 = vmatprep.subr.mxu0 0.0
    %4397 = vmatpush1.msra.mxu0 %v503
    %4398 = vmatprep.subr.mxu0 0.0
    %4399 = vmatpush1.msra.mxu0 %v502
    %4400 = vmatprep.subr.mxu0 0.0
    %4401 = vmatpush1.msra.mxu0 %v501
    %4402 = vmatprep.subr.mxu0 0.0
    %4403 = vmatpush1.msra.mxu0 %v500
    %4404 = vmatprep.subr.mxu0 0.0
    %4405 = vmatpush1.msra.mxu0 %v499
    %4406 = vmatprep.subr.mxu0 0.0
    %4407 = vmatpush1.msra.mxu0 %v498
    %4408 = vmatprep.subr.mxu0 0.0
    %4409 = vmatpush1.msra.mxu0 %v497
    %4410 = vmatprep.subr.mxu0 0.0
    %4411 = vmatpush2.msra.mxu0 %v528
    %4412 = vmatprep.subr.mxu0 0.0
    %4413 = vmatpush2.msra.mxu0 %v527
    %4414 = vmatprep.subr.mxu0 0.0
    %4415 = vmatpush2.msra.mxu0 %v526
    %4416 = vmatprep.subr.mxu0 0.0
    %4417 = vmatpush2.msra.mxu0 %v525
    %4418 = vmatprep.subr.mxu0 0.0
    %4419 = vmatpush2.msra.mxu0 %v524
    %4420 = vmatprep.subr.mxu0 0.0
    %4421 = vmatpush2.msra.mxu0 %v523
    %4422 = vmatprep.subr.mxu0 0.0
    %4423 = vmatpush2.msra.mxu0 %v522
    %4424 = vmatprep.subr.mxu0 0.0
    %4425 = vmatpush2.msra.mxu0 %v521
    %4426 = vmatprep.subr.mxu0 0.0
    %4427 = vmatpush2.msra.mxu0 %v520
    %4428 = vmatprep.subr.mxu0 0.0
    %4429 = vmatpush2.msra.mxu0 %v519
    %4430 = vmatprep.subr.mxu0 0.0
    %4431 = vmatpush2.msra.mxu0 %v518
    %4432 = vmatprep.subr.mxu0 0.0
    %4433 = vmatpush2.msra.mxu0 %v517
    %4434 = vmatprep.subr.mxu0 0.0
    %4435 = vmatpush2.msra.mxu0 %v516
    %4436 = vmatprep.subr.mxu0 0.0
    %4437 = vmatpush2.msra.mxu0 %v515
    %4438 = vmatprep.subr.mxu0 0.0
    %4439 = vmatpush2.msra.mxu0 %v514
    %4440 = vmatprep.subr.mxu0 0.0
    %4441 = vmatpush2.msra.mxu0 %v513
    %4442 = vmatprep.mubr.f32.mxu0 %v2543
    %4443 = vmatmul.mubr.f32.gmra.mxu0 %v2542
    %v4444 = vpop.f32.mrf.mxu0
    %v4445 = vadd.f32 %v4375, %v4444
    %v4446 = vpop.f32.mrf.mxu0
    %4447 = vdwg.mxu0
    %4448 = vmatprep.subr.mxu0 0.0
    %4449 = vmatpush1.msra.mxu0 %v544
    %4450 = vmatprep.subr.mxu0 0.0
    %4451 = vmatpush1.msra.mxu0 %v543
    %4452 = vmatprep.subr.mxu0 0.0
    %4453 = vmatpush1.msra.mxu0 %v542
    %4454 = vmatprep.subr.mxu0 0.0
    %4455 = vmatpush1.msra.mxu0 %v541
    %4456 = vmatprep.subr.mxu0 0.0
    %4457 = vmatpush1.msra.mxu0 %v540
    %4458 = vmatprep.subr.mxu0 0.0
    %4459 = vmatpush1.msra.mxu0 %v539
    %4460 = vmatprep.subr.mxu0 0.0
    %4461 = vmatpush1.msra.mxu0 %v538
    %4462 = vmatprep.subr.mxu0 0.0
    %4463 = vmatpush1.msra.mxu0 %v537
    %4464 = vmatprep.subr.mxu0 0.0
    %4465 = vmatpush1.msra.mxu0 %v536
    %4466 = vmatprep.subr.mxu0 0.0
    %4467 = vmatpush1.msra.mxu0 %v535
    %4468 = vmatprep.subr.mxu0 0.0
    %4469 = vmatpush1.msra.mxu0 %v534
    %4470 = vmatprep.subr.mxu0 0.0
    %4471 = vmatpush1.msra.mxu0 %v533
    %4472 = vmatprep.subr.mxu0 0.0
    %4473 = vmatpush1.msra.mxu0 %v532
    %4474 = vmatprep.subr.mxu0 0.0
    %4475 = vmatpush1.msra.mxu0 %v531
    %4476 = vmatprep.subr.mxu0 0.0
    %4477 = vmatpush1.msra.mxu0 %v530
    %4478 = vmatprep.subr.mxu0 0.0
    %4479 = vmatpush1.msra.mxu0 %v529
    %4480 = vmatprep.subr.mxu0 0.0
    %4481 = vmatpush2.msra.mxu0 %v560
    %4482 = vmatprep.subr.mxu0 0.0
    %4483 = vmatpush2.msra.mxu0 %v559
    %4484 = vmatprep.subr.mxu0 0.0
    %4485 = vmatpush2.msra.mxu0 %v558
    %4486 = vmatprep.subr.mxu0 0.0
    %4487 = vmatpush2.msra.mxu0 %v557
    %4488 = vmatprep.subr.mxu0 0.0
    %4489 = vmatpush2.msra.mxu0 %v556
    %4490 = vmatprep.subr.mxu0 0.0
    %4491 = vmatpush2.msra.mxu0 %v555
    %4492 = vmatprep.subr.mxu0 0.0
    %4493 = vmatpush2.msra.mxu0 %v554
    %4494 = vmatprep.subr.mxu0 0.0
    %4495 = vmatpush2.msra.mxu0 %v553
    %4496 = vmatprep.subr.mxu0 0.0
    %4497 = vmatpush2.msra.mxu0 %v552
    %4498 = vmatprep.subr.mxu0 0.0
    %4499 = vmatpush2.msra.mxu0 %v551
    %4500 = vmatprep.subr.mxu0 0.0
    %4501 = vmatpush2.msra.mxu0 %v550
    %4502 = vmatprep.subr.mxu0 0.0
    %4503 = vmatpush2.msra.mxu0 %v549
    %4504 = vmatprep.subr.mxu0 0.0
    %4505 = vmatpush2.msra.mxu0 %v548
    %4506 = vmatprep.subr.mxu0 0.0
    %4507 = vmatpush2.msra.mxu0 %v547
    %4508 = vmatprep.subr.mxu0 0.0
    %4509 = vmatpush2.msra.mxu0 %v546
    %4510 = vmatprep.subr.mxu0 0.0
    %4511 = vmatpush2.msra.mxu0 %v545
    %4512 = vmatprep.mubr.f32.mxu0 %v2577
    %4513 = vmatmul.mubr.f32.gmra.mxu0 %v2576
    %v4514 = vpop.f32.mrf.mxu0
    %v4515 = vadd.f32 %v4445, %v4514
    %v4516 = vpop.f32.mrf.mxu0
    %4517 = vdwg.mxu0
    %4518 = vmatprep.subr.mxu0 0.0
    %4519 = vmatpush1.msra.mxu0 %v576
    %4520 = vmatprep.subr.mxu0 0.0
    %4521 = vmatpush1.msra.mxu0 %v575
    %4522 = vmatprep.subr.mxu0 0.0
    %4523 = vmatpush1.msra.mxu0 %v574
    %4524 = vmatprep.subr.mxu0 0.0
    %4525 = vmatpush1.msra.mxu0 %v573
    %4526 = vmatprep.subr.mxu0 0.0
    %4527 = vmatpush1.msra.mxu0 %v572
    %4528 = vmatprep.subr.mxu0 0.0
    %4529 = vmatpush1.msra.mxu0 %v571
    %4530 = vmatprep.subr.mxu0 0.0
    %4531 = vmatpush1.msra.mxu0 %v570
    %4532 = vmatprep.subr.mxu0 0.0
    %4533 = vmatpush1.msra.mxu0 %v569
    %4534 = vmatprep.subr.mxu0 0.0
    %4535 = vmatpush1.msra.mxu0 %v568
    %4536 = vmatprep.subr.mxu0 0.0
    %4537 = vmatpush1.msra.mxu0 %v567
    %4538 = vmatprep.subr.mxu0 0.0
    %4539 = vmatpush1.msra.mxu0 %v566
    %4540 = vmatprep.subr.mxu0 0.0
    %4541 = vmatpush1.msra.mxu0 %v565
    %4542 = vmatprep.subr.mxu0 0.0
    %4543 = vmatpush1.msra.mxu0 %v564
    %4544 = vmatprep.subr.mxu0 0.0
    %4545 = vmatpush1.msra.mxu0 %v563
    %4546 = vmatprep.subr.mxu0 0.0
    %4547 = vmatpush1.msra.mxu0 %v562
    %4548 = vmatprep.subr.mxu0 0.0
    %4549 = vmatpush1.msra.mxu0 %v561
    %4550 = vmatprep.subr.mxu0 0.0
    %4551 = vmatpush2.msra.mxu0 %v592
    %4552 = vmatprep.subr.mxu0 0.0
    %4553 = vmatpush2.msra.mxu0 %v591
    %4554 = vmatprep.subr.mxu0 0.0
    %4555 = vmatpush2.msra.mxu0 %v590
    %4556 = vmatprep.subr.mxu0 0.0
    %4557 = vmatpush2.msra.mxu0 %v589
    %4558 = vmatprep.subr.mxu0 0.0
    %4559 = vmatpush2.msra.mxu0 %v588
    %4560 = vmatprep.subr.mxu0 0.0
    %4561 = vmatpush2.msra.mxu0 %v587
    %4562 = vmatprep.subr.mxu0 0.0
    %4563 = vmatpush2.msra.mxu0 %v586
    %4564 = vmatprep.subr.mxu0 0.0
    %4565 = vmatpush2.msra.mxu0 %v585
    %4566 = vmatprep.subr.mxu0 0.0
    %4567 = vmatpush2.msra.mxu0 %v584
    %4568 = vmatprep.subr.mxu0 0.0
    %4569 = vmatpush2.msra.mxu0 %v583
    %4570 = vmatprep.subr.mxu0 0.0
    %4571 = vmatpush2.msra.mxu0 %v582
    %4572 = vmatprep.subr.mxu0 0.0
    %4573 = vmatpush2.msra.mxu0 %v581
    %4574 = vmatprep.subr.mxu0 0.0
    %4575 = vmatpush2.msra.mxu0 %v580
    %4576 = vmatprep.subr.mxu0 0.0
    %4577 = vmatpush2.msra.mxu0 %v579
    %4578 = vmatprep.subr.mxu0 0.0
    %4579 = vmatpush2.msra.mxu0 %v578
    %4580 = vmatprep.subr.mxu0 0.0
    %4581 = vmatpush2.msra.mxu0 %v577
    %4582 = vmatprep.mubr.f32.mxu0 %v2579
    %4583 = vmatmul.mubr.f32.gmra.mxu0 %v2578
    %v4584 = vpop.f32.mrf.mxu0
    %v4585 = vadd.f32 %v4515, %v4584
    %v4586 = vpop.f32.mrf.mxu0
    %4587 = vdwg.mxu0
    %4588 = vmatprep.subr.mxu0 0.0
    %4589 = vmatpush1.msra.mxu0 %v608
    %4590 = vmatprep.subr.mxu0 0.0
    %4591 = vmatpush1.msra.mxu0 %v607
    %4592 = vmatprep.subr.mxu0 0.0
    %4593 = vmatpush1.msra.mxu0 %v606
    %4594 = vmatprep.subr.mxu0 0.0
    %4595 = vmatpush1.msra.mxu0 %v605
    %4596 = vmatprep.subr.mxu0 0.0
    %4597 = vmatpush1.msra.mxu0 %v604
    %4598 = vmatprep.subr.mxu0 0.0
    %4599 = vmatpush1.msra.mxu0 %v603
    %4600 = vmatprep.subr.mxu0 0.0
    %4601 = vmatpush1.msra.mxu0 %v602
    %4602 = vmatprep.subr.mxu0 0.0
    %4603 = vmatpush1.msra.mxu0 %v601
    %4604 = vmatprep.subr.mxu0 0.0
    %4605 = vmatpush1.msra.mxu0 %v600
    %4606 = vmatprep.subr.mxu0 0.0
    %4607 = vmatpush1.msra.mxu0 %v599
    %4608 = vmatprep.subr.mxu0 0.0
    %4609 = vmatpush1.msra.mxu0 %v598
    %4610 = vmatprep.subr.mxu0 0.0
    %4611 = vmatpush1.msra.mxu0 %v597
    %4612 = vmatprep.subr.mxu0 0.0
    %4613 = vmatpush1.msra.mxu0 %v596
    %4614 = vmatprep.subr.mxu0 0.0
    %4615 = vmatpush1.msra.mxu0 %v595
    %4616 = vmatprep.subr.mxu0 0.0
    %4617 = vmatpush1.msra.mxu0 %v594
    %4618 = vmatprep.subr.mxu0 0.0
    %4619 = vmatpush1.msra.mxu0 %v593
    %4620 = vmatprep.subr.mxu0 0.0
    %4621 = vmatpush2.msra.mxu0 %v624
    %4622 = vmatprep.subr.mxu0 0.0
    %4623 = vmatpush2.msra.mxu0 %v623
    %4624 = vmatprep.subr.mxu0 0.0
    %4625 = vmatpush2.msra.mxu0 %v622
    %4626 = vmatprep.subr.mxu0 0.0
    %4627 = vmatpush2.msra.mxu0 %v621
    %4628 = vmatprep.subr.mxu0 0.0
    %4629 = vmatpush2.msra.mxu0 %v620
    %4630 = vmatprep.subr.mxu0 0.0
    %4631 = vmatpush2.msra.mxu0 %v619
    %4632 = vmatprep.subr.mxu0 0.0
    %4633 = vmatpush2.msra.mxu0 %v618
    %4634 = vmatprep.subr.mxu0 0.0
    %4635 = vmatpush2.msra.mxu0 %v617
    %4636 = vmatprep.subr.mxu0 0.0
    %4637 = vmatpush2.msra.mxu0 %v616
    %4638 = vmatprep.subr.mxu0 0.0
    %4639 = vmatpush2.msra.mxu0 %v615
    %4640 = vmatprep.subr.mxu0 0.0
    %4641 = vmatpush2.msra.mxu0 %v614
    %4642 = vmatprep.subr.mxu0 0.0
    %4643 = vmatpush2.msra.mxu0 %v613
    %4644 = vmatprep.subr.mxu0 0.0
    %4645 = vmatpush2.msra.mxu0 %v612
    %4646 = vmatprep.subr.mxu0 0.0
    %4647 = vmatpush2.msra.mxu0 %v611
    %4648 = vmatprep.subr.mxu0 0.0
    %4649 = vmatpush2.msra.mxu0 %v610
    %4650 = vmatprep.subr.mxu0 0.0
    %4651 = vmatpush2.msra.mxu0 %v609
    %4652 = vmatprep.mubr.f32.mxu0 %v2613
    %4653 = vmatmul.mubr.f32.gmra.mxu0 %v2612
    %v4654 = vpop.f32.mrf.mxu0
    %v4655 = vadd.f32 %v4585, %v4654
    %v4656 = vpop.f32.mrf.mxu0
    %4657 = vdwg.mxu0
    %4658 = vmatprep.subr.mxu0 0.0
    %4659 = vmatpush1.msra.mxu0 %v640
    %4660 = vmatprep.subr.mxu0 0.0
    %4661 = vmatpush1.msra.mxu0 %v639
    %4662 = vmatprep.subr.mxu0 0.0
    %4663 = vmatpush1.msra.mxu0 %v638
    %4664 = vmatprep.subr.mxu0 0.0
    %4665 = vmatpush1.msra.mxu0 %v637
    %4666 = vmatprep.subr.mxu0 0.0
    %4667 = vmatpush1.msra.mxu0 %v636
    %4668 = vmatprep.subr.mxu0 0.0
    %4669 = vmatpush1.msra.mxu0 %v635
    %4670 = vmatprep.subr.mxu0 0.0
    %4671 = vmatpush1.msra.mxu0 %v634
    %4672 = vmatprep.subr.mxu0 0.0
    %4673 = vmatpush1.msra.mxu0 %v633
    %4674 = vmatprep.subr.mxu0 0.0
    %4675 = vmatpush1.msra.mxu0 %v632
    %4676 = vmatprep.subr.mxu0 0.0
    %4677 = vmatpush1.msra.mxu0 %v631
    %4678 = vmatprep.subr.mxu0 0.0
    %4679 = vmatpush1.msra.mxu0 %v630
    %4680 = vmatprep.subr.mxu0 0.0
    %4681 = vmatpush1.msra.mxu0 %v629
    %4682 = vmatprep.subr.mxu0 0.0
    %4683 = vmatpush1.msra.mxu0 %v628
    %4684 = vmatprep.subr.mxu0 0.0
    %4685 = vmatpush1.msra.mxu0 %v627
    %4686 = vmatprep.subr.mxu0 0.0
    %4687 = vmatpush1.msra.mxu0 %v626
    %4688 = vmatprep.subr.mxu0 0.0
    %4689 = vmatpush1.msra.mxu0 %v625
    %4690 = vmatprep.subr.mxu0 0.0
    %4691 = vmatpush2.msra.mxu0 %v656
    %4692 = vmatprep.subr.mxu0 0.0
    %4693 = vmatpush2.msra.mxu0 %v655
    %4694 = vmatprep.subr.mxu0 0.0
    %4695 = vmatpush2.msra.mxu0 %v654
    %4696 = vmatprep.subr.mxu0 0.0
    %4697 = vmatpush2.msra.mxu0 %v653
    %4698 = vmatprep.subr.mxu0 0.0
    %4699 = vmatpush2.msra.mxu0 %v652
    %4700 = vmatprep.subr.mxu0 0.0
    %4701 = vmatpush2.msra.mxu0 %v651
    %4702 = vmatprep.subr.mxu0 0.0
    %4703 = vmatpush2.msra.mxu0 %v650
    %4704 = vmatprep.subr.mxu0 0.0
    %4705 = vmatpush2.msra.mxu0 %v649
    %4706 = vmatprep.subr.mxu0 0.0
    %4707 = vmatpush2.msra.mxu0 %v648
    %4708 = vmatprep.subr.mxu0 0.0
    %4709 = vmatpush2.msra.mxu0 %v647
    %4710 = vmatprep.subr.mxu0 0.0
    %4711 = vmatpush2.msra.mxu0 %v646
    %4712 = vmatprep.subr.mxu0 0.0
    %4713 = vmatpush2.msra.mxu0 %v645
    %4714 = vmatprep.subr.mxu0 0.0
    %4715 = vmatpush2.msra.mxu0 %v644
    %4716 = vmatprep.subr.mxu0 0.0
    %4717 = vmatpush2.msra.mxu0 %v643
    %4718 = vmatprep.subr.mxu0 0.0
    %4719 = vmatpush2.msra.mxu0 %v642
    %4720 = vmatprep.subr.mxu0 0.0
    %4721 = vmatpush2.msra.mxu0 %v641
    %4722 = vmatprep.mubr.f32.mxu0 %v2615
    %4723 = vmatmul.mubr.f32.gmra.mxu0 %v2614
    %v4724 = vpop.f32.mrf.mxu0
    %v4725 = vadd.f32 %v4655, %v4724
    %v4726 = vpop.f32.mrf.mxu0
    %4727 = vdwg.mxu0
    %4728 = vmatprep.subr.mxu0 0.0
    %4729 = vmatpush1.msra.mxu0 %v672
    %4730 = vmatprep.subr.mxu0 0.0
    %4731 = vmatpush1.msra.mxu0 %v671
    %4732 = vmatprep.subr.mxu0 0.0
    %4733 = vmatpush1.msra.mxu0 %v670
    %4734 = vmatprep.subr.mxu0 0.0
    %4735 = vmatpush1.msra.mxu0 %v669
    %4736 = vmatprep.subr.mxu0 0.0
    %4737 = vmatpush1.msra.mxu0 %v668
    %4738 = vmatprep.subr.mxu0 0.0
    %4739 = vmatpush1.msra.mxu0 %v667
    %4740 = vmatprep.subr.mxu0 0.0
    %4741 = vmatpush1.msra.mxu0 %v666
    %4742 = vmatprep.subr.mxu0 0.0
    %4743 = vmatpush1.msra.mxu0 %v665
    %4744 = vmatprep.subr.mxu0 0.0
    %4745 = vmatpush1.msra.mxu0 %v664
    %4746 = vmatprep.subr.mxu0 0.0
    %4747 = vmatpush1.msra.mxu0 %v663
    %4748 = vmatprep.subr.mxu0 0.0
    %4749 = vmatpush1.msra.mxu0 %v662
    %4750 = vmatprep.subr.mxu0 0.0
    %4751 = vmatpush1.msra.mxu0 %v661
    %4752 = vmatprep.subr.mxu0 0.0
    %4753 = vmatpush1.msra.mxu0 %v660
    %4754 = vmatprep.subr.mxu0 0.0
    %4755 = vmatpush1.msra.mxu0 %v659
    %4756 = vmatprep.subr.mxu0 0.0
    %4757 = vmatpush1.msra.mxu0 %v658
    %4758 = vmatprep.subr.mxu0 0.0
    %4759 = vmatpush1.msra.mxu0 %v657
    %4760 = vmatprep.subr.mxu0 0.0
    %4761 = vmatpush2.msra.mxu0 %v688
    %4762 = vmatprep.subr.mxu0 0.0
    %4763 = vmatpush2.msra.mxu0 %v687
    %4764 = vmatprep.subr.mxu0 0.0
    %4765 = vmatpush2.msra.mxu0 %v686
    %4766 = vmatprep.subr.mxu0 0.0
    %4767 = vmatpush2.msra.mxu0 %v685
    %4768 = vmatprep.subr.mxu0 0.0
    %4769 = vmatpush2.msra.mxu0 %v684
    %4770 = vmatprep.subr.mxu0 0.0
    %4771 = vmatpush2.msra.mxu0 %v683
    %4772 = vmatprep.subr.mxu0 0.0
    %4773 = vmatpush2.msra.mxu0 %v682
    %4774 = vmatprep.subr.mxu0 0.0
    %4775 = vmatpush2.msra.mxu0 %v681
    %4776 = vmatprep.subr.mxu0 0.0
    %4777 = vmatpush2.msra.mxu0 %v680
    %4778 = vmatprep.subr.mxu0 0.0
    %4779 = vmatpush2.msra.mxu0 %v679
    %4780 = vmatprep.subr.mxu0 0.0
    %4781 = vmatpush2.msra.mxu0 %v678
    %4782 = vmatprep.subr.mxu0 0.0
    %4783 = vmatpush2.msra.mxu0 %v677
    %4784 = vmatprep.subr.mxu0 0.0
    %4785 = vmatpush2.msra.mxu0 %v676
    %4786 = vmatprep.subr.mxu0 0.0
    %4787 = vmatpush2.msra.mxu0 %v675
    %4788 = vmatprep.subr.mxu0 0.0
    %4789 = vmatpush2.msra.mxu0 %v674
    %4790 = vmatprep.subr.mxu0 0.0
    %4791 = vmatpush2.msra.mxu0 %v673
    %4792 = vmatprep.mubr.f32.mxu0 %v2649
    %4793 = vmatmul.mubr.f32.gmra.mxu0 %v2648
    %v4794 = vpop.f32.mrf.mxu0
    %v4795 = vadd.f32 %v4725, %v4794
    %v4796 = vpop.f32.mrf.mxu0
    %4797 = vdwg.mxu0
    %4798 = vmatprep.subr.mxu0 0.0
    %4799 = vmatpush1.msra.mxu0 %v704
    %4800 = vmatprep.subr.mxu0 0.0
    %4801 = vmatpush1.msra.mxu0 %v703
    %4802 = vmatprep.subr.mxu0 0.0
    %4803 = vmatpush1.msra.mxu0 %v702
    %4804 = vmatprep.subr.mxu0 0.0
    %4805 = vmatpush1.msra.mxu0 %v701
    %4806 = vmatprep.subr.mxu0 0.0
    %4807 = vmatpush1.msra.mxu0 %v700
    %4808 = vmatprep.subr.mxu0 0.0
    %4809 = vmatpush1.msra.mxu0 %v699
    %4810 = vmatprep.subr.mxu0 0.0
    %4811 = vmatpush1.msra.mxu0 %v698
    %4812 = vmatprep.subr.mxu0 0.0
    %4813 = vmatpush1.msra.mxu0 %v697
    %4814 = vmatprep.subr.mxu0 0.0
    %4815 = vmatpush1.msra.mxu0 %v696
    %4816 = vmatprep.subr.mxu0 0.0
    %4817 = vmatpush1.msra.mxu0 %v695
    %4818 = vmatprep.subr.mxu0 0.0
    %4819 = vmatpush1.msra.mxu0 %v694
    %4820 = vmatprep.subr.mxu0 0.0
    %4821 = vmatpush1.msra.mxu0 %v693
    %4822 = vmatprep.subr.mxu0 0.0
    %4823 = vmatpush1.msra.mxu0 %v692
    %4824 = vmatprep.subr.mxu0 0.0
    %4825 = vmatpush1.msra.mxu0 %v691
    %4826 = vmatprep.subr.mxu0 0.0
    %4827 = vmatpush1.msra.mxu0 %v690
    %4828 = vmatprep.subr.mxu0 0.0
    %4829 = vmatpush1.msra.mxu0 %v689
    %4830 = vmatprep.subr.mxu0 0.0
    %4831 = vmatpush2.msra.mxu0 %v720
    %4832 = vmatprep.subr.mxu0 0.0
    %4833 = vmatpush2.msra.mxu0 %v719
    %4834 = vmatprep.subr.mxu0 0.0
    %4835 = vmatpush2.msra.mxu0 %v718
    %4836 = vmatprep.subr.mxu0 0.0
    %4837 = vmatpush2.msra.mxu0 %v717
    %4838 = vmatprep.subr.mxu0 0.0
    %4839 = vmatpush2.msra.mxu0 %v716
    %4840 = vmatprep.subr.mxu0 0.0
    %4841 = vmatpush2.msra.mxu0 %v715
    %4842 = vmatprep.subr.mxu0 0.0
    %4843 = vmatpush2.msra.mxu0 %v714
    %4844 = vmatprep.subr.mxu0 0.0
    %4845 = vmatpush2.msra.mxu0 %v713
    %4846 = vmatprep.subr.mxu0 0.0
    %4847 = vmatpush2.msra.mxu0 %v712
    %4848 = vmatprep.subr.mxu0 0.0
    %4849 = vmatpush2.msra.mxu0 %v711
    %4850 = vmatprep.subr.mxu0 0.0
    %4851 = vmatpush2.msra.mxu0 %v710
    %4852 = vmatprep.subr.mxu0 0.0
    %4853 = vmatpush2.msra.mxu0 %v709
    %4854 = vmatprep.subr.mxu0 0.0
    %4855 = vmatpush2.msra.mxu0 %v708
    %4856 = vmatprep.subr.mxu0 0.0
    %4857 = vmatpush2.msra.mxu0 %v707
    %4858 = vmatprep.subr.mxu0 0.0
    %4859 = vmatpush2.msra.mxu0 %v706
    %4860 = vmatprep.subr.mxu0 0.0
    %4861 = vmatpush2.msra.mxu0 %v705
    %4862 = vmatprep.mubr.f32.mxu0 %v2651
    %4863 = vmatmul.mubr.f32.gmra.mxu0 %v2650
    %v4864 = vpop.f32.mrf.mxu0
    %v4865 = vadd.f32 %v4795, %v4864
    %v4866 = vpop.f32.mrf.mxu0
    %4867 = vdwg.mxu0
    %4868 = vmatprep.subr.mxu0 0.0
    %4869 = vmatpush1.msra.mxu0 %v736
    %4870 = vmatprep.subr.mxu0 0.0
    %4871 = vmatpush1.msra.mxu0 %v735
    %4872 = vmatprep.subr.mxu0 0.0
    %4873 = vmatpush1.msra.mxu0 %v734
    %4874 = vmatprep.subr.mxu0 0.0
    %4875 = vmatpush1.msra.mxu0 %v733
    %4876 = vmatprep.subr.mxu0 0.0
    %4877 = vmatpush1.msra.mxu0 %v732
    %4878 = vmatprep.subr.mxu0 0.0
    %4879 = vmatpush1.msra.mxu0 %v731
    %4880 = vmatprep.subr.mxu0 0.0
    %4881 = vmatpush1.msra.mxu0 %v730
    %4882 = vmatprep.subr.mxu0 0.0
    %4883 = vmatpush1.msra.mxu0 %v729
    %4884 = vmatprep.subr.mxu0 0.0
    %4885 = vmatpush1.msra.mxu0 %v728
    %4886 = vmatprep.subr.mxu0 0.0
    %4887 = vmatpush1.msra.mxu0 %v727
    %4888 = vmatprep.subr.mxu0 0.0
    %4889 = vmatpush1.msra.mxu0 %v726
    %4890 = vmatprep.subr.mxu0 0.0
    %4891 = vmatpush1.msra.mxu0 %v725
    %4892 = vmatprep.subr.mxu0 0.0
    %4893 = vmatpush1.msra.mxu0 %v724
    %4894 = vmatprep.subr.mxu0 0.0
    %4895 = vmatpush1.msra.mxu0 %v723
    %4896 = vmatprep.subr.mxu0 0.0
    %4897 = vmatpush1.msra.mxu0 %v722
    %4898 = vmatprep.subr.mxu0 0.0
    %4899 = vmatpush1.msra.mxu0 %v721
    %4900 = vmatprep.subr.mxu0 0.0
    %4901 = vmatpush2.msra.mxu0 %v752
    %4902 = vmatprep.subr.mxu0 0.0
    %4903 = vmatpush2.msra.mxu0 %v751
    %4904 = vmatprep.subr.mxu0 0.0
    %4905 = vmatpush2.msra.mxu0 %v750
    %4906 = vmatprep.subr.mxu0 0.0
    %4907 = vmatpush2.msra.mxu0 %v749
    %4908 = vmatprep.subr.mxu0 0.0
    %4909 = vmatpush2.msra.mxu0 %v748
    %4910 = vmatprep.subr.mxu0 0.0
    %4911 = vmatpush2.msra.mxu0 %v747
    %4912 = vmatprep.subr.mxu0 0.0
    %4913 = vmatpush2.msra.mxu0 %v746
    %4914 = vmatprep.subr.mxu0 0.0
    %4915 = vmatpush2.msra.mxu0 %v745
    %4916 = vmatprep.subr.mxu0 0.0
    %4917 = vmatpush2.msra.mxu0 %v744
    %4918 = vmatprep.subr.mxu0 0.0
    %4919 = vmatpush2.msra.mxu0 %v743
    %4920 = vmatprep.subr.mxu0 0.0
    %4921 = vmatpush2.msra.mxu0 %v742
    %4922 = vmatprep.subr.mxu0 0.0
    %4923 = vmatpush2.msra.mxu0 %v741
    %4924 = vmatprep.subr.mxu0 0.0
    %4925 = vmatpush2.msra.mxu0 %v740
    %4926 = vmatprep.subr.mxu0 0.0
    %4927 = vmatpush2.msra.mxu0 %v739
    %4928 = vmatprep.subr.mxu0 0.0
    %4929 = vmatpush2.msra.mxu0 %v738
    %4930 = vmatprep.subr.mxu0 0.0
    %4931 = vmatpush2.msra.mxu0 %v737
    %4932 = vmatprep.mubr.f32.mxu0 %v2685
    %4933 = vmatmul.mubr.f32.gmra.mxu0 %v2684
    %v4934 = vpop.f32.mrf.mxu0
    %v4935 = vadd.f32 %v4865, %v4934
    %v4936 = vpop.f32.mrf.mxu0
    %4937 = vdwg.mxu0
    %4938 = vmatprep.subr.mxu0 0.0
    %4939 = vmatpush1.msra.mxu0 %v768
    %4940 = vmatprep.subr.mxu0 0.0
    %4941 = vmatpush1.msra.mxu0 %v767
    %4942 = vmatprep.subr.mxu0 0.0
    %4943 = vmatpush1.msra.mxu0 %v766
    %4944 = vmatprep.subr.mxu0 0.0
    %4945 = vmatpush1.msra.mxu0 %v765
    %4946 = vmatprep.subr.mxu0 0.0
    %4947 = vmatpush1.msra.mxu0 %v764
    %4948 = vmatprep.subr.mxu0 0.0
    %4949 = vmatpush1.msra.mxu0 %v763
    %4950 = vmatprep.subr.mxu0 0.0
    %4951 = vmatpush1.msra.mxu0 %v762
    %4952 = vmatprep.subr.mxu0 0.0
    %4953 = vmatpush1.msra.mxu0 %v761
    %4954 = vmatprep.subr.mxu0 0.0
    %4955 = vmatpush1.msra.mxu0 %v760
    %4956 = vmatprep.subr.mxu0 0.0
    %4957 = vmatpush1.msra.mxu0 %v759
    %4958 = vmatprep.subr.mxu0 0.0
    %4959 = vmatpush1.msra.mxu0 %v758
    %4960 = vmatprep.subr.mxu0 0.0
    %4961 = vmatpush1.msra.mxu0 %v757
    %4962 = vmatprep.subr.mxu0 0.0
    %4963 = vmatpush1.msra.mxu0 %v756
    %4964 = vmatprep.subr.mxu0 0.0
    %4965 = vmatpush1.msra.mxu0 %v755
    %4966 = vmatprep.subr.mxu0 0.0
    %4967 = vmatpush1.msra.mxu0 %v754
    %4968 = vmatprep.subr.mxu0 0.0
    %4969 = vmatpush1.msra.mxu0 %v753
    %4970 = vmatprep.subr.mxu0 0.0
    %4971 = vmatpush2.msra.mxu0 %v784
    %4972 = vmatprep.subr.mxu0 0.0
    %4973 = vmatpush2.msra.mxu0 %v783
    %4974 = vmatprep.subr.mxu0 0.0
    %4975 = vmatpush2.msra.mxu0 %v782
    %4976 = vmatprep.subr.mxu0 0.0
    %4977 = vmatpush2.msra.mxu0 %v781
    %4978 = vmatprep.subr.mxu0 0.0
    %4979 = vmatpush2.msra.mxu0 %v780
    %4980 = vmatprep.subr.mxu0 0.0
    %4981 = vmatpush2.msra.mxu0 %v779
    %4982 = vmatprep.subr.mxu0 0.0
    %4983 = vmatpush2.msra.mxu0 %v778
    %4984 = vmatprep.subr.mxu0 0.0
    %4985 = vmatpush2.msra.mxu0 %v777
    %4986 = vmatprep.subr.mxu0 0.0
    %4987 = vmatpush2.msra.mxu0 %v776
    %4988 = vmatprep.subr.mxu0 0.0
    %4989 = vmatpush2.msra.mxu0 %v775
    %4990 = vmatprep.subr.mxu0 0.0
    %4991 = vmatpush2.msra.mxu0 %v774
    %4992 = vmatprep.subr.mxu0 0.0
    %4993 = vmatpush2.msra.mxu0 %v773
    %4994 = vmatprep.subr.mxu0 0.0
    %4995 = vmatpush2.msra.mxu0 %v772
    %4996 = vmatprep.subr.mxu0 0.0
    %4997 = vmatpush2.msra.mxu0 %v771
    %4998 = vmatprep.subr.mxu0 0.0
    %4999 = vmatpush2.msra.mxu0 %v770
    %5000 = vmatprep.subr.mxu0 0.0
    %5001 = vmatpush2.msra.mxu0 %v769
    %5002 = vmatprep.mubr.f32.mxu0 %v2687
    %5003 = vmatmul.mubr.f32.gmra.mxu0 %v2686
    %v5004 = vpop.f32.mrf.mxu0
    %v5005 = vadd.f32 %v4935, %v5004
    %v5006 = vpop.f32.mrf.mxu0
    %5007 = vdwg.mxu0
    %5008 = vmatprep.subr.mxu0 0.0
    %5009 = vmatpush1.msra.mxu0 %v800
    %5010 = vmatprep.subr.mxu0 0.0
    %5011 = vmatpush1.msra.mxu0 %v799
    %5012 = vmatprep.subr.mxu0 0.0
    %5013 = vmatpush1.msra.mxu0 %v798
    %5014 = vmatprep.subr.mxu0 0.0
    %5015 = vmatpush1.msra.mxu0 %v797
    %5016 = vmatprep.subr.mxu0 0.0
    %5017 = vmatpush1.msra.mxu0 %v796
    %5018 = vmatprep.subr.mxu0 0.0
    %5019 = vmatpush1.msra.mxu0 %v795
    %5020 = vmatprep.subr.mxu0 0.0
    %5021 = vmatpush1.msra.mxu0 %v794
    %5022 = vmatprep.subr.mxu0 0.0
    %5023 = vmatpush1.msra.mxu0 %v793
    %5024 = vmatprep.subr.mxu0 0.0
    %5025 = vmatpush1.msra.mxu0 %v792
    %5026 = vmatprep.subr.mxu0 0.0
    %5027 = vmatpush1.msra.mxu0 %v791
    %5028 = vmatprep.subr.mxu0 0.0
    %5029 = vmatpush1.msra.mxu0 %v790
    %5030 = vmatprep.subr.mxu0 0.0
    %5031 = vmatpush1.msra.mxu0 %v789
    %5032 = vmatprep.subr.mxu0 0.0
    %5033 = vmatpush1.msra.mxu0 %v788
    %5034 = vmatprep.subr.mxu0 0.0
    %5035 = vmatpush1.msra.mxu0 %v787
    %5036 = vmatprep.subr.mxu0 0.0
    %5037 = vmatpush1.msra.mxu0 %v786
    %5038 = vmatprep.subr.mxu0 0.0
    %5039 = vmatpush1.msra.mxu0 %v785
    %5040 = vmatprep.subr.mxu0 0.0
    %5041 = vmatpush2.msra.mxu0 %v816
    %5042 = vmatprep.subr.mxu0 0.0
    %5043 = vmatpush2.msra.mxu0 %v815
    %5044 = vmatprep.subr.mxu0 0.0
    %5045 = vmatpush2.msra.mxu0 %v814
    %5046 = vmatprep.subr.mxu0 0.0
    %5047 = vmatpush2.msra.mxu0 %v813
    %5048 = vmatprep.subr.mxu0 0.0
    %5049 = vmatpush2.msra.mxu0 %v812
    %5050 = vmatprep.subr.mxu0 0.0
    %5051 = vmatpush2.msra.mxu0 %v811
    %5052 = vmatprep.subr.mxu0 0.0
    %5053 = vmatpush2.msra.mxu0 %v810
    %5054 = vmatprep.subr.mxu0 0.0
    %5055 = vmatpush2.msra.mxu0 %v809
    %5056 = vmatprep.subr.mxu0 0.0
    %5057 = vmatpush2.msra.mxu0 %v808
    %5058 = vmatprep.subr.mxu0 0.0
    %5059 = vmatpush2.msra.mxu0 %v807
    %5060 = vmatprep.subr.mxu0 0.0
    %5061 = vmatpush2.msra.mxu0 %v806
    %5062 = vmatprep.subr.mxu0 0.0
    %5063 = vmatpush2.msra.mxu0 %v805
    %5064 = vmatprep.subr.mxu0 0.0
    %5065 = vmatpush2.msra.mxu0 %v804
    %5066 = vmatprep.subr.mxu0 0.0
    %5067 = vmatpush2.msra.mxu0 %v803
    %5068 = vmatprep.subr.mxu0 0.0
    %5069 = vmatpush2.msra.mxu0 %v802
    %5070 = vmatprep.subr.mxu0 0.0
    %5071 = vmatpush2.msra.mxu0 %v801
    %5072 = vmatprep.mubr.f32.mxu0 %v2721
    %5073 = vmatmul.mubr.f32.gmra.mxu0 %v2720
    %v5074 = vpop.f32.mrf.mxu0
    %v5075 = vadd.f32 %v5005, %v5074
    %v5076 = vpop.f32.mrf.mxu0
    %5077 = vdwg.mxu0
    %5078 = vmatprep.subr.mxu0 0.0
    %5079 = vmatpush1.msra.mxu0 %v832
    %5080 = vmatprep.subr.mxu0 0.0
    %5081 = vmatpush1.msra.mxu0 %v831
    %5082 = vmatprep.subr.mxu0 0.0
    %5083 = vmatpush1.msra.mxu0 %v830
    %5084 = vmatprep.subr.mxu0 0.0
    %5085 = vmatpush1.msra.mxu0 %v829
    %5086 = vmatprep.subr.mxu0 0.0
    %5087 = vmatpush1.msra.mxu0 %v828
    %5088 = vmatprep.subr.mxu0 0.0
    %5089 = vmatpush1.msra.mxu0 %v827
    %5090 = vmatprep.subr.mxu0 0.0
    %5091 = vmatpush1.msra.mxu0 %v826
    %5092 = vmatprep.subr.mxu0 0.0
    %5093 = vmatpush1.msra.mxu0 %v825
    %5094 = vmatprep.subr.mxu0 0.0
    %5095 = vmatpush1.msra.mxu0 %v824
    %5096 = vmatprep.subr.mxu0 0.0
    %5097 = vmatpush1.msra.mxu0 %v823
    %5098 = vmatprep.subr.mxu0 0.0
    %5099 = vmatpush1.msra.mxu0 %v822
    %5100 = vmatprep.subr.mxu0 0.0
    %5101 = vmatpush1.msra.mxu0 %v821
    %5102 = vmatprep.subr.mxu0 0.0
    %5103 = vmatpush1.msra.mxu0 %v820
    %5104 = vmatprep.subr.mxu0 0.0
    %5105 = vmatpush1.msra.mxu0 %v819
    %5106 = vmatprep.subr.mxu0 0.0
    %5107 = vmatpush1.msra.mxu0 %v818
    %5108 = vmatprep.subr.mxu0 0.0
    %5109 = vmatpush1.msra.mxu0 %v817
    %5110 = vmatprep.subr.mxu0 0.0
    %5111 = vmatpush2.msra.mxu0 %v848
    %5112 = vmatprep.subr.mxu0 0.0
    %5113 = vmatpush2.msra.mxu0 %v847
    %5114 = vmatprep.subr.mxu0 0.0
    %5115 = vmatpush2.msra.mxu0 %v846
    %5116 = vmatprep.subr.mxu0 0.0
    %5117 = vmatpush2.msra.mxu0 %v845
    %5118 = vmatprep.subr.mxu0 0.0
    %5119 = vmatpush2.msra.mxu0 %v844
    %5120 = vmatprep.subr.mxu0 0.0
    %5121 = vmatpush2.msra.mxu0 %v843
    %5122 = vmatprep.subr.mxu0 0.0
    %5123 = vmatpush2.msra.mxu0 %v842
    %5124 = vmatprep.subr.mxu0 0.0
    %5125 = vmatpush2.msra.mxu0 %v841
    %5126 = vmatprep.subr.mxu0 0.0
    %5127 = vmatpush2.msra.mxu0 %v840
    %5128 = vmatprep.subr.mxu0 0.0
    %5129 = vmatpush2.msra.mxu0 %v839
    %5130 = vmatprep.subr.mxu0 0.0
    %5131 = vmatpush2.msra.mxu0 %v838
    %5132 = vmatprep.subr.mxu0 0.0
    %5133 = vmatpush2.msra.mxu0 %v837
    %5134 = vmatprep.subr.mxu0 0.0
    %5135 = vmatpush2.msra.mxu0 %v836
    %5136 = vmatprep.subr.mxu0 0.0
    %5137 = vmatpush2.msra.mxu0 %v835
    %5138 = vmatprep.subr.mxu0 0.0
    %5139 = vmatpush2.msra.mxu0 %v834
    %5140 = vmatprep.subr.mxu0 0.0
    %5141 = vmatpush2.msra.mxu0 %v833
    %5142 = vmatprep.mubr.f32.mxu0 %v2723
    %5143 = vmatmul.mubr.f32.gmra.mxu0 %v2722
    %v5144 = vpop.f32.mrf.mxu0
    %v5145 = vadd.f32 %v5075, %v5144
    %v5146 = vpop.f32.mrf.mxu0
    %5147 = vdwg.mxu0
    %5148 = vmatprep.subr.mxu0 0.0
    %5149 = vmatpush1.msra.mxu0 %v864
    %5150 = vmatprep.subr.mxu0 0.0
    %5151 = vmatpush1.msra.mxu0 %v863
    %5152 = vmatprep.subr.mxu0 0.0
    %5153 = vmatpush1.msra.mxu0 %v862
    %5154 = vmatprep.subr.mxu0 0.0
    %5155 = vmatpush1.msra.mxu0 %v861
    %5156 = vmatprep.subr.mxu0 0.0
    %5157 = vmatpush1.msra.mxu0 %v860
    %5158 = vmatprep.subr.mxu0 0.0
    %5159 = vmatpush1.msra.mxu0 %v859
    %5160 = vmatprep.subr.mxu0 0.0
    %5161 = vmatpush1.msra.mxu0 %v858
    %5162 = vmatprep.subr.mxu0 0.0
    %5163 = vmatpush1.msra.mxu0 %v857
    %5164 = vmatprep.subr.mxu0 0.0
    %5165 = vmatpush1.msra.mxu0 %v856
    %5166 = vmatprep.subr.mxu0 0.0
    %5167 = vmatpush1.msra.mxu0 %v855
    %5168 = vmatprep.subr.mxu0 0.0
    %5169 = vmatpush1.msra.mxu0 %v854
    %5170 = vmatprep.subr.mxu0 0.0
    %5171 = vmatpush1.msra.mxu0 %v853
    %5172 = vmatprep.subr.mxu0 0.0
    %5173 = vmatpush1.msra.mxu0 %v852
    %5174 = vmatprep.subr.mxu0 0.0
    %5175 = vmatpush1.msra.mxu0 %v851
    %5176 = vmatprep.subr.mxu0 0.0
    %5177 = vmatpush1.msra.mxu0 %v850
    %5178 = vmatprep.subr.mxu0 0.0
    %5179 = vmatpush1.msra.mxu0 %v849
    %5180 = vmatprep.subr.mxu0 0.0
    %5181 = vmatpush2.msra.mxu0 %v880
    %5182 = vmatprep.subr.mxu0 0.0
    %5183 = vmatpush2.msra.mxu0 %v879
    %5184 = vmatprep.subr.mxu0 0.0
    %5185 = vmatpush2.msra.mxu0 %v878
    %5186 = vmatprep.subr.mxu0 0.0
    %5187 = vmatpush2.msra.mxu0 %v877
    %5188 = vmatprep.subr.mxu0 0.0
    %5189 = vmatpush2.msra.mxu0 %v876
    %5190 = vmatprep.subr.mxu0 0.0
    %5191 = vmatpush2.msra.mxu0 %v875
    %5192 = vmatprep.subr.mxu0 0.0
    %5193 = vmatpush2.msra.mxu0 %v874
    %5194 = vmatprep.subr.mxu0 0.0
    %5195 = vmatpush2.msra.mxu0 %v873
    %5196 = vmatprep.subr.mxu0 0.0
    %5197 = vmatpush2.msra.mxu0 %v872
    %5198 = vmatprep.subr.mxu0 0.0
    %5199 = vmatpush2.msra.mxu0 %v871
    %5200 = vmatprep.subr.mxu0 0.0
    %5201 = vmatpush2.msra.mxu0 %v870
    %5202 = vmatprep.subr.mxu0 0.0
    %5203 = vmatpush2.msra.mxu0 %v869
    %5204 = vmatprep.subr.mxu0 0.0
    %5205 = vmatpush2.msra.mxu0 %v868
    %5206 = vmatprep.subr.mxu0 0.0
    %5207 = vmatpush2.msra.mxu0 %v867
    %5208 = vmatprep.subr.mxu0 0.0
    %5209 = vmatpush2.msra.mxu0 %v866
    %5210 = vmatprep.subr.mxu0 0.0
    %5211 = vmatpush2.msra.mxu0 %v865
    %5212 = vmatprep.mubr.f32.mxu0 %v2757
    %5213 = vmatmul.mubr.f32.gmra.mxu0 %v2756
    %v5214 = vpop.f32.mrf.mxu0
    %v5215 = vadd.f32 %v5145, %v5214
    %v5216 = vpop.f32.mrf.mxu0
    %5217 = vdwg.mxu0
    %5218 = vmatprep.subr.mxu0 0.0
    %5219 = vmatpush1.msra.mxu0 %v896
    %5220 = vmatprep.subr.mxu0 0.0
    %5221 = vmatpush1.msra.mxu0 %v895
    %5222 = vmatprep.subr.mxu0 0.0
    %5223 = vmatpush1.msra.mxu0 %v894
    %5224 = vmatprep.subr.mxu0 0.0
    %5225 = vmatpush1.msra.mxu0 %v893
    %5226 = vmatprep.subr.mxu0 0.0
    %5227 = vmatpush1.msra.mxu0 %v892
    %5228 = vmatprep.subr.mxu0 0.0
    %5229 = vmatpush1.msra.mxu0 %v891
    %5230 = vmatprep.subr.mxu0 0.0
    %5231 = vmatpush1.msra.mxu0 %v890
    %5232 = vmatprep.subr.mxu0 0.0
    %5233 = vmatpush1.msra.mxu0 %v889
    %5234 = vmatprep.subr.mxu0 0.0
    %5235 = vmatpush1.msra.mxu0 %v888
    %5236 = vmatprep.subr.mxu0 0.0
    %5237 = vmatpush1.msra.mxu0 %v887
    %5238 = vmatprep.subr.mxu0 0.0
    %5239 = vmatpush1.msra.mxu0 %v886
    %5240 = vmatprep.subr.mxu0 0.0
    %5241 = vmatpush1.msra.mxu0 %v885
    %5242 = vmatprep.subr.mxu0 0.0
    %5243 = vmatpush1.msra.mxu0 %v884
    %5244 = vmatprep.subr.mxu0 0.0
    %5245 = vmatpush1.msra.mxu0 %v883
    %5246 = vmatprep.subr.mxu0 0.0
    %5247 = vmatpush1.msra.mxu0 %v882
    %5248 = vmatprep.subr.mxu0 0.0
    %5249 = vmatpush1.msra.mxu0 %v881
    %5250 = vmatprep.subr.mxu0 0.0
    %5251 = vmatpush2.msra.mxu0 %v912
    %5252 = vmatprep.subr.mxu0 0.0
    %5253 = vmatpush2.msra.mxu0 %v911
    %5254 = vmatprep.subr.mxu0 0.0
    %5255 = vmatpush2.msra.mxu0 %v910
    %5256 = vmatprep.subr.mxu0 0.0
    %5257 = vmatpush2.msra.mxu0 %v909
    %5258 = vmatprep.subr.mxu0 0.0
    %5259 = vmatpush2.msra.mxu0 %v908
    %5260 = vmatprep.subr.mxu0 0.0
    %5261 = vmatpush2.msra.mxu0 %v907
    %5262 = vmatprep.subr.mxu0 0.0
    %5263 = vmatpush2.msra.mxu0 %v906
    %5264 = vmatprep.subr.mxu0 0.0
    %5265 = vmatpush2.msra.mxu0 %v905
    %5266 = vmatprep.subr.mxu0 0.0
    %5267 = vmatpush2.msra.mxu0 %v904
    %5268 = vmatprep.subr.mxu0 0.0
    %5269 = vmatpush2.msra.mxu0 %v903
    %5270 = vmatprep.subr.mxu0 0.0
    %5271 = vmatpush2.msra.mxu0 %v902
    %5272 = vmatprep.subr.mxu0 0.0
    %5273 = vmatpush2.msra.mxu0 %v901
    %5274 = vmatprep.subr.mxu0 0.0
    %5275 = vmatpush2.msra.mxu0 %v900
    %5276 = vmatprep.subr.mxu0 0.0
    %5277 = vmatpush2.msra.mxu0 %v899
    %5278 = vmatprep.subr.mxu0 0.0
    %5279 = vmatpush2.msra.mxu0 %v898
    %5280 = vmatprep.subr.mxu0 0.0
    %5281 = vmatpush2.msra.mxu0 %v897
    %5282 = vmatprep.mubr.f32.mxu0 %v2759
    %5283 = vmatmul.mubr.f32.gmra.mxu0 %v2758
    %v5284 = vpop.f32.mrf.mxu0
    %v5285 = vadd.f32 %v5215, %v5284
    %v5286 = vpop.f32.mrf.mxu0
    %5287 = vdwg.mxu0
    %5288 = vmatprep.subr.mxu0 0.0
    %5289 = vmatpush1.msra.mxu0 %v928
    %5290 = vmatprep.subr.mxu0 0.0
    %5291 = vmatpush1.msra.mxu0 %v927
    %5292 = vmatprep.subr.mxu0 0.0
    %5293 = vmatpush1.msra.mxu0 %v926
    %5294 = vmatprep.subr.mxu0 0.0
    %5295 = vmatpush1.msra.mxu0 %v925
    %5296 = vmatprep.subr.mxu0 0.0
    %5297 = vmatpush1.msra.mxu0 %v924
    %5298 = vmatprep.subr.mxu0 0.0
    %5299 = vmatpush1.msra.mxu0 %v923
    %5300 = vmatprep.subr.mxu0 0.0
    %5301 = vmatpush1.msra.mxu0 %v922
    %5302 = vmatprep.subr.mxu0 0.0
    %5303 = vmatpush1.msra.mxu0 %v921
    %5304 = vmatprep.subr.mxu0 0.0
    %5305 = vmatpush1.msra.mxu0 %v920
    %5306 = vmatprep.subr.mxu0 0.0
    %5307 = vmatpush1.msra.mxu0 %v919
    %5308 = vmatprep.subr.mxu0 0.0
    %5309 = vmatpush1.msra.mxu0 %v918
    %5310 = vmatprep.subr.mxu0 0.0
    %5311 = vmatpush1.msra.mxu0 %v917
    %5312 = vmatprep.subr.mxu0 0.0
    %5313 = vmatpush1.msra.mxu0 %v916
    %5314 = vmatprep.subr.mxu0 0.0
    %5315 = vmatpush1.msra.mxu0 %v915
    %5316 = vmatprep.subr.mxu0 0.0
    %5317 = vmatpush1.msra.mxu0 %v914
    %5318 = vmatprep.subr.mxu0 0.0
    %5319 = vmatpush1.msra.mxu0 %v913
    %5320 = vmatprep.subr.mxu0 0.0
    %5321 = vmatpush2.msra.mxu0 %v944
    %5322 = vmatprep.subr.mxu0 0.0
    %5323 = vmatpush2.msra.mxu0 %v943
    %5324 = vmatprep.subr.mxu0 0.0
    %5325 = vmatpush2.msra.mxu0 %v942
    %5326 = vmatprep.subr.mxu0 0.0
    %5327 = vmatpush2.msra.mxu0 %v941
    %5328 = vmatprep.subr.mxu0 0.0
    %5329 = vmatpush2.msra.mxu0 %v940
    %5330 = vmatprep.subr.mxu0 0.0
    %5331 = vmatpush2.msra.mxu0 %v939
    %5332 = vmatprep.subr.mxu0 0.0
    %5333 = vmatpush2.msra.mxu0 %v938
    %5334 = vmatprep.subr.mxu0 0.0
    %5335 = vmatpush2.msra.mxu0 %v937
    %5336 = vmatprep.subr.mxu0 0.0
    %5337 = vmatpush2.msra.mxu0 %v936
    %5338 = vmatprep.subr.mxu0 0.0
    %5339 = vmatpush2.msra.mxu0 %v935
    %5340 = vmatprep.subr.mxu0 0.0
    %5341 = vmatpush2.msra.mxu0 %v934
    %5342 = vmatprep.subr.mxu0 0.0
    %5343 = vmatpush2.msra.mxu0 %v933
    %5344 = vmatprep.subr.mxu0 0.0
    %5345 = vmatpush2.msra.mxu0 %v932
    %5346 = vmatprep.subr.mxu0 0.0
    %5347 = vmatpush2.msra.mxu0 %v931
    %5348 = vmatprep.subr.mxu0 0.0
    %5349 = vmatpush2.msra.mxu0 %v930
    %5350 = vmatprep.subr.mxu0 0.0
    %5351 = vmatpush2.msra.mxu0 %v929
    %5352 = vmatprep.mubr.f32.mxu0 %v2793
    %5353 = vmatmul.mubr.f32.gmra.mxu0 %v2792
    %v5354 = vpop.f32.mrf.mxu0
    %v5355 = vadd.f32 %v5285, %v5354
    %v5356 = vpop.f32.mrf.mxu0
    %5357 = vdwg.mxu0
    %5358 = vmatprep.subr.mxu0 0.0
    %5359 = vmatpush1.msra.mxu0 %v960
    %5360 = vmatprep.subr.mxu0 0.0
    %5361 = vmatpush1.msra.mxu0 %v959
    %5362 = vmatprep.subr.mxu0 0.0
    %5363 = vmatpush1.msra.mxu0 %v958
    %5364 = vmatprep.subr.mxu0 0.0
    %5365 = vmatpush1.msra.mxu0 %v957
    %5366 = vmatprep.subr.mxu0 0.0
    %5367 = vmatpush1.msra.mxu0 %v956
    %5368 = vmatprep.subr.mxu0 0.0
    %5369 = vmatpush1.msra.mxu0 %v955
    %5370 = vmatprep.subr.mxu0 0.0
    %5371 = vmatpush1.msra.mxu0 %v954
    %5372 = vmatprep.subr.mxu0 0.0
    %5373 = vmatpush1.msra.mxu0 %v953
    %5374 = vmatprep.subr.mxu0 0.0
    %5375 = vmatpush1.msra.mxu0 %v952
    %5376 = vmatprep.subr.mxu0 0.0
    %5377 = vmatpush1.msra.mxu0 %v951
    %5378 = vmatprep.subr.mxu0 0.0
    %5379 = vmatpush1.msra.mxu0 %v950
    %5380 = vmatprep.subr.mxu0 0.0
    %5381 = vmatpush1.msra.mxu0 %v949
    %5382 = vmatprep.subr.mxu0 0.0
    %5383 = vmatpush1.msra.mxu0 %v948
    %5384 = vmatprep.subr.mxu0 0.0
    %5385 = vmatpush1.msra.mxu0 %v947
    %5386 = vmatprep.subr.mxu0 0.0
    %5387 = vmatpush1.msra.mxu0 %v946
    %5388 = vmatprep.subr.mxu0 0.0
    %5389 = vmatpush1.msra.mxu0 %v945
    %5390 = vmatprep.subr.mxu0 0.0
    %5391 = vmatpush2.msra.mxu0 %v976
    %5392 = vmatprep.subr.mxu0 0.0
    %5393 = vmatpush2.msra.mxu0 %v975
    %5394 = vmatprep.subr.mxu0 0.0
    %5395 = vmatpush2.msra.mxu0 %v974
    %5396 = vmatprep.subr.mxu0 0.0
    %5397 = vmatpush2.msra.mxu0 %v973
    %5398 = vmatprep.subr.mxu0 0.0
    %5399 = vmatpush2.msra.mxu0 %v972
    %5400 = vmatprep.subr.mxu0 0.0
    %5401 = vmatpush2.msra.mxu0 %v971
    %5402 = vmatprep.subr.mxu0 0.0
    %5403 = vmatpush2.msra.mxu0 %v970
    %5404 = vmatprep.subr.mxu0 0.0
    %5405 = vmatpush2.msra.mxu0 %v969
    %5406 = vmatprep.subr.mxu0 0.0
    %5407 = vmatpush2.msra.mxu0 %v968
    %5408 = vmatprep.subr.mxu0 0.0
    %5409 = vmatpush2.msra.mxu0 %v967
    %5410 = vmatprep.subr.mxu0 0.0
    %5411 = vmatpush2.msra.mxu0 %v966
    %5412 = vmatprep.subr.mxu0 0.0
    %5413 = vmatpush2.msra.mxu0 %v965
    %5414 = vmatprep.subr.mxu0 0.0
    %5415 = vmatpush2.msra.mxu0 %v964
    %5416 = vmatprep.subr.mxu0 0.0
    %5417 = vmatpush2.msra.mxu0 %v963
    %5418 = vmatprep.subr.mxu0 0.0
    %5419 = vmatpush2.msra.mxu0 %v962
    %5420 = vmatprep.subr.mxu0 0.0
    %5421 = vmatpush2.msra.mxu0 %v961
    %5422 = vmatprep.mubr.f32.mxu0 %v2795
    %5423 = vmatmul.mubr.f32.gmra.mxu0 %v2794
    %v5424 = vpop.f32.mrf.mxu0
    %v5425 = vadd.f32 %v5355, %v5424
    %v5426 = vpop.f32.mrf.mxu0
    %5427 = vdwg.mxu0
    %5428 = vmatprep.subr.mxu0 0.0
    %5429 = vmatpush1.msra.mxu0 %v992
    %5430 = vmatprep.subr.mxu0 0.0
    %5431 = vmatpush1.msra.mxu0 %v991
    %5432 = vmatprep.subr.mxu0 0.0
    %5433 = vmatpush1.msra.mxu0 %v990
    %5434 = vmatprep.subr.mxu0 0.0
    %5435 = vmatpush1.msra.mxu0 %v989
    %5436 = vmatprep.subr.mxu0 0.0
    %5437 = vmatpush1.msra.mxu0 %v988
    %5438 = vmatprep.subr.mxu0 0.0
    %5439 = vmatpush1.msra.mxu0 %v987
    %5440 = vmatprep.subr.mxu0 0.0
    %5441 = vmatpush1.msra.mxu0 %v986
    %5442 = vmatprep.subr.mxu0 0.0
    %5443 = vmatpush1.msra.mxu0 %v985
    %5444 = vmatprep.subr.mxu0 0.0
    %5445 = vmatpush1.msra.mxu0 %v984
    %5446 = vmatprep.subr.mxu0 0.0
    %5447 = vmatpush1.msra.mxu0 %v983
    %5448 = vmatprep.subr.mxu0 0.0
    %5449 = vmatpush1.msra.mxu0 %v982
    %5450 = vmatprep.subr.mxu0 0.0
    %5451 = vmatpush1.msra.mxu0 %v981
    %5452 = vmatprep.subr.mxu0 0.0
    %5453 = vmatpush1.msra.mxu0 %v980
    %5454 = vmatprep.subr.mxu0 0.0
    %5455 = vmatpush1.msra.mxu0 %v979
    %5456 = vmatprep.subr.mxu0 0.0
    %5457 = vmatpush1.msra.mxu0 %v978
    %5458 = vmatprep.subr.mxu0 0.0
    %5459 = vmatpush1.msra.mxu0 %v977
    %5460 = vmatprep.subr.mxu0 0.0
    %5461 = vmatpush2.msra.mxu0 %v1008
    %5462 = vmatprep.subr.mxu0 0.0
    %5463 = vmatpush2.msra.mxu0 %v1007
    %5464 = vmatprep.subr.mxu0 0.0
    %5465 = vmatpush2.msra.mxu0 %v1006
    %5466 = vmatprep.subr.mxu0 0.0
    %5467 = vmatpush2.msra.mxu0 %v1005
    %5468 = vmatprep.subr.mxu0 0.0
    %5469 = vmatpush2.msra.mxu0 %v1004
    %5470 = vmatprep.subr.mxu0 0.0
    %5471 = vmatpush2.msra.mxu0 %v1003
    %5472 = vmatprep.subr.mxu0 0.0
    %5473 = vmatpush2.msra.mxu0 %v1002
    %5474 = vmatprep.subr.mxu0 0.0
    %5475 = vmatpush2.msra.mxu0 %v1001
    %5476 = vmatprep.subr.mxu0 0.0
    %5477 = vmatpush2.msra.mxu0 %v1000
    %5478 = vmatprep.subr.mxu0 0.0
    %5479 = vmatpush2.msra.mxu0 %v999
    %5480 = vmatprep.subr.mxu0 0.0
    %5481 = vmatpush2.msra.mxu0 %v998
    %5482 = vmatprep.subr.mxu0 0.0
    %5483 = vmatpush2.msra.mxu0 %v997
    %5484 = vmatprep.subr.mxu0 0.0
    %5485 = vmatpush2.msra.mxu0 %v996
    %5486 = vmatprep.subr.mxu0 0.0
    %5487 = vmatpush2.msra.mxu0 %v995
    %5488 = vmatprep.subr.mxu0 0.0
    %5489 = vmatpush2.msra.mxu0 %v994
    %5490 = vmatprep.subr.mxu0 0.0
    %5491 = vmatpush2.msra.mxu0 %v993
    %5492 = vmatprep.mubr.f32.mxu0 %v2829
    %5493 = vmatmul.mubr.f32.gmra.mxu0 %v2828
    %v5494 = vpop.f32.mrf.mxu0
    %v5495 = vadd.f32 %v5425, %v5494
    %v5496 = vpop.f32.mrf.mxu0
    %5497 = vdwg.mxu0
    %5498 = vmatprep.subr.mxu0 0.0
    %5499 = vmatpush1.msra.mxu0 %v1024
    %5500 = vmatprep.subr.mxu0 0.0
    %5501 = vmatpush1.msra.mxu0 %v1023
    %5502 = vmatprep.subr.mxu0 0.0
    %5503 = vmatpush1.msra.mxu0 %v1022
    %5504 = vmatprep.subr.mxu0 0.0
    %5505 = vmatpush1.msra.mxu0 %v1021
    %5506 = vmatprep.subr.mxu0 0.0
    %5507 = vmatpush1.msra.mxu0 %v1020
    %5508 = vmatprep.subr.mxu0 0.0
    %5509 = vmatpush1.msra.mxu0 %v1019
    %5510 = vmatprep.subr.mxu0 0.0
    %5511 = vmatpush1.msra.mxu0 %v1018
    %5512 = vmatprep.subr.mxu0 0.0
    %5513 = vmatpush1.msra.mxu0 %v1017
    %5514 = vmatprep.subr.mxu0 0.0
    %5515 = vmatpush1.msra.mxu0 %v1016
    %5516 = vmatprep.subr.mxu0 0.0
    %5517 = vmatpush1.msra.mxu0 %v1015
    %5518 = vmatprep.subr.mxu0 0.0
    %5519 = vmatpush1.msra.mxu0 %v1014
    %5520 = vmatprep.subr.mxu0 0.0
    %5521 = vmatpush1.msra.mxu0 %v1013
    %5522 = vmatprep.subr.mxu0 0.0
    %5523 = vmatpush1.msra.mxu0 %v1012
    %5524 = vmatprep.subr.mxu0 0.0
    %5525 = vmatpush1.msra.mxu0 %v1011
    %5526 = vmatprep.subr.mxu0 0.0
    %5527 = vmatpush1.msra.mxu0 %v1010
    %5528 = vmatprep.subr.mxu0 0.0
    %5529 = vmatpush1.msra.mxu0 %v1009
    %5530 = vmatprep.subr.mxu0 0.0
    %5531 = vmatpush2.msra.mxu0 %v1040
    %5532 = vmatprep.subr.mxu0 0.0
    %5533 = vmatpush2.msra.mxu0 %v1039
    %5534 = vmatprep.subr.mxu0 0.0
    %5535 = vmatpush2.msra.mxu0 %v1038
    %5536 = vmatprep.subr.mxu0 0.0
    %5537 = vmatpush2.msra.mxu0 %v1037
    %5538 = vmatprep.subr.mxu0 0.0
    %5539 = vmatpush2.msra.mxu0 %v1036
    %5540 = vmatprep.subr.mxu0 0.0
    %5541 = vmatpush2.msra.mxu0 %v1035
    %5542 = vmatprep.subr.mxu0 0.0
    %5543 = vmatpush2.msra.mxu0 %v1034
    %5544 = vmatprep.subr.mxu0 0.0
    %5545 = vmatpush2.msra.mxu0 %v1033
    %5546 = vmatprep.subr.mxu0 0.0
    %5547 = vmatpush2.msra.mxu0 %v1032
    %5548 = vmatprep.subr.mxu0 0.0
    %5549 = vmatpush2.msra.mxu0 %v1031
    %5550 = vmatprep.subr.mxu0 0.0
    %5551 = vmatpush2.msra.mxu0 %v1030
    %5552 = vmatprep.subr.mxu0 0.0
    %5553 = vmatpush2.msra.mxu0 %v1029
    %5554 = vmatprep.subr.mxu0 0.0
    %5555 = vmatpush2.msra.mxu0 %v1028
    %5556 = vmatprep.subr.mxu0 0.0
    %5557 = vmatpush2.msra.mxu0 %v1027
    %5558 = vmatprep.subr.mxu0 0.0
    %5559 = vmatpush2.msra.mxu0 %v1026
    %5560 = vmatprep.subr.mxu0 0.0
    %5561 = vmatpush2.msra.mxu0 %v1025
    %5562 = vmatprep.mubr.f32.mxu0 %v2831
    %5563 = vmatmul.mubr.f32.gmra.mxu0 %v2830
    %v5564 = vpop.f32.mrf.mxu0
    %v5565 = vadd.f32 %v5495, %v5564
    %v5566 = vpop.f32.mrf.mxu0
    %5567 = vdwg.mxu0
    %5568 = vmatprep.subr.mxu0 0.0
    %5569 = vmatpush1.msra.mxu0 %v1056
    %5570 = vmatprep.subr.mxu0 0.0
    %5571 = vmatpush1.msra.mxu0 %v1055
    %5572 = vmatprep.subr.mxu0 0.0
    %5573 = vmatpush1.msra.mxu0 %v1054
    %5574 = vmatprep.subr.mxu0 0.0
    %5575 = vmatpush1.msra.mxu0 %v1053
    %5576 = vmatprep.subr.mxu0 0.0
    %5577 = vmatpush1.msra.mxu0 %v1052
    %5578 = vmatprep.subr.mxu0 0.0
    %5579 = vmatpush1.msra.mxu0 %v1051
    %5580 = vmatprep.subr.mxu0 0.0
    %5581 = vmatpush1.msra.mxu0 %v1050
    %5582 = vmatprep.subr.mxu0 0.0
    %5583 = vmatpush1.msra.mxu0 %v1049
    %5584 = vmatprep.subr.mxu0 0.0
    %5585 = vmatpush1.msra.mxu0 %v1048
    %5586 = vmatprep.subr.mxu0 0.0
    %5587 = vmatpush1.msra.mxu0 %v1047
    %5588 = vmatprep.subr.mxu0 0.0
    %5589 = vmatpush1.msra.mxu0 %v1046
    %5590 = vmatprep.subr.mxu0 0.0
    %5591 = vmatpush1.msra.mxu0 %v1045
    %5592 = vmatprep.subr.mxu0 0.0
    %5593 = vmatpush1.msra.mxu0 %v1044
    %5594 = vmatprep.subr.mxu0 0.0
    %5595 = vmatpush1.msra.mxu0 %v1043
    %5596 = vmatprep.subr.mxu0 0.0
    %5597 = vmatpush1.msra.mxu0 %v1042
    %5598 = vmatprep.subr.mxu0 0.0
    %5599 = vmatpush1.msra.mxu0 %v1041
    %5600 = vmatprep.subr.mxu0 0.0
    %5601 = vmatpush2.msra.mxu0 %v1072
    %5602 = vmatprep.subr.mxu0 0.0
    %5603 = vmatpush2.msra.mxu0 %v1071
    %5604 = vmatprep.subr.mxu0 0.0
    %5605 = vmatpush2.msra.mxu0 %v1070
    %5606 = vmatprep.subr.mxu0 0.0
    %5607 = vmatpush2.msra.mxu0 %v1069
    %5608 = vmatprep.subr.mxu0 0.0
    %5609 = vmatpush2.msra.mxu0 %v1068
    %5610 = vmatprep.subr.mxu0 0.0
    %5611 = vmatpush2.msra.mxu0 %v1067
    %5612 = vmatprep.subr.mxu0 0.0
    %5613 = vmatpush2.msra.mxu0 %v1066
    %5614 = vmatprep.subr.mxu0 0.0
    %5615 = vmatpush2.msra.mxu0 %v1065
    %5616 = vmatprep.subr.mxu0 0.0
    %5617 = vmatpush2.msra.mxu0 %v1064
    %5618 = vmatprep.subr.mxu0 0.0
    %5619 = vmatpush2.msra.mxu0 %v1063
    %5620 = vmatprep.subr.mxu0 0.0
    %5621 = vmatpush2.msra.mxu0 %v1062
    %5622 = vmatprep.subr.mxu0 0.0
    %5623 = vmatpush2.msra.mxu0 %v1061
    %5624 = vmatprep.subr.mxu0 0.0
    %5625 = vmatpush2.msra.mxu0 %v1060
    %5626 = vmatprep.subr.mxu0 0.0
    %5627 = vmatpush2.msra.mxu0 %v1059
    %5628 = vmatprep.subr.mxu0 0.0
    %5629 = vmatpush2.msra.mxu0 %v1058
    %5630 = vmatprep.subr.mxu0 0.0
    %5631 = vmatpush2.msra.mxu0 %v1057
    %5632 = vmatprep.mubr.f32.mxu0 %v2865
    %5633 = vmatmul.mubr.f32.gmra.mxu0 %v2864
    %v5634 = vpop.f32.mrf.mxu0
    %v5635 = vadd.f32 %v5565, %v5634
    %v5636 = vpop.f32.mrf.mxu0
    %5637 = vdwg.mxu0
    %5638 = vmatprep.subr.mxu0 0.0
    %5639 = vmatpush1.msra.mxu0 %v1088
    %5640 = vmatprep.subr.mxu0 0.0
    %5641 = vmatpush1.msra.mxu0 %v1087
    %5642 = vmatprep.subr.mxu0 0.0
    %5643 = vmatpush1.msra.mxu0 %v1086
    %5644 = vmatprep.subr.mxu0 0.0
    %5645 = vmatpush1.msra.mxu0 %v1085
    %5646 = vmatprep.subr.mxu0 0.0
    %5647 = vmatpush1.msra.mxu0 %v1084
    %5648 = vmatprep.subr.mxu0 0.0
    %5649 = vmatpush1.msra.mxu0 %v1083
    %5650 = vmatprep.subr.mxu0 0.0
    %5651 = vmatpush1.msra.mxu0 %v1082
    %5652 = vmatprep.subr.mxu0 0.0
    %5653 = vmatpush1.msra.mxu0 %v1081
    %5654 = vmatprep.subr.mxu0 0.0
    %5655 = vmatpush1.msra.mxu0 %v1080
    %5656 = vmatprep.subr.mxu0 0.0
    %5657 = vmatpush1.msra.mxu0 %v1079
    %5658 = vmatprep.subr.mxu0 0.0
    %5659 = vmatpush1.msra.mxu0 %v1078
    %5660 = vmatprep.subr.mxu0 0.0
    %5661 = vmatpush1.msra.mxu0 %v1077
    %5662 = vmatprep.subr.mxu0 0.0
    %5663 = vmatpush1.msra.mxu0 %v1076
    %5664 = vmatprep.subr.mxu0 0.0
    %5665 = vmatpush1.msra.mxu0 %v1075
    %5666 = vmatprep.subr.mxu0 0.0
    %5667 = vmatpush1.msra.mxu0 %v1074
    %5668 = vmatprep.subr.mxu0 0.0
    %5669 = vmatpush1.msra.mxu0 %v1073
    %5670 = vmatprep.subr.mxu0 0.0
    %5671 = vmatpush2.msra.mxu0 %v1104
    %5672 = vmatprep.subr.mxu0 0.0
    %5673 = vmatpush2.msra.mxu0 %v1103
    %5674 = vmatprep.subr.mxu0 0.0
    %5675 = vmatpush2.msra.mxu0 %v1102
    %5676 = vmatprep.subr.mxu0 0.0
    %5677 = vmatpush2.msra.mxu0 %v1101
    %5678 = vmatprep.subr.mxu0 0.0
    %5679 = vmatpush2.msra.mxu0 %v1100
    %5680 = vmatprep.subr.mxu0 0.0
    %5681 = vmatpush2.msra.mxu0 %v1099
    %5682 = vmatprep.subr.mxu0 0.0
    %5683 = vmatpush2.msra.mxu0 %v1098
    %5684 = vmatprep.subr.mxu0 0.0
    %5685 = vmatpush2.msra.mxu0 %v1097
    %5686 = vmatprep.subr.mxu0 0.0
    %5687 = vmatpush2.msra.mxu0 %v1096
    %5688 = vmatprep.subr.mxu0 0.0
    %5689 = vmatpush2.msra.mxu0 %v1095
    %5690 = vmatprep.subr.mxu0 0.0
    %5691 = vmatpush2.msra.mxu0 %v1094
    %5692 = vmatprep.subr.mxu0 0.0
    %5693 = vmatpush2.msra.mxu0 %v1093
    %5694 = vmatprep.subr.mxu0 0.0
    %5695 = vmatpush2.msra.mxu0 %v1092
    %5696 = vmatprep.subr.mxu0 0.0
    %5697 = vmatpush2.msra.mxu0 %v1091
    %5698 = vmatprep.subr.mxu0 0.0
    %5699 = vmatpush2.msra.mxu0 %v1090
    %5700 = vmatprep.subr.mxu0 0.0
    %5701 = vmatpush2.msra.mxu0 %v1089
    %5702 = vmatprep.mubr.f32.mxu0 %v2867
    %5703 = vmatmul.mubr.f32.gmra.mxu0 %v2866
    %v5704 = vpop.f32.mrf.mxu0
    %v5705 = vadd.f32 %v5635, %v5704
    %v5706 = vpop.f32.mrf.mxu0
    %5707 = vdwg.mxu0
    %5708 = vmatprep.subr.mxu0 0.0
    %5709 = vmatpush1.msra.mxu0 %v1120
    %5710 = vmatprep.subr.mxu0 0.0
    %5711 = vmatpush1.msra.mxu0 %v1119
    %5712 = vmatprep.subr.mxu0 0.0
    %5713 = vmatpush1.msra.mxu0 %v1118
    %5714 = vmatprep.subr.mxu0 0.0
    %5715 = vmatpush1.msra.mxu0 %v1117
    %5716 = vmatprep.subr.mxu0 0.0
    %5717 = vmatpush1.msra.mxu0 %v1116
    %5718 = vmatprep.subr.mxu0 0.0
    %5719 = vmatpush1.msra.mxu0 %v1115
    %5720 = vmatprep.subr.mxu0 0.0
    %5721 = vmatpush1.msra.mxu0 %v1114
    %5722 = vmatprep.subr.mxu0 0.0
    %5723 = vmatpush1.msra.mxu0 %v1113
    %5724 = vmatprep.subr.mxu0 0.0
    %5725 = vmatpush1.msra.mxu0 %v1112
    %5726 = vmatprep.subr.mxu0 0.0
    %5727 = vmatpush1.msra.mxu0 %v1111
    %5728 = vmatprep.subr.mxu0 0.0
    %5729 = vmatpush1.msra.mxu0 %v1110
    %5730 = vmatprep.subr.mxu0 0.0
    %5731 = vmatpush1.msra.mxu0 %v1109
    %5732 = vmatprep.subr.mxu0 0.0
    %5733 = vmatpush1.msra.mxu0 %v1108
    %5734 = vmatprep.subr.mxu0 0.0
    %5735 = vmatpush1.msra.mxu0 %v1107
    %5736 = vmatprep.subr.mxu0 0.0
    %5737 = vmatpush1.msra.mxu0 %v1106
    %5738 = vmatprep.subr.mxu0 0.0
    %5739 = vmatpush1.msra.mxu0 %v1105
    %5740 = vmatprep.subr.mxu0 0.0
    %5741 = vmatpush2.msra.mxu0 %v1136
    %5742 = vmatprep.subr.mxu0 0.0
    %5743 = vmatpush2.msra.mxu0 %v1135
    %5744 = vmatprep.subr.mxu0 0.0
    %5745 = vmatpush2.msra.mxu0 %v1134
    %5746 = vmatprep.subr.mxu0 0.0
    %5747 = vmatpush2.msra.mxu0 %v1133
    %5748 = vmatprep.subr.mxu0 0.0
    %5749 = vmatpush2.msra.mxu0 %v1132
    %5750 = vmatprep.subr.mxu0 0.0
    %5751 = vmatpush2.msra.mxu0 %v1131
    %5752 = vmatprep.subr.mxu0 0.0
    %5753 = vmatpush2.msra.mxu0 %v1130
    %5754 = vmatprep.subr.mxu0 0.0
    %5755 = vmatpush2.msra.mxu0 %v1129
    %5756 = vmatprep.subr.mxu0 0.0
    %5757 = vmatpush2.msra.mxu0 %v1128
    %5758 = vmatprep.subr.mxu0 0.0
    %5759 = vmatpush2.msra.mxu0 %v1127
    %5760 = vmatprep.subr.mxu0 0.0
    %5761 = vmatpush2.msra.mxu0 %v1126
    %5762 = vmatprep.subr.mxu0 0.0
    %5763 = vmatpush2.msra.mxu0 %v1125
    %5764 = vmatprep.subr.mxu0 0.0
    %5765 = vmatpush2.msra.mxu0 %v1124
    %5766 = vmatprep.subr.mxu0 0.0
    %5767 = vmatpush2.msra.mxu0 %v1123
    %5768 = vmatprep.subr.mxu0 0.0
    %5769 = vmatpush2.msra.mxu0 %v1122
    %5770 = vmatprep.subr.mxu0 0.0
    %5771 = vmatpush2.msra.mxu0 %v1121
    %5772 = vmatprep.mubr.f32.mxu0 %v2901
    %5773 = vmatmul.mubr.f32.gmra.mxu0 %v2900
    %v5774 = vpop.f32.mrf.mxu0
    %v5775 = vadd.f32 %v5705, %v5774
    %v5776 = vpop.f32.mrf.mxu0
    %5777 = vdwg.mxu0
    %5778 = vmatprep.subr.mxu0 0.0
    %5779 = vmatpush1.msra.mxu0 %v1152
    %5780 = vmatprep.subr.mxu0 0.0
    %5781 = vmatpush1.msra.mxu0 %v1151
    %5782 = vmatprep.subr.mxu0 0.0
    %5783 = vmatpush1.msra.mxu0 %v1150
    %5784 = vmatprep.subr.mxu0 0.0
    %5785 = vmatpush1.msra.mxu0 %v1149
    %5786 = vmatprep.subr.mxu0 0.0
    %5787 = vmatpush1.msra.mxu0 %v1148
    %5788 = vmatprep.subr.mxu0 0.0
    %5789 = vmatpush1.msra.mxu0 %v1147
    %5790 = vmatprep.subr.mxu0 0.0
    %5791 = vmatpush1.msra.mxu0 %v1146
    %5792 = vmatprep.subr.mxu0 0.0
    %5793 = vmatpush1.msra.mxu0 %v1145
    %5794 = vmatprep.subr.mxu0 0.0
    %5795 = vmatpush1.msra.mxu0 %v1144
    %5796 = vmatprep.subr.mxu0 0.0
    %5797 = vmatpush1.msra.mxu0 %v1143
    %5798 = vmatprep.subr.mxu0 0.0
    %5799 = vmatpush1.msra.mxu0 %v1142
    %5800 = vmatprep.subr.mxu0 0.0
    %5801 = vmatpush1.msra.mxu0 %v1141
    %5802 = vmatprep.subr.mxu0 0.0
    %5803 = vmatpush1.msra.mxu0 %v1140
    %5804 = vmatprep.subr.mxu0 0.0
    %5805 = vmatpush1.msra.mxu0 %v1139
    %5806 = vmatprep.subr.mxu0 0.0
    %5807 = vmatpush1.msra.mxu0 %v1138
    %5808 = vmatprep.subr.mxu0 0.0
    %5809 = vmatpush1.msra.mxu0 %v1137
    %5810 = vmatprep.subr.mxu0 0.0
    %5811 = vmatpush2.msra.mxu0 %v1168
    %5812 = vmatprep.subr.mxu0 0.0
    %5813 = vmatpush2.msra.mxu0 %v1167
    %5814 = vmatprep.subr.mxu0 0.0
    %5815 = vmatpush2.msra.mxu0 %v1166
    %5816 = vmatprep.subr.mxu0 0.0
    %5817 = vmatpush2.msra.mxu0 %v1165
    %5818 = vmatprep.subr.mxu0 0.0
    %5819 = vmatpush2.msra.mxu0 %v1164
    %5820 = vmatprep.subr.mxu0 0.0
    %5821 = vmatpush2.msra.mxu0 %v1163
    %5822 = vmatprep.subr.mxu0 0.0
    %5823 = vmatpush2.msra.mxu0 %v1162
    %5824 = vmatprep.subr.mxu0 0.0
    %5825 = vmatpush2.msra.mxu0 %v1161
    %5826 = vmatprep.subr.mxu0 0.0
    %5827 = vmatpush2.msra.mxu0 %v1160
    %5828 = vmatprep.subr.mxu0 0.0
    %5829 = vmatpush2.msra.mxu0 %v1159
    %5830 = vmatprep.subr.mxu0 0.0
    %5831 = vmatpush2.msra.mxu0 %v1158
    %5832 = vmatprep.subr.mxu0 0.0
    %5833 = vmatpush2.msra.mxu0 %v1157
    %5834 = vmatprep.subr.mxu0 0.0
    %5835 = vmatpush2.msra.mxu0 %v1156
    %5836 = vmatprep.subr.mxu0 0.0
    %5837 = vmatpush2.msra.mxu0 %v1155
    %5838 = vmatprep.subr.mxu0 0.0
    %5839 = vmatpush2.msra.mxu0 %v1154
    %5840 = vmatprep.subr.mxu0 0.0
    %5841 = vmatpush2.msra.mxu0 %v1153
    %5842 = vmatprep.mubr.f32.mxu0 %v2903
    %5843 = vmatmul.mubr.f32.gmra.mxu0 %v2902
    %v5844 = vpop.f32.mrf.mxu0
    %v5845 = vadd.f32 %v5775, %v5844
    %v5846 = vpop.f32.mrf.mxu0
    %5847 = vdwg.mxu0
    %5848 = vmatprep.subr.mxu0 0.0
    %5849 = vmatpush1.msra.mxu0 %v1184
    %5850 = vmatprep.subr.mxu0 0.0
    %5851 = vmatpush1.msra.mxu0 %v1183
    %5852 = vmatprep.subr.mxu0 0.0
    %5853 = vmatpush1.msra.mxu0 %v1182
    %5854 = vmatprep.subr.mxu0 0.0
    %5855 = vmatpush1.msra.mxu0 %v1181
    %5856 = vmatprep.subr.mxu0 0.0
    %5857 = vmatpush1.msra.mxu0 %v1180
    %5858 = vmatprep.subr.mxu0 0.0
    %5859 = vmatpush1.msra.mxu0 %v1179
    %5860 = vmatprep.subr.mxu0 0.0
    %5861 = vmatpush1.msra.mxu0 %v1178
    %5862 = vmatprep.subr.mxu0 0.0
    %5863 = vmatpush1.msra.mxu0 %v1177
    %5864 = vmatprep.subr.mxu0 0.0
    %5865 = vmatpush1.msra.mxu0 %v1176
    %5866 = vmatprep.subr.mxu0 0.0
    %5867 = vmatpush1.msra.mxu0 %v1175
    %5868 = vmatprep.subr.mxu0 0.0
    %5869 = vmatpush1.msra.mxu0 %v1174
    %5870 = vmatprep.subr.mxu0 0.0
    %5871 = vmatpush1.msra.mxu0 %v1173
    %5872 = vmatprep.subr.mxu0 0.0
    %5873 = vmatpush1.msra.mxu0 %v1172
    %5874 = vmatprep.subr.mxu0 0.0
    %5875 = vmatpush1.msra.mxu0 %v1171
    %5876 = vmatprep.subr.mxu0 0.0
    %5877 = vmatpush1.msra.mxu0 %v1170
    %5878 = vmatprep.subr.mxu0 0.0
    %5879 = vmatpush1.msra.mxu0 %v1169
    %5880 = vmatprep.subr.mxu0 0.0
    %5881 = vmatpush2.msra.mxu0 %v1200
    %5882 = vmatprep.subr.mxu0 0.0
    %5883 = vmatpush2.msra.mxu0 %v1199
    %5884 = vmatprep.subr.mxu0 0.0
    %5885 = vmatpush2.msra.mxu0 %v1198
    %5886 = vmatprep.subr.mxu0 0.0
    %5887 = vmatpush2.msra.mxu0 %v1197
    %5888 = vmatprep.subr.mxu0 0.0
    %5889 = vmatpush2.msra.mxu0 %v1196
    %5890 = vmatprep.subr.mxu0 0.0
    %5891 = vmatpush2.msra.mxu0 %v1195
    %5892 = vmatprep.subr.mxu0 0.0
    %5893 = vmatpush2.msra.mxu0 %v1194
    %5894 = vmatprep.subr.mxu0 0.0
    %5895 = vmatpush2.msra.mxu0 %v1193
    %5896 = vmatprep.subr.mxu0 0.0
    %5897 = vmatpush2.msra.mxu0 %v1192
    %5898 = vmatprep.subr.mxu0 0.0
    %5899 = vmatpush2.msra.mxu0 %v1191
    %5900 = vmatprep.subr.mxu0 0.0
    %5901 = vmatpush2.msra.mxu0 %v1190
    %5902 = vmatprep.subr.mxu0 0.0
    %5903 = vmatpush2.msra.mxu0 %v1189
    %5904 = vmatprep.subr.mxu0 0.0
    %5905 = vmatpush2.msra.mxu0 %v1188
    %5906 = vmatprep.subr.mxu0 0.0
    %5907 = vmatpush2.msra.mxu0 %v1187
    %5908 = vmatprep.subr.mxu0 0.0
    %5909 = vmatpush2.msra.mxu0 %v1186
    %5910 = vmatprep.subr.mxu0 0.0
    %5911 = vmatpush2.msra.mxu0 %v1185
    %5912 = vmatprep.mubr.f32.mxu0 %v2937
    %5913 = vmatmul.mubr.f32.gmra.mxu0 %v2936
    %v5914 = vpop.f32.mrf.mxu0
    %v5915 = vadd.f32 %v5845, %v5914
    %v5916 = vpop.f32.mrf.mxu0
    %5917 = vdwg.mxu0
    %5918 = vmatprep.subr.mxu0 0.0
    %5919 = vmatpush1.msra.mxu0 %v1216
    %5920 = vmatprep.subr.mxu0 0.0
    %5921 = vmatpush1.msra.mxu0 %v1215
    %5922 = vmatprep.subr.mxu0 0.0
    %5923 = vmatpush1.msra.mxu0 %v1214
    %5924 = vmatprep.subr.mxu0 0.0
    %5925 = vmatpush1.msra.mxu0 %v1213
    %5926 = vmatprep.subr.mxu0 0.0
    %5927 = vmatpush1.msra.mxu0 %v1212
    %5928 = vmatprep.subr.mxu0 0.0
    %5929 = vmatpush1.msra.mxu0 %v1211
    %5930 = vmatprep.subr.mxu0 0.0
    %5931 = vmatpush1.msra.mxu0 %v1210
    %5932 = vmatprep.subr.mxu0 0.0
    %5933 = vmatpush1.msra.mxu0 %v1209
    %5934 = vmatprep.subr.mxu0 0.0
    %5935 = vmatpush1.msra.mxu0 %v1208
    %5936 = vmatprep.subr.mxu0 0.0
    %5937 = vmatpush1.msra.mxu0 %v1207
    %5938 = vmatprep.subr.mxu0 0.0
    %5939 = vmatpush1.msra.mxu0 %v1206
    %5940 = vmatprep.subr.mxu0 0.0
    %5941 = vmatpush1.msra.mxu0 %v1205
    %5942 = vmatprep.subr.mxu0 0.0
    %5943 = vmatpush1.msra.mxu0 %v1204
    %5944 = vmatprep.subr.mxu0 0.0
    %5945 = vmatpush1.msra.mxu0 %v1203
    %5946 = vmatprep.subr.mxu0 0.0
    %5947 = vmatpush1.msra.mxu0 %v1202
    %5948 = vmatprep.subr.mxu0 0.0
    %5949 = vmatpush1.msra.mxu0 %v1201
    %5950 = vmatprep.subr.mxu0 0.0
    %5951 = vmatpush2.msra.mxu0 %v1232
    %5952 = vmatprep.subr.mxu0 0.0
    %5953 = vmatpush2.msra.mxu0 %v1231
    %5954 = vmatprep.subr.mxu0 0.0
    %5955 = vmatpush2.msra.mxu0 %v1230
    %5956 = vmatprep.subr.mxu0 0.0
    %5957 = vmatpush2.msra.mxu0 %v1229
    %5958 = vmatprep.subr.mxu0 0.0
    %5959 = vmatpush2.msra.mxu0 %v1228
    %5960 = vmatprep.subr.mxu0 0.0
    %5961 = vmatpush2.msra.mxu0 %v1227
    %5962 = vmatprep.subr.mxu0 0.0
    %5963 = vmatpush2.msra.mxu0 %v1226
    %5964 = vmatprep.subr.mxu0 0.0
    %5965 = vmatpush2.msra.mxu0 %v1225
    %5966 = vmatprep.subr.mxu0 0.0
    %5967 = vmatpush2.msra.mxu0 %v1224
    %5968 = vmatprep.subr.mxu0 0.0
    %5969 = vmatpush2.msra.mxu0 %v1223
    %5970 = vmatprep.subr.mxu0 0.0
    %5971 = vmatpush2.msra.mxu0 %v1222
    %5972 = vmatprep.subr.mxu0 0.0
    %5973 = vmatpush2.msra.mxu0 %v1221
    %5974 = vmatprep.subr.mxu0 0.0
    %5975 = vmatpush2.msra.mxu0 %v1220
    %5976 = vmatprep.subr.mxu0 0.0
    %5977 = vmatpush2.msra.mxu0 %v1219
    %5978 = vmatprep.subr.mxu0 0.0
    %5979 = vmatpush2.msra.mxu0 %v1218
    %5980 = vmatprep.subr.mxu0 0.0
    %5981 = vmatpush2.msra.mxu0 %v1217
    %5982 = vmatprep.mubr.f32.mxu0 %v2939
    %5983 = vmatmul.mubr.f32.gmra.mxu0 %v2938
    %v5984 = vpop.f32.mrf.mxu0
    %v5985 = vadd.f32 %v5915, %v5984
    %v5986 = vpop.f32.mrf.mxu0
    %5987 = vdwg.mxu0
    %5988 = vmatprep.subr.mxu0 0.0
    %5989 = vmatpush1.msra.mxu0 %v1248
    %5990 = vmatprep.subr.mxu0 0.0
    %5991 = vmatpush1.msra.mxu0 %v1247
    %5992 = vmatprep.subr.mxu0 0.0
    %5993 = vmatpush1.msra.mxu0 %v1246
    %5994 = vmatprep.subr.mxu0 0.0
    %5995 = vmatpush1.msra.mxu0 %v1245
    %5996 = vmatprep.subr.mxu0 0.0
    %5997 = vmatpush1.msra.mxu0 %v1244
    %5998 = vmatprep.subr.mxu0 0.0
    %5999 = vmatpush1.msra.mxu0 %v1243
    %6000 = vmatprep.subr.mxu0 0.0
    %6001 = vmatpush1.msra.mxu0 %v1242
    %6002 = vmatprep.subr.mxu0 0.0
    %6003 = vmatpush1.msra.mxu0 %v1241
    %6004 = vmatprep.subr.mxu0 0.0
    %6005 = vmatpush1.msra.mxu0 %v1240
    %6006 = vmatprep.subr.mxu0 0.0
    %6007 = vmatpush1.msra.mxu0 %v1239
    %6008 = vmatprep.subr.mxu0 0.0
    %6009 = vmatpush1.msra.mxu0 %v1238
    %6010 = vmatprep.subr.mxu0 0.0
    %6011 = vmatpush1.msra.mxu0 %v1237
    %6012 = vmatprep.subr.mxu0 0.0
    %6013 = vmatpush1.msra.mxu0 %v1236
    %6014 = vmatprep.subr.mxu0 0.0
    %6015 = vmatpush1.msra.mxu0 %v1235
    %6016 = vmatprep.subr.mxu0 0.0
    %6017 = vmatpush1.msra.mxu0 %v1234
    %6018 = vmatprep.subr.mxu0 0.0
    %6019 = vmatpush1.msra.mxu0 %v1233
    %6020 = vmatprep.subr.mxu0 0.0
    %6021 = vmatpush2.msra.mxu0 %v1264
    %6022 = vmatprep.subr.mxu0 0.0
    %6023 = vmatpush2.msra.mxu0 %v1263
    %6024 = vmatprep.subr.mxu0 0.0
    %6025 = vmatpush2.msra.mxu0 %v1262
    %6026 = vmatprep.subr.mxu0 0.0
    %6027 = vmatpush2.msra.mxu0 %v1261
    %6028 = vmatprep.subr.mxu0 0.0
    %6029 = vmatpush2.msra.mxu0 %v1260
    %6030 = vmatprep.subr.mxu0 0.0
    %6031 = vmatpush2.msra.mxu0 %v1259
    %6032 = vmatprep.subr.mxu0 0.0
    %6033 = vmatpush2.msra.mxu0 %v1258
    %6034 = vmatprep.subr.mxu0 0.0
    %6035 = vmatpush2.msra.mxu0 %v1257
    %6036 = vmatprep.subr.mxu0 0.0
    %6037 = vmatpush2.msra.mxu0 %v1256
    %6038 = vmatprep.subr.mxu0 0.0
    %6039 = vmatpush2.msra.mxu0 %v1255
    %6040 = vmatprep.subr.mxu0 0.0
    %6041 = vmatpush2.msra.mxu0 %v1254
    %6042 = vmatprep.subr.mxu0 0.0
    %6043 = vmatpush2.msra.mxu0 %v1253
    %6044 = vmatprep.subr.mxu0 0.0
    %6045 = vmatpush2.msra.mxu0 %v1252
    %6046 = vmatprep.subr.mxu0 0.0
    %6047 = vmatpush2.msra.mxu0 %v1251
    %6048 = vmatprep.subr.mxu0 0.0
    %6049 = vmatpush2.msra.mxu0 %v1250
    %6050 = vmatprep.subr.mxu0 0.0
    %6051 = vmatpush2.msra.mxu0 %v1249
    %6052 = vmatprep.mubr.f32.mxu0 %v2973
    %6053 = vmatmul.mubr.f32.gmra.mxu0 %v2972
    %v6054 = vpop.f32.mrf.mxu0
    %v6055 = vadd.f32 %v5985, %v6054
    %v6056 = vpop.f32.mrf.mxu0
    %6057 = vdwg.mxu0
    %6058 = vmatprep.subr.mxu0 0.0
    %6059 = vmatpush1.msra.mxu0 %v1280
    %6060 = vmatprep.subr.mxu0 0.0
    %6061 = vmatpush1.msra.mxu0 %v1279
    %6062 = vmatprep.subr.mxu0 0.0
    %6063 = vmatpush1.msra.mxu0 %v1278
    %6064 = vmatprep.subr.mxu0 0.0
    %6065 = vmatpush1.msra.mxu0 %v1277
    %6066 = vmatprep.subr.mxu0 0.0
    %6067 = vmatpush1.msra.mxu0 %v1276
    %6068 = vmatprep.subr.mxu0 0.0
    %6069 = vmatpush1.msra.mxu0 %v1275
    %6070 = vmatprep.subr.mxu0 0.0
    %6071 = vmatpush1.msra.mxu0 %v1274
    %6072 = vmatprep.subr.mxu0 0.0
    %6073 = vmatpush1.msra.mxu0 %v1273
    %6074 = vmatprep.subr.mxu0 0.0
    %6075 = vmatpush1.msra.mxu0 %v1272
    %6076 = vmatprep.subr.mxu0 0.0
    %6077 = vmatpush1.msra.mxu0 %v1271
    %6078 = vmatprep.subr.mxu0 0.0
    %6079 = vmatpush1.msra.mxu0 %v1270
    %6080 = vmatprep.subr.mxu0 0.0
    %6081 = vmatpush1.msra.mxu0 %v1269
    %6082 = vmatprep.subr.mxu0 0.0
    %6083 = vmatpush1.msra.mxu0 %v1268
    %6084 = vmatprep.subr.mxu0 0.0
    %6085 = vmatpush1.msra.mxu0 %v1267
    %6086 = vmatprep.subr.mxu0 0.0
    %6087 = vmatpush1.msra.mxu0 %v1266
    %6088 = vmatprep.subr.mxu0 0.0
    %6089 = vmatpush1.msra.mxu0 %v1265
    %6090 = vmatprep.subr.mxu0 0.0
    %6091 = vmatpush2.msra.mxu0 %v1296
    %6092 = vmatprep.subr.mxu0 0.0
    %6093 = vmatpush2.msra.mxu0 %v1295
    %6094 = vmatprep.subr.mxu0 0.0
    %6095 = vmatpush2.msra.mxu0 %v1294
    %6096 = vmatprep.subr.mxu0 0.0
    %6097 = vmatpush2.msra.mxu0 %v1293
    %6098 = vmatprep.subr.mxu0 0.0
    %6099 = vmatpush2.msra.mxu0 %v1292
    %6100 = vmatprep.subr.mxu0 0.0
    %6101 = vmatpush2.msra.mxu0 %v1291
    %6102 = vmatprep.subr.mxu0 0.0
    %6103 = vmatpush2.msra.mxu0 %v1290
    %6104 = vmatprep.subr.mxu0 0.0
    %6105 = vmatpush2.msra.mxu0 %v1289
    %6106 = vmatprep.subr.mxu0 0.0
    %6107 = vmatpush2.msra.mxu0 %v1288
    %6108 = vmatprep.subr.mxu0 0.0
    %6109 = vmatpush2.msra.mxu0 %v1287
    %6110 = vmatprep.subr.mxu0 0.0
    %6111 = vmatpush2.msra.mxu0 %v1286
    %6112 = vmatprep.subr.mxu0 0.0
    %6113 = vmatpush2.msra.mxu0 %v1285
    %6114 = vmatprep.subr.mxu0 0.0
    %6115 = vmatpush2.msra.mxu0 %v1284
    %6116 = vmatprep.subr.mxu0 0.0
    %6117 = vmatpush2.msra.mxu0 %v1283
    %6118 = vmatprep.subr.mxu0 0.0
    %6119 = vmatpush2.msra.mxu0 %v1282
    %6120 = vmatprep.subr.mxu0 0.0
    %6121 = vmatpush2.msra.mxu0 %v1281
    %6122 = vmatprep.mubr.f32.mxu0 %v2975
    %6123 = vmatmul.mubr.f32.gmra.mxu0 %v2974
    %v6124 = vpop.f32.mrf.mxu0
    %v6125 = vadd.f32 %v6055, %v6124
    %v6126 = vpop.f32.mrf.mxu0
    %6127 = vdwg.mxu0
    %6128 = vmatprep.subr.mxu0 0.0
    %6129 = vmatpush1.msra.mxu0 %v1312
    %6130 = vmatprep.subr.mxu0 0.0
    %6131 = vmatpush1.msra.mxu0 %v1311
    %6132 = vmatprep.subr.mxu0 0.0
    %6133 = vmatpush1.msra.mxu0 %v1310
    %6134 = vmatprep.subr.mxu0 0.0
    %6135 = vmatpush1.msra.mxu0 %v1309
    %6136 = vmatprep.subr.mxu0 0.0
    %6137 = vmatpush1.msra.mxu0 %v1308
    %6138 = vmatprep.subr.mxu0 0.0
    %6139 = vmatpush1.msra.mxu0 %v1307
    %6140 = vmatprep.subr.mxu0 0.0
    %6141 = vmatpush1.msra.mxu0 %v1306
    %6142 = vmatprep.subr.mxu0 0.0
    %6143 = vmatpush1.msra.mxu0 %v1305
    %6144 = vmatprep.subr.mxu0 0.0
    %6145 = vmatpush1.msra.mxu0 %v1304
    %6146 = vmatprep.subr.mxu0 0.0
    %6147 = vmatpush1.msra.mxu0 %v1303
    %6148 = vmatprep.subr.mxu0 0.0
    %6149 = vmatpush1.msra.mxu0 %v1302
    %6150 = vmatprep.subr.mxu0 0.0
    %6151 = vmatpush1.msra.mxu0 %v1301
    %6152 = vmatprep.subr.mxu0 0.0
    %6153 = vmatpush1.msra.mxu0 %v1300
    %6154 = vmatprep.subr.mxu0 0.0
    %6155 = vmatpush1.msra.mxu0 %v1299
    %6156 = vmatprep.subr.mxu0 0.0
    %6157 = vmatpush1.msra.mxu0 %v1298
    %6158 = vmatprep.subr.mxu0 0.0
    %6159 = vmatpush1.msra.mxu0 %v1297
    %6160 = vmatprep.subr.mxu0 0.0
    %6161 = vmatpush2.msra.mxu0 %v1328
    %6162 = vmatprep.subr.mxu0 0.0
    %6163 = vmatpush2.msra.mxu0 %v1327
    %6164 = vmatprep.subr.mxu0 0.0
    %6165 = vmatpush2.msra.mxu0 %v1326
    %6166 = vmatprep.subr.mxu0 0.0
    %6167 = vmatpush2.msra.mxu0 %v1325
    %6168 = vmatprep.subr.mxu0 0.0
    %6169 = vmatpush2.msra.mxu0 %v1324
    %6170 = vmatprep.subr.mxu0 0.0
    %6171 = vmatpush2.msra.mxu0 %v1323
    %6172 = vmatprep.subr.mxu0 0.0
    %6173 = vmatpush2.msra.mxu0 %v1322
    %6174 = vmatprep.subr.mxu0 0.0
    %6175 = vmatpush2.msra.mxu0 %v1321
    %6176 = vmatprep.subr.mxu0 0.0
    %6177 = vmatpush2.msra.mxu0 %v1320
    %6178 = vmatprep.subr.mxu0 0.0
    %6179 = vmatpush2.msra.mxu0 %v1319
    %6180 = vmatprep.subr.mxu0 0.0
    %6181 = vmatpush2.msra.mxu0 %v1318
    %6182 = vmatprep.subr.mxu0 0.0
    %6183 = vmatpush2.msra.mxu0 %v1317
    %6184 = vmatprep.subr.mxu0 0.0
    %6185 = vmatpush2.msra.mxu0 %v1316
    %6186 = vmatprep.subr.mxu0 0.0
    %6187 = vmatpush2.msra.mxu0 %v1315
    %6188 = vmatprep.subr.mxu0 0.0
    %6189 = vmatpush2.msra.mxu0 %v1314
    %6190 = vmatprep.subr.mxu0 0.0
    %6191 = vmatpush2.msra.mxu0 %v1313
    %6192 = vmatprep.mubr.f32.mxu0 %v3009
    %6193 = vmatmul.mubr.f32.gmra.mxu0 %v3008
    %v6194 = vpop.f32.mrf.mxu0
    %v6195 = vadd.f32 %v6125, %v6194
    %v6196 = vpop.f32.mrf.mxu0
    %6197 = vdwg.mxu0
    %6198 = vmatprep.subr.mxu0 0.0
    %6199 = vmatpush1.msra.mxu0 %v1344
    %6200 = vmatprep.subr.mxu0 0.0
    %6201 = vmatpush1.msra.mxu0 %v1343
    %6202 = vmatprep.subr.mxu0 0.0
    %6203 = vmatpush1.msra.mxu0 %v1342
    %6204 = vmatprep.subr.mxu0 0.0
    %6205 = vmatpush1.msra.mxu0 %v1341
    %6206 = vmatprep.subr.mxu0 0.0
    %6207 = vmatpush1.msra.mxu0 %v1340
    %6208 = vmatprep.subr.mxu0 0.0
    %6209 = vmatpush1.msra.mxu0 %v1339
    %6210 = vmatprep.subr.mxu0 0.0
    %6211 = vmatpush1.msra.mxu0 %v1338
    %6212 = vmatprep.subr.mxu0 0.0
    %6213 = vmatpush1.msra.mxu0 %v1337
    %6214 = vmatprep.subr.mxu0 0.0
    %6215 = vmatpush1.msra.mxu0 %v1336
    %6216 = vmatprep.subr.mxu0 0.0
    %6217 = vmatpush1.msra.mxu0 %v1335
    %6218 = vmatprep.subr.mxu0 0.0
    %6219 = vmatpush1.msra.mxu0 %v1334
    %6220 = vmatprep.subr.mxu0 0.0
    %6221 = vmatpush1.msra.mxu0 %v1333
    %6222 = vmatprep.subr.mxu0 0.0
    %6223 = vmatpush1.msra.mxu0 %v1332
    %6224 = vmatprep.subr.mxu0 0.0
    %6225 = vmatpush1.msra.mxu0 %v1331
    %6226 = vmatprep.subr.mxu0 0.0
    %6227 = vmatpush1.msra.mxu0 %v1330
    %6228 = vmatprep.subr.mxu0 0.0
    %6229 = vmatpush1.msra.mxu0 %v1329
    %6230 = vmatprep.subr.mxu0 0.0
    %6231 = vmatpush2.msra.mxu0 %v1360
    %6232 = vmatprep.subr.mxu0 0.0
    %6233 = vmatpush2.msra.mxu0 %v1359
    %6234 = vmatprep.subr.mxu0 0.0
    %6235 = vmatpush2.msra.mxu0 %v1358
    %6236 = vmatprep.subr.mxu0 0.0
    %6237 = vmatpush2.msra.mxu0 %v1357
    %6238 = vmatprep.subr.mxu0 0.0
    %6239 = vmatpush2.msra.mxu0 %v1356
    %6240 = vmatprep.subr.mxu0 0.0
    %6241 = vmatpush2.msra.mxu0 %v1355
    %6242 = vmatprep.subr.mxu0 0.0
    %6243 = vmatpush2.msra.mxu0 %v1354
    %6244 = vmatprep.subr.mxu0 0.0
    %6245 = vmatpush2.msra.mxu0 %v1353
    %6246 = vmatprep.subr.mxu0 0.0
    %6247 = vmatpush2.msra.mxu0 %v1352
    %6248 = vmatprep.subr.mxu0 0.0
    %6249 = vmatpush2.msra.mxu0 %v1351
    %6250 = vmatprep.subr.mxu0 0.0
    %6251 = vmatpush2.msra.mxu0 %v1350
    %6252 = vmatprep.subr.mxu0 0.0
    %6253 = vmatpush2.msra.mxu0 %v1349
    %6254 = vmatprep.subr.mxu0 0.0
    %6255 = vmatpush2.msra.mxu0 %v1348
    %6256 = vmatprep.subr.mxu0 0.0
    %6257 = vmatpush2.msra.mxu0 %v1347
    %6258 = vmatprep.subr.mxu0 0.0
    %6259 = vmatpush2.msra.mxu0 %v1346
    %6260 = vmatprep.subr.mxu0 0.0
    %6261 = vmatpush2.msra.mxu0 %v1345
    %6262 = vmatprep.mubr.f32.mxu0 %v3011
    %6263 = vmatmul.mubr.f32.gmra.mxu0 %v3010
    %v6264 = vpop.f32.mrf.mxu0
    %v6265 = vadd.f32 %v6195, %v6264
    %v6266 = vpop.f32.mrf.mxu0
    %6267 = vdwg.mxu0
    %6268 = vmatprep.subr.mxu0 0.0
    %6269 = vmatpush1.msra.mxu0 %v1376
    %6270 = vmatprep.subr.mxu0 0.0
    %6271 = vmatpush1.msra.mxu0 %v1375
    %6272 = vmatprep.subr.mxu0 0.0
    %6273 = vmatpush1.msra.mxu0 %v1374
    %6274 = vmatprep.subr.mxu0 0.0
    %6275 = vmatpush1.msra.mxu0 %v1373
    %6276 = vmatprep.subr.mxu0 0.0
    %6277 = vmatpush1.msra.mxu0 %v1372
    %6278 = vmatprep.subr.mxu0 0.0
    %6279 = vmatpush1.msra.mxu0 %v1371
    %6280 = vmatprep.subr.mxu0 0.0
    %6281 = vmatpush1.msra.mxu0 %v1370
    %6282 = vmatprep.subr.mxu0 0.0
    %6283 = vmatpush1.msra.mxu0 %v1369
    %6284 = vmatprep.subr.mxu0 0.0
    %6285 = vmatpush1.msra.mxu0 %v1368
    %6286 = vmatprep.subr.mxu0 0.0
    %6287 = vmatpush1.msra.mxu0 %v1367
    %6288 = vmatprep.subr.mxu0 0.0
    %6289 = vmatpush1.msra.mxu0 %v1366
    %6290 = vmatprep.subr.mxu0 0.0
    %6291 = vmatpush1.msra.mxu0 %v1365
    %6292 = vmatprep.subr.mxu0 0.0
    %6293 = vmatpush1.msra.mxu0 %v1364
    %6294 = vmatprep.subr.mxu0 0.0
    %6295 = vmatpush1.msra.mxu0 %v1363
    %6296 = vmatprep.subr.mxu0 0.0
    %6297 = vmatpush1.msra.mxu0 %v1362
    %6298 = vmatprep.subr.mxu0 0.0
    %6299 = vmatpush1.msra.mxu0 %v1361
    %6300 = vmatprep.subr.mxu0 0.0
    %6301 = vmatpush2.msra.mxu0 %v1392
    %6302 = vmatprep.subr.mxu0 0.0
    %6303 = vmatpush2.msra.mxu0 %v1391
    %6304 = vmatprep.subr.mxu0 0.0
    %6305 = vmatpush2.msra.mxu0 %v1390
    %6306 = vmatprep.subr.mxu0 0.0
    %6307 = vmatpush2.msra.mxu0 %v1389
    %6308 = vmatprep.subr.mxu0 0.0
    %6309 = vmatpush2.msra.mxu0 %v1388
    %6310 = vmatprep.subr.mxu0 0.0
    %6311 = vmatpush2.msra.mxu0 %v1387
    %6312 = vmatprep.subr.mxu0 0.0
    %6313 = vmatpush2.msra.mxu0 %v1386
    %6314 = vmatprep.subr.mxu0 0.0
    %6315 = vmatpush2.msra.mxu0 %v1385
    %6316 = vmatprep.subr.mxu0 0.0
    %6317 = vmatpush2.msra.mxu0 %v1384
    %6318 = vmatprep.subr.mxu0 0.0
    %6319 = vmatpush2.msra.mxu0 %v1383
    %6320 = vmatprep.subr.mxu0 0.0
    %6321 = vmatpush2.msra.mxu0 %v1382
    %6322 = vmatprep.subr.mxu0 0.0
    %6323 = vmatpush2.msra.mxu0 %v1381
    %6324 = vmatprep.subr.mxu0 0.0
    %6325 = vmatpush2.msra.mxu0 %v1380
    %6326 = vmatprep.subr.mxu0 0.0
    %6327 = vmatpush2.msra.mxu0 %v1379
    %6328 = vmatprep.subr.mxu0 0.0
    %6329 = vmatpush2.msra.mxu0 %v1378
    %6330 = vmatprep.subr.mxu0 0.0
    %6331 = vmatpush2.msra.mxu0 %v1377
    %6332 = vmatprep.mubr.f32.mxu0 %v3045
    %6333 = vmatmul.mubr.f32.gmra.mxu0 %v3044
    %v6334 = vpop.f32.mrf.mxu0
    %v6335 = vadd.f32 %v6265, %v6334
    %v6336 = vpop.f32.mrf.mxu0
    %6337 = vdwg.mxu0
    %6338 = vmatprep.subr.mxu0 0.0
    %6339 = vmatpush1.msra.mxu0 %v1408
    %6340 = vmatprep.subr.mxu0 0.0
    %6341 = vmatpush1.msra.mxu0 %v1407
    %6342 = vmatprep.subr.mxu0 0.0
    %6343 = vmatpush1.msra.mxu0 %v1406
    %6344 = vmatprep.subr.mxu0 0.0
    %6345 = vmatpush1.msra.mxu0 %v1405
    %6346 = vmatprep.subr.mxu0 0.0
    %6347 = vmatpush1.msra.mxu0 %v1404
    %6348 = vmatprep.subr.mxu0 0.0
    %6349 = vmatpush1.msra.mxu0 %v1403
    %6350 = vmatprep.subr.mxu0 0.0
    %6351 = vmatpush1.msra.mxu0 %v1402
    %6352 = vmatprep.subr.mxu0 0.0
    %6353 = vmatpush1.msra.mxu0 %v1401
    %6354 = vmatprep.subr.mxu0 0.0
    %6355 = vmatpush1.msra.mxu0 %v1400
    %6356 = vmatprep.subr.mxu0 0.0
    %6357 = vmatpush1.msra.mxu0 %v1399
    %6358 = vmatprep.subr.mxu0 0.0
    %6359 = vmatpush1.msra.mxu0 %v1398
    %6360 = vmatprep.subr.mxu0 0.0
    %6361 = vmatpush1.msra.mxu0 %v1397
    %6362 = vmatprep.subr.mxu0 0.0
    %6363 = vmatpush1.msra.mxu0 %v1396
    %6364 = vmatprep.subr.mxu0 0.0
    %6365 = vmatpush1.msra.mxu0 %v1395
    %6366 = vmatprep.subr.mxu0 0.0
    %6367 = vmatpush1.msra.mxu0 %v1394
    %6368 = vmatprep.subr.mxu0 0.0
    %6369 = vmatpush1.msra.mxu0 %v1393
    %6370 = vmatprep.subr.mxu0 0.0
    %6371 = vmatpush2.msra.mxu0 %v1424
    %6372 = vmatprep.subr.mxu0 0.0
    %6373 = vmatpush2.msra.mxu0 %v1423
    %6374 = vmatprep.subr.mxu0 0.0
    %6375 = vmatpush2.msra.mxu0 %v1422
    %6376 = vmatprep.subr.mxu0 0.0
    %6377 = vmatpush2.msra.mxu0 %v1421
    %6378 = vmatprep.subr.mxu0 0.0
    %6379 = vmatpush2.msra.mxu0 %v1420
    %6380 = vmatprep.subr.mxu0 0.0
    %6381 = vmatpush2.msra.mxu0 %v1419
    %6382 = vmatprep.subr.mxu0 0.0
    %6383 = vmatpush2.msra.mxu0 %v1418
    %6384 = vmatprep.subr.mxu0 0.0
    %6385 = vmatpush2.msra.mxu0 %v1417
    %6386 = vmatprep.subr.mxu0 0.0
    %6387 = vmatpush2.msra.mxu0 %v1416
    %6388 = vmatprep.subr.mxu0 0.0
    %6389 = vmatpush2.msra.mxu0 %v1415
    %6390 = vmatprep.subr.mxu0 0.0
    %6391 = vmatpush2.msra.mxu0 %v1414
    %6392 = vmatprep.subr.mxu0 0.0
    %6393 = vmatpush2.msra.mxu0 %v1413
    %6394 = vmatprep.subr.mxu0 0.0
    %6395 = vmatpush2.msra.mxu0 %v1412
    %6396 = vmatprep.subr.mxu0 0.0
    %6397 = vmatpush2.msra.mxu0 %v1411
    %6398 = vmatprep.subr.mxu0 0.0
    %6399 = vmatpush2.msra.mxu0 %v1410
    %6400 = vmatprep.subr.mxu0 0.0
    %6401 = vmatpush2.msra.mxu0 %v1409
    %6402 = vmatprep.mubr.f32.mxu0 %v3047
    %6403 = vmatmul.mubr.f32.gmra.mxu0 %v3046
    %v6404 = vpop.f32.mrf.mxu0
    %v6405 = vadd.f32 %v6335, %v6404
    %v6406 = vpop.f32.mrf.mxu0
    %6407 = vdwg.mxu0
    %6408 = vmatprep.subr.mxu0 0.0
    %6409 = vmatpush1.msra.mxu0 %v1440
    %6410 = vmatprep.subr.mxu0 0.0
    %6411 = vmatpush1.msra.mxu0 %v1439
    %6412 = vmatprep.subr.mxu0 0.0
    %6413 = vmatpush1.msra.mxu0 %v1438
    %6414 = vmatprep.subr.mxu0 0.0
    %6415 = vmatpush1.msra.mxu0 %v1437
    %6416 = vmatprep.subr.mxu0 0.0
    %6417 = vmatpush1.msra.mxu0 %v1436
    %6418 = vmatprep.subr.mxu0 0.0
    %6419 = vmatpush1.msra.mxu0 %v1435
    %6420 = vmatprep.subr.mxu0 0.0
    %6421 = vmatpush1.msra.mxu0 %v1434
    %6422 = vmatprep.subr.mxu0 0.0
    %6423 = vmatpush1.msra.mxu0 %v1433
    %6424 = vmatprep.subr.mxu0 0.0
    %6425 = vmatpush1.msra.mxu0 %v1432
    %6426 = vmatprep.subr.mxu0 0.0
    %6427 = vmatpush1.msra.mxu0 %v1431
    %6428 = vmatprep.subr.mxu0 0.0
    %6429 = vmatpush1.msra.mxu0 %v1430
    %6430 = vmatprep.subr.mxu0 0.0
    %6431 = vmatpush1.msra.mxu0 %v1429
    %6432 = vmatprep.subr.mxu0 0.0
    %6433 = vmatpush1.msra.mxu0 %v1428
    %6434 = vmatprep.subr.mxu0 0.0
    %6435 = vmatpush1.msra.mxu0 %v1427
    %6436 = vmatprep.subr.mxu0 0.0
    %6437 = vmatpush1.msra.mxu0 %v1426
    %6438 = vmatprep.subr.mxu0 0.0
    %6439 = vmatpush1.msra.mxu0 %v1425
    %6440 = vmatprep.subr.mxu0 0.0
    %6441 = vmatpush2.msra.mxu0 %v1456
    %6442 = vmatprep.subr.mxu0 0.0
    %6443 = vmatpush2.msra.mxu0 %v1455
    %6444 = vmatprep.subr.mxu0 0.0
    %6445 = vmatpush2.msra.mxu0 %v1454
    %6446 = vmatprep.subr.mxu0 0.0
    %6447 = vmatpush2.msra.mxu0 %v1453
    %6448 = vmatprep.subr.mxu0 0.0
    %6449 = vmatpush2.msra.mxu0 %v1452
    %6450 = vmatprep.subr.mxu0 0.0
    %6451 = vmatpush2.msra.mxu0 %v1451
    %6452 = vmatprep.subr.mxu0 0.0
    %6453 = vmatpush2.msra.mxu0 %v1450
    %6454 = vmatprep.subr.mxu0 0.0
    %6455 = vmatpush2.msra.mxu0 %v1449
    %6456 = vmatprep.subr.mxu0 0.0
    %6457 = vmatpush2.msra.mxu0 %v1448
    %6458 = vmatprep.subr.mxu0 0.0
    %6459 = vmatpush2.msra.mxu0 %v1447
    %6460 = vmatprep.subr.mxu0 0.0
    %6461 = vmatpush2.msra.mxu0 %v1446
    %6462 = vmatprep.subr.mxu0 0.0
    %6463 = vmatpush2.msra.mxu0 %v1445
    %6464 = vmatprep.subr.mxu0 0.0
    %6465 = vmatpush2.msra.mxu0 %v1444
    %6466 = vmatprep.subr.mxu0 0.0
    %6467 = vmatpush2.msra.mxu0 %v1443
    %6468 = vmatprep.subr.mxu0 0.0
    %6469 = vmatpush2.msra.mxu0 %v1442
    %6470 = vmatprep.subr.mxu0 0.0
    %6471 = vmatpush2.msra.mxu0 %v1441
    %6472 = vmatprep.mubr.f32.mxu0 %v3081
    %6473 = vmatmul.mubr.f32.gmra.mxu0 %v3080
    %v6474 = vpop.f32.mrf.mxu0
    %v6475 = vadd.f32 %v6405, %v6474
    %v6476 = vpop.f32.mrf.mxu0
    %6477 = vdwg.mxu0
    %6478 = vmatprep.subr.mxu0 0.0
    %6479 = vmatpush1.msra.mxu0 %v1472
    %6480 = vmatprep.subr.mxu0 0.0
    %6481 = vmatpush1.msra.mxu0 %v1471
    %6482 = vmatprep.subr.mxu0 0.0
    %6483 = vmatpush1.msra.mxu0 %v1470
    %6484 = vmatprep.subr.mxu0 0.0
    %6485 = vmatpush1.msra.mxu0 %v1469
    %6486 = vmatprep.subr.mxu0 0.0
    %6487 = vmatpush1.msra.mxu0 %v1468
    %6488 = vmatprep.subr.mxu0 0.0
    %6489 = vmatpush1.msra.mxu0 %v1467
    %6490 = vmatprep.subr.mxu0 0.0
    %6491 = vmatpush1.msra.mxu0 %v1466
    %6492 = vmatprep.subr.mxu0 0.0
    %6493 = vmatpush1.msra.mxu0 %v1465
    %6494 = vmatprep.subr.mxu0 0.0
    %6495 = vmatpush1.msra.mxu0 %v1464
    %6496 = vmatprep.subr.mxu0 0.0
    %6497 = vmatpush1.msra.mxu0 %v1463
    %6498 = vmatprep.subr.mxu0 0.0
    %6499 = vmatpush1.msra.mxu0 %v1462
    %6500 = vmatprep.subr.mxu0 0.0
    %6501 = vmatpush1.msra.mxu0 %v1461
    %6502 = vmatprep.subr.mxu0 0.0
    %6503 = vmatpush1.msra.mxu0 %v1460
    %6504 = vmatprep.subr.mxu0 0.0
    %6505 = vmatpush1.msra.mxu0 %v1459
    %6506 = vmatprep.subr.mxu0 0.0
    %6507 = vmatpush1.msra.mxu0 %v1458
    %6508 = vmatprep.subr.mxu0 0.0
    %6509 = vmatpush1.msra.mxu0 %v1457
    %6510 = vmatprep.subr.mxu0 0.0
    %6511 = vmatpush2.msra.mxu0 %v1488
    %6512 = vmatprep.subr.mxu0 0.0
    %6513 = vmatpush2.msra.mxu0 %v1487
    %6514 = vmatprep.subr.mxu0 0.0
    %6515 = vmatpush2.msra.mxu0 %v1486
    %6516 = vmatprep.subr.mxu0 0.0
    %6517 = vmatpush2.msra.mxu0 %v1485
    %6518 = vmatprep.subr.mxu0 0.0
    %6519 = vmatpush2.msra.mxu0 %v1484
    %6520 = vmatprep.subr.mxu0 0.0
    %6521 = vmatpush2.msra.mxu0 %v1483
    %6522 = vmatprep.subr.mxu0 0.0
    %6523 = vmatpush2.msra.mxu0 %v1482
    %6524 = vmatprep.subr.mxu0 0.0
    %6525 = vmatpush2.msra.mxu0 %v1481
    %6526 = vmatprep.subr.mxu0 0.0
    %6527 = vmatpush2.msra.mxu0 %v1480
    %6528 = vmatprep.subr.mxu0 0.0
    %6529 = vmatpush2.msra.mxu0 %v1479
    %6530 = vmatprep.subr.mxu0 0.0
    %6531 = vmatpush2.msra.mxu0 %v1478
    %6532 = vmatprep.subr.mxu0 0.0
    %6533 = vmatpush2.msra.mxu0 %v1477
    %6534 = vmatprep.subr.mxu0 0.0
    %6535 = vmatpush2.msra.mxu0 %v1476
    %6536 = vmatprep.subr.mxu0 0.0
    %6537 = vmatpush2.msra.mxu0 %v1475
    %6538 = vmatprep.subr.mxu0 0.0
    %6539 = vmatpush2.msra.mxu0 %v1474
    %6540 = vmatprep.subr.mxu0 0.0
    %6541 = vmatpush2.msra.mxu0 %v1473
    %6542 = vmatprep.mubr.f32.mxu0 %v3083
    %6543 = vmatmul.mubr.f32.gmra.mxu0 %v3082
    %v6544 = vpop.f32.mrf.mxu0
    %v6545 = vadd.f32 %v6475, %v6544
    %v6546 = vpop.f32.mrf.mxu0
    %6547 = vdwg.mxu0
    %6548 = vmatprep.subr.mxu0 0.0
    %6549 = vmatpush1.msra.mxu0 %v1504
    %6550 = vmatprep.subr.mxu0 0.0
    %6551 = vmatpush1.msra.mxu0 %v1503
    %6552 = vmatprep.subr.mxu0 0.0
    %6553 = vmatpush1.msra.mxu0 %v1502
    %6554 = vmatprep.subr.mxu0 0.0
    %6555 = vmatpush1.msra.mxu0 %v1501
    %6556 = vmatprep.subr.mxu0 0.0
    %6557 = vmatpush1.msra.mxu0 %v1500
    %6558 = vmatprep.subr.mxu0 0.0
    %6559 = vmatpush1.msra.mxu0 %v1499
    %6560 = vmatprep.subr.mxu0 0.0
    %6561 = vmatpush1.msra.mxu0 %v1498
    %6562 = vmatprep.subr.mxu0 0.0
    %6563 = vmatpush1.msra.mxu0 %v1497
    %6564 = vmatprep.subr.mxu0 0.0
    %6565 = vmatpush1.msra.mxu0 %v1496
    %6566 = vmatprep.subr.mxu0 0.0
    %6567 = vmatpush1.msra.mxu0 %v1495
    %6568 = vmatprep.subr.mxu0 0.0
    %6569 = vmatpush1.msra.mxu0 %v1494
    %6570 = vmatprep.subr.mxu0 0.0
    %6571 = vmatpush1.msra.mxu0 %v1493
    %6572 = vmatprep.subr.mxu0 0.0
    %6573 = vmatpush1.msra.mxu0 %v1492
    %6574 = vmatprep.subr.mxu0 0.0
    %6575 = vmatpush1.msra.mxu0 %v1491
    %6576 = vmatprep.subr.mxu0 0.0
    %6577 = vmatpush1.msra.mxu0 %v1490
    %6578 = vmatprep.subr.mxu0 0.0
    %6579 = vmatpush1.msra.mxu0 %v1489
    %6580 = vmatprep.subr.mxu0 0.0
    %6581 = vmatpush2.msra.mxu0 %v1520
    %6582 = vmatprep.subr.mxu0 0.0
    %6583 = vmatpush2.msra.mxu0 %v1519
    %6584 = vmatprep.subr.mxu0 0.0
    %6585 = vmatpush2.msra.mxu0 %v1518
    %6586 = vmatprep.subr.mxu0 0.0
    %6587 = vmatpush2.msra.mxu0 %v1517
    %6588 = vmatprep.subr.mxu0 0.0
    %6589 = vmatpush2.msra.mxu0 %v1516
    %6590 = vmatprep.subr.mxu0 0.0
    %6591 = vmatpush2.msra.mxu0 %v1515
    %6592 = vmatprep.subr.mxu0 0.0
    %6593 = vmatpush2.msra.mxu0 %v1514
    %6594 = vmatprep.subr.mxu0 0.0
    %6595 = vmatpush2.msra.mxu0 %v1513
    %6596 = vmatprep.subr.mxu0 0.0
    %6597 = vmatpush2.msra.mxu0 %v1512
    %6598 = vmatprep.subr.mxu0 0.0
    %6599 = vmatpush2.msra.mxu0 %v1511
    %6600 = vmatprep.subr.mxu0 0.0
    %6601 = vmatpush2.msra.mxu0 %v1510
    %6602 = vmatprep.subr.mxu0 0.0
    %6603 = vmatpush2.msra.mxu0 %v1509
    %6604 = vmatprep.subr.mxu0 0.0
    %6605 = vmatpush2.msra.mxu0 %v1508
    %6606 = vmatprep.subr.mxu0 0.0
    %6607 = vmatpush2.msra.mxu0 %v1507
    %6608 = vmatprep.subr.mxu0 0.0
    %6609 = vmatpush2.msra.mxu0 %v1506
    %6610 = vmatprep.subr.mxu0 0.0
    %6611 = vmatpush2.msra.mxu0 %v1505
    %6612 = vmatprep.mubr.f32.mxu0 %v3117
    %6613 = vmatmul.mubr.f32.gmra.mxu0 %v3116
    %v6614 = vpop.f32.mrf.mxu0
    %v6615 = vadd.f32 %v6545, %v6614
    %v6616 = vpop.f32.mrf.mxu0
    %6617 = vdwg.mxu0
    %6618 = vmatprep.subr.mxu0 0.0
    %6619 = vmatpush1.msra.mxu0 %v1536
    %6620 = vmatprep.subr.mxu0 0.0
    %6621 = vmatpush1.msra.mxu0 %v1535
    %6622 = vmatprep.subr.mxu0 0.0
    %6623 = vmatpush1.msra.mxu0 %v1534
    %6624 = vmatprep.subr.mxu0 0.0
    %6625 = vmatpush1.msra.mxu0 %v1533
    %6626 = vmatprep.subr.mxu0 0.0
    %6627 = vmatpush1.msra.mxu0 %v1532
    %6628 = vmatprep.subr.mxu0 0.0
    %6629 = vmatpush1.msra.mxu0 %v1531
    %6630 = vmatprep.subr.mxu0 0.0
    %6631 = vmatpush1.msra.mxu0 %v1530
    %6632 = vmatprep.subr.mxu0 0.0
    %6633 = vmatpush1.msra.mxu0 %v1529
    %6634 = vmatprep.subr.mxu0 0.0
    %6635 = vmatpush1.msra.mxu0 %v1528
    %6636 = vmatprep.subr.mxu0 0.0
    %6637 = vmatpush1.msra.mxu0 %v1527
    %6638 = vmatprep.subr.mxu0 0.0
    %6639 = vmatpush1.msra.mxu0 %v1526
    %6640 = vmatprep.subr.mxu0 0.0
    %6641 = vmatpush1.msra.mxu0 %v1525
    %6642 = vmatprep.subr.mxu0 0.0
    %6643 = vmatpush1.msra.mxu0 %v1524
    %6644 = vmatprep.subr.mxu0 0.0
    %6645 = vmatpush1.msra.mxu0 %v1523
    %6646 = vmatprep.subr.mxu0 0.0
    %6647 = vmatpush1.msra.mxu0 %v1522
    %6648 = vmatprep.subr.mxu0 0.0
    %6649 = vmatpush1.msra.mxu0 %v1521
    %6650 = vmatprep.subr.mxu0 0.0
    %6651 = vmatpush2.msra.mxu0 %v1552
    %6652 = vmatprep.subr.mxu0 0.0
    %6653 = vmatpush2.msra.mxu0 %v1551
    %6654 = vmatprep.subr.mxu0 0.0
    %6655 = vmatpush2.msra.mxu0 %v1550
    %6656 = vmatprep.subr.mxu0 0.0
    %6657 = vmatpush2.msra.mxu0 %v1549
    %6658 = vmatprep.subr.mxu0 0.0
    %6659 = vmatpush2.msra.mxu0 %v1548
    %6660 = vmatprep.subr.mxu0 0.0
    %6661 = vmatpush2.msra.mxu0 %v1547
    %6662 = vmatprep.subr.mxu0 0.0
    %6663 = vmatpush2.msra.mxu0 %v1546
    %6664 = vmatprep.subr.mxu0 0.0
    %6665 = vmatpush2.msra.mxu0 %v1545
    %6666 = vmatprep.subr.mxu0 0.0
    %6667 = vmatpush2.msra.mxu0 %v1544
    %6668 = vmatprep.subr.mxu0 0.0
    %6669 = vmatpush2.msra.mxu0 %v1543
    %6670 = vmatprep.subr.mxu0 0.0
    %6671 = vmatpush2.msra.mxu0 %v1542
    %6672 = vmatprep.subr.mxu0 0.0
    %6673 = vmatpush2.msra.mxu0 %v1541
    %6674 = vmatprep.subr.mxu0 0.0
    %6675 = vmatpush2.msra.mxu0 %v1540
    %6676 = vmatprep.subr.mxu0 0.0
    %6677 = vmatpush2.msra.mxu0 %v1539
    %6678 = vmatprep.subr.mxu0 0.0
    %6679 = vmatpush2.msra.mxu0 %v1538
    %6680 = vmatprep.subr.mxu0 0.0
    %6681 = vmatpush2.msra.mxu0 %v1537
    %6682 = vmatprep.mubr.f32.mxu0 %v3119
    %6683 = vmatmul.mubr.f32.gmra.mxu0 %v3118
    %v6684 = vpop.f32.mrf.mxu0
    %v6685 = vadd.f32 %v6615, %v6684
    %v6686 = vpop.f32.mrf.mxu0
    %6687 = vdwg.mxu0
    %6688 = vmatprep.subr.mxu0 0.0
    %6689 = vmatpush1.msra.mxu0 %v1568
    %6690 = vmatprep.subr.mxu0 0.0
    %6691 = vmatpush1.msra.mxu0 %v1567
    %6692 = vmatprep.subr.mxu0 0.0
    %6693 = vmatpush1.msra.mxu0 %v1566
    %6694 = vmatprep.subr.mxu0 0.0
    %6695 = vmatpush1.msra.mxu0 %v1565
    %6696 = vmatprep.subr.mxu0 0.0
    %6697 = vmatpush1.msra.mxu0 %v1564
    %6698 = vmatprep.subr.mxu0 0.0
    %6699 = vmatpush1.msra.mxu0 %v1563
    %6700 = vmatprep.subr.mxu0 0.0
    %6701 = vmatpush1.msra.mxu0 %v1562
    %6702 = vmatprep.subr.mxu0 0.0
    %6703 = vmatpush1.msra.mxu0 %v1561
    %6704 = vmatprep.subr.mxu0 0.0
    %6705 = vmatpush1.msra.mxu0 %v1560
    %6706 = vmatprep.subr.mxu0 0.0
    %6707 = vmatpush1.msra.mxu0 %v1559
    %6708 = vmatprep.subr.mxu0 0.0
    %6709 = vmatpush1.msra.mxu0 %v1558
    %6710 = vmatprep.subr.mxu0 0.0
    %6711 = vmatpush1.msra.mxu0 %v1557
    %6712 = vmatprep.subr.mxu0 0.0
    %6713 = vmatpush1.msra.mxu0 %v1556
    %6714 = vmatprep.subr.mxu0 0.0
    %6715 = vmatpush1.msra.mxu0 %v1555
    %6716 = vmatprep.subr.mxu0 0.0
    %6717 = vmatpush1.msra.mxu0 %v1554
    %6718 = vmatprep.subr.mxu0 0.0
    %6719 = vmatpush1.msra.mxu0 %v1553
    %6720 = vmatprep.subr.mxu0 0.0
    %6721 = vmatpush2.msra.mxu0 %v1584
    %6722 = vmatprep.subr.mxu0 0.0
    %6723 = vmatpush2.msra.mxu0 %v1583
    %6724 = vmatprep.subr.mxu0 0.0
    %6725 = vmatpush2.msra.mxu0 %v1582
    %6726 = vmatprep.subr.mxu0 0.0
    %6727 = vmatpush2.msra.mxu0 %v1581
    %6728 = vmatprep.subr.mxu0 0.0
    %6729 = vmatpush2.msra.mxu0 %v1580
    %6730 = vmatprep.subr.mxu0 0.0
    %6731 = vmatpush2.msra.mxu0 %v1579
    %6732 = vmatprep.subr.mxu0 0.0
    %6733 = vmatpush2.msra.mxu0 %v1578
    %6734 = vmatprep.subr.mxu0 0.0
    %6735 = vmatpush2.msra.mxu0 %v1577
    %6736 = vmatprep.subr.mxu0 0.0
    %6737 = vmatpush2.msra.mxu0 %v1576
    %6738 = vmatprep.subr.mxu0 0.0
    %6739 = vmatpush2.msra.mxu0 %v1575
    %6740 = vmatprep.subr.mxu0 0.0
    %6741 = vmatpush2.msra.mxu0 %v1574
    %6742 = vmatprep.subr.mxu0 0.0
    %6743 = vmatpush2.msra.mxu0 %v1573
    %6744 = vmatprep.subr.mxu0 0.0
    %6745 = vmatpush2.msra.mxu0 %v1572
    %6746 = vmatprep.subr.mxu0 0.0
    %6747 = vmatpush2.msra.mxu0 %v1571
    %6748 = vmatprep.subr.mxu0 0.0
    %6749 = vmatpush2.msra.mxu0 %v1570
    %6750 = vmatprep.subr.mxu0 0.0
    %6751 = vmatpush2.msra.mxu0 %v1569
    %6752 = vmatprep.mubr.f32.mxu0 %v3153
    %6753 = vmatmul.mubr.f32.gmra.mxu0 %v3152
    %v6754 = vpop.f32.mrf.mxu0
    %v6755 = vadd.f32 %v6685, %v6754
    %v6756 = vpop.f32.mrf.mxu0
    %6757 = vdwg.mxu0
    %6758 = vmatprep.subr.mxu0 0.0
    %6759 = vmatpush1.msra.mxu0 %v1600
    %6760 = vmatprep.subr.mxu0 0.0
    %6761 = vmatpush1.msra.mxu0 %v1599
    %6762 = vmatprep.subr.mxu0 0.0
    %6763 = vmatpush1.msra.mxu0 %v1598
    %6764 = vmatprep.subr.mxu0 0.0
    %6765 = vmatpush1.msra.mxu0 %v1597
    %6766 = vmatprep.subr.mxu0 0.0
    %6767 = vmatpush1.msra.mxu0 %v1596
    %6768 = vmatprep.subr.mxu0 0.0
    %6769 = vmatpush1.msra.mxu0 %v1595
    %6770 = vmatprep.subr.mxu0 0.0
    %6771 = vmatpush1.msra.mxu0 %v1594
    %6772 = vmatprep.subr.mxu0 0.0
    %6773 = vmatpush1.msra.mxu0 %v1593
    %6774 = vmatprep.subr.mxu0 0.0
    %6775 = vmatpush1.msra.mxu0 %v1592
    %6776 = vmatprep.subr.mxu0 0.0
    %6777 = vmatpush1.msra.mxu0 %v1591
    %6778 = vmatprep.subr.mxu0 0.0
    %6779 = vmatpush1.msra.mxu0 %v1590
    %6780 = vmatprep.subr.mxu0 0.0
    %6781 = vmatpush1.msra.mxu0 %v1589
    %6782 = vmatprep.subr.mxu0 0.0
    %6783 = vmatpush1.msra.mxu0 %v1588
    %6784 = vmatprep.subr.mxu0 0.0
    %6785 = vmatpush1.msra.mxu0 %v1587
    %6786 = vmatprep.subr.mxu0 0.0
    %6787 = vmatpush1.msra.mxu0 %v1586
    %6788 = vmatprep.subr.mxu0 0.0
    %6789 = vmatpush1.msra.mxu0 %v1585
    %6790 = vmatprep.subr.mxu0 0.0
    %6791 = vmatpush2.msra.mxu0 %v1616
    %6792 = vmatprep.subr.mxu0 0.0
    %6793 = vmatpush2.msra.mxu0 %v1615
    %6794 = vmatprep.subr.mxu0 0.0
    %6795 = vmatpush2.msra.mxu0 %v1614
    %6796 = vmatprep.subr.mxu0 0.0
    %6797 = vmatpush2.msra.mxu0 %v1613
    %6798 = vmatprep.subr.mxu0 0.0
    %6799 = vmatpush2.msra.mxu0 %v1612
    %6800 = vmatprep.subr.mxu0 0.0
    %6801 = vmatpush2.msra.mxu0 %v1611
    %6802 = vmatprep.subr.mxu0 0.0
    %6803 = vmatpush2.msra.mxu0 %v1610
    %6804 = vmatprep.subr.mxu0 0.0
    %6805 = vmatpush2.msra.mxu0 %v1609
    %6806 = vmatprep.subr.mxu0 0.0
    %6807 = vmatpush2.msra.mxu0 %v1608
    %6808 = vmatprep.subr.mxu0 0.0
    %6809 = vmatpush2.msra.mxu0 %v1607
    %6810 = vmatprep.subr.mxu0 0.0
    %6811 = vmatpush2.msra.mxu0 %v1606
    %6812 = vmatprep.subr.mxu0 0.0
    %6813 = vmatpush2.msra.mxu0 %v1605
    %6814 = vmatprep.subr.mxu0 0.0
    %6815 = vmatpush2.msra.mxu0 %v1604
    %6816 = vmatprep.subr.mxu0 0.0
    %6817 = vmatpush2.msra.mxu0 %v1603
    %6818 = vmatprep.subr.mxu0 0.0
    %6819 = vmatpush2.msra.mxu0 %v1602
    %6820 = vmatprep.subr.mxu0 0.0
    %6821 = vmatpush2.msra.mxu0 %v1601
    %6822 = vmatprep.mubr.f32.mxu0 %v3155
    %6823 = vmatmul.mubr.f32.gmra.mxu0 %v3154
    %v6824 = vpop.f32.mrf.mxu0
    %v6825 = vadd.f32 %v6755, %v6824
    %v6826 = vpop.f32.mrf.mxu0
    %6827 = vdwg.mxu0
    %6828 = vmatprep.subr.mxu0 0.0
    %6829 = vmatpush1.msra.mxu0 %v1632
    %6830 = vmatprep.subr.mxu0 0.0
    %6831 = vmatpush1.msra.mxu0 %v1631
    %6832 = vmatprep.subr.mxu0 0.0
    %6833 = vmatpush1.msra.mxu0 %v1630
    %6834 = vmatprep.subr.mxu0 0.0
    %6835 = vmatpush1.msra.mxu0 %v1629
    %6836 = vmatprep.subr.mxu0 0.0
    %6837 = vmatpush1.msra.mxu0 %v1628
    %6838 = vmatprep.subr.mxu0 0.0
    %6839 = vmatpush1.msra.mxu0 %v1627
    %6840 = vmatprep.subr.mxu0 0.0
    %6841 = vmatpush1.msra.mxu0 %v1626
    %6842 = vmatprep.subr.mxu0 0.0
    %6843 = vmatpush1.msra.mxu0 %v1625
    %6844 = vmatprep.subr.mxu0 0.0
    %6845 = vmatpush1.msra.mxu0 %v1624
    %6846 = vmatprep.subr.mxu0 0.0
    %6847 = vmatpush1.msra.mxu0 %v1623
    %6848 = vmatprep.subr.mxu0 0.0
    %6849 = vmatpush1.msra.mxu0 %v1622
    %6850 = vmatprep.subr.mxu0 0.0
    %6851 = vmatpush1.msra.mxu0 %v1621
    %6852 = vmatprep.subr.mxu0 0.0
    %6853 = vmatpush1.msra.mxu0 %v1620
    %6854 = vmatprep.subr.mxu0 0.0
    %6855 = vmatpush1.msra.mxu0 %v1619
    %6856 = vmatprep.subr.mxu0 0.0
    %6857 = vmatpush1.msra.mxu0 %v1618
    %6858 = vmatprep.subr.mxu0 0.0
    %6859 = vmatpush1.msra.mxu0 %v1617
    %6860 = vmatprep.subr.mxu0 0.0
    %6861 = vmatpush2.msra.mxu0 %v1648
    %6862 = vmatprep.subr.mxu0 0.0
    %6863 = vmatpush2.msra.mxu0 %v1647
    %6864 = vmatprep.subr.mxu0 0.0
    %6865 = vmatpush2.msra.mxu0 %v1646
    %6866 = vmatprep.subr.mxu0 0.0
    %6867 = vmatpush2.msra.mxu0 %v1645
    %6868 = vmatprep.subr.mxu0 0.0
    %6869 = vmatpush2.msra.mxu0 %v1644
    %6870 = vmatprep.subr.mxu0 0.0
    %6871 = vmatpush2.msra.mxu0 %v1643
    %6872 = vmatprep.subr.mxu0 0.0
    %6873 = vmatpush2.msra.mxu0 %v1642
    %6874 = vmatprep.subr.mxu0 0.0
    %6875 = vmatpush2.msra.mxu0 %v1641
    %6876 = vmatprep.subr.mxu0 0.0
    %6877 = vmatpush2.msra.mxu0 %v1640
    %6878 = vmatprep.subr.mxu0 0.0
    %6879 = vmatpush2.msra.mxu0 %v1639
    %6880 = vmatprep.subr.mxu0 0.0
    %6881 = vmatpush2.msra.mxu0 %v1638
    %6882 = vmatprep.subr.mxu0 0.0
    %6883 = vmatpush2.msra.mxu0 %v1637
    %6884 = vmatprep.subr.mxu0 0.0
    %6885 = vmatpush2.msra.mxu0 %v1636
    %6886 = vmatprep.subr.mxu0 0.0
    %6887 = vmatpush2.msra.mxu0 %v1635
    %6888 = vmatprep.subr.mxu0 0.0
    %6889 = vmatpush2.msra.mxu0 %v1634
    %6890 = vmatprep.subr.mxu0 0.0
    %6891 = vmatpush2.msra.mxu0 %v1633
    %6892 = vmatprep.mubr.f32.mxu0 %v3189
    %6893 = vmatmul.mubr.f32.gmra.mxu0 %v3188
    %v6894 = vpop.f32.mrf.mxu0
    %v6895 = vadd.f32 %v6825, %v6894
    %v6896 = vpop.f32.mrf.mxu0
    %6897 = vdwg.mxu0
    %6898 = vmatprep.subr.mxu0 0.0
    %6899 = vmatpush1.msra.mxu0 %v1664
    %6900 = vmatprep.subr.mxu0 0.0
    %6901 = vmatpush1.msra.mxu0 %v1663
    %6902 = vmatprep.subr.mxu0 0.0
    %6903 = vmatpush1.msra.mxu0 %v1662
    %6904 = vmatprep.subr.mxu0 0.0
    %6905 = vmatpush1.msra.mxu0 %v1661
    %6906 = vmatprep.subr.mxu0 0.0
    %6907 = vmatpush1.msra.mxu0 %v1660
    %6908 = vmatprep.subr.mxu0 0.0
    %6909 = vmatpush1.msra.mxu0 %v1659
    %6910 = vmatprep.subr.mxu0 0.0
    %6911 = vmatpush1.msra.mxu0 %v1658
    %6912 = vmatprep.subr.mxu0 0.0
    %6913 = vmatpush1.msra.mxu0 %v1657
    %6914 = vmatprep.subr.mxu0 0.0
    %6915 = vmatpush1.msra.mxu0 %v1656
    %6916 = vmatprep.subr.mxu0 0.0
    %6917 = vmatpush1.msra.mxu0 %v1655
    %6918 = vmatprep.subr.mxu0 0.0
    %6919 = vmatpush1.msra.mxu0 %v1654
    %6920 = vmatprep.subr.mxu0 0.0
    %6921 = vmatpush1.msra.mxu0 %v1653
    %6922 = vmatprep.subr.mxu0 0.0
    %6923 = vmatpush1.msra.mxu0 %v1652
    %6924 = vmatprep.subr.mxu0 0.0
    %6925 = vmatpush1.msra.mxu0 %v1651
    %6926 = vmatprep.subr.mxu0 0.0
    %6927 = vmatpush1.msra.mxu0 %v1650
    %6928 = vmatprep.subr.mxu0 0.0
    %6929 = vmatpush1.msra.mxu0 %v1649
    %6930 = vmatprep.subr.mxu0 0.0
    %6931 = vmatpush2.msra.mxu0 %v1680
    %6932 = vmatprep.subr.mxu0 0.0
    %6933 = vmatpush2.msra.mxu0 %v1679
    %6934 = vmatprep.subr.mxu0 0.0
    %6935 = vmatpush2.msra.mxu0 %v1678
    %6936 = vmatprep.subr.mxu0 0.0
    %6937 = vmatpush2.msra.mxu0 %v1677
    %6938 = vmatprep.subr.mxu0 0.0
    %6939 = vmatpush2.msra.mxu0 %v1676
    %6940 = vmatprep.subr.mxu0 0.0
    %6941 = vmatpush2.msra.mxu0 %v1675
    %6942 = vmatprep.subr.mxu0 0.0
    %6943 = vmatpush2.msra.mxu0 %v1674
    %6944 = vmatprep.subr.mxu0 0.0
    %6945 = vmatpush2.msra.mxu0 %v1673
    %6946 = vmatprep.subr.mxu0 0.0
    %6947 = vmatpush2.msra.mxu0 %v1672
    %6948 = vmatprep.subr.mxu0 0.0
    %6949 = vmatpush2.msra.mxu0 %v1671
    %6950 = vmatprep.subr.mxu0 0.0
    %6951 = vmatpush2.msra.mxu0 %v1670
    %6952 = vmatprep.subr.mxu0 0.0
    %6953 = vmatpush2.msra.mxu0 %v1669
    %6954 = vmatprep.subr.mxu0 0.0
    %6955 = vmatpush2.msra.mxu0 %v1668
    %6956 = vmatprep.subr.mxu0 0.0
    %6957 = vmatpush2.msra.mxu0 %v1667
    %6958 = vmatprep.subr.mxu0 0.0
    %6959 = vmatpush2.msra.mxu0 %v1666
    %6960 = vmatprep.subr.mxu0 0.0
    %6961 = vmatpush2.msra.mxu0 %v1665
    %6962 = vmatprep.mubr.f32.mxu0 %v3191
    %6963 = vmatmul.mubr.f32.gmra.mxu0 %v3190
    %v6964 = vpop.f32.mrf.mxu0
    %v6965 = vadd.f32 %v6895, %v6964
    %v6966 = vpop.f32.mrf.mxu0
    %6967 = vdwg.mxu0
    %6968 = vmatprep.subr.mxu0 0.0
    %6969 = vmatpush1.msra.mxu0 %v1696
    %6970 = vmatprep.subr.mxu0 0.0
    %6971 = vmatpush1.msra.mxu0 %v1695
    %6972 = vmatprep.subr.mxu0 0.0
    %6973 = vmatpush1.msra.mxu0 %v1694
    %6974 = vmatprep.subr.mxu0 0.0
    %6975 = vmatpush1.msra.mxu0 %v1693
    %6976 = vmatprep.subr.mxu0 0.0
    %6977 = vmatpush1.msra.mxu0 %v1692
    %6978 = vmatprep.subr.mxu0 0.0
    %6979 = vmatpush1.msra.mxu0 %v1691
    %6980 = vmatprep.subr.mxu0 0.0
    %6981 = vmatpush1.msra.mxu0 %v1690
    %6982 = vmatprep.subr.mxu0 0.0
    %6983 = vmatpush1.msra.mxu0 %v1689
    %6984 = vmatprep.subr.mxu0 0.0
    %6985 = vmatpush1.msra.mxu0 %v1688
    %6986 = vmatprep.subr.mxu0 0.0
    %6987 = vmatpush1.msra.mxu0 %v1687
    %6988 = vmatprep.subr.mxu0 0.0
    %6989 = vmatpush1.msra.mxu0 %v1686
    %6990 = vmatprep.subr.mxu0 0.0
    %6991 = vmatpush1.msra.mxu0 %v1685
    %6992 = vmatprep.subr.mxu0 0.0
    %6993 = vmatpush1.msra.mxu0 %v1684
    %6994 = vmatprep.subr.mxu0 0.0
    %6995 = vmatpush1.msra.mxu0 %v1683
    %6996 = vmatprep.subr.mxu0 0.0
    %6997 = vmatpush1.msra.mxu0 %v1682
    %6998 = vmatprep.subr.mxu0 0.0
    %6999 = vmatpush1.msra.mxu0 %v1681
    %7000 = vmatprep.subr.mxu0 0.0
    %7001 = vmatpush2.msra.mxu0 %v1712
    %7002 = vmatprep.subr.mxu0 0.0
    %7003 = vmatpush2.msra.mxu0 %v1711
    %7004 = vmatprep.subr.mxu0 0.0
    %7005 = vmatpush2.msra.mxu0 %v1710
    %7006 = vmatprep.subr.mxu0 0.0
    %7007 = vmatpush2.msra.mxu0 %v1709
    %7008 = vmatprep.subr.mxu0 0.0
    %7009 = vmatpush2.msra.mxu0 %v1708
    %7010 = vmatprep.subr.mxu0 0.0
    %7011 = vmatpush2.msra.mxu0 %v1707
    %7012 = vmatprep.subr.mxu0 0.0
    %7013 = vmatpush2.msra.mxu0 %v1706
    %7014 = vmatprep.subr.mxu0 0.0
    %7015 = vmatpush2.msra.mxu0 %v1705
    %7016 = vmatprep.subr.mxu0 0.0
    %7017 = vmatpush2.msra.mxu0 %v1704
    %7018 = vmatprep.subr.mxu0 0.0
    %7019 = vmatpush2.msra.mxu0 %v1703
    %7020 = vmatprep.subr.mxu0 0.0
    %7021 = vmatpush2.msra.mxu0 %v1702
    %7022 = vmatprep.subr.mxu0 0.0
    %7023 = vmatpush2.msra.mxu0 %v1701
    %7024 = vmatprep.subr.mxu0 0.0
    %7025 = vmatpush2.msra.mxu0 %v1700
    %7026 = vmatprep.subr.mxu0 0.0
    %7027 = vmatpush2.msra.mxu0 %v1699
    %7028 = vmatprep.subr.mxu0 0.0
    %7029 = vmatpush2.msra.mxu0 %v1698
    %7030 = vmatprep.subr.mxu0 0.0
    %7031 = vmatpush2.msra.mxu0 %v1697
    %7032 = vmatprep.mubr.f32.mxu0 %v3225
    %7033 = vmatmul.mubr.f32.gmra.mxu0 %v3224
    %v7034 = vpop.f32.mrf.mxu0
    %v7035 = vadd.f32 %v6965, %v7034
    %v7036 = vpop.f32.mrf.mxu0
    %7037 = vdwg.mxu0
    %7038 = vmatprep.subr.mxu0 0.0
    %7039 = vmatpush1.msra.mxu0 %v1728
    %7040 = vmatprep.subr.mxu0 0.0
    %7041 = vmatpush1.msra.mxu0 %v1727
    %7042 = vmatprep.subr.mxu0 0.0
    %7043 = vmatpush1.msra.mxu0 %v1726
    %7044 = vmatprep.subr.mxu0 0.0
    %7045 = vmatpush1.msra.mxu0 %v1725
    %7046 = vmatprep.subr.mxu0 0.0
    %7047 = vmatpush1.msra.mxu0 %v1724
    %7048 = vmatprep.subr.mxu0 0.0
    %7049 = vmatpush1.msra.mxu0 %v1723
    %7050 = vmatprep.subr.mxu0 0.0
    %7051 = vmatpush1.msra.mxu0 %v1722
    %7052 = vmatprep.subr.mxu0 0.0
    %7053 = vmatpush1.msra.mxu0 %v1721
    %7054 = vmatprep.subr.mxu0 0.0
    %7055 = vmatpush1.msra.mxu0 %v1720
    %7056 = vmatprep.subr.mxu0 0.0
    %7057 = vmatpush1.msra.mxu0 %v1719
    %7058 = vmatprep.subr.mxu0 0.0
    %7059 = vmatpush1.msra.mxu0 %v1718
    %7060 = vmatprep.subr.mxu0 0.0
    %7061 = vmatpush1.msra.mxu0 %v1717
    %7062 = vmatprep.subr.mxu0 0.0
    %7063 = vmatpush1.msra.mxu0 %v1716
    %7064 = vmatprep.subr.mxu0 0.0
    %7065 = vmatpush1.msra.mxu0 %v1715
    %7066 = vmatprep.subr.mxu0 0.0
    %7067 = vmatpush1.msra.mxu0 %v1714
    %7068 = vmatprep.subr.mxu0 0.0
    %7069 = vmatpush1.msra.mxu0 %v1713
    %7070 = vmatprep.subr.mxu0 0.0
    %7071 = vmatpush2.msra.mxu0 %v1744
    %7072 = vmatprep.subr.mxu0 0.0
    %7073 = vmatpush2.msra.mxu0 %v1743
    %7074 = vmatprep.subr.mxu0 0.0
    %7075 = vmatpush2.msra.mxu0 %v1742
    %7076 = vmatprep.subr.mxu0 0.0
    %7077 = vmatpush2.msra.mxu0 %v1741
    %7078 = vmatprep.subr.mxu0 0.0
    %7079 = vmatpush2.msra.mxu0 %v1740
    %7080 = vmatprep.subr.mxu0 0.0
    %7081 = vmatpush2.msra.mxu0 %v1739
    %7082 = vmatprep.subr.mxu0 0.0
    %7083 = vmatpush2.msra.mxu0 %v1738
    %7084 = vmatprep.subr.mxu0 0.0
    %7085 = vmatpush2.msra.mxu0 %v1737
    %7086 = vmatprep.subr.mxu0 0.0
    %7087 = vmatpush2.msra.mxu0 %v1736
    %7088 = vmatprep.subr.mxu0 0.0
    %7089 = vmatpush2.msra.mxu0 %v1735
    %7090 = vmatprep.subr.mxu0 0.0
    %7091 = vmatpush2.msra.mxu0 %v1734
    %7092 = vmatprep.subr.mxu0 0.0
    %7093 = vmatpush2.msra.mxu0 %v1733
    %7094 = vmatprep.subr.mxu0 0.0
    %7095 = vmatpush2.msra.mxu0 %v1732
    %7096 = vmatprep.subr.mxu0 0.0
    %7097 = vmatpush2.msra.mxu0 %v1731
    %7098 = vmatprep.subr.mxu0 0.0
    %7099 = vmatpush2.msra.mxu0 %v1730
    %7100 = vmatprep.subr.mxu0 0.0
    %7101 = vmatpush2.msra.mxu0 %v1729
    %7102 = vmatprep.mubr.f32.mxu0 %v3227
    %7103 = vmatmul.mubr.f32.gmra.mxu0 %v3226
    %v7104 = vpop.f32.mrf.mxu0
    %v7105 = vadd.f32 %v7035, %v7104
    %v7106 = vpop.f32.mrf.mxu0
    %7107 = vdwg.mxu0
    %7108 = vmatprep.subr.mxu0 0.0
    %7109 = vmatpush1.msra.mxu0 %v1760
    %7110 = vmatprep.subr.mxu0 0.0
    %7111 = vmatpush1.msra.mxu0 %v1759
    %7112 = vmatprep.subr.mxu0 0.0
    %7113 = vmatpush1.msra.mxu0 %v1758
    %7114 = vmatprep.subr.mxu0 0.0
    %7115 = vmatpush1.msra.mxu0 %v1757
    %7116 = vmatprep.subr.mxu0 0.0
    %7117 = vmatpush1.msra.mxu0 %v1756
    %7118 = vmatprep.subr.mxu0 0.0
    %7119 = vmatpush1.msra.mxu0 %v1755
    %7120 = vmatprep.subr.mxu0 0.0
    %7121 = vmatpush1.msra.mxu0 %v1754
    %7122 = vmatprep.subr.mxu0 0.0
    %7123 = vmatpush1.msra.mxu0 %v1753
    %7124 = vmatprep.subr.mxu0 0.0
    %7125 = vmatpush1.msra.mxu0 %v1752
    %7126 = vmatprep.subr.mxu0 0.0
    %7127 = vmatpush1.msra.mxu0 %v1751
    %7128 = vmatprep.subr.mxu0 0.0
    %7129 = vmatpush1.msra.mxu0 %v1750
    %7130 = vmatprep.subr.mxu0 0.0
    %7131 = vmatpush1.msra.mxu0 %v1749
    %7132 = vmatprep.subr.mxu0 0.0
    %7133 = vmatpush1.msra.mxu0 %v1748
    %7134 = vmatprep.subr.mxu0 0.0
    %7135 = vmatpush1.msra.mxu0 %v1747
    %7136 = vmatprep.subr.mxu0 0.0
    %7137 = vmatpush1.msra.mxu0 %v1746
    %7138 = vmatprep.subr.mxu0 0.0
    %7139 = vmatpush1.msra.mxu0 %v1745
    %7140 = vmatprep.subr.mxu0 0.0
    %7141 = vmatpush2.msra.mxu0 %v1776
    %7142 = vmatprep.subr.mxu0 0.0
    %7143 = vmatpush2.msra.mxu0 %v1775
    %7144 = vmatprep.subr.mxu0 0.0
    %7145 = vmatpush2.msra.mxu0 %v1774
    %7146 = vmatprep.subr.mxu0 0.0
    %7147 = vmatpush2.msra.mxu0 %v1773
    %7148 = vmatprep.subr.mxu0 0.0
    %7149 = vmatpush2.msra.mxu0 %v1772
    %7150 = vmatprep.subr.mxu0 0.0
    %7151 = vmatpush2.msra.mxu0 %v1771
    %7152 = vmatprep.subr.mxu0 0.0
    %7153 = vmatpush2.msra.mxu0 %v1770
    %7154 = vmatprep.subr.mxu0 0.0
    %7155 = vmatpush2.msra.mxu0 %v1769
    %7156 = vmatprep.subr.mxu0 0.0
    %7157 = vmatpush2.msra.mxu0 %v1768
    %7158 = vmatprep.subr.mxu0 0.0
    %7159 = vmatpush2.msra.mxu0 %v1767
    %7160 = vmatprep.subr.mxu0 0.0
    %7161 = vmatpush2.msra.mxu0 %v1766
    %7162 = vmatprep.subr.mxu0 0.0
    %7163 = vmatpush2.msra.mxu0 %v1765
    %7164 = vmatprep.subr.mxu0 0.0
    %7165 = vmatpush2.msra.mxu0 %v1764
    %7166 = vmatprep.subr.mxu0 0.0
    %7167 = vmatpush2.msra.mxu0 %v1763
    %7168 = vmatprep.subr.mxu0 0.0
    %7169 = vmatpush2.msra.mxu0 %v1762
    %7170 = vmatprep.subr.mxu0 0.0
    %7171 = vmatpush2.msra.mxu0 %v1761
    %7172 = vmatprep.mubr.f32.mxu0 %v3261
    %7173 = vmatmul.mubr.f32.gmra.mxu0 %v3260
    %v7174 = vpop.f32.mrf.mxu0
    %v7175 = vadd.f32 %v7105, %v7174
    %v7176 = vpop.f32.mrf.mxu0
    %7177 = vdwg.mxu0
    %7178 = vmatprep.subr.mxu0 0.0
    %7179 = vmatpush1.msra.mxu0 %v1792
    %7180 = vmatprep.subr.mxu0 0.0
    %7181 = vmatpush1.msra.mxu0 %v1791
    %7182 = vmatprep.subr.mxu0 0.0
    %7183 = vmatpush1.msra.mxu0 %v1790
    %7184 = vmatprep.subr.mxu0 0.0
    %7185 = vmatpush1.msra.mxu0 %v1789
    %7186 = vmatprep.subr.mxu0 0.0
    %7187 = vmatpush1.msra.mxu0 %v1788
    %7188 = vmatprep.subr.mxu0 0.0
    %7189 = vmatpush1.msra.mxu0 %v1787
    %7190 = vmatprep.subr.mxu0 0.0
    %7191 = vmatpush1.msra.mxu0 %v1786
    %7192 = vmatprep.subr.mxu0 0.0
    %7193 = vmatpush1.msra.mxu0 %v1785
    %7194 = vmatprep.subr.mxu0 0.0
    %7195 = vmatpush1.msra.mxu0 %v1784
    %7196 = vmatprep.subr.mxu0 0.0
    %7197 = vmatpush1.msra.mxu0 %v1783
    %7198 = vmatprep.subr.mxu0 0.0
    %7199 = vmatpush1.msra.mxu0 %v1782
    %7200 = vmatprep.subr.mxu0 0.0
    %7201 = vmatpush1.msra.mxu0 %v1781
    %7202 = vmatprep.subr.mxu0 0.0
    %7203 = vmatpush1.msra.mxu0 %v1780
    %7204 = vmatprep.subr.mxu0 0.0
    %7205 = vmatpush1.msra.mxu0 %v1779
    %7206 = vmatprep.subr.mxu0 0.0
    %7207 = vmatpush1.msra.mxu0 %v1778
    %7208 = vmatprep.subr.mxu0 0.0
    %7209 = vmatpush1.msra.mxu0 %v1777
    %7210 = vmatprep.subr.mxu0 0.0
    %7211 = vmatpush2.msra.mxu0 %v1808
    %7212 = vmatprep.subr.mxu0 0.0
    %7213 = vmatpush2.msra.mxu0 %v1807
    %7214 = vmatprep.subr.mxu0 0.0
    %7215 = vmatpush2.msra.mxu0 %v1806
    %7216 = vmatprep.subr.mxu0 0.0
    %7217 = vmatpush2.msra.mxu0 %v1805
    %7218 = vmatprep.subr.mxu0 0.0
    %7219 = vmatpush2.msra.mxu0 %v1804
    %7220 = vmatprep.subr.mxu0 0.0
    %7221 = vmatpush2.msra.mxu0 %v1803
    %7222 = vmatprep.subr.mxu0 0.0
    %7223 = vmatpush2.msra.mxu0 %v1802
    %7224 = vmatprep.subr.mxu0 0.0
    %7225 = vmatpush2.msra.mxu0 %v1801
    %7226 = vmatprep.subr.mxu0 0.0
    %7227 = vmatpush2.msra.mxu0 %v1800
    %7228 = vmatprep.subr.mxu0 0.0
    %7229 = vmatpush2.msra.mxu0 %v1799
    %7230 = vmatprep.subr.mxu0 0.0
    %7231 = vmatpush2.msra.mxu0 %v1798
    %7232 = vmatprep.subr.mxu0 0.0
    %7233 = vmatpush2.msra.mxu0 %v1797
    %7234 = vmatprep.subr.mxu0 0.0
    %7235 = vmatpush2.msra.mxu0 %v1796
    %7236 = vmatprep.subr.mxu0 0.0
    %7237 = vmatpush2.msra.mxu0 %v1795
    %7238 = vmatprep.subr.mxu0 0.0
    %7239 = vmatpush2.msra.mxu0 %v1794
    %7240 = vmatprep.subr.mxu0 0.0
    %7241 = vmatpush2.msra.mxu0 %v1793
    %7242 = vmatprep.mubr.f32.mxu0 %v3263
    %7243 = vmatmul.mubr.f32.gmra.mxu0 %v3262
    %v7244 = vpop.f32.mrf.mxu0
    %v7245 = vadd.f32 %v7175, %v7244
    %v7246 = vpop.f32.mrf.mxu0
    %7247 = vdwg.mxu0
    %7248 = vmatprep.subr.mxu0 0.0
    %7249 = vmatpush1.msra.mxu0 %v1824
    %7250 = vmatprep.subr.mxu0 0.0
    %7251 = vmatpush1.msra.mxu0 %v1823
    %7252 = vmatprep.subr.mxu0 0.0
    %7253 = vmatpush1.msra.mxu0 %v1822
    %7254 = vmatprep.subr.mxu0 0.0
    %7255 = vmatpush1.msra.mxu0 %v1821
    %7256 = vmatprep.subr.mxu0 0.0
    %7257 = vmatpush1.msra.mxu0 %v1820
    %7258 = vmatprep.subr.mxu0 0.0
    %7259 = vmatpush1.msra.mxu0 %v1819
    %7260 = vmatprep.subr.mxu0 0.0
    %7261 = vmatpush1.msra.mxu0 %v1818
    %7262 = vmatprep.subr.mxu0 0.0
    %7263 = vmatpush1.msra.mxu0 %v1817
    %7264 = vmatprep.subr.mxu0 0.0
    %7265 = vmatpush1.msra.mxu0 %v1816
    %7266 = vmatprep.subr.mxu0 0.0
    %7267 = vmatpush1.msra.mxu0 %v1815
    %7268 = vmatprep.subr.mxu0 0.0
    %7269 = vmatpush1.msra.mxu0 %v1814
    %7270 = vmatprep.subr.mxu0 0.0
    %7271 = vmatpush1.msra.mxu0 %v1813
    %7272 = vmatprep.subr.mxu0 0.0
    %7273 = vmatpush1.msra.mxu0 %v1812
    %7274 = vmatprep.subr.mxu0 0.0
    %7275 = vmatpush1.msra.mxu0 %v1811
    %7276 = vmatprep.subr.mxu0 0.0
    %7277 = vmatpush1.msra.mxu0 %v1810
    %7278 = vmatprep.subr.mxu0 0.0
    %7279 = vmatpush1.msra.mxu0 %v1809
    %7280 = vmatprep.subr.mxu0 0.0
    %7281 = vmatpush2.msra.mxu0 %v1840
    %7282 = vmatprep.subr.mxu0 0.0
    %7283 = vmatpush2.msra.mxu0 %v1839
    %7284 = vmatprep.subr.mxu0 0.0
    %7285 = vmatpush2.msra.mxu0 %v1838
    %7286 = vmatprep.subr.mxu0 0.0
    %7287 = vmatpush2.msra.mxu0 %v1837
    %7288 = vmatprep.subr.mxu0 0.0
    %7289 = vmatpush2.msra.mxu0 %v1836
    %7290 = vmatprep.subr.mxu0 0.0
    %7291 = vmatpush2.msra.mxu0 %v1835
    %7292 = vmatprep.subr.mxu0 0.0
    %7293 = vmatpush2.msra.mxu0 %v1834
    %7294 = vmatprep.subr.mxu0 0.0
    %7295 = vmatpush2.msra.mxu0 %v1833
    %7296 = vmatprep.subr.mxu0 0.0
    %7297 = vmatpush2.msra.mxu0 %v1832
    %7298 = vmatprep.subr.mxu0 0.0
    %7299 = vmatpush2.msra.mxu0 %v1831
    %7300 = vmatprep.subr.mxu0 0.0
    %7301 = vmatpush2.msra.mxu0 %v1830
    %7302 = vmatprep.subr.mxu0 0.0
    %7303 = vmatpush2.msra.mxu0 %v1829
    %7304 = vmatprep.subr.mxu0 0.0
    %7305 = vmatpush2.msra.mxu0 %v1828
    %7306 = vmatprep.subr.mxu0 0.0
    %7307 = vmatpush2.msra.mxu0 %v1827
    %7308 = vmatprep.subr.mxu0 0.0
    %7309 = vmatpush2.msra.mxu0 %v1826
    %7310 = vmatprep.subr.mxu0 0.0
    %7311 = vmatpush2.msra.mxu0 %v1825
    %7312 = vmatprep.mubr.f32.mxu0 %v3297
    %7313 = vmatmul.mubr.f32.gmra.mxu0 %v3296
    %v7314 = vpop.f32.mrf.mxu0
    %v7315 = vadd.f32 %v7245, %v7314
    %v7316 = vpop.f32.mrf.mxu0
    %7317 = vdwg.mxu0
    %7318 = vmatprep.subr.mxu0 0.0
    %7319 = vmatpush1.msra.mxu0 %v1856
    %7320 = vmatprep.subr.mxu0 0.0
    %7321 = vmatpush1.msra.mxu0 %v1855
    %7322 = vmatprep.subr.mxu0 0.0
    %7323 = vmatpush1.msra.mxu0 %v1854
    %7324 = vmatprep.subr.mxu0 0.0
    %7325 = vmatpush1.msra.mxu0 %v1853
    %7326 = vmatprep.subr.mxu0 0.0
    %7327 = vmatpush1.msra.mxu0 %v1852
    %7328 = vmatprep.subr.mxu0 0.0
    %7329 = vmatpush1.msra.mxu0 %v1851
    %7330 = vmatprep.subr.mxu0 0.0
    %7331 = vmatpush1.msra.mxu0 %v1850
    %7332 = vmatprep.subr.mxu0 0.0
    %7333 = vmatpush1.msra.mxu0 %v1849
    %7334 = vmatprep.subr.mxu0 0.0
    %7335 = vmatpush1.msra.mxu0 %v1848
    %7336 = vmatprep.subr.mxu0 0.0
    %7337 = vmatpush1.msra.mxu0 %v1847
    %7338 = vmatprep.subr.mxu0 0.0
    %7339 = vmatpush1.msra.mxu0 %v1846
    %7340 = vmatprep.subr.mxu0 0.0
    %7341 = vmatpush1.msra.mxu0 %v1845
    %7342 = vmatprep.subr.mxu0 0.0
    %7343 = vmatpush1.msra.mxu0 %v1844
    %7344 = vmatprep.subr.mxu0 0.0
    %7345 = vmatpush1.msra.mxu0 %v1843
    %7346 = vmatprep.subr.mxu0 0.0
    %7347 = vmatpush1.msra.mxu0 %v1842
    %7348 = vmatprep.subr.mxu0 0.0
    %7349 = vmatpush1.msra.mxu0 %v1841
    %7350 = vmatprep.subr.mxu0 0.0
    %7351 = vmatpush2.msra.mxu0 %v1872
    %7352 = vmatprep.subr.mxu0 0.0
    %7353 = vmatpush2.msra.mxu0 %v1871
    %7354 = vmatprep.subr.mxu0 0.0
    %7355 = vmatpush2.msra.mxu0 %v1870
    %7356 = vmatprep.subr.mxu0 0.0
    %7357 = vmatpush2.msra.mxu0 %v1869
    %7358 = vmatprep.subr.mxu0 0.0
    %7359 = vmatpush2.msra.mxu0 %v1868
    %7360 = vmatprep.subr.mxu0 0.0
    %7361 = vmatpush2.msra.mxu0 %v1867
    %7362 = vmatprep.subr.mxu0 0.0
    %7363 = vmatpush2.msra.mxu0 %v1866
    %7364 = vmatprep.subr.mxu0 0.0
    %7365 = vmatpush2.msra.mxu0 %v1865
    %7366 = vmatprep.subr.mxu0 0.0
    %7367 = vmatpush2.msra.mxu0 %v1864
    %7368 = vmatprep.subr.mxu0 0.0
    %7369 = vmatpush2.msra.mxu0 %v1863
    %7370 = vmatprep.subr.mxu0 0.0
    %7371 = vmatpush2.msra.mxu0 %v1862
    %7372 = vmatprep.subr.mxu0 0.0
    %7373 = vmatpush2.msra.mxu0 %v1861
    %7374 = vmatprep.subr.mxu0 0.0
    %7375 = vmatpush2.msra.mxu0 %v1860
    %7376 = vmatprep.subr.mxu0 0.0
    %7377 = vmatpush2.msra.mxu0 %v1859
    %7378 = vmatprep.subr.mxu0 0.0
    %7379 = vmatpush2.msra.mxu0 %v1858
    %7380 = vmatprep.subr.mxu0 0.0
    %7381 = vmatpush2.msra.mxu0 %v1857
    %7382 = vmatprep.mubr.f32.mxu0 %v3299
    %7383 = vmatmul.mubr.f32.gmra.mxu0 %v3298
    %v7384 = vpop.f32.mrf.mxu0
    %v7385 = vadd.f32 %v7315, %v7384
    %v7386 = vpop.f32.mrf.mxu0
    %7387 = vdwg.mxu0
    %7388 = vmatprep.subr.mxu0 0.0
    %7389 = vmatpush1.msra.mxu0 %v1888
    %7390 = vmatprep.subr.mxu0 0.0
    %7391 = vmatpush1.msra.mxu0 %v1887
    %7392 = vmatprep.subr.mxu0 0.0
    %7393 = vmatpush1.msra.mxu0 %v1886
    %7394 = vmatprep.subr.mxu0 0.0
    %7395 = vmatpush1.msra.mxu0 %v1885
    %7396 = vmatprep.subr.mxu0 0.0
    %7397 = vmatpush1.msra.mxu0 %v1884
    %7398 = vmatprep.subr.mxu0 0.0
    %7399 = vmatpush1.msra.mxu0 %v1883
    %7400 = vmatprep.subr.mxu0 0.0
    %7401 = vmatpush1.msra.mxu0 %v1882
    %7402 = vmatprep.subr.mxu0 0.0
    %7403 = vmatpush1.msra.mxu0 %v1881
    %7404 = vmatprep.subr.mxu0 0.0
    %7405 = vmatpush1.msra.mxu0 %v1880
    %7406 = vmatprep.subr.mxu0 0.0
    %7407 = vmatpush1.msra.mxu0 %v1879
    %7408 = vmatprep.subr.mxu0 0.0
    %7409 = vmatpush1.msra.mxu0 %v1878
    %7410 = vmatprep.subr.mxu0 0.0
    %7411 = vmatpush1.msra.mxu0 %v1877
    %7412 = vmatprep.subr.mxu0 0.0
    %7413 = vmatpush1.msra.mxu0 %v1876
    %7414 = vmatprep.subr.mxu0 0.0
    %7415 = vmatpush1.msra.mxu0 %v1875
    %7416 = vmatprep.subr.mxu0 0.0
    %7417 = vmatpush1.msra.mxu0 %v1874
    %7418 = vmatprep.subr.mxu0 0.0
    %7419 = vmatpush1.msra.mxu0 %v1873
    %7420 = vmatprep.subr.mxu0 0.0
    %7421 = vmatpush2.msra.mxu0 %v1904
    %7422 = vmatprep.subr.mxu0 0.0
    %7423 = vmatpush2.msra.mxu0 %v1903
    %7424 = vmatprep.subr.mxu0 0.0
    %7425 = vmatpush2.msra.mxu0 %v1902
    %7426 = vmatprep.subr.mxu0 0.0
    %7427 = vmatpush2.msra.mxu0 %v1901
    %7428 = vmatprep.subr.mxu0 0.0
    %7429 = vmatpush2.msra.mxu0 %v1900
    %7430 = vmatprep.subr.mxu0 0.0
    %7431 = vmatpush2.msra.mxu0 %v1899
    %7432 = vmatprep.subr.mxu0 0.0
    %7433 = vmatpush2.msra.mxu0 %v1898
    %7434 = vmatprep.subr.mxu0 0.0
    %7435 = vmatpush2.msra.mxu0 %v1897
    %7436 = vmatprep.subr.mxu0 0.0
    %7437 = vmatpush2.msra.mxu0 %v1896
    %7438 = vmatprep.subr.mxu0 0.0
    %7439 = vmatpush2.msra.mxu0 %v1895
    %7440 = vmatprep.subr.mxu0 0.0
    %7441 = vmatpush2.msra.mxu0 %v1894
    %7442 = vmatprep.subr.mxu0 0.0
    %7443 = vmatpush2.msra.mxu0 %v1893
    %7444 = vmatprep.subr.mxu0 0.0
    %7445 = vmatpush2.msra.mxu0 %v1892
    %7446 = vmatprep.subr.mxu0 0.0
    %7447 = vmatpush2.msra.mxu0 %v1891
    %7448 = vmatprep.subr.mxu0 0.0
    %7449 = vmatpush2.msra.mxu0 %v1890
    %7450 = vmatprep.subr.mxu0 0.0
    %7451 = vmatpush2.msra.mxu0 %v1889
    %7452 = vmatprep.mubr.f32.mxu0 %v3333
    %7453 = vmatmul.mubr.f32.gmra.mxu0 %v3332
    %v7454 = vpop.f32.mrf.mxu0
    %v7455 = vadd.f32 %v7385, %v7454
    %v7456 = vpop.f32.mrf.mxu0
    %7457 = vdwg.mxu0
    %7458 = vmatprep.subr.mxu0 0.0
    %7459 = vmatpush1.msra.mxu0 %v1920
    %7460 = vmatprep.subr.mxu0 0.0
    %7461 = vmatpush1.msra.mxu0 %v1919
    %7462 = vmatprep.subr.mxu0 0.0
    %7463 = vmatpush1.msra.mxu0 %v1918
    %7464 = vmatprep.subr.mxu0 0.0
    %7465 = vmatpush1.msra.mxu0 %v1917
    %7466 = vmatprep.subr.mxu0 0.0
    %7467 = vmatpush1.msra.mxu0 %v1916
    %7468 = vmatprep.subr.mxu0 0.0
    %7469 = vmatpush1.msra.mxu0 %v1915
    %7470 = vmatprep.subr.mxu0 0.0
    %7471 = vmatpush1.msra.mxu0 %v1914
    %7472 = vmatprep.subr.mxu0 0.0
    %7473 = vmatpush1.msra.mxu0 %v1913
    %7474 = vmatprep.subr.mxu0 0.0
    %7475 = vmatpush1.msra.mxu0 %v1912
    %7476 = vmatprep.subr.mxu0 0.0
    %7477 = vmatpush1.msra.mxu0 %v1911
    %7478 = vmatprep.subr.mxu0 0.0
    %7479 = vmatpush1.msra.mxu0 %v1910
    %7480 = vmatprep.subr.mxu0 0.0
    %7481 = vmatpush1.msra.mxu0 %v1909
    %7482 = vmatprep.subr.mxu0 0.0
    %7483 = vmatpush1.msra.mxu0 %v1908
    %7484 = vmatprep.subr.mxu0 0.0
    %7485 = vmatpush1.msra.mxu0 %v1907
    %7486 = vmatprep.subr.mxu0 0.0
    %7487 = vmatpush1.msra.mxu0 %v1906
    %7488 = vmatprep.subr.mxu0 0.0
    %7489 = vmatpush1.msra.mxu0 %v1905
    %7490 = vmatprep.subr.mxu0 0.0
    %7491 = vmatpush2.msra.mxu0 %v1936
    %7492 = vmatprep.subr.mxu0 0.0
    %7493 = vmatpush2.msra.mxu0 %v1935
    %7494 = vmatprep.subr.mxu0 0.0
    %7495 = vmatpush2.msra.mxu0 %v1934
    %7496 = vmatprep.subr.mxu0 0.0
    %7497 = vmatpush2.msra.mxu0 %v1933
    %7498 = vmatprep.subr.mxu0 0.0
    %7499 = vmatpush2.msra.mxu0 %v1932
    %7500 = vmatprep.subr.mxu0 0.0
    %7501 = vmatpush2.msra.mxu0 %v1931
    %7502 = vmatprep.subr.mxu0 0.0
    %7503 = vmatpush2.msra.mxu0 %v1930
    %7504 = vmatprep.subr.mxu0 0.0
    %7505 = vmatpush2.msra.mxu0 %v1929
    %7506 = vmatprep.subr.mxu0 0.0
    %7507 = vmatpush2.msra.mxu0 %v1928
    %7508 = vmatprep.subr.mxu0 0.0
    %7509 = vmatpush2.msra.mxu0 %v1927
    %7510 = vmatprep.subr.mxu0 0.0
    %7511 = vmatpush2.msra.mxu0 %v1926
    %7512 = vmatprep.subr.mxu0 0.0
    %7513 = vmatpush2.msra.mxu0 %v1925
    %7514 = vmatprep.subr.mxu0 0.0
    %7515 = vmatpush2.msra.mxu0 %v1924
    %7516 = vmatprep.subr.mxu0 0.0
    %7517 = vmatpush2.msra.mxu0 %v1923
    %7518 = vmatprep.subr.mxu0 0.0
    %7519 = vmatpush2.msra.mxu0 %v1922
    %7520 = vmatprep.subr.mxu0 0.0
    %7521 = vmatpush2.msra.mxu0 %v1921
    %7522 = vmatprep.mubr.f32.mxu0 %v3335
    %7523 = vmatmul.mubr.f32.gmra.mxu0 %v3334
    %v7524 = vpop.f32.mrf.mxu0
    %v7525 = vadd.f32 %v7455, %v7524
    %v7526 = vpop.f32.mrf.mxu0
    %7527 = vdwg.mxu0
    %7528 = vmatprep.subr.mxu0 0.0
    %7529 = vmatpush1.msra.mxu0 %v1952
    %7530 = vmatprep.subr.mxu0 0.0
    %7531 = vmatpush1.msra.mxu0 %v1951
    %7532 = vmatprep.subr.mxu0 0.0
    %7533 = vmatpush1.msra.mxu0 %v1950
    %7534 = vmatprep.subr.mxu0 0.0
    %7535 = vmatpush1.msra.mxu0 %v1949
    %7536 = vmatprep.subr.mxu0 0.0
    %7537 = vmatpush1.msra.mxu0 %v1948
    %7538 = vmatprep.subr.mxu0 0.0
    %7539 = vmatpush1.msra.mxu0 %v1947
    %7540 = vmatprep.subr.mxu0 0.0
    %7541 = vmatpush1.msra.mxu0 %v1946
    %7542 = vmatprep.subr.mxu0 0.0
    %7543 = vmatpush1.msra.mxu0 %v1945
    %7544 = vmatprep.subr.mxu0 0.0
    %7545 = vmatpush1.msra.mxu0 %v1944
    %7546 = vmatprep.subr.mxu0 0.0
    %7547 = vmatpush1.msra.mxu0 %v1943
    %7548 = vmatprep.subr.mxu0 0.0
    %7549 = vmatpush1.msra.mxu0 %v1942
    %7550 = vmatprep.subr.mxu0 0.0
    %7551 = vmatpush1.msra.mxu0 %v1941
    %7552 = vmatprep.subr.mxu0 0.0
    %7553 = vmatpush1.msra.mxu0 %v1940
    %7554 = vmatprep.subr.mxu0 0.0
    %7555 = vmatpush1.msra.mxu0 %v1939
    %7556 = vmatprep.subr.mxu0 0.0
    %7557 = vmatpush1.msra.mxu0 %v1938
    %7558 = vmatprep.subr.mxu0 0.0
    %7559 = vmatpush1.msra.mxu0 %v1937
    %7560 = vmatprep.subr.mxu0 0.0
    %7561 = vmatpush2.msra.mxu0 %v1968
    %7562 = vmatprep.subr.mxu0 0.0
    %7563 = vmatpush2.msra.mxu0 %v1967
    %7564 = vmatprep.subr.mxu0 0.0
    %7565 = vmatpush2.msra.mxu0 %v1966
    %7566 = vmatprep.subr.mxu0 0.0
    %7567 = vmatpush2.msra.mxu0 %v1965
    %7568 = vmatprep.subr.mxu0 0.0
    %7569 = vmatpush2.msra.mxu0 %v1964
    %7570 = vmatprep.subr.mxu0 0.0
    %7571 = vmatpush2.msra.mxu0 %v1963
    %7572 = vmatprep.subr.mxu0 0.0
    %7573 = vmatpush2.msra.mxu0 %v1962
    %7574 = vmatprep.subr.mxu0 0.0
    %7575 = vmatpush2.msra.mxu0 %v1961
    %7576 = vmatprep.subr.mxu0 0.0
    %7577 = vmatpush2.msra.mxu0 %v1960
    %7578 = vmatprep.subr.mxu0 0.0
    %7579 = vmatpush2.msra.mxu0 %v1959
    %7580 = vmatprep.subr.mxu0 0.0
    %7581 = vmatpush2.msra.mxu0 %v1958
    %7582 = vmatprep.subr.mxu0 0.0
    %7583 = vmatpush2.msra.mxu0 %v1957
    %7584 = vmatprep.subr.mxu0 0.0
    %7585 = vmatpush2.msra.mxu0 %v1956
    %7586 = vmatprep.subr.mxu0 0.0
    %7587 = vmatpush2.msra.mxu0 %v1955
    %7588 = vmatprep.subr.mxu0 0.0
    %7589 = vmatpush2.msra.mxu0 %v1954
    %7590 = vmatprep.subr.mxu0 0.0
    %7591 = vmatpush2.msra.mxu0 %v1953
    %7592 = vmatprep.mubr.f32.mxu0 %v3369
    %7593 = vmatmul.mubr.f32.gmra.mxu0 %v3368
    %v7594 = vpop.f32.mrf.mxu0
    %v7595 = vadd.f32 %v7525, %v7594
    %v7596 = vpop.f32.mrf.mxu0
    %7597 = vdwg.mxu0
    %7598 = vmatprep.subr.mxu0 0.0
    %7599 = vmatpush1.msra.mxu0 %v1984
    %7600 = vmatprep.subr.mxu0 0.0
    %7601 = vmatpush1.msra.mxu0 %v1983
    %7602 = vmatprep.subr.mxu0 0.0
    %7603 = vmatpush1.msra.mxu0 %v1982
    %7604 = vmatprep.subr.mxu0 0.0
    %7605 = vmatpush1.msra.mxu0 %v1981
    %7606 = vmatprep.subr.mxu0 0.0
    %7607 = vmatpush1.msra.mxu0 %v1980
    %7608 = vmatprep.subr.mxu0 0.0
    %7609 = vmatpush1.msra.mxu0 %v1979
    %7610 = vmatprep.subr.mxu0 0.0
    %7611 = vmatpush1.msra.mxu0 %v1978
    %7612 = vmatprep.subr.mxu0 0.0
    %7613 = vmatpush1.msra.mxu0 %v1977
    %7614 = vmatprep.subr.mxu0 0.0
    %7615 = vmatpush1.msra.mxu0 %v1976
    %7616 = vmatprep.subr.mxu0 0.0
    %7617 = vmatpush1.msra.mxu0 %v1975
    %7618 = vmatprep.subr.mxu0 0.0
    %7619 = vmatpush1.msra.mxu0 %v1974
    %7620 = vmatprep.subr.mxu0 0.0
    %7621 = vmatpush1.msra.mxu0 %v1973
    %7622 = vmatprep.subr.mxu0 0.0
    %7623 = vmatpush1.msra.mxu0 %v1972
    %7624 = vmatprep.subr.mxu0 0.0
    %7625 = vmatpush1.msra.mxu0 %v1971
    %7626 = vmatprep.subr.mxu0 0.0
    %7627 = vmatpush1.msra.mxu0 %v1970
    %7628 = vmatprep.subr.mxu0 0.0
    %7629 = vmatpush1.msra.mxu0 %v1969
    %7630 = vmatprep.subr.mxu0 0.0
    %7631 = vmatpush2.msra.mxu0 %v2000
    %7632 = vmatprep.subr.mxu0 0.0
    %7633 = vmatpush2.msra.mxu0 %v1999
    %7634 = vmatprep.subr.mxu0 0.0
    %7635 = vmatpush2.msra.mxu0 %v1998
    %7636 = vmatprep.subr.mxu0 0.0
    %7637 = vmatpush2.msra.mxu0 %v1997
    %7638 = vmatprep.subr.mxu0 0.0
    %7639 = vmatpush2.msra.mxu0 %v1996
    %7640 = vmatprep.subr.mxu0 0.0
    %7641 = vmatpush2.msra.mxu0 %v1995
    %7642 = vmatprep.subr.mxu0 0.0
    %7643 = vmatpush2.msra.mxu0 %v1994
    %7644 = vmatprep.subr.mxu0 0.0
    %7645 = vmatpush2.msra.mxu0 %v1993
    %7646 = vmatprep.subr.mxu0 0.0
    %7647 = vmatpush2.msra.mxu0 %v1992
    %7648 = vmatprep.subr.mxu0 0.0
    %7649 = vmatpush2.msra.mxu0 %v1991
    %7650 = vmatprep.subr.mxu0 0.0
    %7651 = vmatpush2.msra.mxu0 %v1990
    %7652 = vmatprep.subr.mxu0 0.0
    %7653 = vmatpush2.msra.mxu0 %v1989
    %7654 = vmatprep.subr.mxu0 0.0
    %7655 = vmatpush2.msra.mxu0 %v1988
    %7656 = vmatprep.subr.mxu0 0.0
    %7657 = vmatpush2.msra.mxu0 %v1987
    %7658 = vmatprep.subr.mxu0 0.0
    %7659 = vmatpush2.msra.mxu0 %v1986
    %7660 = vmatprep.subr.mxu0 0.0
    %7661 = vmatpush2.msra.mxu0 %v1985
    %7662 = vmatprep.mubr.f32.mxu0 %v3371
    %7663 = vmatmul.mubr.f32.gmra.mxu0 %v3370
    %v7664 = vpop.f32.mrf.mxu0
    %v7665 = vadd.f32 %v7595, %v7664
    %v7666 = vpop.f32.mrf.mxu0
    %7667 = vdwg.mxu0
    %7668 = vmatprep.subr.mxu0 0.0
    %7669 = vmatpush1.msra.mxu0 %v2016
    %7670 = vmatprep.subr.mxu0 0.0
    %7671 = vmatpush1.msra.mxu0 %v2015
    %7672 = vmatprep.subr.mxu0 0.0
    %7673 = vmatpush1.msra.mxu0 %v2014
    %7674 = vmatprep.subr.mxu0 0.0
    %7675 = vmatpush1.msra.mxu0 %v2013
    %7676 = vmatprep.subr.mxu0 0.0
    %7677 = vmatpush1.msra.mxu0 %v2012
    %7678 = vmatprep.subr.mxu0 0.0
    %7679 = vmatpush1.msra.mxu0 %v2011
    %7680 = vmatprep.subr.mxu0 0.0
    %7681 = vmatpush1.msra.mxu0 %v2010
    %7682 = vmatprep.subr.mxu0 0.0
    %7683 = vmatpush1.msra.mxu0 %v2009
    %7684 = vmatprep.subr.mxu0 0.0
    %7685 = vmatpush1.msra.mxu0 %v2008
    %7686 = vmatprep.subr.mxu0 0.0
    %7687 = vmatpush1.msra.mxu0 %v2007
    %7688 = vmatprep.subr.mxu0 0.0
    %7689 = vmatpush1.msra.mxu0 %v2006
    %7690 = vmatprep.subr.mxu0 0.0
    %7691 = vmatpush1.msra.mxu0 %v2005
    %7692 = vmatprep.subr.mxu0 0.0
    %7693 = vmatpush1.msra.mxu0 %v2004
    %7694 = vmatprep.subr.mxu0 0.0
    %7695 = vmatpush1.msra.mxu0 %v2003
    %7696 = vmatprep.subr.mxu0 0.0
    %7697 = vmatpush1.msra.mxu0 %v2002
    %7698 = vmatprep.subr.mxu0 0.0
    %7699 = vmatpush1.msra.mxu0 %v2001
    %7700 = vmatprep.subr.mxu0 0.0
    %7701 = vmatpush2.msra.mxu0 %v2032
    %7702 = vmatprep.subr.mxu0 0.0
    %7703 = vmatpush2.msra.mxu0 %v2031
    %7704 = vmatprep.subr.mxu0 0.0
    %7705 = vmatpush2.msra.mxu0 %v2030
    %7706 = vmatprep.subr.mxu0 0.0
    %7707 = vmatpush2.msra.mxu0 %v2029
    %7708 = vmatprep.subr.mxu0 0.0
    %7709 = vmatpush2.msra.mxu0 %v2028
    %7710 = vmatprep.subr.mxu0 0.0
    %7711 = vmatpush2.msra.mxu0 %v2027
    %7712 = vmatprep.subr.mxu0 0.0
    %7713 = vmatpush2.msra.mxu0 %v2026
    %7714 = vmatprep.subr.mxu0 0.0
    %7715 = vmatpush2.msra.mxu0 %v2025
    %7716 = vmatprep.subr.mxu0 0.0
    %7717 = vmatpush2.msra.mxu0 %v2024
    %7718 = vmatprep.subr.mxu0 0.0
    %7719 = vmatpush2.msra.mxu0 %v2023
    %7720 = vmatprep.subr.mxu0 0.0
    %7721 = vmatpush2.msra.mxu0 %v2022
    %7722 = vmatprep.subr.mxu0 0.0
    %7723 = vmatpush2.msra.mxu0 %v2021
    %7724 = vmatprep.subr.mxu0 0.0
    %7725 = vmatpush2.msra.mxu0 %v2020
    %7726 = vmatprep.subr.mxu0 0.0
    %7727 = vmatpush2.msra.mxu0 %v2019
    %7728 = vmatprep.subr.mxu0 0.0
    %7729 = vmatpush2.msra.mxu0 %v2018
    %7730 = vmatprep.subr.mxu0 0.0
    %7731 = vmatpush2.msra.mxu0 %v2017
    %7732 = vmatprep.mubr.f32.mxu0 %v3405
    %7733 = vmatmul.mubr.f32.gmra.mxu0 %v3404
    %v7734 = vpop.f32.mrf.mxu0
    %v7735 = vadd.f32 %v7665, %v7734
    %v7736 = vpop.f32.mrf.mxu0
    %7737 = vdwg.mxu0
    %7738 = vmatprep.subr.mxu0 0.0
    %7739 = vmatpush1.msra.mxu0 %v2048
    %7740 = vmatprep.subr.mxu0 0.0
    %7741 = vmatpush1.msra.mxu0 %v2047
    %7742 = vmatprep.subr.mxu0 0.0
    %7743 = vmatpush1.msra.mxu0 %v2046
    %7744 = vmatprep.subr.mxu0 0.0
    %7745 = vmatpush1.msra.mxu0 %v2045
    %7746 = vmatprep.subr.mxu0 0.0
    %7747 = vmatpush1.msra.mxu0 %v2044
    %7748 = vmatprep.subr.mxu0 0.0
    %7749 = vmatpush1.msra.mxu0 %v2043
    %7750 = vmatprep.subr.mxu0 0.0
    %7751 = vmatpush1.msra.mxu0 %v2042
    %7752 = vmatprep.subr.mxu0 0.0
    %7753 = vmatpush1.msra.mxu0 %v2041
    %7754 = vmatprep.subr.mxu0 0.0
    %7755 = vmatpush1.msra.mxu0 %v2040
    %7756 = vmatprep.subr.mxu0 0.0
    %7757 = vmatpush1.msra.mxu0 %v2039
    %7758 = vmatprep.subr.mxu0 0.0
    %7759 = vmatpush1.msra.mxu0 %v2038
    %7760 = vmatprep.subr.mxu0 0.0
    %7761 = vmatpush1.msra.mxu0 %v2037
    %7762 = vmatprep.subr.mxu0 0.0
    %7763 = vmatpush1.msra.mxu0 %v2036
    %7764 = vmatprep.subr.mxu0 0.0
    %7765 = vmatpush1.msra.mxu0 %v2035
    %7766 = vmatprep.subr.mxu0 0.0
    %7767 = vmatpush1.msra.mxu0 %v2034
    %7768 = vmatprep.subr.mxu0 0.0
    %7769 = vmatpush1.msra.mxu0 %v2033
    %7770 = vmatprep.subr.mxu0 0.0
    %7771 = vmatpush2.msra.mxu0 %v2064
    %7772 = vmatprep.subr.mxu0 0.0
    %7773 = vmatpush2.msra.mxu0 %v2063
    %7774 = vmatprep.subr.mxu0 0.0
    %7775 = vmatpush2.msra.mxu0 %v2062
    %7776 = vmatprep.subr.mxu0 0.0
    %7777 = vmatpush2.msra.mxu0 %v2061
    %7778 = vmatprep.subr.mxu0 0.0
    %7779 = vmatpush2.msra.mxu0 %v2060
    %7780 = vmatprep.subr.mxu0 0.0
    %7781 = vmatpush2.msra.mxu0 %v2059
    %7782 = vmatprep.subr.mxu0 0.0
    %7783 = vmatpush2.msra.mxu0 %v2058
    %7784 = vmatprep.subr.mxu0 0.0
    %7785 = vmatpush2.msra.mxu0 %v2057
    %7786 = vmatprep.subr.mxu0 0.0
    %7787 = vmatpush2.msra.mxu0 %v2056
    %7788 = vmatprep.subr.mxu0 0.0
    %7789 = vmatpush2.msra.mxu0 %v2055
    %7790 = vmatprep.subr.mxu0 0.0
    %7791 = vmatpush2.msra.mxu0 %v2054
    %7792 = vmatprep.subr.mxu0 0.0
    %7793 = vmatpush2.msra.mxu0 %v2053
    %7794 = vmatprep.subr.mxu0 0.0
    %7795 = vmatpush2.msra.mxu0 %v2052
    %7796 = vmatprep.subr.mxu0 0.0
    %7797 = vmatpush2.msra.mxu0 %v2051
    %7798 = vmatprep.subr.mxu0 0.0
    %7799 = vmatpush2.msra.mxu0 %v2050
    %7800 = vmatprep.subr.mxu0 0.0
    %7801 = vmatpush2.msra.mxu0 %v2049
    %7802 = vmatprep.mubr.f32.mxu0 %v3407
    %7803 = vmatmul.mubr.f32.gmra.mxu0 %v3406
    %v7804 = vpop.f32.mrf.mxu0
    %v7805 = vadd.f32 %v7735, %v7804
    %v7806 = vpop.f32.mrf.mxu0
    %7807 = vdwg.mxu0
    %7808 = vmatprep.subr.mxu0 0.0
    %7809 = vmatpush1.msra.mxu0 %v2080
    %7810 = vmatprep.subr.mxu0 0.0
    %7811 = vmatpush1.msra.mxu0 %v2079
    %7812 = vmatprep.subr.mxu0 0.0
    %7813 = vmatpush1.msra.mxu0 %v2078
    %7814 = vmatprep.subr.mxu0 0.0
    %7815 = vmatpush1.msra.mxu0 %v2077
    %7816 = vmatprep.subr.mxu0 0.0
    %7817 = vmatpush1.msra.mxu0 %v2076
    %7818 = vmatprep.subr.mxu0 0.0
    %7819 = vmatpush1.msra.mxu0 %v2075
    %7820 = vmatprep.subr.mxu0 0.0
    %7821 = vmatpush1.msra.mxu0 %v2074
    %7822 = vmatprep.subr.mxu0 0.0
    %7823 = vmatpush1.msra.mxu0 %v2073
    %7824 = vmatprep.subr.mxu0 0.0
    %7825 = vmatpush1.msra.mxu0 %v2072
    %7826 = vmatprep.subr.mxu0 0.0
    %7827 = vmatpush1.msra.mxu0 %v2071
    %7828 = vmatprep.subr.mxu0 0.0
    %7829 = vmatpush1.msra.mxu0 %v2070
    %7830 = vmatprep.subr.mxu0 0.0
    %7831 = vmatpush1.msra.mxu0 %v2069
    %7832 = vmatprep.subr.mxu0 0.0
    %7833 = vmatpush1.msra.mxu0 %v2068
    %7834 = vmatprep.subr.mxu0 0.0
    %7835 = vmatpush1.msra.mxu0 %v2067
    %7836 = vmatprep.subr.mxu0 0.0
    %7837 = vmatpush1.msra.mxu0 %v2066
    %7838 = vmatprep.subr.mxu0 0.0
    %7839 = vmatpush1.msra.mxu0 %v2065
    %7840 = vmatprep.subr.mxu0 0.0
    %7841 = vmatpush2.msra.mxu0 %v2096
    %7842 = vmatprep.subr.mxu0 0.0
    %7843 = vmatpush2.msra.mxu0 %v2095
    %7844 = vmatprep.subr.mxu0 0.0
    %7845 = vmatpush2.msra.mxu0 %v2094
    %7846 = vmatprep.subr.mxu0 0.0
    %7847 = vmatpush2.msra.mxu0 %v2093
    %7848 = vmatprep.subr.mxu0 0.0
    %7849 = vmatpush2.msra.mxu0 %v2092
    %7850 = vmatprep.subr.mxu0 0.0
    %7851 = vmatpush2.msra.mxu0 %v2091
    %7852 = vmatprep.subr.mxu0 0.0
    %7853 = vmatpush2.msra.mxu0 %v2090
    %7854 = vmatprep.subr.mxu0 0.0
    %7855 = vmatpush2.msra.mxu0 %v2089
    %7856 = vmatprep.subr.mxu0 0.0
    %7857 = vmatpush2.msra.mxu0 %v2088
    %7858 = vmatprep.subr.mxu0 0.0
    %7859 = vmatpush2.msra.mxu0 %v2087
    %7860 = vmatprep.subr.mxu0 0.0
    %7861 = vmatpush2.msra.mxu0 %v2086
    %7862 = vmatprep.subr.mxu0 0.0
    %7863 = vmatpush2.msra.mxu0 %v2085
    %7864 = vmatprep.subr.mxu0 0.0
    %7865 = vmatpush2.msra.mxu0 %v2084
    %7866 = vmatprep.subr.mxu0 0.0
    %7867 = vmatpush2.msra.mxu0 %v2083
    %7868 = vmatprep.subr.mxu0 0.0
    %7869 = vmatpush2.msra.mxu0 %v2082
    %7870 = vmatprep.subr.mxu0 0.0
    %7871 = vmatpush2.msra.mxu0 %v2081
    %7872 = vmatprep.mubr.f32.mxu0 %v3441
    %7873 = vmatmul.mubr.f32.gmra.mxu0 %v3440
    %v7874 = vpop.f32.mrf.mxu0
    %v7875 = vadd.f32 %v7805, %v7874
    %v7876 = vpop.f32.mrf.mxu0
    %7877 = vdwg.mxu0
    %7878 = vmatprep.subr.mxu0 0.0
    %7879 = vmatpush1.msra.mxu0 %v2112
    %7880 = vmatprep.subr.mxu0 0.0
    %7881 = vmatpush1.msra.mxu0 %v2111
    %7882 = vmatprep.subr.mxu0 0.0
    %7883 = vmatpush1.msra.mxu0 %v2110
    %7884 = vmatprep.subr.mxu0 0.0
    %7885 = vmatpush1.msra.mxu0 %v2109
    %7886 = vmatprep.subr.mxu0 0.0
    %7887 = vmatpush1.msra.mxu0 %v2108
    %7888 = vmatprep.subr.mxu0 0.0
    %7889 = vmatpush1.msra.mxu0 %v2107
    %7890 = vmatprep.subr.mxu0 0.0
    %7891 = vmatpush1.msra.mxu0 %v2106
    %7892 = vmatprep.subr.mxu0 0.0
    %7893 = vmatpush1.msra.mxu0 %v2105
    %7894 = vmatprep.subr.mxu0 0.0
    %7895 = vmatpush1.msra.mxu0 %v2104
    %7896 = vmatprep.subr.mxu0 0.0
    %7897 = vmatpush1.msra.mxu0 %v2103
    %7898 = vmatprep.subr.mxu0 0.0
    %7899 = vmatpush1.msra.mxu0 %v2102
    %7900 = vmatprep.subr.mxu0 0.0
    %7901 = vmatpush1.msra.mxu0 %v2101
    %7902 = vmatprep.subr.mxu0 0.0
    %7903 = vmatpush1.msra.mxu0 %v2100
    %7904 = vmatprep.subr.mxu0 0.0
    %7905 = vmatpush1.msra.mxu0 %v2099
    %7906 = vmatprep.subr.mxu0 0.0
    %7907 = vmatpush1.msra.mxu0 %v2098
    %7908 = vmatprep.subr.mxu0 0.0
    %7909 = vmatpush1.msra.mxu0 %v2097
    %7910 = vmatprep.subr.mxu0 0.0
    %7911 = vmatpush2.msra.mxu0 %v2128
    %7912 = vmatprep.subr.mxu0 0.0
    %7913 = vmatpush2.msra.mxu0 %v2127
    %7914 = vmatprep.subr.mxu0 0.0
    %7915 = vmatpush2.msra.mxu0 %v2126
    %7916 = vmatprep.subr.mxu0 0.0
    %7917 = vmatpush2.msra.mxu0 %v2125
    %7918 = vmatprep.subr.mxu0 0.0
    %7919 = vmatpush2.msra.mxu0 %v2124
    %7920 = vmatprep.subr.mxu0 0.0
    %7921 = vmatpush2.msra.mxu0 %v2123
    %7922 = vmatprep.subr.mxu0 0.0
    %7923 = vmatpush2.msra.mxu0 %v2122
    %7924 = vmatprep.subr.mxu0 0.0
    %7925 = vmatpush2.msra.mxu0 %v2121
    %7926 = vmatprep.subr.mxu0 0.0
    %7927 = vmatpush2.msra.mxu0 %v2120
    %7928 = vmatprep.subr.mxu0 0.0
    %7929 = vmatpush2.msra.mxu0 %v2119
    %7930 = vmatprep.subr.mxu0 0.0
    %7931 = vmatpush2.msra.mxu0 %v2118
    %7932 = vmatprep.subr.mxu0 0.0
    %7933 = vmatpush2.msra.mxu0 %v2117
    %7934 = vmatprep.subr.mxu0 0.0
    %7935 = vmatpush2.msra.mxu0 %v2116
    %7936 = vmatprep.subr.mxu0 0.0
    %7937 = vmatpush2.msra.mxu0 %v2115
    %7938 = vmatprep.subr.mxu0 0.0
    %7939 = vmatpush2.msra.mxu0 %v2114
    %7940 = vmatprep.subr.mxu0 0.0
    %7941 = vmatpush2.msra.mxu0 %v2113
    %7942 = vmatprep.mubr.f32.mxu0 %v3443
    %7943 = vmatmul.mubr.f32.gmra.mxu0 %v3442
    %v7944 = vpop.f32.mrf.mxu0
    %v7945 = vadd.f32 %v7875, %v7944
    %v7946 = vpop.f32.mrf.mxu0
    %7947 = vdwg.mxu0
    %7948 = vmatprep.subr.mxu0 0.0
    %7949 = vmatpush1.msra.mxu0 %v2144
    %7950 = vmatprep.subr.mxu0 0.0
    %7951 = vmatpush1.msra.mxu0 %v2143
    %7952 = vmatprep.subr.mxu0 0.0
    %7953 = vmatpush1.msra.mxu0 %v2142
    %7954 = vmatprep.subr.mxu0 0.0
    %7955 = vmatpush1.msra.mxu0 %v2141
    %7956 = vmatprep.subr.mxu0 0.0
    %7957 = vmatpush1.msra.mxu0 %v2140
    %7958 = vmatprep.subr.mxu0 0.0
    %7959 = vmatpush1.msra.mxu0 %v2139
    %7960 = vmatprep.subr.mxu0 0.0
    %7961 = vmatpush1.msra.mxu0 %v2138
    %7962 = vmatprep.subr.mxu0 0.0
    %7963 = vmatpush1.msra.mxu0 %v2137
    %7964 = vmatprep.subr.mxu0 0.0
    %7965 = vmatpush1.msra.mxu0 %v2136
    %7966 = vmatprep.subr.mxu0 0.0
    %7967 = vmatpush1.msra.mxu0 %v2135
    %7968 = vmatprep.subr.mxu0 0.0
    %7969 = vmatpush1.msra.mxu0 %v2134
    %7970 = vmatprep.subr.mxu0 0.0
    %7971 = vmatpush1.msra.mxu0 %v2133
    %7972 = vmatprep.subr.mxu0 0.0
    %7973 = vmatpush1.msra.mxu0 %v2132
    %7974 = vmatprep.subr.mxu0 0.0
    %7975 = vmatpush1.msra.mxu0 %v2131
    %7976 = vmatprep.subr.mxu0 0.0
    %7977 = vmatpush1.msra.mxu0 %v2130
    %7978 = vmatprep.subr.mxu0 0.0
    %7979 = vmatpush1.msra.mxu0 %v2129
    %7980 = vmatprep.subr.mxu0 0.0
    %7981 = vmatpush2.msra.mxu0 %v2160
    %7982 = vmatprep.subr.mxu0 0.0
    %7983 = vmatpush2.msra.mxu0 %v2159
    %7984 = vmatprep.subr.mxu0 0.0
    %7985 = vmatpush2.msra.mxu0 %v2158
    %7986 = vmatprep.subr.mxu0 0.0
    %7987 = vmatpush2.msra.mxu0 %v2157
    %7988 = vmatprep.subr.mxu0 0.0
    %7989 = vmatpush2.msra.mxu0 %v2156
    %7990 = vmatprep.subr.mxu0 0.0
    %7991 = vmatpush2.msra.mxu0 %v2155
    %7992 = vmatprep.subr.mxu0 0.0
    %7993 = vmatpush2.msra.mxu0 %v2154
    %7994 = vmatprep.subr.mxu0 0.0
    %7995 = vmatpush2.msra.mxu0 %v2153
    %7996 = vmatprep.subr.mxu0 0.0
    %7997 = vmatpush2.msra.mxu0 %v2152
    %7998 = vmatprep.subr.mxu0 0.0
    %7999 = vmatpush2.msra.mxu0 %v2151
    %8000 = vmatprep.subr.mxu0 0.0
    %8001 = vmatpush2.msra.mxu0 %v2150
    %8002 = vmatprep.subr.mxu0 0.0
    %8003 = vmatpush2.msra.mxu0 %v2149
    %8004 = vmatprep.subr.mxu0 0.0
    %8005 = vmatpush2.msra.mxu0 %v2148
    %8006 = vmatprep.subr.mxu0 0.0
    %8007 = vmatpush2.msra.mxu0 %v2147
    %8008 = vmatprep.subr.mxu0 0.0
    %8009 = vmatpush2.msra.mxu0 %v2146
    %8010 = vmatprep.subr.mxu0 0.0
    %8011 = vmatpush2.msra.mxu0 %v2145
    %8012 = vmatprep.mubr.f32.mxu0 %v3477
    %8013 = vmatmul.mubr.f32.gmra.mxu0 %v3476
    %v8014 = vpop.f32.mrf.mxu0
    %v8015 = vadd.f32 %v7945, %v8014
    %v8016 = vpop.f32.mrf.mxu0
    %8017 = vdwg.mxu0
    %8018 = vmatprep.subr.mxu0 0.0
    %8019 = vmatpush1.msra.mxu0 %v2176
    %8020 = vmatprep.subr.mxu0 0.0
    %8021 = vmatpush1.msra.mxu0 %v2175
    %8022 = vmatprep.subr.mxu0 0.0
    %8023 = vmatpush1.msra.mxu0 %v2174
    %8024 = vmatprep.subr.mxu0 0.0
    %8025 = vmatpush1.msra.mxu0 %v2173
    %8026 = vmatprep.subr.mxu0 0.0
    %8027 = vmatpush1.msra.mxu0 %v2172
    %8028 = vmatprep.subr.mxu0 0.0
    %8029 = vmatpush1.msra.mxu0 %v2171
    %8030 = vmatprep.subr.mxu0 0.0
    %8031 = vmatpush1.msra.mxu0 %v2170
    %8032 = vmatprep.subr.mxu0 0.0
    %8033 = vmatpush1.msra.mxu0 %v2169
    %8034 = vmatprep.subr.mxu0 0.0
    %8035 = vmatpush1.msra.mxu0 %v2168
    %8036 = vmatprep.subr.mxu0 0.0
    %8037 = vmatpush1.msra.mxu0 %v2167
    %8038 = vmatprep.subr.mxu0 0.0
    %8039 = vmatpush1.msra.mxu0 %v2166
    %8040 = vmatprep.subr.mxu0 0.0
    %8041 = vmatpush1.msra.mxu0 %v2165
    %8042 = vmatprep.subr.mxu0 0.0
    %8043 = vmatpush1.msra.mxu0 %v2164
    %8044 = vmatprep.subr.mxu0 0.0
    %8045 = vmatpush1.msra.mxu0 %v2163
    %8046 = vmatprep.subr.mxu0 0.0
    %8047 = vmatpush1.msra.mxu0 %v2162
    %8048 = vmatprep.subr.mxu0 0.0
    %8049 = vmatpush1.msra.mxu0 %v2161
    %8050 = vmatprep.subr.mxu0 0.0
    %8051 = vmatpush2.msra.mxu0 %v2192
    %8052 = vmatprep.subr.mxu0 0.0
    %8053 = vmatpush2.msra.mxu0 %v2191
    %8054 = vmatprep.subr.mxu0 0.0
    %8055 = vmatpush2.msra.mxu0 %v2190
    %8056 = vmatprep.subr.mxu0 0.0
    %8057 = vmatpush2.msra.mxu0 %v2189
    %8058 = vmatprep.subr.mxu0 0.0
    %8059 = vmatpush2.msra.mxu0 %v2188
    %8060 = vmatprep.subr.mxu0 0.0
    %8061 = vmatpush2.msra.mxu0 %v2187
    %8062 = vmatprep.subr.mxu0 0.0
    %8063 = vmatpush2.msra.mxu0 %v2186
    %8064 = vmatprep.subr.mxu0 0.0
    %8065 = vmatpush2.msra.mxu0 %v2185
    %8066 = vmatprep.subr.mxu0 0.0
    %8067 = vmatpush2.msra.mxu0 %v2184
    %8068 = vmatprep.subr.mxu0 0.0
    %8069 = vmatpush2.msra.mxu0 %v2183
    %8070 = vmatprep.subr.mxu0 0.0
    %8071 = vmatpush2.msra.mxu0 %v2182
    %8072 = vmatprep.subr.mxu0 0.0
    %8073 = vmatpush2.msra.mxu0 %v2181
    %8074 = vmatprep.subr.mxu0 0.0
    %8075 = vmatpush2.msra.mxu0 %v2180
    %8076 = vmatprep.subr.mxu0 0.0
    %8077 = vmatpush2.msra.mxu0 %v2179
    %8078 = vmatprep.subr.mxu0 0.0
    %8079 = vmatpush2.msra.mxu0 %v2178
    %8080 = vmatprep.subr.mxu0 0.0
    %8081 = vmatpush2.msra.mxu0 %v2177
    %8082 = vmatprep.mubr.f32.mxu0 %v3479
    %8083 = vmatmul.mubr.f32.gmra.mxu0 %v3478
    %v8084 = vpop.f32.mrf.mxu0
    %v8085 = vadd.f32 %v8015, %v8084
    %v8086 = vpop.f32.mrf.mxu0
    %8087 = vdwg.mxu0
    %v8088 = vld [vmem:[%s3] sm:$0xff]
    %v8089 = vld [vmem:[%s3 + $0x8] sm:$0xff]
    %v8090 = vld [vmem:[%s3 + $0x10] sm:$0xff]
    %v8091 = vld [vmem:[%s3 + $0x18] sm:$0xff]
    %v8092 = vld [vmem:[%s3 + $0x20] sm:$0xff]
    %v8093 = vld [vmem:[%s3 + $0x28] sm:$0xff]
    %v8094 = vld [vmem:[%s3 + $0x30] sm:$0xff]
    %v8095 = vld [vmem:[%s3 + $0x38] sm:$0xff]
    %v8096 = vld [vmem:[%s3 + $0x40] sm:$0xff]
    %v8097 = vld [vmem:[%s3 + $0x48] sm:$0xff]
    %v8098 = vld [vmem:[%s3 + $0x50] sm:$0xff]
    %v8099 = vld [vmem:[%s3 + $0x58] sm:$0xff]
    %v8100 = vld [vmem:[%s3 + $0x60] sm:$0xff]
    %v8101 = vld [vmem:[%s3 + $0x68] sm:$0xff]
    %v8102 = vld [vmem:[%s3 + $0x70] sm:$0xff]
    %v8103 = vld [vmem:[%s3 + $0x78] sm:$0xff]
    %8104 = vmatprep.subr.mxu0 0.0
    %8105 = vmatpush1.msra.mxu0 %v8103
    %8106 = vmatprep.subr.mxu0 0.0
    %8107 = vmatpush1.msra.mxu0 %v8102
    %8108 = vmatprep.subr.mxu0 0.0
    %8109 = vmatpush1.msra.mxu0 %v8101
    %8110 = vmatprep.subr.mxu0 0.0
    %8111 = vmatpush1.msra.mxu0 %v8100
    %8112 = vmatprep.subr.mxu0 0.0
    %8113 = vmatpush1.msra.mxu0 %v8099
    %8114 = vmatprep.subr.mxu0 0.0
    %8115 = vmatpush1.msra.mxu0 %v8098
    %8116 = vmatprep.subr.mxu0 0.0
    %8117 = vmatpush1.msra.mxu0 %v8097
    %8118 = vmatprep.subr.mxu0 0.0
    %8119 = vmatpush1.msra.mxu0 %v8096
    %8120 = vmatprep.subr.mxu0 0.0
    %8121 = vmatpush1.msra.mxu0 %v8095
    %8122 = vmatprep.subr.mxu0 0.0
    %8123 = vmatpush1.msra.mxu0 %v8094
    %8124 = vmatprep.subr.mxu0 0.0
    %8125 = vmatpush1.msra.mxu0 %v8093
    %8126 = vmatprep.subr.mxu0 0.0
    %8127 = vmatpush1.msra.mxu0 %v8092
    %8128 = vmatprep.subr.mxu0 0.0
    %8129 = vmatpush1.msra.mxu0 %v8091
    %8130 = vmatprep.subr.mxu0 0.0
    %8131 = vmatpush1.msra.mxu0 %v8090
    %8132 = vmatprep.subr.mxu0 0.0
    %8133 = vmatpush1.msra.mxu0 %v8089
    %8134 = vmatprep.subr.mxu0 0.0
    %8135 = vmatpush1.msra.mxu0 %v8088
    %8136 = vmatprep.subr.mxu0 0.0
    %8137 = vmatpush2.msra.mxu0 0.0
    %8138 = vmatprep.subr.mxu0 0.0
    %8139 = vmatpush2.msra.mxu0 0.0
    %8140 = vmatprep.subr.mxu0 0.0
    %8141 = vmatpush2.msra.mxu0 0.0
    %8142 = vmatprep.subr.mxu0 0.0
    %8143 = vmatpush2.msra.mxu0 0.0
    %8144 = vmatprep.subr.mxu0 0.0
    %8145 = vmatpush2.msra.mxu0 0.0
    %8146 = vmatprep.subr.mxu0 0.0
    %8147 = vmatpush2.msra.mxu0 0.0
    %8148 = vmatprep.subr.mxu0 0.0
    %8149 = vmatpush2.msra.mxu0 0.0
    %8150 = vmatprep.subr.mxu0 0.0
    %8151 = vmatpush2.msra.mxu0 0.0
    %8152 = vmatprep.subr.mxu0 0.0
    %8153 = vmatpush2.msra.mxu0 0.0
    %8154 = vmatprep.subr.mxu0 0.0
    %8155 = vmatpush2.msra.mxu0 0.0
    %8156 = vmatprep.subr.mxu0 0.0
    %8157 = vmatpush2.msra.mxu0 0.0
    %8158 = vmatprep.subr.mxu0 0.0
    %8159 = vmatpush2.msra.mxu0 0.0
    %8160 = vmatprep.subr.mxu0 0.0
    %8161 = vmatpush2.msra.mxu0 0.0
    %8162 = vmatprep.subr.mxu0 0.0
    %8163 = vmatpush2.msra.mxu0 0.0
    %8164 = vmatprep.subr.mxu0 0.0
    %8165 = vmatpush2.msra.mxu0 0.0
    %8166 = vmatprep.subr.mxu0 0.0
    %8167 = vmatpush2.msra.mxu0 0.0
    %8168 = vmatprep.mubr.f32.mxu0 0.0
    %8169 = vmatmul.mubr.f32.gmra.mxu0 %v8085
    %v8170 = vpop.f32.mrf.mxu0
    %v8171 = vadd.f32 0.0, %v8170
    %v8172 = vpop.f32.mrf.mxu0
    %8173 = vdwg.mxu0
    %v8174 = vadd.f32 %v8085, %v8171
    %v8175 = vlaneseq
    %v8176 = vand.u32 %v8175, 127
    %vm8177 = vcmp.ge.s32.totalorder %v8176, 40
    %vm8178 = vcmp.lt.s32.totalorder %v8176, 48
    %vm8179 = vmand %vm8177, %vm8178
    %v8180 = vsel %vm8179, %v8174, -inf
    %8181 = vmax.xlane.f32.xlu0 %v8180
    %v8182 = vpop.xlane.xlu0 %8181
    %v8183 = vsub.f32 %v8180, %v8182
    %v8184 = vmul.f32 %v8183, 1.442695
    %v8185 = vpow.pop %v8184
    %v8186 = vsel %vm8179, %v8185, 0.0
    %8187 = vadd.xlane.f32.xlu0 %v8186
    %v8188 = vpop.xlane.xlu0 %8187
    %v8189 = vrcp.pop %v8188
    %v8190 = vmul.f32 %v8186, %v8189
    %v8191 = vsel %vm8179, %v8190, %v8174
    %8192 = vst [vmem:[#allocation2] sm:$0xff] %v8191
    // Predicated region
    $region18: #{classifier_forward.1} parent=1 // pred_check
      _
    $region19: #{classifier_forward.1} parent=1 // pred_check_branch
      %8194 = sbr.rel (0) target = $region21
    $region20: #{classifier_forward.1} parent=1 // pred_region
      // Predicated region
      $region22: #{classifier_forward.1} parent=20 // pred_check
        _
      $region23: #{classifier_forward.1} parent=20 // pred_check_branch
        %8196 = sbr.rel (0) target = $region25
      $region24: #{classifier_forward.1} parent=20 // pred_region
        // Predicated region
        $region26: #{classifier_forward.1} parent=24 // pred_check
          _
        $region27: #{classifier_forward.1} parent=24 // pred_check_branch
          %8198 = sbr.rel target = $region29
        $region28: #{classifier_forward.1} parent=24 // pred_region
          // Predicated region
          $region41: #{classifier_forward.1} parent=28 // pred_check
            _
          $region42: #{classifier_forward.1} parent=28 // pred_check_branch
            %8214 = sbr.rel (0) target = $region44
          $region43: #{classifier_forward.1} parent=28 // pred_region
            %s8216 = ssub.s32 4, 1
            loop: start=0, step=1, limit=1
            $region45: #{classifier_forward.1} parent=43 // loop_pre_header
              _
            $region46: #{classifier_forward.1} parent=43 // loop_header
              %s8218 = sphi 0, %s8222
              %p8219 = scmp.ge.s32.totalorder %s8218, 1
              %s8223 = sphi [#allocation2], [#allocation2]
              %s8224 = sphi %s4, %s4
            $region47: #{classifier_forward.1} parent=43 // loop_header_branch
              %8221 = sbr.rel (%p8219) target = $region51
            $region48: #{classifier_forward.1} parent=43 // loop_body
              %v8225 = vld [vmem:[%s8223] sm:%s8216]
              %8226 = vst [vmem:[%s8224] sm:%s8216] %v8225
            $region49: #{classifier_forward.1} parent=43 // loop_footer
              %s8222 = sadd.s32 1, %s8218
            $region50: #{classifier_forward.1} parent=43 // loop_footer_branch
              %8217 = sbr.rel target = $region46
            $region51: #{classifier_forward.1} parent=43 // loop_exit
              _
          $region44: #{classifier_forward.1} parent=28 // pred_fallthru
            _
        $region29: #{classifier_forward.1} parent=24 // pred_fallthru
          _
        // Predicated region
        $region30: #{classifier_forward.1} parent=24 // pred_check
          _
        $region31: #{classifier_forward.1} parent=24 // pred_check_branch
          %8200 = sbr.rel (0) target = $region33
        $region32: #{classifier_forward.1} parent=24 // pred_region
          %s8202 = ssub.s32 4, 1
          loop: start=0, step=1, limit=1
          $region34: #{classifier_forward.1} parent=32 // loop_pre_header
            _
          $region35: #{classifier_forward.1} parent=32 // loop_header
            %s8204 = sphi 0, %s8208
            %p8205 = scmp.ge.s32.totalorder %s8204, 1
            %s8209 = sphi [#allocation2], [#allocation2]
            %s8210 = sphi %s4, %s4
          $region36: #{classifier_forward.1} parent=32 // loop_header_branch
            %8207 = sbr.rel (%p8205) target = $region40
          $region37: #{classifier_forward.1} parent=32 // loop_body
            %v8211 = vld [vmem:[%s8209] sm:%s8202]
            %8212 = vst [vmem:[%s8210] sm:%s8202] %v8211
          $region38: #{classifier_forward.1} parent=32 // loop_footer
            %s8208 = sadd.s32 1, %s8204
          $region39: #{classifier_forward.1} parent=32 // loop_footer_branch
            %8203 = sbr.rel target = $region35
          $region40: #{classifier_forward.1} parent=32 // loop_exit
            _
        $region33: #{classifier_forward.1} parent=24 // pred_fallthru
          _
      $region25: #{classifier_forward.1} parent=20 // pred_fallthru
        _
      %8227 = vnop
    $region21: #{classifier_forward.1} parent=1 // pred_fallthru
      _
    // Predicated region
    $region52: #{classifier_forward.1} parent=1 // pred_check
      _
    $region53: #{classifier_forward.1} parent=1 // pred_check_branch
      %8229 = sbr.rel (0) target = $region55
    $region54: #{classifier_forward.1} parent=1 // pred_region
      _
    $region55: #{classifier_forward.1} parent=1 // pred_fallthru
      _

</llo_original>
